<compile_context>
chip_gen: v6e
topology: v6e:2x2x1
jax: 0.10.0
libtpu: 0.0.40
codegen_flags: <defaults>
</compile_context>

<pallas_src>
import jax
import jax.numpy as jnp
from jax.experimental import pallas as pl
from jax.experimental.pallas import tpu as pltpu

BOARD = 15
HW = BOARD * BOARD            # 225 board positions
GRID = 16                     # padded board edge (stride-16 layout)
RSTEP = GRID * GRID           # 256 rows per batch element (y*16 + x)
TR = 128                      # conv row tile (per-tile f32 acc <= 16 vregs)
HALO = 32                     # zero halo rows above/below (tap offsets in [-17, 17])
OFFS = tuple((ky - 1) * GRID + (kx - 1) for ky in range(3) for kx in range(3))


# ----------------------------------------------------------------------------
# Fused kernel: one grid step == one batch element.
# ----------------------------------------------------------------------------
def _fused_kernel(xcol_ref, w1_ref, b1_ref, w2_ref, b2_ref, w3_ref, b3_ref,
                  wh_ref, bh_ref, wp0_ref, wp1_ref, bp_ref, wv1_ref, bv1_ref,
                  wv2_ref, bv2_ref, policy_ref, value_ref,
                  h1_ref, h2_ref, pcv_ref):
    f32 = jnp.float32
    nt = RSTEP // TR

    def in_board(r0):
        # rows are s = y*16 + x; valid board positions have x < 15 and y < 15.
        s = jax.lax.broadcasted_iota(jnp.int32, (TR, 1), 0) + r0
        return (s % GRID < BOARD) & (s < BOARD * GRID)

    # Zero the halo rows so off-board taps read exact (finite) zeros.
    for ref, c in ((h1_ref, 32), (h2_ref, 64)):
        ref[0:HALO, :] = jnp.zeros((HALO, c), jnp.bfloat16)
        ref[HALO + RSTEP:HALO + RSTEP + HALO, :] = jnp.zeros((HALO, c),
                                                             jnp.bfloat16)

    # conv1: host-built im2col (K = 9*4 = 36), one MXU dot per row tile.
    for ti in range(nt):
        r0 = ti * TR
        acc = jnp.dot(xcol_ref[0, r0:r0 + TR, :], w1_ref[...],
                      preferred_element_type=f32)
        h = jnp.where(in_board(r0), jnp.maximum(acc + b1_ref[...], 0.0), 0.0)
        h1_ref[HALO + r0:HALO + r0 + TR, :] = h.astype(jnp.bfloat16)

    # conv2: taps folded into K (9*32 = 288), one dot per row tile.
    for ti in range(nt):
        r0 = ti * TR
        col = jnp.concatenate(
            [h1_ref[HALO + r0 + o:HALO + r0 + o + TR, :] for o in OFFS],
            axis=1)                                              # (TR, 288)
        acc = jnp.dot(col, w2_ref[...], preferred_element_type=f32)
        h = jnp.where(in_board(r0), jnp.maximum(acc + b2_ref[...], 0.0), 0.0)
        h2_ref[HALO + r0:HALO + r0 + TR, :] = h.astype(jnp.bfloat16)

    # conv3 (K = 9*64 = 576) fused with the 1x1 policy/value convs; h3 is never
    # stored. Pad rows of pcv are harmless: the head FC weights have zero
    # columns at pad positions.
    for ti in range(nt):
        r0 = ti * TR
        col = jnp.concatenate(
            [h2_ref[HALO + r0 + o:HALO + r0 + o + TR, :] for o in OFFS],
            axis=1)                                              # (TR, 576)
        acc = jnp.dot(col, w3_ref[...], preferred_element_type=f32)
        h3 = jnp.maximum(acc + b3_ref[...], 0.0).astype(jnp.bfloat16)  # (TR,128)
        pcv = jnp.maximum(
            jnp.dot(h3, wh_ref[...], preferred_element_type=f32) + bh_ref[...],
            0.0)                                                 # (TR, 4)
        pcv_ref[r0:r0 + TR, :] = pcv.astype(jnp.bfloat16)

    # Heads: contract over the aligned 256-row block (K padded 225 -> 256 with
    # zero weight columns); bf16 operands, f32 accumulation.
    blk = pcv_ref[...]                       # (256, 4) bf16: [p0, p1, v, 0]
    p0 = blk[:, 0:1]
    p1 = blk[:, 1:2]
    vv = blk[:, 2:3]

    logits = (jnp.dot(wp0_ref[...], p0, preferred_element_type=f32)
              + jnp.dot(wp1_ref[...], p1, preferred_element_type=f32)
              + bp_ref[...])                                     # (225, 1)
    m = jnp.max(logits, axis=0, keepdims=True)
    e = jnp.exp(logits - m)
    probs = e / jnp.sum(e, axis=0, keepdims=True)                # exact division
    policy_ref[...] = probs.reshape(1, HW, 1)

    hv = jnp.maximum(
        jnp.dot(wv1_ref[...], vv, preferred_element_type=f32) + bv1_ref[...],
        0.0)                                                     # (64, 1)
    val = jnp.tanh(jnp.sum(wv2_ref[...] * hv, axis=0, keepdims=True)
                   + bv2_ref[...])                               # (1, 1)
    value_ref[...] = val.reshape(1, 1, 1)


# ----------------------------------------------------------------------------
# Wrapper
# ----------------------------------------------------------------------------
def alphazero_forward(x_nchw, kparams):
    batch = x_nchw.shape[0]

    # Stride-16 im2col of the tiny network input: column index t*4 + c with
    # tap t = ky*3 + kx (matches the w1 layout).
    x_nhwc = jnp.transpose(x_nchw, (0, 2, 3, 1))                  # (B,15,15,4)
    xp = jnp.pad(x_nhwc, ((0, 0), (1, 2), (1, 2), (0, 0)))        # (B,18,18,4)
    taps = [xp[:, ky:ky + GRID, kx:kx + GRID, :]
            for ky in range(3) for kx in range(3)]
    x_col = jnp.concatenate(taps, axis=-1)                        # (B,16,16,36)
    x_col = x_col.reshape(batch, RSTEP, 9 * 4).astype(jnp.bfloat16)

    weights = (kparams["w1"], kparams["b1"], kparams["w2"], kparams["b2"],
               kparams["w3"], kparams["b3"], kparams["wh"], kparams["bh"],
               kparams["wp0"], kparams["wp1"], kparams["bp"],
               kparams["wv1"], kparams["bv1"], kparams["wv2"], kparams["bv2"])

    def const_spec(a):
        nd = a.ndim
        return pl.BlockSpec(a.shape, lambda i, _n=nd: (0,) * _n)

    in_specs = ([pl.BlockSpec((1, RSTEP, 9 * 4), lambda i: (i, 0, 0))]
                + [const_spec(w) for w in weights])
    out_specs = (pl.BlockSpec((1, HW, 1), lambda i: (i, 0, 0)),
                 pl.BlockSpec((1, 1, 1), lambda i: (i, 0, 0)))

    flops = int(batch * (2 * RSTEP * (36 * 32 + 288 * 64 + 576 * 128 + 128 * 4)
                         + 2 * RSTEP * (2 * HW + 64) + 2 * 64))
    bytes_accessed = int(x_col.size * 2
                         + sum(w.size * w.dtype.itemsize for w in weights)
                         + batch * (HW + 1) * 4)

    policy3, value3 = pl.pallas_call(
        _fused_kernel,
        out_shape=(jax.ShapeDtypeStruct((batch, HW, 1), jnp.float32),
                   jax.ShapeDtypeStruct((batch, 1, 1), jnp.float32)),
        grid=(batch,),
        in_specs=in_specs,
        out_specs=out_specs,
        scratch_shapes=[pltpu.VMEM((RSTEP + 2 * HALO, 32), jnp.bfloat16),
                        pltpu.VMEM((RSTEP + 2 * HALO, 64), jnp.bfloat16),
                        pltpu.VMEM((RSTEP, 4), jnp.bfloat16)],
        compiler_params=pltpu.CompilerParams(
            dimension_semantics=("parallel",)),
        cost_estimate=pl.CostEstimate(flops=flops,
                                      transcendentals=int(batch * (HW + 4)),
                                      bytes_accessed=bytes_accessed),
    )(x_col, *weights)

    return policy3[:, :, 0], value3[:, :, 0]


# ----------------------------------------------------------------------------
# Parameters: PyTorch-native shapes + conversion to the kernel layout.
# ----------------------------------------------------------------------------
def init_torch_params(key):
    ks = jax.random.split(key, 16)

    def conv_w(k, cout, cin, ksz):
        fan_in = cin * ksz * ksz
        return jax.random.normal(k, (cout, cin, ksz, ksz),
                                 jnp.float32) / jnp.sqrt(fan_in)

    def lin_w(k, cout, cin):
        return jax.random.normal(k, (cout, cin), jnp.float32) / jnp.sqrt(cin)

    def bias(k, n):
        return 0.01 * jax.random.normal(k, (n,), jnp.float32)

    return {
        "w1": conv_w(ks[0], 32, 4, 3), "b1": bias(ks[1], 32),
        "w2": conv_w(ks[2], 64, 32, 3), "b2": bias(ks[3], 64),
        "w3": conv_w(ks[4], 128, 64, 3), "b3": bias(ks[5], 128),
        "wpc": conv_w(ks[6], 2, 128, 1), "bpc": bias(ks[7], 2),
        "wpf": lin_w(ks[8], HW, 2 * HW), "bpf": bias(ks[9], HW),
        "wvc": conv_w(ks[10], 1, 128, 1), "bvc": bias(ks[11], 1),
        "wv1": lin_w(ks[12], 64, HW), "bv1": bias(ks[13], 64),
        "wv2": lin_w(ks[14], 1, 64), "bv2": bias(ks[15], 1),
    }


def to_kernel_params(p):
    bf = jnp.bfloat16

    def conv_taps(w):   # (Cout,Cin,3,3) -> (9*Cin, Cout), row = (ky*3+kx)*Cin + c
        co, ci, kh, kw = w.shape
        return jnp.transpose(w, (2, 3, 1, 0)).reshape(kh * kw * ci, co)

    pos = jnp.arange(HW)
    pos_to_s = (pos // BOARD) * GRID + (pos % BOARD)   # board pos -> stride-16 row

    def remap_k(w):   # (out, 225) -> (out, 256): zero columns at pad positions
        out = jnp.zeros((w.shape[0], RSTEP), w.dtype)
        return out.at[:, pos_to_s].set(w)

    wh = jnp.concatenate([p["wpc"][:, :, 0, 0].T,                 # (128, 2)
                          p["wvc"][:, :, 0, 0].T,                 # (128, 1)
                          jnp.zeros((128, 1), jnp.float32)], axis=1)
    bh = jnp.concatenate([p["bpc"], p["bvc"], jnp.zeros((1,), jnp.float32)])

    return {
        "w1": conv_taps(p["w1"]).astype(bf), "b1": p["b1"].reshape(1, 32),
        "w2": conv_taps(p["w2"]).astype(bf), "b2": p["b2"].reshape(1, 64),
        "w3": conv_taps(p["w3"]).astype(bf), "b3": p["b3"].reshape(1, 128),
        "wh": wh.astype(bf), "bh": bh.reshape(1, 4),
        "wp0": remap_k(p["wpf"][:, :HW]).astype(bf),              # (225, 256)
        "wp1": remap_k(p["wpf"][:, HW:]).astype(bf),              # (225, 256)
        "bp": p["bpf"].reshape(HW, 1),
        "wv1": remap_k(p["wv1"]).astype(bf),                      # (64, 256)
        "bv1": p["bv1"].reshape(64, 1),
        "wv2": p["wv2"].reshape(64, 1),                           # f32 column
        "bv2": p["bv2"].reshape(1, 1),
    }


# ----------------------------------------------------------------------------
# Pure-JAX f32 reference (mirrors the PyTorch forward exactly).
# ----------------------------------------------------------------------------
def reference_forward(x, p):
    dn = ("NCHW", "OIHW", "NCHW")

    def conv(h, w, b, pad):
        y = jax.lax.conv_general_dilated(h, w, (1, 1),
                                         [(pad, pad), (pad, pad)],
                                         dimension_numbers=dn)
        return y + b.reshape(1, -1, 1, 1)

    h = jax.nn.relu(conv(x, p["w1"], p["b1"], 1))
    h = jax.nn.relu(conv(h, p["w2"], p["b2"], 1))
    h = jax.nn.relu(conv(h, p["w3"], p["b3"], 1))
    pc = jax.nn.relu(conv(h, p["wpc"], p["bpc"], 0)).reshape(x.shape[0], -1)
    policy = jax.nn.softmax(pc @ p["wpf"].T + p["bpf"], axis=1)
    vc = jax.nn.relu(conv(h, p["wvc"], p["bvc"], 0)).reshape(x.shape[0], -1)
    hv = jax.nn.relu(vc @ p["wv1"].T + p["bv1"])
    value = jnp.tanh(hv @ p["wv2"].T + p["bv2"])
    return policy, value


if __name__ == "__main__":
    key = jax.random.PRNGKey(0)
    pkey, xkey = jax.random.split(key)
    torch_params = init_torch_params(pkey)
    kparams = to_kernel_params(torch_params)

    # Input shape fixed by the module: (B, 4, 15, 15); small batch of 2.
    x = jax.random.normal(xkey, (2, 4, BOARD, BOARD), jnp.float32)

    fwd = jax.jit(alphazero_forward)
    policy, value = fwd(x, kparams)
    jax.block_until_ready((policy, value))

    assert policy.shape == (2, HW), policy.shape
    assert value.shape == (2, 1), value.shape
    # softmax rows sum to 1 (exact f32 division in-kernel), tanh bound on value
    assert float(jnp.max(jnp.abs(jnp.sum(policy, axis=1) - 1.0))) < 1e-4
    assert float(jnp.max(jnp.abs(value))) <= 1.0 + 1e-6

    # compare against the f32 reference (kernel uses bf16 matmul operands with
    # f32 accumulation -> loose tolerances)
    pref, vref = reference_forward(x, torch_params)
    assert float(jnp.max(jnp.abs(policy - pref))) < 5e-3
    assert float(jnp.max(jnp.abs(value - vref))) < 5e-2

    print("KERNEL_OK")
</pallas_src>

<mosaic_0001>
module attributes {stable_mosaic.version = 11 : i64} {
  func.func @_fused_kernel(%arg0: i32, %arg1: memref<1x256x36xbf16, #tpu.memory_space<vmem>>, %arg2: memref<36x32xbf16, #tpu.memory_space<vmem>>, %arg3: memref<1x32xf32, #tpu.memory_space<vmem>>, %arg4: memref<288x64xbf16, #tpu.memory_space<vmem>>, %arg5: memref<1x64xf32, #tpu.memory_space<vmem>>, %arg6: memref<576x128xbf16, #tpu.memory_space<vmem>>, %arg7: memref<1x128xf32, #tpu.memory_space<vmem>>, %arg8: memref<128x4xbf16, #tpu.memory_space<vmem>>, %arg9: memref<1x4xf32, #tpu.memory_space<vmem>>, %arg10: memref<225x256xbf16, #tpu.memory_space<vmem>>, %arg11: memref<225x256xbf16, #tpu.memory_space<vmem>>, %arg12: memref<225x1xf32, #tpu.memory_space<vmem>>, %arg13: memref<64x256xbf16, #tpu.memory_space<vmem>>, %arg14: memref<64x1xf32, #tpu.memory_space<vmem>>, %arg15: memref<64x1xf32, #tpu.memory_space<vmem>>, %arg16: memref<1x1xf32, #tpu.memory_space<vmem>>, %arg17: memref<1x225x1xf32, #tpu.memory_space<vmem>>, %arg18: memref<1x1x1xf32, #tpu.memory_space<vmem>>, %arg19: memref<320x32xbf16, #tpu.memory_space<vmem>>, %arg20: memref<320x64xbf16, #tpu.memory_space<vmem>>, %arg21: memref<256x4xbf16, #tpu.memory_space<vmem>>) attributes {dimension_semantics = [#tpu.dimension_semantics<parallel>], iteration_bounds = array<i64: 2>, scalar_prefetch = 0 : i64, scratch_operands = 3 : i64, tpu.core_type = #tpu.core_type<tc>, window_params = [{transform_indices = @transform_0, window_bounds = array<i64: 1, 256, 36>}, {pipeline_mode = #tpu.pipeline_mode<synchronous>, transform_indices = @transform_1, window_bounds = array<i64: 36, 32>}, {pipeline_mode = #tpu.pipeline_mode<synchronous>, transform_indices = @transform_2, window_bounds = array<i64: 1, 32>}, {pipeline_mode = #tpu.pipeline_mode<synchronous>, transform_indices = @transform_3, window_bounds = array<i64: 288, 64>}, {pipeline_mode = #tpu.pipeline_mode<synchronous>, transform_indices = @transform_4, window_bounds = array<i64: 1, 64>}, {pipeline_mode = #tpu.pipeline_mode<synchronous>, transform_indices = @transform_5, window_bounds = array<i64: 576, 128>}, {pipeline_mode = #tpu.pipeline_mode<synchronous>, transform_indices = @transform_6, window_bounds = array<i64: 1, 128>}, {pipeline_mode = #tpu.pipeline_mode<synchronous>, transform_indices = @transform_7, window_bounds = array<i64: 128, 4>}, {pipeline_mode = #tpu.pipeline_mode<synchronous>, transform_indices = @transform_8, window_bounds = array<i64: 1, 4>}, {pipeline_mode = #tpu.pipeline_mode<synchronous>, transform_indices = @transform_9, window_bounds = array<i64: 225, 256>}, {pipeline_mode = #tpu.pipeline_mode<synchronous>, transform_indices = @transform_10, window_bounds = array<i64: 225, 256>}, {pipeline_mode = #tpu.pipeline_mode<synchronous>, transform_indices = @transform_11, window_bounds = array<i64: 225, 1>}, {pipeline_mode = #tpu.pipeline_mode<synchronous>, transform_indices = @transform_12, window_bounds = array<i64: 64, 256>}, {pipeline_mode = #tpu.pipeline_mode<synchronous>, transform_indices = @transform_13, window_bounds = array<i64: 64, 1>}, {pipeline_mode = #tpu.pipeline_mode<synchronous>, transform_indices = @transform_14, window_bounds = array<i64: 64, 1>}, {pipeline_mode = #tpu.pipeline_mode<synchronous>, transform_indices = @transform_15, window_bounds = array<i64: 1, 1>}, {transform_indices = @transform_16, window_bounds = array<i64: 1, 225, 1>}, {transform_indices = @transform_17, window_bounds = array<i64: 1, 1, 1>}]} {
    %cst = arith.constant 0.000000e+00 : bf16
    %0 = vector.broadcast %cst : bf16 to vector<32x32xbf16>
    %c0 = arith.constant 0 : index
    %c0_0 = arith.constant 0 : index
    %1 = vector.load %arg19[%c0, %c0_0] : memref<320x32xbf16, #tpu.memory_space<vmem>>, vector<32x32xbf16>
    tpu.vector_store %arg19[%c0, %c0_0], %0 {strides = array<i32>} : memref<320x32xbf16, #tpu.memory_space<vmem>>, vector<32x32xbf16>,
    %cst_1 = arith.constant 0.000000e+00 : bf16
    %2 = vector.broadcast %cst_1 : bf16 to vector<32x32xbf16>
    %c288 = arith.constant 288 : index
    %c0_2 = arith.constant 0 : index
    %3 = vector.load %arg19[%c288, %c0_2] : memref<320x32xbf16, #tpu.memory_space<vmem>>, vector<32x32xbf16>
    tpu.vector_store %arg19[%c288, %c0_2], %2 {strides = array<i32>} : memref<320x32xbf16, #tpu.memory_space<vmem>>, vector<32x32xbf16>,
    %cst_3 = arith.constant 0.000000e+00 : bf16
    %4 = vector.broadcast %cst_3 : bf16 to vector<32x64xbf16>
    %c0_4 = arith.constant 0 : index
    %c0_5 = arith.constant 0 : index
    %5 = vector.load %arg20[%c0_4, %c0_5] : memref<320x64xbf16, #tpu.memory_space<vmem>>, vector<32x64xbf16>
    tpu.vector_store %arg20[%c0_4, %c0_5], %4 {strides = array<i32>} : memref<320x64xbf16, #tpu.memory_space<vmem>>, vector<32x64xbf16>,
    %cst_6 = arith.constant 0.000000e+00 : bf16
    %6 = vector.broadcast %cst_6 : bf16 to vector<32x64xbf16>
    %c288_7 = arith.constant 288 : index
    %c0_8 = arith.constant 0 : index
    %7 = vector.load %arg20[%c288_7, %c0_8] : memref<320x64xbf16, #tpu.memory_space<vmem>>, vector<32x64xbf16>
    tpu.vector_store %arg20[%c288_7, %c0_8], %6 {strides = array<i32>} : memref<320x64xbf16, #tpu.memory_space<vmem>>, vector<32x64xbf16>,
    %c0_9 = arith.constant 0 : index
    %c0_10 = arith.constant 0 : index
    %c0_11 = arith.constant 0 : index
    %8 = vector.load %arg1[%c0_9, %c0_10, %c0_11] : memref<1x256x36xbf16, #tpu.memory_space<vmem>>, vector<1x128x36xbf16>
    %9 = vector.shape_cast %8 : vector<1x128x36xbf16> to vector<128x36xbf16>
    %c0_12 = arith.constant 0 : index
    %c0_13 = arith.constant 0 : index
    %10 = vector.load %arg2[%c0_12, %c0_13] : memref<36x32xbf16, #tpu.memory_space<vmem>>, vector<36x32xbf16>
    %cst_14 = arith.constant dense<0.000000e+00> : vector<128x32xf32>
    %11 = tpu.matmul %9, %10, %cst_14 {dimension_numbers = #tpu.dot_dimension_numbers<[1], [0], [0], [1], [0, 0, 1, 1], [], []>} : vector<128x36xbf16>, vector<36x32xbf16>, vector<128x32xf32> -> vector<128x32xf32>
    %12 = tpu.iota {dimensions = array<i32: 0>} : vector<128x1xi32>
    %c0_i32 = arith.constant 0 : i32
    %13 = vector.broadcast %c0_i32 : i32 to vector<128x1xi32>
    %14 = arith.addi %12, %13 : vector<128x1xi32>
    %c16_i32 = arith.constant 16 : i32
    %c0_i32_15 = arith.constant 0 : i32
    %15 = arith.cmpi eq, %c16_i32, %c0_i32_15 : i32
    %c1_i32 = arith.constant 1 : i32
    %16 = arith.select %15, %c1_i32, %c16_i32 : i32
    %17 = vector.broadcast %16 : i32 to vector<128x1xi32>
    %18 = arith.remsi %14, %17 : vector<128x1xi32>
    %c0_i32_16 = arith.constant 0 : i32
    %19 = vector.broadcast %c0_i32_16 : i32 to vector<128x1xi32>
    %20 = arith.cmpi ne, %18, %19 : vector<128x1xi32>
    %c0_i32_17 = arith.constant 0 : i32
    %21 = vector.broadcast %c0_i32_17 : i32 to vector<128x1xi32>
    %22 = arith.cmpi slt, %18, %21 : vector<128x1xi32>
    %c0_i32_18 = arith.constant 0 : i32
    %23 = arith.cmpi slt, %16, %c0_i32_18 : i32
    %24 = vector.broadcast %23 : i1 to vector<128x1xi1>
    %25 = vector.broadcast %24 : vector<128x1xi1> to vector<128x1xi1>
    %26 = arith.xori %22, %25 : vector<128x1xi1>
    %27 = arith.andi %26, %20 : vector<128x1xi1>
    %28 = vector.broadcast %16 : i32 to vector<128x1xi32>
    %29 = arith.addi %18, %28 : vector<128x1xi32>
    %30 = arith.select %27, %29, %18 : vector<128x1xi1>, vector<128x1xi32>
    %c15_i32 = arith.constant 15 : i32
    %31 = vector.broadcast %c15_i32 : i32 to vector<128x1xi32>
    %32 = arith.cmpi slt, %30, %31 : vector<128x1xi32>
    %c240_i32 = arith.constant 240 : i32
    %33 = vector.broadcast %c240_i32 : i32 to vector<128x1xi32>
    %34 = arith.cmpi slt, %14, %33 : vector<128x1xi32>
    %35 = arith.andi %32, %34 : vector<128x1xi1>
    %c0_19 = arith.constant 0 : index
    %c0_20 = arith.constant 0 : index
    %36 = vector.load %arg3[%c0_19, %c0_20] : memref<1x32xf32, #tpu.memory_space<vmem>>, vector<1x32xf32>
    %37 = vector.broadcast %36 : vector<1x32xf32> to vector<128x32xf32>
    %38 = arith.addf %11, %37 : vector<128x32xf32>
    %cst_21 = arith.constant 0.000000e+00 : f32
    %39 = vector.broadcast %cst_21 : f32 to vector<128x32xf32>
    %40 = arith.maximumf %38, %39 : vector<128x32xf32>
    %cst_22 = arith.constant 0.000000e+00 : f32
    %41 = vector.shape_cast %35 : vector<128x1xi1> to vector<128x1xi1>
    %42 = vector.broadcast %41 : vector<128x1xi1> to vector<128x32xi1>
    %43 = vector.broadcast %cst_22 : f32 to vector<128x32xf32>
    %44 = arith.select %42, %40, %43 : vector<128x32xi1>, vector<128x32xf32>
    %45 = arith.truncf %44 : vector<128x32xf32> to vector<128x32xbf16>
    %c32 = arith.constant 32 : index
    %c0_23 = arith.constant 0 : index
    %46 = vector.load %arg19[%c32, %c0_23] : memref<320x32xbf16, #tpu.memory_space<vmem>>, vector<128x32xbf16>
    tpu.vector_store %arg19[%c32, %c0_23], %45 {strides = array<i32>} : memref<320x32xbf16, #tpu.memory_space<vmem>>, vector<128x32xbf16>,
    %c0_24 = arith.constant 0 : index
    %c128 = arith.constant 128 : index
    %c0_25 = arith.constant 0 : index
    %47 = vector.load %arg1[%c0_24, %c128, %c0_25] : memref<1x256x36xbf16, #tpu.memory_space<vmem>>, vector<1x128x36xbf16>
    %48 = vector.shape_cast %47 : vector<1x128x36xbf16> to vector<128x36xbf16>
    %c0_26 = arith.constant 0 : index
    %c0_27 = arith.constant 0 : index
    %49 = vector.load %arg2[%c0_26, %c0_27] : memref<36x32xbf16, #tpu.memory_space<vmem>>, vector<36x32xbf16>
    %cst_28 = arith.constant dense<0.000000e+00> : vector<128x32xf32>
    %50 = tpu.matmul %48, %49, %cst_28 {dimension_numbers = #tpu.dot_dimension_numbers<[1], [0], [0], [1], [0, 0, 1, 1], [], []>} : vector<128x36xbf16>, vector<36x32xbf16>, vector<128x32xf32> -> vector<128x32xf32>
    %51 = tpu.iota {dimensions = array<i32: 0>} : vector<128x1xi32>
    %c128_i32 = arith.constant 128 : i32
    %52 = vector.broadcast %c128_i32 : i32 to vector<128x1xi32>
    %53 = arith.addi %51, %52 : vector<128x1xi32>
    %c16_i32_29 = arith.constant 16 : i32
    %c0_i32_30 = arith.constant 0 : i32
    %54 = arith.cmpi eq, %c16_i32_29, %c0_i32_30 : i32
    %c1_i32_31 = arith.constant 1 : i32
    %55 = arith.select %54, %c1_i32_31, %c16_i32_29 : i32
    %56 = vector.broadcast %55 : i32 to vector<128x1xi32>
    %57 = arith.remsi %53, %56 : vector<128x1xi32>
    %c0_i32_32 = arith.constant 0 : i32
    %58 = vector.broadcast %c0_i32_32 : i32 to vector<128x1xi32>
    %59 = arith.cmpi ne, %57, %58 : vector<128x1xi32>
    %c0_i32_33 = arith.constant 0 : i32
    %60 = vector.broadcast %c0_i32_33 : i32 to vector<128x1xi32>
    %61 = arith.cmpi slt, %57, %60 : vector<128x1xi32>
    %c0_i32_34 = arith.constant 0 : i32
    %62 = arith.cmpi slt, %55, %c0_i32_34 : i32
    %63 = vector.broadcast %62 : i1 to vector<128x1xi1>
    %64 = vector.broadcast %63 : vector<128x1xi1> to vector<128x1xi1>
    %65 = arith.xori %61, %64 : vector<128x1xi1>
    %66 = arith.andi %65, %59 : vector<128x1xi1>
    %67 = vector.broadcast %55 : i32 to vector<128x1xi32>
    %68 = arith.addi %57, %67 : vector<128x1xi32>
    %69 = arith.select %66, %68, %57 : vector<128x1xi1>, vector<128x1xi32>
    %c15_i32_35 = arith.constant 15 : i32
    %70 = vector.broadcast %c15_i32_35 : i32 to vector<128x1xi32>
    %71 = arith.cmpi slt, %69, %70 : vector<128x1xi32>
    %c240_i32_36 = arith.constant 240 : i32
    %72 = vector.broadcast %c240_i32_36 : i32 to vector<128x1xi32>
    %73 = arith.cmpi slt, %53, %72 : vector<128x1xi32>
    %74 = arith.andi %71, %73 : vector<128x1xi1>
    %c0_37 = arith.constant 0 : index
    %c0_38 = arith.constant 0 : index
    %75 = vector.load %arg3[%c0_37, %c0_38] : memref<1x32xf32, #tpu.memory_space<vmem>>, vector<1x32xf32>
    %76 = vector.broadcast %75 : vector<1x32xf32> to vector<128x32xf32>
    %77 = arith.addf %50, %76 : vector<128x32xf32>
    %cst_39 = arith.constant 0.000000e+00 : f32
    %78 = vector.broadcast %cst_39 : f32 to vector<128x32xf32>
    %79 = arith.maximumf %77, %78 : vector<128x32xf32>
    %cst_40 = arith.constant 0.000000e+00 : f32
    %80 = vector.shape_cast %74 : vector<128x1xi1> to vector<128x1xi1>
    %81 = vector.broadcast %80 : vector<128x1xi1> to vector<128x32xi1>
    %82 = vector.broadcast %cst_40 : f32 to vector<128x32xf32>
    %83 = arith.select %81, %79, %82 : vector<128x32xi1>, vector<128x32xf32>
    %84 = arith.truncf %83 : vector<128x32xf32> to vector<128x32xbf16>
    %c160 = arith.constant 160 : index
    %c0_41 = arith.constant 0 : index
    %85 = vector.load %arg19[%c160, %c0_41] : memref<320x32xbf16, #tpu.memory_space<vmem>>, vector<128x32xbf16>
    tpu.vector_store %arg19[%c160, %c0_41], %84 {strides = array<i32>} : memref<320x32xbf16, #tpu.memory_space<vmem>>, vector<128x32xbf16>,
    %c15 = arith.constant 15 : index
    %c0_42 = arith.constant 0 : index
    %86 = vector.load %arg19[%c15, %c0_42] : memref<320x32xbf16, #tpu.memory_space<vmem>>, vector<128x32xbf16>
    %c16 = arith.constant 16 : index
    %c0_43 = arith.constant 0 : index
    %87 = vector.load %arg19[%c16, %c0_43] : memref<320x32xbf16, #tpu.memory_space<vmem>>, vector<128x32xbf16>
    %c17 = arith.constant 17 : index
    %c0_44 = arith.constant 0 : index
    %88 = vector.load %arg19[%c17, %c0_44] : memref<320x32xbf16, #tpu.memory_space<vmem>>, vector<128x32xbf16>
    %c31 = arith.constant 31 : index
    %c0_45 = arith.constant 0 : index
    %89 = vector.load %arg19[%c31, %c0_45] : memref<320x32xbf16, #tpu.memory_space<vmem>>, vector<128x32xbf16>
    %c32_46 = arith.constant 32 : index
    %c0_47 = arith.constant 0 : index
    %90 = vector.load %arg19[%c32_46, %c0_47] : memref<320x32xbf16, #tpu.memory_space<vmem>>, vector<128x32xbf16>
    %c33 = arith.constant 33 : index
    %c0_48 = arith.constant 0 : index
    %91 = vector.load %arg19[%c33, %c0_48] : memref<320x32xbf16, #tpu.memory_space<vmem>>, vector<128x32xbf16>
    %c47 = arith.constant 47 : index
    %c0_49 = arith.constant 0 : index
    %92 = vector.load %arg19[%c47, %c0_49] : memref<320x32xbf16, #tpu.memory_space<vmem>>, vector<128x32xbf16>
    %c48 = arith.constant 48 : index
    %c0_50 = arith.constant 0 : index
    %93 = vector.load %arg19[%c48, %c0_50] : memref<320x32xbf16, #tpu.memory_space<vmem>>, vector<128x32xbf16>
    %c49 = arith.constant 49 : index
    %c0_51 = arith.constant 0 : index
    %94 = vector.load %arg19[%c49, %c0_51] : memref<320x32xbf16, #tpu.memory_space<vmem>>, vector<128x32xbf16>
    %95 = tpu.concatenate %86, %87, %88, %89, %90, %91, %92, %93, %94 in 1 : vector<128x32xbf16>, vector<128x32xbf16>, vector<128x32xbf16>, vector<128x32xbf16>, vector<128x32xbf16>, vector<128x32xbf16>, vector<128x32xbf16>, vector<128x32xbf16>, vector<128x32xbf16> -> vector<128x288xbf16>
    %c0_52 = arith.constant 0 : index
    %c0_53 = arith.constant 0 : index
    %96 = vector.load %arg4[%c0_52, %c0_53] : memref<288x64xbf16, #tpu.memory_space<vmem>>, vector<288x64xbf16>
    %cst_54 = arith.constant dense<0.000000e+00> : vector<128x64xf32>
    %97 = tpu.matmul %95, %96, %cst_54 {dimension_numbers = #tpu.dot_dimension_numbers<[1], [0], [0], [1], [0, 0, 1, 1], [], []>} : vector<128x288xbf16>, vector<288x64xbf16>, vector<128x64xf32> -> vector<128x64xf32>
    %98 = tpu.iota {dimensions = array<i32: 0>} : vector<128x1xi32>
    %c0_i32_55 = arith.constant 0 : i32
    %99 = vector.broadcast %c0_i32_55 : i32 to vector<128x1xi32>
    %100 = arith.addi %98, %99 : vector<128x1xi32>
    %c16_i32_56 = arith.constant 16 : i32
    %c0_i32_57 = arith.constant 0 : i32
    %101 = arith.cmpi eq, %c16_i32_56, %c0_i32_57 : i32
    %c1_i32_58 = arith.constant 1 : i32
    %102 = arith.select %101, %c1_i32_58, %c16_i32_56 : i32
    %103 = vector.broadcast %102 : i32 to vector<128x1xi32>
    %104 = arith.remsi %100, %103 : vector<128x1xi32>
    %c0_i32_59 = arith.constant 0 : i32
    %105 = vector.broadcast %c0_i32_59 : i32 to vector<128x1xi32>
    %106 = arith.cmpi ne, %104, %105 : vector<128x1xi32>
    %c0_i32_60 = arith.constant 0 : i32
    %107 = vector.broadcast %c0_i32_60 : i32 to vector<128x1xi32>
    %108 = arith.cmpi slt, %104, %107 : vector<128x1xi32>
    %c0_i32_61 = arith.constant 0 : i32
    %109 = arith.cmpi slt, %102, %c0_i32_61 : i32
    %110 = vector.broadcast %109 : i1 to vector<128x1xi1>
    %111 = vector.broadcast %110 : vector<128x1xi1> to vector<128x1xi1>
    %112 = arith.xori %108, %111 : vector<128x1xi1>
    %113 = arith.andi %112, %106 : vector<128x1xi1>
    %114 = vector.broadcast %102 : i32 to vector<128x1xi32>
    %115 = arith.addi %104, %114 : vector<128x1xi32>
    %116 = arith.select %113, %115, %104 : vector<128x1xi1>, vector<128x1xi32>
    %c15_i32_62 = arith.constant 15 : i32
    %117 = vector.broadcast %c15_i32_62 : i32 to vector<128x1xi32>
    %118 = arith.cmpi slt, %116, %117 : vector<128x1xi32>
    %c240_i32_63 = arith.constant 240 : i32
    %119 = vector.broadcast %c240_i32_63 : i32 to vector<128x1xi32>
    %120 = arith.cmpi slt, %100, %119 : vector<128x1xi32>
    %121 = arith.andi %118, %120 : vector<128x1xi1>
    %c0_64 = arith.constant 0 : index
    %c0_65 = arith.constant 0 : index
    %122 = vector.load %arg5[%c0_64, %c0_65] : memref<1x64xf32, #tpu.memory_space<vmem>>, vector<1x64xf32>
    %123 = vector.broadcast %122 : vector<1x64xf32> to vector<128x64xf32>
    %124 = arith.addf %97, %123 : vector<128x64xf32>
    %cst_66 = arith.constant 0.000000e+00 : f32
    %125 = vector.broadcast %cst_66 : f32 to vector<128x64xf32>
    %126 = arith.maximumf %124, %125 : vector<128x64xf32>
    %cst_67 = arith.constant 0.000000e+00 : f32
    %127 = vector.shape_cast %121 : vector<128x1xi1> to vector<128x1xi1>
    %128 = vector.broadcast %127 : vector<128x1xi1> to vector<128x64xi1>
    %129 = vector.broadcast %cst_67 : f32 to vector<128x64xf32>
    %130 = arith.select %128, %126, %129 : vector<128x64xi1>, vector<128x64xf32>
    %131 = arith.truncf %130 : vector<128x64xf32> to vector<128x64xbf16>
    %c32_68 = arith.constant 32 : index
    %c0_69 = arith.constant 0 : index
    %132 = vector.load %arg20[%c32_68, %c0_69] : memref<320x64xbf16, #tpu.memory_space<vmem>>, vector<128x64xbf16>
    tpu.vector_store %arg20[%c32_68, %c0_69], %131 {strides = array<i32>} : memref<320x64xbf16, #tpu.memory_space<vmem>>, vector<128x64xbf16>,
    %c143 = arith.constant 143 : index
    %c0_70 = arith.constant 0 : index
    %133 = vector.load %arg19[%c143, %c0_70] : memref<320x32xbf16, #tpu.memory_space<vmem>>, vector<128x32xbf16>
    %c144 = arith.constant 144 : index
    %c0_71 = arith.constant 0 : index
    %134 = vector.load %arg19[%c144, %c0_71] : memref<320x32xbf16, #tpu.memory_space<vmem>>, vector<128x32xbf16>
    %c145 = arith.constant 145 : index
    %c0_72 = arith.constant 0 : index
    %135 = vector.load %arg19[%c145, %c0_72] : memref<320x32xbf16, #tpu.memory_space<vmem>>, vector<128x32xbf16>
    %c159 = arith.constant 159 : index
    %c0_73 = arith.constant 0 : index
    %136 = vector.load %arg19[%c159, %c0_73] : memref<320x32xbf16, #tpu.memory_space<vmem>>, vector<128x32xbf16>
    %c160_74 = arith.constant 160 : index
    %c0_75 = arith.constant 0 : index
    %137 = vector.load %arg19[%c160_74, %c0_75] : memref<320x32xbf16, #tpu.memory_space<vmem>>, vector<128x32xbf16>
    %c161 = arith.constant 161 : index
    %c0_76 = arith.constant 0 : index
    %138 = vector.load %arg19[%c161, %c0_76] : memref<320x32xbf16, #tpu.memory_space<vmem>>, vector<128x32xbf16>
    %c175 = arith.constant 175 : index
    %c0_77 = arith.constant 0 : index
    %139 = vector.load %arg19[%c175, %c0_77] : memref<320x32xbf16, #tpu.memory_space<vmem>>, vector<128x32xbf16>
    %c176 = arith.constant 176 : index
    %c0_78 = arith.constant 0 : index
    %140 = vector.load %arg19[%c176, %c0_78] : memref<320x32xbf16, #tpu.memory_space<vmem>>, vector<128x32xbf16>
    %c177 = arith.constant 177 : index
    %c0_79 = arith.constant 0 : index
    %141 = vector.load %arg19[%c177, %c0_79] : memref<320x32xbf16, #tpu.memory_space<vmem>>, vector<128x32xbf16>
    %142 = tpu.concatenate %133, %134, %135, %136, %137, %138, %139, %140, %141 in 1 : vector<128x32xbf16>, vector<128x32xbf16>, vector<128x32xbf16>, vector<128x32xbf16>, vector<128x32xbf16>, vector<128x32xbf16>, vector<128x32xbf16>, vector<128x32xbf16>, vector<128x32xbf16> -> vector<128x288xbf16>
    %c0_80 = arith.constant 0 : index
    %c0_81 = arith.constant 0 : index
    %143 = vector.load %arg4[%c0_80, %c0_81] : memref<288x64xbf16, #tpu.memory_space<vmem>>, vector<288x64xbf16>
    %cst_82 = arith.constant dense<0.000000e+00> : vector<128x64xf32>
    %144 = tpu.matmul %142, %143, %cst_82 {dimension_numbers = #tpu.dot_dimension_numbers<[1], [0], [0], [1], [0, 0, 1, 1], [], []>} : vector<128x288xbf16>, vector<288x64xbf16>, vector<128x64xf32> -> vector<128x64xf32>
    %145 = tpu.iota {dimensions = array<i32: 0>} : vector<128x1xi32>
    %c128_i32_83 = arith.constant 128 : i32
    %146 = vector.broadcast %c128_i32_83 : i32 to vector<128x1xi32>
    %147 = arith.addi %145, %146 : vector<128x1xi32>
    %c16_i32_84 = arith.constant 16 : i32
    %c0_i32_85 = arith.constant 0 : i32
    %148 = arith.cmpi eq, %c16_i32_84, %c0_i32_85 : i32
    %c1_i32_86 = arith.constant 1 : i32
    %149 = arith.select %148, %c1_i32_86, %c16_i32_84 : i32
    %150 = vector.broadcast %149 : i32 to vector<128x1xi32>
    %151 = arith.remsi %147, %150 : vector<128x1xi32>
    %c0_i32_87 = arith.constant 0 : i32
    %152 = vector.broadcast %c0_i32_87 : i32 to vector<128x1xi32>
    %153 = arith.cmpi ne, %151, %152 : vector<128x1xi32>
    %c0_i32_88 = arith.constant 0 : i32
    %154 = vector.broadcast %c0_i32_88 : i32 to vector<128x1xi32>
    %155 = arith.cmpi slt, %151, %154 : vector<128x1xi32>
    %c0_i32_89 = arith.constant 0 : i32
    %156 = arith.cmpi slt, %149, %c0_i32_89 : i32
    %157 = vector.broadcast %156 : i1 to vector<128x1xi1>
    %158 = vector.broadcast %157 : vector<128x1xi1> to vector<128x1xi1>
    %159 = arith.xori %155, %158 : vector<128x1xi1>
    %160 = arith.andi %159, %153 : vector<128x1xi1>
    %161 = vector.broadcast %149 : i32 to vector<128x1xi32>
    %162 = arith.addi %151, %161 : vector<128x1xi32>
    %163 = arith.select %160, %162, %151 : vector<128x1xi1>, vector<128x1xi32>
    %c15_i32_90 = arith.constant 15 : i32
    %164 = vector.broadcast %c15_i32_90 : i32 to vector<128x1xi32>
    %165 = arith.cmpi slt, %163, %164 : vector<128x1xi32>
    %c240_i32_91 = arith.constant 240 : i32
    %166 = vector.broadcast %c240_i32_91 : i32 to vector<128x1xi32>
    %167 = arith.cmpi slt, %147, %166 : vector<128x1xi32>
    %168 = arith.andi %165, %167 : vector<128x1xi1>
    %c0_92 = arith.constant 0 : index
    %c0_93 = arith.constant 0 : index
    %169 = vector.load %arg5[%c0_92, %c0_93] : memref<1x64xf32, #tpu.memory_space<vmem>>, vector<1x64xf32>
    %170 = vector.broadcast %169 : vector<1x64xf32> to vector<128x64xf32>
    %171 = arith.addf %144, %170 : vector<128x64xf32>
    %cst_94 = arith.constant 0.000000e+00 : f32
    %172 = vector.broadcast %cst_94 : f32 to vector<128x64xf32>
    %173 = arith.maximumf %171, %172 : vector<128x64xf32>
    %cst_95 = arith.constant 0.000000e+00 : f32
    %174 = vector.shape_cast %168 : vector<128x1xi1> to vector<128x1xi1>
    %175 = vector.broadcast %174 : vector<128x1xi1> to vector<128x64xi1>
    %176 = vector.broadcast %cst_95 : f32 to vector<128x64xf32>
    %177 = arith.select %175, %173, %176 : vector<128x64xi1>, vector<128x64xf32>
    %178 = arith.truncf %177 : vector<128x64xf32> to vector<128x64xbf16>
    %c160_96 = arith.constant 160 : index
    %c0_97 = arith.constant 0 : index
    %179 = vector.load %arg20[%c160_96, %c0_97] : memref<320x64xbf16, #tpu.memory_space<vmem>>, vector<128x64xbf16>
    tpu.vector_store %arg20[%c160_96, %c0_97], %178 {strides = array<i32>} : memref<320x64xbf16, #tpu.memory_space<vmem>>, vector<128x64xbf16>,
    %c15_98 = arith.constant 15 : index
    %c0_99 = arith.constant 0 : index
    %180 = vector.load %arg20[%c15_98, %c0_99] : memref<320x64xbf16, #tpu.memory_space<vmem>>, vector<128x64xbf16>
    %c16_100 = arith.constant 16 : index
    %c0_101 = arith.constant 0 : index
    %181 = vector.load %arg20[%c16_100, %c0_101] : memref<320x64xbf16, #tpu.memory_space<vmem>>, vector<128x64xbf16>
    %c17_102 = arith.constant 17 : index
    %c0_103 = arith.constant 0 : index
    %182 = vector.load %arg20[%c17_102, %c0_103] : memref<320x64xbf16, #tpu.memory_space<vmem>>, vector<128x64xbf16>
    %c31_104 = arith.constant 31 : index
    %c0_105 = arith.constant 0 : index
    %183 = vector.load %arg20[%c31_104, %c0_105] : memref<320x64xbf16, #tpu.memory_space<vmem>>, vector<128x64xbf16>
    %c32_106 = arith.constant 32 : index
    %c0_107 = arith.constant 0 : index
    %184 = vector.load %arg20[%c32_106, %c0_107] : memref<320x64xbf16, #tpu.memory_space<vmem>>, vector<128x64xbf16>
    %c33_108 = arith.constant 33 : index
    %c0_109 = arith.constant 0 : index
    %185 = vector.load %arg20[%c33_108, %c0_109] : memref<320x64xbf16, #tpu.memory_space<vmem>>, vector<128x64xbf16>
    %c47_110 = arith.constant 47 : index
    %c0_111 = arith.constant 0 : index
    %186 = vector.load %arg20[%c47_110, %c0_111] : memref<320x64xbf16, #tpu.memory_space<vmem>>, vector<128x64xbf16>
    %c48_112 = arith.constant 48 : index
    %c0_113 = arith.constant 0 : index
    %187 = vector.load %arg20[%c48_112, %c0_113] : memref<320x64xbf16, #tpu.memory_space<vmem>>, vector<128x64xbf16>
    %c49_114 = arith.constant 49 : index
    %c0_115 = arith.constant 0 : index
    %188 = vector.load %arg20[%c49_114, %c0_115] : memref<320x64xbf16, #tpu.memory_space<vmem>>, vector<128x64xbf16>
    %189 = tpu.concatenate %180, %181, %182, %183, %184, %185, %186, %187, %188 in 1 : vector<128x64xbf16>, vector<128x64xbf16>, vector<128x64xbf16>, vector<128x64xbf16>, vector<128x64xbf16>, vector<128x64xbf16>, vector<128x64xbf16>, vector<128x64xbf16>, vector<128x64xbf16> -> vector<128x576xbf16>
    %c0_116 = arith.constant 0 : index
    %c0_117 = arith.constant 0 : index
    %190 = vector.load %arg6[%c0_116, %c0_117] : memref<576x128xbf16, #tpu.memory_space<vmem>>, vector<576x128xbf16>
    %cst_118 = arith.constant dense<0.000000e+00> : vector<128x128xf32>
    %191 = tpu.matmul %189, %190, %cst_118 {dimension_numbers = #tpu.dot_dimension_numbers<[1], [0], [0], [1], [0, 0, 1, 1], [], []>} : vector<128x576xbf16>, vector<576x128xbf16>, vector<128x128xf32> -> vector<128x128xf32>
    %c0_119 = arith.constant 0 : index
    %c0_120 = arith.constant 0 : index
    %192 = vector.load %arg7[%c0_119, %c0_120] : memref<1x128xf32, #tpu.memory_space<vmem>>, vector<1x128xf32>
    %193 = vector.broadcast %192 : vector<1x128xf32> to vector<128x128xf32>
    %194 = arith.addf %191, %193 : vector<128x128xf32>
    %cst_121 = arith.constant 0.000000e+00 : f32
    %195 = vector.broadcast %cst_121 : f32 to vector<128x128xf32>
    %196 = arith.maximumf %194, %195 : vector<128x128xf32>
    %197 = arith.truncf %196 : vector<128x128xf32> to vector<128x128xbf16>
    %c0_122 = arith.constant 0 : index
    %c0_123 = arith.constant 0 : index
    %198 = vector.load %arg8[%c0_122, %c0_123] : memref<128x4xbf16, #tpu.memory_space<vmem>>, vector<128x4xbf16>
    %cst_124 = arith.constant dense<0.000000e+00> : vector<128x4xf32>
    %199 = tpu.matmul %197, %198, %cst_124 {dimension_numbers = #tpu.dot_dimension_numbers<[1], [0], [0], [1], [0, 0, 1, 1], [], []>} : vector<128x128xbf16>, vector<128x4xbf16>, vector<128x4xf32> -> vector<128x4xf32>
    %c0_125 = arith.constant 0 : index
    %c0_126 = arith.constant 0 : index
    %200 = vector.load %arg9[%c0_125, %c0_126] : memref<1x4xf32, #tpu.memory_space<vmem>>, vector<1x4xf32>
    %201 = vector.broadcast %200 : vector<1x4xf32> to vector<128x4xf32>
    %202 = arith.addf %199, %201 : vector<128x4xf32>
    %cst_127 = arith.constant 0.000000e+00 : f32
    %203 = vector.broadcast %cst_127 : f32 to vector<128x4xf32>
    %204 = arith.maximumf %202, %203 : vector<128x4xf32>
    %205 = arith.truncf %204 : vector<128x4xf32> to vector<128x4xbf16>
    %c0_128 = arith.constant 0 : index
    %c0_129 = arith.constant 0 : index
    %206 = vector.load %arg21[%c0_128, %c0_129] : memref<256x4xbf16, #tpu.memory_space<vmem>>, vector<128x4xbf16>
    tpu.vector_store %arg21[%c0_128, %c0_129], %205 {strides = array<i32>} : memref<256x4xbf16, #tpu.memory_space<vmem>>, vector<128x4xbf16>,
    %c143_130 = arith.constant 143 : index
    %c0_131 = arith.constant 0 : index
    %207 = vector.load %arg20[%c143_130, %c0_131] : memref<320x64xbf16, #tpu.memory_space<vmem>>, vector<128x64xbf16>
    %c144_132 = arith.constant 144 : index
    %c0_133 = arith.constant 0 : index
    %208 = vector.load %arg20[%c144_132, %c0_133] : memref<320x64xbf16, #tpu.memory_space<vmem>>, vector<128x64xbf16>
    %c145_134 = arith.constant 145 : index
    %c0_135 = arith.constant 0 : index
    %209 = vector.load %arg20[%c145_134, %c0_135] : memref<320x64xbf16, #tpu.memory_space<vmem>>, vector<128x64xbf16>
    %c159_136 = arith.constant 159 : index
    %c0_137 = arith.constant 0 : index
    %210 = vector.load %arg20[%c159_136, %c0_137] : memref<320x64xbf16, #tpu.memory_space<vmem>>, vector<128x64xbf16>
    %c160_138 = arith.constant 160 : index
    %c0_139 = arith.constant 0 : index
    %211 = vector.load %arg20[%c160_138, %c0_139] : memref<320x64xbf16, #tpu.memory_space<vmem>>, vector<128x64xbf16>
    %c161_140 = arith.constant 161 : index
    %c0_141 = arith.constant 0 : index
    %212 = vector.load %arg20[%c161_140, %c0_141] : memref<320x64xbf16, #tpu.memory_space<vmem>>, vector<128x64xbf16>
    %c175_142 = arith.constant 175 : index
    %c0_143 = arith.constant 0 : index
    %213 = vector.load %arg20[%c175_142, %c0_143] : memref<320x64xbf16, #tpu.memory_space<vmem>>, vector<128x64xbf16>
    %c176_144 = arith.constant 176 : index
    %c0_145 = arith.constant 0 : index
    %214 = vector.load %arg20[%c176_144, %c0_145] : memref<320x64xbf16, #tpu.memory_space<vmem>>, vector<128x64xbf16>
    %c177_146 = arith.constant 177 : index
    %c0_147 = arith.constant 0 : index
    %215 = vector.load %arg20[%c177_146, %c0_147] : memref<320x64xbf16, #tpu.memory_space<vmem>>, vector<128x64xbf16>
    %216 = tpu.concatenate %207, %208, %209, %210, %211, %212, %213, %214, %215 in 1 : vector<128x64xbf16>, vector<128x64xbf16>, vector<128x64xbf16>, vector<128x64xbf16>, vector<128x64xbf16>, vector<128x64xbf16>, vector<128x64xbf16>, vector<128x64xbf16>, vector<128x64xbf16> -> vector<128x576xbf16>
    %c0_148 = arith.constant 0 : index
    %c0_149 = arith.constant 0 : index
    %217 = vector.load %arg6[%c0_148, %c0_149] : memref<576x128xbf16, #tpu.memory_space<vmem>>, vector<576x128xbf16>
    %cst_150 = arith.constant dense<0.000000e+00> : vector<128x128xf32>
    %218 = tpu.matmul %216, %217, %cst_150 {dimension_numbers = #tpu.dot_dimension_numbers<[1], [0], [0], [1], [0, 0, 1, 1], [], []>} : vector<128x576xbf16>, vector<576x128xbf16>, vector<128x128xf32> -> vector<128x128xf32>
    %c0_151 = arith.constant 0 : index
    %c0_152 = arith.constant 0 : index
    %219 = vector.load %arg7[%c0_151, %c0_152] : memref<1x128xf32, #tpu.memory_space<vmem>>, vector<1x128xf32>
    %220 = vector.broadcast %219 : vector<1x128xf32> to vector<128x128xf32>
    %221 = arith.addf %218, %220 : vector<128x128xf32>
    %cst_153 = arith.constant 0.000000e+00 : f32
    %222 = vector.broadcast %cst_153 : f32 to vector<128x128xf32>
    %223 = arith.maximumf %221, %222 : vector<128x128xf32>
    %224 = arith.truncf %223 : vector<128x128xf32> to vector<128x128xbf16>
    %c0_154 = arith.constant 0 : index
    %c0_155 = arith.constant 0 : index
    %225 = vector.load %arg8[%c0_154, %c0_155] : memref<128x4xbf16, #tpu.memory_space<vmem>>, vector<128x4xbf16>
    %cst_156 = arith.constant dense<0.000000e+00> : vector<128x4xf32>
    %226 = tpu.matmul %224, %225, %cst_156 {dimension_numbers = #tpu.dot_dimension_numbers<[1], [0], [0], [1], [0, 0, 1, 1], [], []>} : vector<128x128xbf16>, vector<128x4xbf16>, vector<128x4xf32> -> vector<128x4xf32>
    %c0_157 = arith.constant 0 : index
    %c0_158 = arith.constant 0 : index
    %227 = vector.load %arg9[%c0_157, %c0_158] : memref<1x4xf32, #tpu.memory_space<vmem>>, vector<1x4xf32>
    %228 = vector.broadcast %227 : vector<1x4xf32> to vector<128x4xf32>
    %229 = arith.addf %226, %228 : vector<128x4xf32>
    %cst_159 = arith.constant 0.000000e+00 : f32
    %230 = vector.broadcast %cst_159 : f32 to vector<128x4xf32>
    %231 = arith.maximumf %229, %230 : vector<128x4xf32>
    %232 = arith.truncf %231 : vector<128x4xf32> to vector<128x4xbf16>
    %c128_160 = arith.constant 128 : index
    %c0_161 = arith.constant 0 : index
    %233 = vector.load %arg21[%c128_160, %c0_161] : memref<256x4xbf16, #tpu.memory_space<vmem>>, vector<128x4xbf16>
    tpu.vector_store %arg21[%c128_160, %c0_161], %232 {strides = array<i32>} : memref<256x4xbf16, #tpu.memory_space<vmem>>, vector<128x4xbf16>,
    %c0_162 = arith.constant 0 : index
    %c0_163 = arith.constant 0 : index
    %234 = vector.load %arg21[%c0_162, %c0_163] : memref<256x4xbf16, #tpu.memory_space<vmem>>, vector<256x4xbf16>
    %235 = vector.extract_strided_slice %234 {offsets = [0, 0], sizes = [256, 1], strides = [1, 1]} : vector<256x4xbf16> to vector<256x1xbf16>
    %236 = vector.extract_strided_slice %234 {offsets = [0, 1], sizes = [256, 1], strides = [1, 1]} : vector<256x4xbf16> to vector<256x1xbf16>
    %237 = vector.extract_strided_slice %234 {offsets = [0, 2], sizes = [256, 1], strides = [1, 1]} : vector<256x4xbf16> to vector<256x1xbf16>
    %c0_164 = arith.constant 0 : index
    %c0_165 = arith.constant 0 : index
    %238 = vector.load %arg10[%c0_164, %c0_165] : memref<225x256xbf16, #tpu.memory_space<vmem>>, vector<225x256xbf16>
    %cst_166 = arith.constant dense<0.000000e+00> : vector<225x1xf32>
    %239 = tpu.matmul %238, %235, %cst_166 {dimension_numbers = #tpu.dot_dimension_numbers<[1], [0], [0], [1], [0, 0, 1, 1], [], []>} : vector<225x256xbf16>, vector<256x1xbf16>, vector<225x1xf32> -> vector<225x1xf32>
    %c0_167 = arith.constant 0 : index
    %c0_168 = arith.constant 0 : index
    %240 = vector.load %arg11[%c0_167, %c0_168] : memref<225x256xbf16, #tpu.memory_space<vmem>>, vector<225x256xbf16>
    %cst_169 = arith.constant dense<0.000000e+00> : vector<225x1xf32>
    %241 = tpu.matmul %240, %236, %cst_169 {dimension_numbers = #tpu.dot_dimension_numbers<[1], [0], [0], [1], [0, 0, 1, 1], [], []>} : vector<225x256xbf16>, vector<256x1xbf16>, vector<225x1xf32> -> vector<225x1xf32>
    %242 = arith.addf %239, %241 : vector<225x1xf32>
    %c0_170 = arith.constant 0 : index
    %c0_171 = arith.constant 0 : index
    %243 = vector.load %arg12[%c0_170, %c0_171] : memref<225x1xf32, #tpu.memory_space<vmem>>, vector<225x1xf32>
    %244 = arith.addf %242, %243 : vector<225x1xf32>
    %cst_172 = arith.constant dense<0xFF800000> : vector<1xf32>
    %245 = vector.multi_reduction <maximumf>, %244, %cst_172 [0] : vector<225x1xf32> to vector<1xf32>
    %246 = vector.shape_cast %245 : vector<1xf32> to vector<1x1xf32>
    %247 = vector.broadcast %246 : vector<1x1xf32> to vector<225x1xf32>
    %248 = arith.subf %244, %247 : vector<225x1xf32>
    %249 = math.exp %248 : vector<225x1xf32>
    %cst_173 = arith.constant dense<0.000000e+00> : vector<1xf32>
    %250 = vector.multi_reduction <add>, %249, %cst_173 [0] : vector<225x1xf32> to vector<1xf32>
    %251 = vector.shape_cast %250 : vector<1xf32> to vector<1x1xf32>
    %252 = vector.broadcast %251 : vector<1x1xf32> to vector<225x1xf32>
    %253 = arith.divf %249, %252 : vector<225x1xf32>
    %254 = vector.shape_cast %253 : vector<225x1xf32> to vector<1x225x1xf32>
    %c0_174 = arith.constant 0 : index
    %c0_175 = arith.constant 0 : index
    %c0_176 = arith.constant 0 : index
    %255 = vector.load %arg17[%c0_174, %c0_175, %c0_176] : memref<1x225x1xf32, #tpu.memory_space<vmem>>, vector<1x225x1xf32>
    tpu.vector_store %arg17[%c0_174, %c0_175, %c0_176], %254 {strides = array<i32>} : memref<1x225x1xf32, #tpu.memory_space<vmem>>, vector<1x225x1xf32>,
    %c0_177 = arith.constant 0 : index
    %c0_178 = arith.constant 0 : index
    %256 = vector.load %arg13[%c0_177, %c0_178] : memref<64x256xbf16, #tpu.memory_space<vmem>>, vector<64x256xbf16>
    %cst_179 = arith.constant dense<0.000000e+00> : vector<64x1xf32>
    %257 = tpu.matmul %256, %237, %cst_179 {dimension_numbers = #tpu.dot_dimension_numbers<[1], [0], [0], [1], [0, 0, 1, 1], [], []>} : vector<64x256xbf16>, vector<256x1xbf16>, vector<64x1xf32> -> vector<64x1xf32>
    %c0_180 = arith.constant 0 : index
    %c0_181 = arith.constant 0 : index
    %258 = vector.load %arg14[%c0_180, %c0_181] : memref<64x1xf32, #tpu.memory_space<vmem>>, vector<64x1xf32>
    %259 = arith.addf %257, %258 : vector<64x1xf32>
    %cst_182 = arith.constant 0.000000e+00 : f32
    %260 = vector.broadcast %cst_182 : f32 to vector<64x1xf32>
    %261 = arith.maximumf %259, %260 : vector<64x1xf32>
    %c0_183 = arith.constant 0 : index
    %c0_184 = arith.constant 0 : index
    %262 = vector.load %arg15[%c0_183, %c0_184] : memref<64x1xf32, #tpu.memory_space<vmem>>, vector<64x1xf32>
    %263 = arith.mulf %262, %261 : vector<64x1xf32>
    %cst_185 = arith.constant dense<0.000000e+00> : vector<1xf32>
    %264 = vector.multi_reduction <add>, %263, %cst_185 [0] : vector<64x1xf32> to vector<1xf32>
    %265 = vector.shape_cast %264 : vector<1xf32> to vector<1x1xf32>
    %c0_186 = arith.constant 0 : index
    %c0_187 = arith.constant 0 : index
    %266 = vector.load %arg16[%c0_186, %c0_187] : memref<1x1xf32, #tpu.memory_space<vmem>>, vector<1x1xf32>
    %267 = arith.addf %265, %266 : vector<1x1xf32>
    %268 = math.tanh %267 : vector<1x1xf32>
    %269 = vector.shape_cast %268 : vector<1x1xf32> to vector<1x1x1xf32>
    %c0_188 = arith.constant 0 : index
    %c0_189 = arith.constant 0 : index
    %c0_190 = arith.constant 0 : index
    %270 = vector.load %arg18[%c0_188, %c0_189, %c0_190] : memref<1x1x1xf32, #tpu.memory_space<vmem>>, vector<1x1x1xf32>
    tpu.vector_store %arg18[%c0_188, %c0_189, %c0_190], %269 {strides = array<i32>} : memref<1x1x1xf32, #tpu.memory_space<vmem>>, vector<1x1x1xf32>,
    return
  }
  func.func @transform_0(%arg0: i32) -> (i32, i32, i32) {
    %c0_i32 = arith.constant 0 : i32
    %c0_i32_0 = arith.constant 0 : i32
    %c0_i32_1 = arith.constant 0 : i32
    return %arg0, %c0_i32, %c0_i32_0 : i32, i32, i32
  }
  func.func @transform_1(%arg0: i32) -> (i32, i32) {
    %c0_i32 = arith.constant 0 : i32
    %c0_i32_0 = arith.constant 0 : i32
    %c0_i32_1 = arith.constant 0 : i32
    return %c0_i32, %c0_i32_0 : i32, i32
  }
  func.func @transform_2(%arg0: i32) -> (i32, i32) {
    %c0_i32 = arith.constant 0 : i32
    %c0_i32_0 = arith.constant 0 : i32
    %c0_i32_1 = arith.constant 0 : i32
    return %c0_i32, %c0_i32_0 : i32, i32
  }
  func.func @transform_3(%arg0: i32) -> (i32, i32) {
    %c0_i32 = arith.constant 0 : i32
    %c0_i32_0 = arith.constant 0 : i32
    %c0_i32_1 = arith.constant 0 : i32
    return %c0_i32, %c0_i32_0 : i32, i32
  }
  func.func @transform_4(%arg0: i32) -> (i32, i32) {
    %c0_i32 = arith.constant 0 : i32
    %c0_i32_0 = arith.constant 0 : i32
    %c0_i32_1 = arith.constant 0 : i32
    return %c0_i32, %c0_i32_0 : i32, i32
  }
  func.func @transform_5(%arg0: i32) -> (i32, i32) {
    %c0_i32 = arith.constant 0 : i32
    %c0_i32_0 = arith.constant 0 : i32
    %c0_i32_1 = arith.constant 0 : i32
    return %c0_i32, %c0_i32_0 : i32, i32
  }
  func.func @transform_6(%arg0: i32) -> (i32, i32) {
    %c0_i32 = arith.constant 0 : i32
    %c0_i32_0 = arith.constant 0 : i32
    %c0_i32_1 = arith.constant 0 : i32
    return %c0_i32, %c0_i32_0 : i32, i32
  }
  func.func @transform_7(%arg0: i32) -> (i32, i32) {
    %c0_i32 = arith.constant 0 : i32
    %c0_i32_0 = arith.constant 0 : i32
    %c0_i32_1 = arith.constant 0 : i32
    return %c0_i32, %c0_i32_0 : i32, i32
  }
  func.func @transform_8(%arg0: i32) -> (i32, i32) {
    %c0_i32 = arith.constant 0 : i32
    %c0_i32_0 = arith.constant 0 : i32
    %c0_i32_1 = arith.constant 0 : i32
    return %c0_i32, %c0_i32_0 : i32, i32
  }
  func.func @transform_9(%arg0: i32) -> (i32, i32) {
    %c0_i32 = arith.constant 0 : i32
    %c0_i32_0 = arith.constant 0 : i32
    %c0_i32_1 = arith.constant 0 : i32
    return %c0_i32, %c0_i32_0 : i32, i32
  }
  func.func @transform_10(%arg0: i32) -> (i32, i32) {
    %c0_i32 = arith.constant 0 : i32
    %c0_i32_0 = arith.constant 0 : i32
    %c0_i32_1 = arith.constant 0 : i32
    return %c0_i32, %c0_i32_0 : i32, i32
  }
  func.func @transform_11(%arg0: i32) -> (i32, i32) {
    %c0_i32 = arith.constant 0 : i32
    %c0_i32_0 = arith.constant 0 : i32
    %c0_i32_1 = arith.constant 0 : i32
    return %c0_i32, %c0_i32_0 : i32, i32
  }
  func.func @transform_12(%arg0: i32) -> (i32, i32) {
    %c0_i32 = arith.constant 0 : i32
    %c0_i32_0 = arith.constant 0 : i32
    %c0_i32_1 = arith.constant 0 : i32
    return %c0_i32, %c0_i32_0 : i32, i32
  }
  func.func @transform_13(%arg0: i32) -> (i32, i32) {
    %c0_i32 = arith.constant 0 : i32
    %c0_i32_0 = arith.constant 0 : i32
    %c0_i32_1 = arith.constant 0 : i32
    return %c0_i32, %c0_i32_0 : i32, i32
  }
  func.func @transform_14(%arg0: i32) -> (i32, i32) {
    %c0_i32 = arith.constant 0 : i32
    %c0_i32_0 = arith.constant 0 : i32
    %c0_i32_1 = arith.constant 0 : i32
    return %c0_i32, %c0_i32_0 : i32, i32
  }
  func.func @transform_15(%arg0: i32) -> (i32, i32) {
    %c0_i32 = arith.constant 0 : i32
    %c0_i32_0 = arith.constant 0 : i32
    %c0_i32_1 = arith.constant 0 : i32
    return %c0_i32, %c0_i32_0 : i32, i32
  }
  func.func @transform_16(%arg0: i32) -> (i32, i32, i32) {
    %c0_i32 = arith.constant 0 : i32
    %c0_i32_0 = arith.constant 0 : i32
    %c0_i32_1 = arith.constant 0 : i32
    return %arg0, %c0_i32, %c0_i32_0 : i32, i32, i32
  }
  func.func @transform_17(%arg0: i32) -> (i32, i32, i32) {
    %c0_i32 = arith.constant 0 : i32
    %c0_i32_0 = arith.constant 0 : i32
    %c0_i32_1 = arith.constant 0 : i32
    return %arg0, %c0_i32, %c0_i32_0 : i32, i32, i32
  }
}

</mosaic_0001>

<llo_original>
// kernel: alphazero_forward.1
$region0: #{alphazero_forward.1}
  #allocation0 [shape = 'u32[]', space=smem, size = 0x4, offset = 0x4, fixed_abs, tag = 'smem constant byte address 0x4 - core index']
  #allocation1 [shape = 'u32[144,128]{1,0:T(1,128)}', space=vmem, size = 0x12000, scoped, tag = 'internal scratch']
  #allocation2 [shape = 'bf16[320,32]{1,0:T(8,128)(2,1)}', space=vmem, size = 0x14000, scoped, tag = 'scratch operand']
  #allocation3 [shape = 'bf16[320,64]{1,0:T(8,128)(2,1)}', space=vmem, size = 0x14000, scoped, tag = 'scratch operand']
  #allocation4 [shape = 'bf16[256,4]{1,0:T(8,128)(2,1)}', space=vmem, size = 0x10000, scoped, tag = 'scratch operand']
  #allocation5 [shape = 'f32[1,1]{1,0:T(1,128)S(1)}', space=vmem, size = 0x200, scoped, tag = 'scoped memory for alphazero_forward.1']
  %s0 = inlined_call_operand.vmem [shape: bf16[2,256,36], index: 0, kind: input, shape index: {}]
  %s1 = inlined_call_operand.vmem [shape: bf16[36,32], index: 1, kind: input, shape index: {}]
  %s2 = inlined_call_operand.vmem [shape: f32[1,32], index: 2, kind: input, shape index: {}]
  %s3 = inlined_call_operand.vmem [shape: bf16[288,64], index: 3, kind: input, shape index: {}]
  %s4 = inlined_call_operand.vmem [shape: f32[1,64], index: 4, kind: input, shape index: {}]
  %s5 = inlined_call_operand.vmem [shape: bf16[576,128], index: 5, kind: input, shape index: {}]
  %s6 = inlined_call_operand.vmem [shape: f32[1,128], index: 6, kind: input, shape index: {}]
  %s7 = inlined_call_operand.vmem [shape: bf16[128,4], index: 7, kind: input, shape index: {}]
  %s8 = inlined_call_operand.vmem [shape: f32[1,4], index: 8, kind: input, shape index: {}]
  %s9 = inlined_call_operand.vmem [shape: bf16[225,256], index: 9, kind: input, shape index: {}]
  %s10 = inlined_call_operand.vmem [shape: bf16[225,256], index: 10, kind: input, shape index: {}]
  %s11 = inlined_call_operand.vmem [shape: f32[225,1], index: 11, kind: input, shape index: {}]
  %s12 = inlined_call_operand.vmem [shape: bf16[64,256], index: 12, kind: input, shape index: {}]
  %s13 = inlined_call_operand.vmem [shape: f32[64,1], index: 13, kind: input, shape index: {}]
  %s14 = inlined_call_operand.vmem [shape: f32[64,1], index: 14, kind: input, shape index: {}]
  %s15 = inlined_call_operand.<no memory space> [shape: f32[1,1], index: 15, kind: input, shape index: {}]
  %s16 = inlined_call_operand.vmem [shape: f32[2,225,1], index: 16, kind: output, shape index: {0}]
  %s17 = inlined_call_operand.vmem [shape: f32[2,1,1], index: 17, kind: output, shape index: {1}]
  %18 = xla_tuple %s16, %s17
  %s19 = sld [smem:[#allocation0]]
  $region105: #{alphazero_forward.1} parent=0
    _
  %s21 = ssub.s32 1, %s19
  %s22 = scalar_select 0, %s21, %s19
  %v23 = vstv %s15
  %24 = vst [vmem:[#allocation5] sm:$0x1] %v23
  loop: start=0, step=1, limit=4
  $region2: #{alphazero_forward.1} parent=0 // loop_pre_header
    _
  $region3: #{alphazero_forward.1} parent=0 // loop_header
    %s26 = sphi 0, %s30
    %p27 = scmp.ge.s32.totalorder %s26, 4
    %s36 = sphi 0, %s38
    %s39 = sphi 0, %s36
    %s40 = sphi 0, %s39
    %s56 = sphi 0, %s40
    %s60 = sphi 0, %s60
    %s62 = sphi 0, %s60
    %s63 = sphi 0, %s62
    %s77 = sphi 0, %s63
    %s81 = sphi 0, %s81
    %s83 = sphi 0, %s81
    %s84 = sphi 0, %s83
    %s98 = sphi 0, %s84
    %s102 = sphi 0, %s102
    %s104 = sphi 0, %s102
    %s105 = sphi 0, %s104
    %s119 = sphi 0, %s105
    %s123 = sphi 0, %s123
    %s125 = sphi 0, %s123
    %s126 = sphi 0, %s125
    %s140 = sphi 0, %s126
    %s144 = sphi 0, %s144
    %s146 = sphi 0, %s144
    %s147 = sphi 0, %s146
    %s161 = sphi 0, %s147
    %s165 = sphi 0, %s165
    %s167 = sphi 0, %s165
    %s168 = sphi 0, %s167
    %s182 = sphi 0, %s168
    %s186 = sphi 0, %s186
    %s188 = sphi 0, %s186
    %s189 = sphi 0, %s188
    %s203 = sphi 0, %s189
    %s207 = sphi 0, %s207
    %s209 = sphi 0, %s207
    %s210 = sphi 0, %s209
    %s224 = sphi 0, %s210
    %s228 = sphi 0, %s228
    %s230 = sphi 0, %s228
    %s231 = sphi 0, %s230
    %s245 = sphi 0, %s231
    %s249 = sphi 0, %s249
    %s251 = sphi 0, %s249
    %s252 = sphi 0, %s251
    %s266 = sphi 0, %s252
    %s270 = sphi 0, %s270
    %s272 = sphi 0, %s270
    %s273 = sphi 0, %s272
    %s287 = sphi 0, %s273
    %s291 = sphi 0, %s291
    %s293 = sphi 0, %s291
    %s294 = sphi 0, %s293
    %s308 = sphi 0, %s294
    %s312 = sphi 0, %s312
    %s314 = sphi 0, %s312
    %s315 = sphi 0, %s314
    %s329 = sphi 0, %s315
    %s333 = sphi 0, %s333
    %s335 = sphi 0, %s333
    %s336 = sphi 0, %s335
    %s350 = sphi 0, %s336
    %s354 = sphi 0, %s354
    %s356 = sphi 0, %s354
    %s357 = sphi 0, %s356
    %s371 = sphi 0, %s357
    %s377 = sphi 0, %s379
    %s380 = sphi 0, %s377
    %s381 = sphi 0, %s380
    %s397 = sphi 0, %s381
    %s403 = sphi 0, %s405
    %s406 = sphi 0, %s403
    %s407 = sphi 0, %s406
    %s423 = sphi 0, %s407
  $region4: #{alphazero_forward.1} parent=0 // loop_header_branch
    %29 = sbr.rel (%p27) target = $region8
  $region5: #{alphazero_forward.1} parent=0 // loop_body
    %s31 = ssub.s32 %s26, 1
    %s32 = ssub.s32 %s26, 2
    %s33 = sadd.s32 %s26, 1
    %s34 = ssub.s32 %s26, %s33
    %p35 = scmp.eq.s32.totalorder %s34, 0
    %s37 = sadd.s32 %s36, 1
    %s38 = scalar_select %p35, %s36, %s37
    %p41 = pneg %p35
    %p42 = scmp.eq.s32.totalorder %s26, 1
    %p43 = por %p41, %p42
    %p44 = scmp.ne.s32.totalorder %s36, %s39
    %p45 = scmp.eq.s32.totalorder %s26, 0
    %p46 = por %p44, %p45
    %p47 = scmp.ne.s32.totalorder %s36, %s39
    %p48 = scmp.eq.s32.totalorder %s31, 1
    %p49 = por %p47, %p48
    %p50 = scmp.ne.s32.totalorder %s39, %s40
    %p51 = scmp.eq.s32.totalorder %s31, 0
    %p52 = por %p50, %p51
    %p53 = scmp.ne.s32.totalorder %s39, %s40
    %p54 = scmp.eq.s32.totalorder %s32, 1
    %p55 = por %p53, %p54
    %p57 = scmp.ne.s32.totalorder %s40, %s56
    %p58 = scmp.eq.s32.totalorder %s32, 0
    %p59 = por %p57, %p58
    %s61 = sadd.s32 %s60, 1
    %p64 = scmp.eq.s32.totalorder %s26, 1
    %p65 = scmp.ne.s32.totalorder %s60, %s62
    %p66 = scmp.eq.s32.totalorder %s26, 0
    %p67 = por %p65, %p66
    %p68 = scmp.ne.s32.totalorder %s60, %s62
    %p69 = scmp.eq.s32.totalorder %s31, 1
    %p70 = por %p68, %p69
    %p71 = scmp.ne.s32.totalorder %s62, %s63
    %p72 = scmp.eq.s32.totalorder %s31, 0
    %p73 = por %p71, %p72
    %p74 = scmp.ne.s32.totalorder %s62, %s63
    %p75 = scmp.eq.s32.totalorder %s32, 1
    %p76 = por %p74, %p75
    %p78 = scmp.ne.s32.totalorder %s63, %s77
    %p79 = scmp.eq.s32.totalorder %s32, 0
    %p80 = por %p78, %p79
    %s82 = sadd.s32 %s81, 1
    %p85 = scmp.eq.s32.totalorder %s26, 1
    %p86 = scmp.ne.s32.totalorder %s81, %s83
    %p87 = scmp.eq.s32.totalorder %s26, 0
    %p88 = por %p86, %p87
    %p89 = scmp.ne.s32.totalorder %s81, %s83
    %p90 = scmp.eq.s32.totalorder %s31, 1
    %p91 = por %p89, %p90
    %p92 = scmp.ne.s32.totalorder %s83, %s84
    %p93 = scmp.eq.s32.totalorder %s31, 0
    %p94 = por %p92, %p93
    %p95 = scmp.ne.s32.totalorder %s83, %s84
    %p96 = scmp.eq.s32.totalorder %s32, 1
    %p97 = por %p95, %p96
    %p99 = scmp.ne.s32.totalorder %s84, %s98
    %p100 = scmp.eq.s32.totalorder %s32, 0
    %p101 = por %p99, %p100
    %s103 = sadd.s32 %s102, 1
    %p106 = scmp.eq.s32.totalorder %s26, 1
    %p107 = scmp.ne.s32.totalorder %s102, %s104
    %p108 = scmp.eq.s32.totalorder %s26, 0
    %p109 = por %p107, %p108
    %p110 = scmp.ne.s32.totalorder %s102, %s104
    %p111 = scmp.eq.s32.totalorder %s31, 1
    %p112 = por %p110, %p111
    %p113 = scmp.ne.s32.totalorder %s104, %s105
    %p114 = scmp.eq.s32.totalorder %s31, 0
    %p115 = por %p113, %p114
    %p116 = scmp.ne.s32.totalorder %s104, %s105
    %p117 = scmp.eq.s32.totalorder %s32, 1
    %p118 = por %p116, %p117
    %p120 = scmp.ne.s32.totalorder %s105, %s119
    %p121 = scmp.eq.s32.totalorder %s32, 0
    %p122 = por %p120, %p121
    %s124 = sadd.s32 %s123, 1
    %p127 = scmp.eq.s32.totalorder %s26, 1
    %p128 = scmp.ne.s32.totalorder %s123, %s125
    %p129 = scmp.eq.s32.totalorder %s26, 0
    %p130 = por %p128, %p129
    %p131 = scmp.ne.s32.totalorder %s123, %s125
    %p132 = scmp.eq.s32.totalorder %s31, 1
    %p133 = por %p131, %p132
    %p134 = scmp.ne.s32.totalorder %s125, %s126
    %p135 = scmp.eq.s32.totalorder %s31, 0
    %p136 = por %p134, %p135
    %p137 = scmp.ne.s32.totalorder %s125, %s126
    %p138 = scmp.eq.s32.totalorder %s32, 1
    %p139 = por %p137, %p138
    %p141 = scmp.ne.s32.totalorder %s126, %s140
    %p142 = scmp.eq.s32.totalorder %s32, 0
    %p143 = por %p141, %p142
    %s145 = sadd.s32 %s144, 1
    %p148 = scmp.eq.s32.totalorder %s26, 1
    %p149 = scmp.ne.s32.totalorder %s144, %s146
    %p150 = scmp.eq.s32.totalorder %s26, 0
    %p151 = por %p149, %p150
    %p152 = scmp.ne.s32.totalorder %s144, %s146
    %p153 = scmp.eq.s32.totalorder %s31, 1
    %p154 = por %p152, %p153
    %p155 = scmp.ne.s32.totalorder %s146, %s147
    %p156 = scmp.eq.s32.totalorder %s31, 0
    %p157 = por %p155, %p156
    %p158 = scmp.ne.s32.totalorder %s146, %s147
    %p159 = scmp.eq.s32.totalorder %s32, 1
    %p160 = por %p158, %p159
    %p162 = scmp.ne.s32.totalorder %s147, %s161
    %p163 = scmp.eq.s32.totalorder %s32, 0
    %p164 = por %p162, %p163
    %s166 = sadd.s32 %s165, 1
    %p169 = scmp.eq.s32.totalorder %s26, 1
    %p170 = scmp.ne.s32.totalorder %s165, %s167
    %p171 = scmp.eq.s32.totalorder %s26, 0
    %p172 = por %p170, %p171
    %p173 = scmp.ne.s32.totalorder %s165, %s167
    %p174 = scmp.eq.s32.totalorder %s31, 1
    %p175 = por %p173, %p174
    %p176 = scmp.ne.s32.totalorder %s167, %s168
    %p177 = scmp.eq.s32.totalorder %s31, 0
    %p178 = por %p176, %p177
    %p179 = scmp.ne.s32.totalorder %s167, %s168
    %p180 = scmp.eq.s32.totalorder %s32, 1
    %p181 = por %p179, %p180
    %p183 = scmp.ne.s32.totalorder %s168, %s182
    %p184 = scmp.eq.s32.totalorder %s32, 0
    %p185 = por %p183, %p184
    %s187 = sadd.s32 %s186, 1
    %p190 = scmp.eq.s32.totalorder %s26, 1
    %p191 = scmp.ne.s32.totalorder %s186, %s188
    %p192 = scmp.eq.s32.totalorder %s26, 0
    %p193 = por %p191, %p192
    %p194 = scmp.ne.s32.totalorder %s186, %s188
    %p195 = scmp.eq.s32.totalorder %s31, 1
    %p196 = por %p194, %p195
    %p197 = scmp.ne.s32.totalorder %s188, %s189
    %p198 = scmp.eq.s32.totalorder %s31, 0
    %p199 = por %p197, %p198
    %p200 = scmp.ne.s32.totalorder %s188, %s189
    %p201 = scmp.eq.s32.totalorder %s32, 1
    %p202 = por %p200, %p201
    %p204 = scmp.ne.s32.totalorder %s189, %s203
    %p205 = scmp.eq.s32.totalorder %s32, 0
    %p206 = por %p204, %p205
    %s208 = sadd.s32 %s207, 1
    %p211 = scmp.eq.s32.totalorder %s26, 1
    %p212 = scmp.ne.s32.totalorder %s207, %s209
    %p213 = scmp.eq.s32.totalorder %s26, 0
    %p214 = por %p212, %p213
    %p215 = scmp.ne.s32.totalorder %s207, %s209
    %p216 = scmp.eq.s32.totalorder %s31, 1
    %p217 = por %p215, %p216
    %p218 = scmp.ne.s32.totalorder %s209, %s210
    %p219 = scmp.eq.s32.totalorder %s31, 0
    %p220 = por %p218, %p219
    %p221 = scmp.ne.s32.totalorder %s209, %s210
    %p222 = scmp.eq.s32.totalorder %s32, 1
    %p223 = por %p221, %p222
    %p225 = scmp.ne.s32.totalorder %s210, %s224
    %p226 = scmp.eq.s32.totalorder %s32, 0
    %p227 = por %p225, %p226
    %s229 = sadd.s32 %s228, 1
    %p232 = scmp.eq.s32.totalorder %s26, 1
    %p233 = scmp.ne.s32.totalorder %s228, %s230
    %p234 = scmp.eq.s32.totalorder %s26, 0
    %p235 = por %p233, %p234
    %p236 = scmp.ne.s32.totalorder %s228, %s230
    %p237 = scmp.eq.s32.totalorder %s31, 1
    %p238 = por %p236, %p237
    %p239 = scmp.ne.s32.totalorder %s230, %s231
    %p240 = scmp.eq.s32.totalorder %s31, 0
    %p241 = por %p239, %p240
    %p242 = scmp.ne.s32.totalorder %s230, %s231
    %p243 = scmp.eq.s32.totalorder %s32, 1
    %p244 = por %p242, %p243
    %p246 = scmp.ne.s32.totalorder %s231, %s245
    %p247 = scmp.eq.s32.totalorder %s32, 0
    %p248 = por %p246, %p247
    %s250 = sadd.s32 %s249, 1
    %p253 = scmp.eq.s32.totalorder %s26, 1
    %p254 = scmp.ne.s32.totalorder %s249, %s251
    %p255 = scmp.eq.s32.totalorder %s26, 0
    %p256 = por %p254, %p255
    %p257 = scmp.ne.s32.totalorder %s249, %s251
    %p258 = scmp.eq.s32.totalorder %s31, 1
    %p259 = por %p257, %p258
    %p260 = scmp.ne.s32.totalorder %s251, %s252
    %p261 = scmp.eq.s32.totalorder %s31, 0
    %p262 = por %p260, %p261
    %p263 = scmp.ne.s32.totalorder %s251, %s252
    %p264 = scmp.eq.s32.totalorder %s32, 1
    %p265 = por %p263, %p264
    %p267 = scmp.ne.s32.totalorder %s252, %s266
    %p268 = scmp.eq.s32.totalorder %s32, 0
    %p269 = por %p267, %p268
    %s271 = sadd.s32 %s270, 1
    %p274 = scmp.eq.s32.totalorder %s26, 1
    %p275 = scmp.ne.s32.totalorder %s270, %s272
    %p276 = scmp.eq.s32.totalorder %s26, 0
    %p277 = por %p275, %p276
    %p278 = scmp.ne.s32.totalorder %s270, %s272
    %p279 = scmp.eq.s32.totalorder %s31, 1
    %p280 = por %p278, %p279
    %p281 = scmp.ne.s32.totalorder %s272, %s273
    %p282 = scmp.eq.s32.totalorder %s31, 0
    %p283 = por %p281, %p282
    %p284 = scmp.ne.s32.totalorder %s272, %s273
    %p285 = scmp.eq.s32.totalorder %s32, 1
    %p286 = por %p284, %p285
    %p288 = scmp.ne.s32.totalorder %s273, %s287
    %p289 = scmp.eq.s32.totalorder %s32, 0
    %p290 = por %p288, %p289
    %s292 = sadd.s32 %s291, 1
    %p295 = scmp.eq.s32.totalorder %s26, 1
    %p296 = scmp.ne.s32.totalorder %s291, %s293
    %p297 = scmp.eq.s32.totalorder %s26, 0
    %p298 = por %p296, %p297
    %p299 = scmp.ne.s32.totalorder %s291, %s293
    %p300 = scmp.eq.s32.totalorder %s31, 1
    %p301 = por %p299, %p300
    %p302 = scmp.ne.s32.totalorder %s293, %s294
    %p303 = scmp.eq.s32.totalorder %s31, 0
    %p304 = por %p302, %p303
    %p305 = scmp.ne.s32.totalorder %s293, %s294
    %p306 = scmp.eq.s32.totalorder %s32, 1
    %p307 = por %p305, %p306
    %p309 = scmp.ne.s32.totalorder %s294, %s308
    %p310 = scmp.eq.s32.totalorder %s32, 0
    %p311 = por %p309, %p310
    %s313 = sadd.s32 %s312, 1
    %p316 = scmp.eq.s32.totalorder %s26, 1
    %p317 = scmp.ne.s32.totalorder %s312, %s314
    %p318 = scmp.eq.s32.totalorder %s26, 0
    %p319 = por %p317, %p318
    %p320 = scmp.ne.s32.totalorder %s312, %s314
    %p321 = scmp.eq.s32.totalorder %s31, 1
    %p322 = por %p320, %p321
    %p323 = scmp.ne.s32.totalorder %s314, %s315
    %p324 = scmp.eq.s32.totalorder %s31, 0
    %p325 = por %p323, %p324
    %p326 = scmp.ne.s32.totalorder %s314, %s315
    %p327 = scmp.eq.s32.totalorder %s32, 1
    %p328 = por %p326, %p327
    %p330 = scmp.ne.s32.totalorder %s315, %s329
    %p331 = scmp.eq.s32.totalorder %s32, 0
    %p332 = por %p330, %p331
    %s334 = sadd.s32 %s333, 1
    %p337 = scmp.eq.s32.totalorder %s26, 1
    %p338 = scmp.ne.s32.totalorder %s333, %s335
    %p339 = scmp.eq.s32.totalorder %s26, 0
    %p340 = por %p338, %p339
    %p341 = scmp.ne.s32.totalorder %s333, %s335
    %p342 = scmp.eq.s32.totalorder %s31, 1
    %p343 = por %p341, %p342
    %p344 = scmp.ne.s32.totalorder %s335, %s336
    %p345 = scmp.eq.s32.totalorder %s31, 0
    %p346 = por %p344, %p345
    %p347 = scmp.ne.s32.totalorder %s335, %s336
    %p348 = scmp.eq.s32.totalorder %s32, 1
    %p349 = por %p347, %p348
    %p351 = scmp.ne.s32.totalorder %s336, %s350
    %p352 = scmp.eq.s32.totalorder %s32, 0
    %p353 = por %p351, %p352
    %s355 = sadd.s32 %s354, 1
    %p358 = scmp.eq.s32.totalorder %s26, 1
    %p359 = scmp.ne.s32.totalorder %s354, %s356
    %p360 = scmp.eq.s32.totalorder %s26, 0
    %p361 = por %p359, %p360
    %p362 = scmp.ne.s32.totalorder %s354, %s356
    %p363 = scmp.eq.s32.totalorder %s31, 1
    %p364 = por %p362, %p363
    %p365 = scmp.ne.s32.totalorder %s356, %s357
    %p366 = scmp.eq.s32.totalorder %s31, 0
    %p367 = por %p365, %p366
    %p368 = scmp.ne.s32.totalorder %s356, %s357
    %p369 = scmp.eq.s32.totalorder %s32, 1
    %p370 = por %p368, %p369
    %p372 = scmp.ne.s32.totalorder %s357, %s371
    %p373 = scmp.eq.s32.totalorder %s32, 0
    %p374 = por %p372, %p373
    %s375 = ssub.s32 %s26, %s33
    %p376 = scmp.eq.s32.totalorder %s375, 0
    %s378 = sadd.s32 %s377, 1
    %s379 = scalar_select %p376, %s377, %s378
    %p382 = pneg %p376
    %p383 = scmp.eq.s32.totalorder %s26, 1
    %p384 = por %p382, %p383
    %p385 = scmp.ne.s32.totalorder %s377, %s380
    %p386 = scmp.eq.s32.totalorder %s26, 0
    %p387 = por %p385, %p386
    %p388 = scmp.ne.s32.totalorder %s377, %s380
    %p389 = scmp.eq.s32.totalorder %s31, 1
    %p390 = por %p388, %p389
    %p391 = scmp.ne.s32.totalorder %s380, %s381
    %p392 = scmp.eq.s32.totalorder %s31, 0
    %p393 = por %p391, %p392
    %p394 = scmp.ne.s32.totalorder %s380, %s381
    %p395 = scmp.eq.s32.totalorder %s32, 1
    %p396 = por %p394, %p395
    %p398 = scmp.ne.s32.totalorder %s381, %s397
    %p399 = scmp.eq.s32.totalorder %s32, 0
    %p400 = por %p398, %p399
    %s401 = ssub.s32 %s26, %s33
    %p402 = scmp.eq.s32.totalorder %s401, 0
    %s404 = sadd.s32 %s403, 1
    %s405 = scalar_select %p402, %s403, %s404
    %p408 = pneg %p402
    %p409 = scmp.eq.s32.totalorder %s26, 1
    %p410 = por %p408, %p409
    %p411 = scmp.ne.s32.totalorder %s403, %s406
    %p412 = scmp.eq.s32.totalorder %s26, 0
    %p413 = por %p411, %p412
    %p414 = scmp.ne.s32.totalorder %s403, %s406
    %p415 = scmp.eq.s32.totalorder %s31, 1
    %p416 = por %p414, %p415
    %p417 = scmp.ne.s32.totalorder %s406, %s407
    %p418 = scmp.eq.s32.totalorder %s31, 0
    %p419 = por %p417, %p418
    %p420 = scmp.ne.s32.totalorder %s406, %s407
    %p421 = scmp.eq.s32.totalorder %s32, 1
    %p422 = por %p420, %p421
    %p424 = scmp.ne.s32.totalorder %s407, %s423
    %p425 = scmp.eq.s32.totalorder %s32, 0
    %p426 = por %p424, %p425
    %p427 = scmp.le.s32.totalorder 1, %s26
    %p428 = scmp.lt.s32.totalorder %s26, 3
    %p429 = pnand %p427, %p428
    %p430 = pneg %p429
    // Predicated region
    $region9: #{alphazero_forward.1} parent=5 // pred_check
      _
    $region10: #{alphazero_forward.1} parent=5 // pred_check_branch
      %432 = sbr.rel (%p429) target = $region12
    $region11: #{alphazero_forward.1} parent=5 // pred_region
      %s433 = ssub.s32 %s26, 1
      // Predicated region
      $region13: #{alphazero_forward.1} parent=11 // pred_check
        %p434 = pneg %p73
      $region14: #{alphazero_forward.1} parent=11 // pred_check_branch
        %436 = sbr.rel (%p434) target = $region16
      $region15: #{alphazero_forward.1} parent=11 // pred_region
        _
      $region16: #{alphazero_forward.1} parent=11 // pred_fallthru
        _
      // Predicated region
      $region17: #{alphazero_forward.1} parent=11 // pred_check
        %p437 = pneg %p94
      $region18: #{alphazero_forward.1} parent=11 // pred_check_branch
        %439 = sbr.rel (%p437) target = $region20
      $region19: #{alphazero_forward.1} parent=11 // pred_region
        _
      $region20: #{alphazero_forward.1} parent=11 // pred_fallthru
        _
      // Predicated region
      $region21: #{alphazero_forward.1} parent=11 // pred_check
        %p440 = pneg %p115
      $region22: #{alphazero_forward.1} parent=11 // pred_check_branch
        %442 = sbr.rel (%p440) target = $region24
      $region23: #{alphazero_forward.1} parent=11 // pred_region
        _
      $region24: #{alphazero_forward.1} parent=11 // pred_fallthru
        _
      // Predicated region
      $region25: #{alphazero_forward.1} parent=11 // pred_check
        %p443 = pneg %p136
      $region26: #{alphazero_forward.1} parent=11 // pred_check_branch
        %445 = sbr.rel (%p443) target = $region28
      $region27: #{alphazero_forward.1} parent=11 // pred_region
        _
      $region28: #{alphazero_forward.1} parent=11 // pred_fallthru
        _
      // Predicated region
      $region29: #{alphazero_forward.1} parent=11 // pred_check
        %p446 = pneg %p157
      $region30: #{alphazero_forward.1} parent=11 // pred_check_branch
        %448 = sbr.rel (%p446) target = $region32
      $region31: #{alphazero_forward.1} parent=11 // pred_region
        _
      $region32: #{alphazero_forward.1} parent=11 // pred_fallthru
        _
      // Predicated region
      $region33: #{alphazero_forward.1} parent=11 // pred_check
        %p449 = pneg %p178
      $region34: #{alphazero_forward.1} parent=11 // pred_check_branch
        %451 = sbr.rel (%p449) target = $region36
      $region35: #{alphazero_forward.1} parent=11 // pred_region
        _
      $region36: #{alphazero_forward.1} parent=11 // pred_fallthru
        _
      // Predicated region
      $region37: #{alphazero_forward.1} parent=11 // pred_check
        %p452 = pneg %p199
      $region38: #{alphazero_forward.1} parent=11 // pred_check_branch
        %454 = sbr.rel (%p452) target = $region40
      $region39: #{alphazero_forward.1} parent=11 // pred_region
        _
      $region40: #{alphazero_forward.1} parent=11 // pred_fallthru
        _
      // Predicated region
      $region41: #{alphazero_forward.1} parent=11 // pred_check
        %p455 = pneg %p220
      $region42: #{alphazero_forward.1} parent=11 // pred_check_branch
        %457 = sbr.rel (%p455) target = $region44
      $region43: #{alphazero_forward.1} parent=11 // pred_region
        _
      $region44: #{alphazero_forward.1} parent=11 // pred_fallthru
        _
      // Predicated region
      $region45: #{alphazero_forward.1} parent=11 // pred_check
        %p458 = pneg %p241
      $region46: #{alphazero_forward.1} parent=11 // pred_check_branch
        %460 = sbr.rel (%p458) target = $region48
      $region47: #{alphazero_forward.1} parent=11 // pred_region
        _
      $region48: #{alphazero_forward.1} parent=11 // pred_fallthru
        _
      // Predicated region
      $region49: #{alphazero_forward.1} parent=11 // pred_check
        %p461 = pneg %p262
      $region50: #{alphazero_forward.1} parent=11 // pred_check_branch
        %463 = sbr.rel (%p461) target = $region52
      $region51: #{alphazero_forward.1} parent=11 // pred_region
        _
      $region52: #{alphazero_forward.1} parent=11 // pred_fallthru
        _
      // Predicated region
      $region53: #{alphazero_forward.1} parent=11 // pred_check
        %p464 = pneg %p283
      $region54: #{alphazero_forward.1} parent=11 // pred_check_branch
        %466 = sbr.rel (%p464) target = $region56
      $region55: #{alphazero_forward.1} parent=11 // pred_region
        _
      $region56: #{alphazero_forward.1} parent=11 // pred_fallthru
        _
      // Predicated region
      $region57: #{alphazero_forward.1} parent=11 // pred_check
        %p467 = pneg %p304
      $region58: #{alphazero_forward.1} parent=11 // pred_check_branch
        %469 = sbr.rel (%p467) target = $region60
      $region59: #{alphazero_forward.1} parent=11 // pred_region
        _
      $region60: #{alphazero_forward.1} parent=11 // pred_fallthru
        _
      // Predicated region
      $region61: #{alphazero_forward.1} parent=11 // pred_check
        %p470 = pneg %p325
      $region62: #{alphazero_forward.1} parent=11 // pred_check_branch
        %472 = sbr.rel (%p470) target = $region64
      $region63: #{alphazero_forward.1} parent=11 // pred_region
        _
      $region64: #{alphazero_forward.1} parent=11 // pred_fallthru
        _
      // Predicated region
      $region65: #{alphazero_forward.1} parent=11 // pred_check
        %p473 = pneg %p346
      $region66: #{alphazero_forward.1} parent=11 // pred_check_branch
        %475 = sbr.rel (%p473) target = $region68
      $region67: #{alphazero_forward.1} parent=11 // pred_region
        _
      $region68: #{alphazero_forward.1} parent=11 // pred_fallthru
        _
      // Predicated region
      $region69: #{alphazero_forward.1} parent=11 // pred_check
        %p476 = pneg %p367
      $region70: #{alphazero_forward.1} parent=11 // pred_check_branch
        %478 = sbr.rel (%p476) target = $region72
      $region71: #{alphazero_forward.1} parent=11 // pred_region
        _
      $region72: #{alphazero_forward.1} parent=11 // pred_fallthru
        _
    $region12: #{alphazero_forward.1} parent=5 // pred_fallthru
      _
    %p479 = scmp.lt.s32.totalorder %s26, 2
    // Predicated region
    $region73: #{alphazero_forward.1} parent=5 // pred_check
      %p480 = pneg %p479
    $region74: #{alphazero_forward.1} parent=5 // pred_check_branch
      %482 = sbr.rel (%p480) target = $region76
    $region75: #{alphazero_forward.1} parent=5 // pred_region
      // Predicated region
      $region77: #{alphazero_forward.1} parent=75 // pred_check
        %p483 = pneg %p46
      $region78: #{alphazero_forward.1} parent=75 // pred_check_branch
        %485 = sbr.rel (%p483) target = $region80
      $region79: #{alphazero_forward.1} parent=75 // pred_region
        %p486 = scmp.lt.s32.totalorder %s26, 1
        %s487 = scalar_select %p486, %s26, 1
        %s488 = smul.addr %s487, 32
        %s489 = smul.addr %s488, 4
        %s490 = scalar_lea.vmem %s0, %s489
      $region80: #{alphazero_forward.1} parent=75 // pred_fallthru
        _
    $region76: #{alphazero_forward.1} parent=5 // pred_fallthru
      _
    %p491 = scmp.le.s32.totalorder 1, %s26
    %p492 = scmp.lt.s32.totalorder %s26, 3
    %p493 = pnand %p491, %p492
    %p494 = pneg %p493
    // Predicated region
    $region81: #{alphazero_forward.1} parent=5 // pred_check
      _
    $region82: #{alphazero_forward.1} parent=5 // pred_check_branch
      %496 = sbr.rel (%p493) target = $region84
    $region83: #{alphazero_forward.1} parent=5 // pred_region
      %s497 = ssub.s32 %s26, 1
      %p498 = scmp.lt.s32.totalorder %s31, 1
      %s499 = scalar_select %p498, %s31, 1
      %s500 = smul.addr %s499, 32
      %s501 = smul.addr %s500, 4
      %s502 = scalar_lea.vmem %s0, %s501
      %p503 = pneg %p52
      %p504 = pneg %p49
      %p505 = pneg %p73
      %p506 = pneg %p70
      %p507 = pneg %p94
      %p508 = pneg %p91
      %p509 = pneg %p115
      %p510 = pneg %p112
      %p511 = pneg %p136
      %p512 = pneg %p133
      %p513 = pneg %p157
      %p514 = pneg %p154
      %p515 = pneg %p178
      %p516 = pneg %p175
      %p517 = pneg %p199
      %p518 = pneg %p196
      %p519 = pneg %p220
      %p520 = pneg %p217
      %p521 = pneg %p241
      %p522 = pneg %p238
      %p523 = pneg %p262
      %p524 = pneg %p259
      %p525 = pneg %p283
      %p526 = pneg %p280
      %p527 = pneg %p304
      %p528 = pneg %p301
      %p529 = pneg %p325
      %p530 = pneg %p322
      %p531 = pneg %p346
      %p532 = pneg %p343
      %p533 = pneg %p367
      %p534 = pneg %p364
      %p535 = pneg %p393
      %p536 = pneg %p390
      %p537 = scmp.lt.s32.totalorder %s31, 1
      %s538 = scalar_select %p537, %s31, 1
      %s539 = smul.addr %s538, 29
      %s540 = smul.addr %s539, 8
      %s541 = scalar_lea.vmem %s16, %s540
      %p542 = pneg %p419
      %p543 = pneg %p416
      %p544 = scmp.lt.s32.totalorder %s31, 1
      %s545 = scalar_select %p544, %s31, 1
      %s546 = scalar_lea.vmem %s17, %s545
      %p547 = scmp.lt.s32.totalorder %s31, 1
      %s548 = scalar_select %p547, %s31, 1
      %s549 = smul.addr %s548, 32
      %s550 = smul.addr %s549, 4
      %s551 = scalar_lea.vmem %s0, %s550
      %p552 = scmp.lt.s32.totalorder %s31, 1
      %s553 = scalar_select %p552, %s31, 1
      %s554 = smul.addr %s553, 29
      %s555 = smul.addr %s554, 8
      %s556 = scalar_lea.vmem %s16, %s555
      %p557 = scmp.lt.s32.totalorder %s31, 1
      %s558 = scalar_select %p557, %s31, 1
      %s559 = scalar_lea.vmem %s17, %s558
      %vm561 = vcmask 257024
      %562 = vst.msk [vmem:[#allocation2] sm:$0xf] %vm561, 0
      %563 = vst.msk [vmem:[#allocation2 + $0x4] sm:$0xf] %vm561, 0
      %564 = vst.msk [vmem:[#allocation2 + $0x8] sm:$0xf] %vm561, 0
      %565 = vst.msk [vmem:[#allocation2 + $0xc] sm:$0xf] %vm561, 0
      %566 = vst.msk [vmem:[#allocation2 + $0x90] sm:$0xf] %vm561, 0
      %567 = vst.msk [vmem:[#allocation2 + $0x94] sm:$0xf] %vm561, 0
      %568 = vst.msk [vmem:[#allocation2 + $0x98] sm:$0xf] %vm561, 0
      %569 = vst.msk [vmem:[#allocation2 + $0x9c] sm:$0xf] %vm561, 0
      %vm570 = vcmask 519168
      %571 = vst.msk [vmem:[#allocation3] sm:$0xf] %vm570, 0
      %572 = vst.msk [vmem:[#allocation3 + $0x4] sm:$0xf] %vm570, 0
      %573 = vst.msk [vmem:[#allocation3 + $0x8] sm:$0xf] %vm570, 0
      %574 = vst.msk [vmem:[#allocation3 + $0xc] sm:$0xf] %vm570, 0
      %575 = vst.msk [vmem:[#allocation3 + $0x90] sm:$0xf] %vm570, 0
      %576 = vst.msk [vmem:[#allocation3 + $0x94] sm:$0xf] %vm570, 0
      %577 = vst.msk [vmem:[#allocation3 + $0x98] sm:$0xf] %vm570, 0
      %578 = vst.msk [vmem:[#allocation3 + $0x9c] sm:$0xf] %vm570, 0
      %v579 = vld [vmem:[%s551] sm:$0xf]
      %v580 = vld [vmem:[%s551 + $0x4] sm:$0xf]
      %v581 = vld [vmem:[%s551 + $0x8] sm:$0xf]
      %v582 = vld [vmem:[%s551 + $0xc] sm:$0xf]
      %v583 = vld [vmem:[%s551 + $0x10] sm:$0xf]
      %v584 = vld [vmem:[%s551 + $0x14] sm:$0xf]
      %v585 = vld [vmem:[%s551 + $0x18] sm:$0xf]
      %v586 = vld [vmem:[%s551 + $0x1c] sm:$0xf]
      %v587 = vld [vmem:[%s551 + $0x20] sm:$0xf]
      %v588 = vld [vmem:[%s551 + $0x24] sm:$0xf]
      %v589 = vld [vmem:[%s551 + $0x28] sm:$0xf]
      %v590 = vld [vmem:[%s551 + $0x2c] sm:$0xf]
      %v591 = vld [vmem:[%s551 + $0x30] sm:$0xf]
      %v592 = vld [vmem:[%s551 + $0x34] sm:$0xf]
      %v593 = vld [vmem:[%s551 + $0x38] sm:$0xf]
      %v594 = vld [vmem:[%s551 + $0x3c] sm:$0xf]
      %v595 = vld [vmem:[%s1] sm:$0xf]
      %v596 = vld [vmem:[%s1 + $0x4] sm:$0xf]
      %v597 = vld [vmem:[%s1 + $0x8] sm:$0xf]
      %v598 = vld [vmem:[%s1 + $0xc] sm:$0xf]
      %v599 = vld [vmem:[%s1 + $0x10] sm:$0x3]
      %v600 = vlaneseq
      %v601 = vshrl.u32 %v600, 7
      %v602 = vadd.s32 %v601, 8
      %v603 = vadd.s32 %v601, 16
      %v604 = vadd.s32 %v601, 24
      %v605 = vadd.s32 %v601, 32
      %v606 = vadd.s32 %v601, 40
      %v607 = vadd.s32 %v601, 48
      %v608 = vadd.s32 %v601, 56
      %v609 = vadd.s32 %v601, 64
      %v610 = vadd.s32 %v601, 72
      %v611 = vadd.s32 %v601, 80
      %v612 = vadd.s32 %v601, 88
      %v613 = vadd.s32 %v601, 96
      %v614 = vadd.s32 %v601, 104
      %v615 = vadd.s32 %v601, 112
      %v616 = vadd.s32 %v601, 120
      %vm617 = vcmp.lt.s32.totalorder %v601, 0
      %v618 = vsub.s32 0, %v601
      %v619 = vsel %vm617, %v618, %v601
      %v620 = vshrl.u32 %v619, 4
      %v621 = vand.u32 %v619, 15
      %v622 = vsub.s32 0, %v621
      %v623 = vsel %vm617, %v622, %v621
      %vm624 = vcmp.lt.s32.totalorder %v602, 0
      %v625 = vsub.s32 0, %v602
      %v626 = vsel %vm624, %v625, %v602
      %v627 = vshrl.u32 %v626, 4
      %v628 = vand.u32 %v626, 15
      %v629 = vsub.s32 0, %v628
      %v630 = vsel %vm624, %v629, %v628
      %vm631 = vcmp.lt.s32.totalorder %v603, 0
      %v632 = vsub.s32 0, %v603
      %v633 = vsel %vm631, %v632, %v603
      %v634 = vshrl.u32 %v633, 4
      %v635 = vand.u32 %v633, 15
      %v636 = vsub.s32 0, %v635
      %v637 = vsel %vm631, %v636, %v635
      %vm638 = vcmp.lt.s32.totalorder %v604, 0
      %v639 = vsub.s32 0, %v604
      %v640 = vsel %vm638, %v639, %v604
      %v641 = vshrl.u32 %v640, 4
      %v642 = vand.u32 %v640, 15
      %v643 = vsub.s32 0, %v642
      %v644 = vsel %vm638, %v643, %v642
      %vm645 = vcmp.lt.s32.totalorder %v605, 0
      %v646 = vsub.s32 0, %v605
      %v647 = vsel %vm645, %v646, %v605
      %v648 = vshrl.u32 %v647, 4
      %v649 = vand.u32 %v647, 15
      %v650 = vsub.s32 0, %v649
      %v651 = vsel %vm645, %v650, %v649
      %vm652 = vcmp.lt.s32.totalorder %v606, 0
      %v653 = vsub.s32 0, %v606
      %v654 = vsel %vm652, %v653, %v606
      %v655 = vshrl.u32 %v654, 4
      %v656 = vand.u32 %v654, 15
      %v657 = vsub.s32 0, %v656
      %v658 = vsel %vm652, %v657, %v656
      %vm659 = vcmp.lt.s32.totalorder %v607, 0
      %v660 = vsub.s32 0, %v607
      %v661 = vsel %vm659, %v660, %v607
      %v662 = vshrl.u32 %v661, 4
      %v663 = vand.u32 %v661, 15
      %v664 = vsub.s32 0, %v663
      %v665 = vsel %vm659, %v664, %v663
      %vm666 = vcmp.lt.s32.totalorder %v608, 0
      %v667 = vsub.s32 0, %v608
      %v668 = vsel %vm666, %v667, %v608
      %v669 = vshrl.u32 %v668, 4
      %v670 = vand.u32 %v668, 15
      %v671 = vsub.s32 0, %v670
      %v672 = vsel %vm666, %v671, %v670
      %vm673 = vcmp.lt.s32.totalorder %v609, 0
      %v674 = vsub.s32 0, %v609
      %v675 = vsel %vm673, %v674, %v609
      %v676 = vshrl.u32 %v675, 4
      %v677 = vand.u32 %v675, 15
      %v678 = vsub.s32 0, %v677
      %v679 = vsel %vm673, %v678, %v677
      %vm680 = vcmp.lt.s32.totalorder %v610, 0
      %v681 = vsub.s32 0, %v610
      %v682 = vsel %vm680, %v681, %v610
      %v683 = vshrl.u32 %v682, 4
      %v684 = vand.u32 %v682, 15
      %v685 = vsub.s32 0, %v684
      %v686 = vsel %vm680, %v685, %v684
      %vm687 = vcmp.lt.s32.totalorder %v611, 0
      %v688 = vsub.s32 0, %v611
      %v689 = vsel %vm687, %v688, %v611
      %v690 = vshrl.u32 %v689, 4
      %v691 = vand.u32 %v689, 15
      %v692 = vsub.s32 0, %v691
      %v693 = vsel %vm687, %v692, %v691
      %vm694 = vcmp.lt.s32.totalorder %v612, 0
      %v695 = vsub.s32 0, %v612
      %v696 = vsel %vm694, %v695, %v612
      %v697 = vshrl.u32 %v696, 4
      %v698 = vand.u32 %v696, 15
      %v699 = vsub.s32 0, %v698
      %v700 = vsel %vm694, %v699, %v698
      %vm701 = vcmp.lt.s32.totalorder %v613, 0
      %v702 = vsub.s32 0, %v613
      %v703 = vsel %vm701, %v702, %v613
      %v704 = vshrl.u32 %v703, 4
      %v705 = vand.u32 %v703, 15
      %v706 = vsub.s32 0, %v705
      %v707 = vsel %vm701, %v706, %v705
      %vm708 = vcmp.lt.s32.totalorder %v614, 0
      %v709 = vsub.s32 0, %v614
      %v710 = vsel %vm708, %v709, %v614
      %v711 = vshrl.u32 %v710, 4
      %v712 = vand.u32 %v710, 15
      %v713 = vsub.s32 0, %v712
      %v714 = vsel %vm708, %v713, %v712
      %vm715 = vcmp.lt.s32.totalorder %v615, 0
      %v716 = vsub.s32 0, %v615
      %v717 = vsel %vm715, %v716, %v615
      %v718 = vshrl.u32 %v717, 4
      %v719 = vand.u32 %v717, 15
      %v720 = vsub.s32 0, %v719
      %v721 = vsel %vm715, %v720, %v719
      %vm722 = vcmp.lt.s32.totalorder %v616, 0
      %v723 = vsub.s32 0, %v616
      %v724 = vsel %vm722, %v723, %v616
      %v725 = vshrl.u32 %v724, 4
      %v726 = vand.u32 %v724, 15
      %v727 = vsub.s32 0, %v726
      %v728 = vsel %vm722, %v727, %v726
      %vm729 = vcmp.ne.s32.totalorder %v623, 0
      %vm730 = vcmp.ne.s32.totalorder %v630, 0
      %vm731 = vcmp.ne.s32.totalorder %v637, 0
      %vm732 = vcmp.ne.s32.totalorder %v644, 0
      %vm733 = vcmp.ne.s32.totalorder %v651, 0
      %vm734 = vcmp.ne.s32.totalorder %v658, 0
      %vm735 = vcmp.ne.s32.totalorder %v665, 0
      %vm736 = vcmp.ne.s32.totalorder %v672, 0
      %vm737 = vcmp.ne.s32.totalorder %v679, 0
      %vm738 = vcmp.ne.s32.totalorder %v686, 0
      %vm739 = vcmp.ne.s32.totalorder %v693, 0
      %vm740 = vcmp.ne.s32.totalorder %v700, 0
      %vm741 = vcmp.ne.s32.totalorder %v707, 0
      %vm742 = vcmp.ne.s32.totalorder %v714, 0
      %vm743 = vcmp.ne.s32.totalorder %v721, 0
      %vm744 = vcmp.ne.s32.totalorder %v728, 0
      %vm745 = vcmp.lt.s32.totalorder %v623, 0
      %vm746 = vcmp.lt.s32.totalorder %v630, 0
      %vm747 = vcmp.lt.s32.totalorder %v637, 0
      %vm748 = vcmp.lt.s32.totalorder %v644, 0
      %vm749 = vcmp.lt.s32.totalorder %v651, 0
      %vm750 = vcmp.lt.s32.totalorder %v658, 0
      %vm751 = vcmp.lt.s32.totalorder %v665, 0
      %vm752 = vcmp.lt.s32.totalorder %v672, 0
      %vm753 = vcmp.lt.s32.totalorder %v679, 0
      %vm754 = vcmp.lt.s32.totalorder %v686, 0
      %vm755 = vcmp.lt.s32.totalorder %v693, 0
      %vm756 = vcmp.lt.s32.totalorder %v700, 0
      %vm757 = vcmp.lt.s32.totalorder %v707, 0
      %vm758 = vcmp.lt.s32.totalorder %v714, 0
      %vm759 = vcmp.lt.s32.totalorder %v721, 0
      %vm760 = vcmp.lt.s32.totalorder %v728, 0
      %vm761 = vmand %vm745, %vm729
      %vm762 = vmand %vm746, %vm730
      %vm763 = vmand %vm747, %vm731
      %vm764 = vmand %vm748, %vm732
      %vm765 = vmand %vm749, %vm733
      %vm766 = vmand %vm750, %vm734
      %vm767 = vmand %vm751, %vm735
      %vm768 = vmand %vm752, %vm736
      %vm769 = vmand %vm753, %vm737
      %vm770 = vmand %vm754, %vm738
      %vm771 = vmand %vm755, %vm739
      %vm772 = vmand %vm756, %vm740
      %vm773 = vmand %vm757, %vm741
      %vm774 = vmand %vm758, %vm742
      %vm775 = vmand %vm759, %vm743
      %vm776 = vmand %vm760, %vm744
      %v777 = vadd.s32 %v623, 16
      %v778 = vadd.s32 %v630, 16
      %v779 = vadd.s32 %v637, 16
      %v780 = vadd.s32 %v644, 16
      %v781 = vadd.s32 %v651, 16
      %v782 = vadd.s32 %v658, 16
      %v783 = vadd.s32 %v665, 16
      %v784 = vadd.s32 %v672, 16
      %v785 = vadd.s32 %v679, 16
      %v786 = vadd.s32 %v686, 16
      %v787 = vadd.s32 %v693, 16
      %v788 = vadd.s32 %v700, 16
      %v789 = vadd.s32 %v707, 16
      %v790 = vadd.s32 %v714, 16
      %v791 = vadd.s32 %v721, 16
      %v792 = vadd.s32 %v728, 16
      %v793 = vsel %vm761, %v777, %v623
      %v794 = vsel %vm762, %v778, %v630
      %v795 = vsel %vm763, %v779, %v637
      %v796 = vsel %vm764, %v780, %v644
      %v797 = vsel %vm765, %v781, %v651
      %v798 = vsel %vm766, %v782, %v658
      %v799 = vsel %vm767, %v783, %v665
      %v800 = vsel %vm768, %v784, %v672
      %v801 = vsel %vm769, %v785, %v679
      %v802 = vsel %vm770, %v786, %v686
      %v803 = vsel %vm771, %v787, %v693
      %v804 = vsel %vm772, %v788, %v700
      %v805 = vsel %vm773, %v789, %v707
      %v806 = vsel %vm774, %v790, %v714
      %v807 = vsel %vm775, %v791, %v721
      %v808 = vsel %vm776, %v792, %v728
      %vm809 = vcmp.lt.s32.totalorder %v793, 15
      %vm810 = vcmp.lt.s32.totalorder %v794, 15
      %vm811 = vcmp.lt.s32.totalorder %v795, 15
      %vm812 = vcmp.lt.s32.totalorder %v796, 15
      %vm813 = vcmp.lt.s32.totalorder %v797, 15
      %vm814 = vcmp.lt.s32.totalorder %v798, 15
      %vm815 = vcmp.lt.s32.totalorder %v799, 15
      %vm816 = vcmp.lt.s32.totalorder %v800, 15
      %vm817 = vcmp.lt.s32.totalorder %v801, 15
      %vm818 = vcmp.lt.s32.totalorder %v802, 15
      %vm819 = vcmp.lt.s32.totalorder %v803, 15
      %vm820 = vcmp.lt.s32.totalorder %v804, 15
      %vm821 = vcmp.lt.s32.totalorder %v805, 15
      %vm822 = vcmp.lt.s32.totalorder %v806, 15
      %vm823 = vcmp.lt.s32.totalorder %v807, 15
      %vm824 = vcmp.lt.s32.totalorder %v808, 15
      %vm825 = vcmp.lt.s32.totalorder %v601, 240
      %vm826 = vcmp.lt.s32.totalorder %v602, 240
      %vm827 = vcmp.lt.s32.totalorder %v603, 240
      %vm828 = vcmp.lt.s32.totalorder %v604, 240
      %vm829 = vcmp.lt.s32.totalorder %v605, 240
      %vm830 = vcmp.lt.s32.totalorder %v606, 240
      %vm831 = vcmp.lt.s32.totalorder %v607, 240
      %vm832 = vcmp.lt.s32.totalorder %v608, 240
      %vm833 = vcmp.lt.s32.totalorder %v609, 240
      %vm834 = vcmp.lt.s32.totalorder %v610, 240
      %vm835 = vcmp.lt.s32.totalorder %v611, 240
      %vm836 = vcmp.lt.s32.totalorder %v612, 240
      %vm837 = vcmp.lt.s32.totalorder %v613, 240
      %vm838 = vcmp.lt.s32.totalorder %v614, 240
      %vm839 = vcmp.lt.s32.totalorder %v615, 240
      %vm840 = vcmp.lt.s32.totalorder %v616, 240
      %vm841 = vmand %vm809, %vm825
      %vm842 = vmand %vm810, %vm826
      %vm843 = vmand %vm811, %vm827
      %vm844 = vmand %vm812, %vm828
      %vm845 = vmand %vm813, %vm829
      %vm846 = vmand %vm814, %vm830
      %vm847 = vmand %vm815, %vm831
      %vm848 = vmand %vm816, %vm832
      %vm849 = vmand %vm817, %vm833
      %vm850 = vmand %vm818, %vm834
      %vm851 = vmand %vm819, %vm835
      %vm852 = vmand %vm820, %vm836
      %vm853 = vmand %vm821, %vm837
      %vm854 = vmand %vm822, %vm838
      %vm855 = vmand %vm823, %vm839
      %vm856 = vmand %vm824, %vm840
      %v857 = vld [vmem:[%s2] sm:$0x1]
      %v859 = vlaneseq
      %v860 = vshrl.u32 %v859, 7
      %v861 = vsub.s32 0, %v860
      %v862 = vrot.slane %v857, %v861
      %v880 = vunpack.c.l.b16 %v579
      %v881 = vunpack.c.l.b16 %v580
      %v882 = vunpack.c.l.b16 %v581
      %v883 = vunpack.c.l.b16 %v582
      %v884 = vunpack.c.l.b16 %v583
      %v885 = vunpack.c.l.b16 %v584
      %v886 = vunpack.c.l.b16 %v585
      %v887 = vunpack.c.l.b16 %v586
      %v888 = vunpack.c.l.b16 %v587
      %v889 = vunpack.c.l.b16 %v588
      %v890 = vunpack.c.l.b16 %v589
      %v891 = vunpack.c.l.b16 %v590
      %v892 = vunpack.c.l.b16 %v591
      %v893 = vunpack.c.l.b16 %v592
      %v894 = vunpack.c.l.b16 %v593
      %v895 = vunpack.c.l.b16 %v594
      %v896 = vpack.c.b16 %v881, %v880
      %v897 = vpack.c.b16 %v883, %v882
      %v898 = vpack.c.b16 %v885, %v884
      %v899 = vpack.c.b16 %v887, %v886
      %v900 = vpack.c.b16 %v889, %v888
      %v901 = vpack.c.b16 %v891, %v890
      %v902 = vpack.c.b16 %v893, %v892
      %v903 = vpack.c.b16 %v895, %v894
      %v909 = vunpack.c.l.b16 %v595
      %v910 = vunpack.c.l.b16 %v596
      %v911 = vunpack.c.l.b16 %v597
      %v912 = vunpack.c.l.b16 %v598
      %v913 = vunpack.c.l.b16 %v599
      %v914 = vpack.c.b16 %v910, %v909
      %v915 = vpack.c.b16 %v912, %v911
      %v916 = vpack.c.b16 %v913, %v913
      %vm919 = vcmask 293888
      %v921 = vsel %vm919, %v896, 0
      %v924 = vsel %vm919, %v897, 0
      %v927 = vsel %vm919, %v898, 0
      %v930 = vsel %vm919, %v899, 0
      %v933 = vsel %vm919, %v900, 0
      %v936 = vsel %vm919, %v901, 0
      %v939 = vsel %vm919, %v902, 0
      %v942 = vsel %vm919, %v903, 0
      %vm944 = vcmask 1041408
      %v946 = vsel %vm944, %v916, 0
      %948 = vmatprep.subr.bf16.mxu0 0
      %949 = vmatpush1.bf16.msra.mxu0 0
      %950 = vmatprep.subr.bf16.mxu0 0
      %951 = vmatpush1.bf16.msra.mxu0 0
      %952 = vmatprep.subr.bf16.mxu0 0
      %953 = vmatpush1.bf16.msra.mxu0 0
      %954 = vmatprep.subr.bf16.mxu0 0
      %955 = vmatpush1.bf16.msra.mxu0 0
      %956 = vmatprep.subr.bf16.mxu0 0
      %957 = vmatpush1.bf16.msra.mxu0 0
      %958 = vmatprep.subr.bf16.mxu0 0
      %959 = vmatpush1.bf16.msra.mxu0 %v946
      %960 = vmatprep.subr.bf16.mxu0 0
      %961 = vmatpush1.bf16.msra.mxu0 %v915
      %962 = vmatprep.subr.bf16.mxu0 0
      %963 = vmatpush1.bf16.msra.mxu0 %v914
      %964 = vmatprep.subr.bf16.mxu0 0
      %965 = vmatpush2.bf16.msra.mxu0 0
      %966 = vmatprep.subr.bf16.mxu0 0
      %967 = vmatpush2.bf16.msra.mxu0 0
      %968 = vmatprep.subr.bf16.mxu0 0
      %969 = vmatpush2.bf16.msra.mxu0 0
      %970 = vmatprep.subr.bf16.mxu0 0
      %971 = vmatpush2.bf16.msra.mxu0 0
      %972 = vmatprep.subr.bf16.mxu0 0
      %973 = vmatpush2.bf16.msra.mxu0 0
      %974 = vmatprep.subr.bf16.mxu0 0
      %975 = vmatpush2.bf16.msra.mxu0 0
      %976 = vmatprep.subr.bf16.mxu0 0
      %977 = vmatpush2.bf16.msra.mxu0 0
      %978 = vmatprep.subr.bf16.mxu0 0
      %979 = vmatpush2.bf16.msra.mxu0 0
      %980 = vmatprep.mubr.bf16.mxu0 0
      %981 = vmatmul.mubr.bf16.gmra.mxu0 %v921
      %v982 = vpop.f32.mrf.mxu0
      %v983 = vadd.f32 %v862, %v982
      %v984 = vpop.f32.mrf.mxu0
      %v985 = vpop.f32.mrf.mxu0
      %v986 = vadd.f32 %v862, %v985
      %v987 = vpop.f32.mrf.mxu0
      %988 = vmatprep.mubr.bf16.mxu0 0
      %989 = vmatmul.mubr.bf16.gmra.mxu0 %v924
      %v990 = vpop.f32.mrf.mxu0
      %v991 = vadd.f32 %v862, %v990
      %v992 = vpop.f32.mrf.mxu0
      %v993 = vpop.f32.mrf.mxu0
      %v994 = vadd.f32 %v862, %v993
      %v995 = vpop.f32.mrf.mxu0
      %996 = vmatprep.mubr.bf16.mxu0 0
      %997 = vmatmul.mubr.bf16.gmra.mxu0 %v927
      %v998 = vpop.f32.mrf.mxu0
      %v999 = vadd.f32 %v862, %v998
      %v1000 = vpop.f32.mrf.mxu0
      %v1001 = vpop.f32.mrf.mxu0
      %v1002 = vadd.f32 %v862, %v1001
      %v1003 = vpop.f32.mrf.mxu0
      %1004 = vmatprep.mubr.bf16.mxu0 0
      %1005 = vmatmul.mubr.bf16.gmra.mxu0 %v930
      %v1006 = vpop.f32.mrf.mxu0
      %v1007 = vadd.f32 %v862, %v1006
      %v1008 = vpop.f32.mrf.mxu0
      %v1009 = vpop.f32.mrf.mxu0
      %v1010 = vadd.f32 %v862, %v1009
      %v1011 = vpop.f32.mrf.mxu0
      %1012 = vmatprep.mubr.bf16.mxu0 0
      %1013 = vmatmul.mubr.bf16.gmra.mxu0 %v933
      %v1014 = vpop.f32.mrf.mxu0
      %v1015 = vadd.f32 %v862, %v1014
      %v1016 = vpop.f32.mrf.mxu0
      %v1017 = vpop.f32.mrf.mxu0
      %v1018 = vadd.f32 %v862, %v1017
      %v1019 = vpop.f32.mrf.mxu0
      %1020 = vmatprep.mubr.bf16.mxu0 0
      %1021 = vmatmul.mubr.bf16.gmra.mxu0 %v936
      %v1022 = vpop.f32.mrf.mxu0
      %v1023 = vadd.f32 %v862, %v1022
      %v1024 = vpop.f32.mrf.mxu0
      %v1025 = vpop.f32.mrf.mxu0
      %v1026 = vadd.f32 %v862, %v1025
      %v1027 = vpop.f32.mrf.mxu0
      %1028 = vmatprep.mubr.bf16.mxu0 0
      %1029 = vmatmul.mubr.bf16.gmra.mxu0 %v939
      %v1030 = vpop.f32.mrf.mxu0
      %v1031 = vadd.f32 %v862, %v1030
      %v1032 = vpop.f32.mrf.mxu0
      %v1033 = vpop.f32.mrf.mxu0
      %v1034 = vadd.f32 %v862, %v1033
      %v1035 = vpop.f32.mrf.mxu0
      %1036 = vmatprep.mubr.bf16.mxu0 0
      %1037 = vmatmul.mubr.bf16.gmra.mxu0 %v942
      %v1038 = vpop.f32.mrf.mxu0
      %v1039 = vadd.f32 %v862, %v1038
      %v1040 = vpop.f32.mrf.mxu0
      %v1041 = vpop.f32.mrf.mxu0
      %v1042 = vadd.f32 %v862, %v1041
      %v1043 = vpop.f32.mrf.mxu0
      %1044 = vdwg.mxu0
      %v1045 = vmax.f32 %v983, 0.0
      %v1046 = vmax.f32 %v986, 0.0
      %v1047 = vmax.f32 %v991, 0.0
      %v1048 = vmax.f32 %v994, 0.0
      %v1049 = vmax.f32 %v999, 0.0
      %v1050 = vmax.f32 %v1002, 0.0
      %v1051 = vmax.f32 %v1007, 0.0
      %v1052 = vmax.f32 %v1010, 0.0
      %v1053 = vmax.f32 %v1015, 0.0
      %v1054 = vmax.f32 %v1018, 0.0
      %v1055 = vmax.f32 %v1023, 0.0
      %v1056 = vmax.f32 %v1026, 0.0
      %v1057 = vmax.f32 %v1031, 0.0
      %v1058 = vmax.f32 %v1034, 0.0
      %v1059 = vmax.f32 %v1039, 0.0
      %v1060 = vmax.f32 %v1042, 0.0
      %v1061 = vsel %vm841, 1, 0
      %v1062 = vsel %vm842, 1, 0
      %v1063 = vsel %vm843, 1, 0
      %v1064 = vsel %vm844, 1, 0
      %v1065 = vsel %vm845, 1, 0
      %v1066 = vsel %vm846, 1, 0
      %v1067 = vsel %vm847, 1, 0
      %v1068 = vsel %vm848, 1, 0
      %v1069 = vsel %vm849, 1, 0
      %v1070 = vsel %vm850, 1, 0
      %v1071 = vsel %vm851, 1, 0
      %v1072 = vsel %vm852, 1, 0
      %v1073 = vsel %vm853, 1, 0
      %v1074 = vsel %vm854, 1, 0
      %v1075 = vsel %vm855, 1, 0
      %v1076 = vsel %vm856, 1, 0
      %vm1077 = vcmp.eq.s32.totalorder %v1061, 1
      %vm1078 = vcmp.eq.s32.totalorder %v1062, 1
      %vm1079 = vcmp.eq.s32.totalorder %v1063, 1
      %vm1080 = vcmp.eq.s32.totalorder %v1064, 1
      %vm1081 = vcmp.eq.s32.totalorder %v1065, 1
      %vm1082 = vcmp.eq.s32.totalorder %v1066, 1
      %vm1083 = vcmp.eq.s32.totalorder %v1067, 1
      %vm1084 = vcmp.eq.s32.totalorder %v1068, 1
      %vm1085 = vcmp.eq.s32.totalorder %v1069, 1
      %vm1086 = vcmp.eq.s32.totalorder %v1070, 1
      %vm1087 = vcmp.eq.s32.totalorder %v1071, 1
      %vm1088 = vcmp.eq.s32.totalorder %v1072, 1
      %vm1089 = vcmp.eq.s32.totalorder %v1073, 1
      %vm1090 = vcmp.eq.s32.totalorder %v1074, 1
      %vm1091 = vcmp.eq.s32.totalorder %v1075, 1
      %vm1092 = vcmp.eq.s32.totalorder %v1076, 1
      %v1093 = vsel %vm1077, %v1045, 0.0
      %v1094 = vsel %vm1078, %v1046, 0.0
      %v1095 = vsel %vm1079, %v1047, 0.0
      %v1096 = vsel %vm1080, %v1048, 0.0
      %v1097 = vsel %vm1081, %v1049, 0.0
      %v1098 = vsel %vm1082, %v1050, 0.0
      %v1099 = vsel %vm1083, %v1051, 0.0
      %v1100 = vsel %vm1084, %v1052, 0.0
      %v1101 = vsel %vm1085, %v1053, 0.0
      %v1102 = vsel %vm1086, %v1054, 0.0
      %v1103 = vsel %vm1087, %v1055, 0.0
      %v1104 = vsel %vm1088, %v1056, 0.0
      %v1105 = vsel %vm1089, %v1057, 0.0
      %v1106 = vsel %vm1090, %v1058, 0.0
      %v1107 = vsel %vm1091, %v1059, 0.0
      %v1108 = vsel %vm1092, %v1060, 0.0
      %v1109 = vpack.c.bf16 %v1094, %v1093
      %v1110 = vpack.c.bf16 %v1096, %v1095
      %v1111 = vpack.c.bf16 %v1098, %v1097
      %v1112 = vpack.c.bf16 %v1100, %v1099
      %v1113 = vpack.c.bf16 %v1102, %v1101
      %v1114 = vpack.c.bf16 %v1104, %v1103
      %v1115 = vpack.c.bf16 %v1106, %v1105
      %v1116 = vpack.c.bf16 %v1108, %v1107
      %v1125 = vunpack.c.l.b16 %v1109
      %v1126 = vunpack.c.h.b16 %v1109
      %v1127 = vunpack.c.l.b16 %v1110
      %v1128 = vunpack.c.h.b16 %v1110
      %v1129 = vunpack.c.l.b16 %v1111
      %v1130 = vunpack.c.h.b16 %v1111
      %v1131 = vunpack.c.l.b16 %v1112
      %v1132 = vunpack.c.h.b16 %v1112
      %v1133 = vunpack.c.l.b16 %v1113
      %v1134 = vunpack.c.h.b16 %v1113
      %v1135 = vunpack.c.l.b16 %v1114
      %v1136 = vunpack.c.h.b16 %v1114
      %v1137 = vunpack.c.l.b16 %v1115
      %v1138 = vunpack.c.h.b16 %v1115
      %v1139 = vunpack.c.l.b16 %v1116
      %v1140 = vunpack.c.h.b16 %v1116
      %v1141 = vpack.c.b16 %v1125, %v1125
      %v1142 = vpack.c.b16 %v1126, %v1126
      %v1143 = vpack.c.b16 %v1127, %v1127
      %v1144 = vpack.c.b16 %v1128, %v1128
      %v1145 = vpack.c.b16 %v1129, %v1129
      %v1146 = vpack.c.b16 %v1130, %v1130
      %v1147 = vpack.c.b16 %v1131, %v1131
      %v1148 = vpack.c.b16 %v1132, %v1132
      %v1149 = vpack.c.b16 %v1133, %v1133
      %v1150 = vpack.c.b16 %v1134, %v1134
      %v1151 = vpack.c.b16 %v1135, %v1135
      %v1152 = vpack.c.b16 %v1136, %v1136
      %v1153 = vpack.c.b16 %v1137, %v1137
      %v1154 = vpack.c.b16 %v1138, %v1138
      %v1155 = vpack.c.b16 %v1139, %v1139
      %v1156 = vpack.c.b16 %v1140, %v1140
      %1173 = vst.msk [vmem:[#allocation2 + $0x10] sm:$0xf] %vm561, %v1141
      %1174 = vst.msk [vmem:[#allocation2 + $0x14] sm:$0xf] %vm561, %v1142
      %1175 = vst.msk [vmem:[#allocation2 + $0x18] sm:$0xf] %vm561, %v1143
      %1176 = vst.msk [vmem:[#allocation2 + $0x1c] sm:$0xf] %vm561, %v1144
      %1177 = vst.msk [vmem:[#allocation2 + $0x20] sm:$0xf] %vm561, %v1145
      %1178 = vst.msk [vmem:[#allocation2 + $0x24] sm:$0xf] %vm561, %v1146
      %1179 = vst.msk [vmem:[#allocation2 + $0x28] sm:$0xf] %vm561, %v1147
      %1180 = vst.msk [vmem:[#allocation2 + $0x2c] sm:$0xf] %vm561, %v1148
      %1181 = vst.msk [vmem:[#allocation2 + $0x30] sm:$0xf] %vm561, %v1149
      %1182 = vst.msk [vmem:[#allocation2 + $0x34] sm:$0xf] %vm561, %v1150
      %1183 = vst.msk [vmem:[#allocation2 + $0x38] sm:$0xf] %vm561, %v1151
      %1184 = vst.msk [vmem:[#allocation2 + $0x3c] sm:$0xf] %vm561, %v1152
      %1185 = vst.msk [vmem:[#allocation2 + $0x40] sm:$0xf] %vm561, %v1153
      %1186 = vst.msk [vmem:[#allocation2 + $0x44] sm:$0xf] %vm561, %v1154
      %1187 = vst.msk [vmem:[#allocation2 + $0x48] sm:$0xf] %vm561, %v1155
      %1188 = vst.msk [vmem:[#allocation2 + $0x4c] sm:$0xf] %vm561, %v1156
      %v1189 = vld [vmem:[%s551 + $0x40] sm:$0xf]
      %v1190 = vld [vmem:[%s551 + $0x44] sm:$0xf]
      %v1191 = vld [vmem:[%s551 + $0x48] sm:$0xf]
      %v1192 = vld [vmem:[%s551 + $0x4c] sm:$0xf]
      %v1193 = vld [vmem:[%s551 + $0x50] sm:$0xf]
      %v1194 = vld [vmem:[%s551 + $0x54] sm:$0xf]
      %v1195 = vld [vmem:[%s551 + $0x58] sm:$0xf]
      %v1196 = vld [vmem:[%s551 + $0x5c] sm:$0xf]
      %v1197 = vld [vmem:[%s551 + $0x60] sm:$0xf]
      %v1198 = vld [vmem:[%s551 + $0x64] sm:$0xf]
      %v1199 = vld [vmem:[%s551 + $0x68] sm:$0xf]
      %v1200 = vld [vmem:[%s551 + $0x6c] sm:$0xf]
      %v1201 = vld [vmem:[%s551 + $0x70] sm:$0xf]
      %v1202 = vld [vmem:[%s551 + $0x74] sm:$0xf]
      %v1203 = vld [vmem:[%s551 + $0x78] sm:$0xf]
      %v1204 = vld [vmem:[%s551 + $0x7c] sm:$0xf]
      %v1205 = vld [vmem:[%s1] sm:$0xf]
      %v1206 = vld [vmem:[%s1 + $0x4] sm:$0xf]
      %v1207 = vld [vmem:[%s1 + $0x8] sm:$0xf]
      %v1208 = vld [vmem:[%s1 + $0xc] sm:$0xf]
      %v1209 = vld [vmem:[%s1 + $0x10] sm:$0x3]
      %v1210 = vadd.s32 %v601, 128
      %v1211 = vadd.s32 %v602, 128
      %v1212 = vadd.s32 %v603, 128
      %v1213 = vadd.s32 %v604, 128
      %v1214 = vadd.s32 %v605, 128
      %v1215 = vadd.s32 %v606, 128
      %v1216 = vadd.s32 %v607, 128
      %v1217 = vadd.s32 %v608, 128
      %v1218 = vadd.s32 %v609, 128
      %v1219 = vadd.s32 %v610, 128
      %v1220 = vadd.s32 %v611, 128
      %v1221 = vadd.s32 %v612, 128
      %v1222 = vadd.s32 %v613, 128
      %v1223 = vadd.s32 %v614, 128
      %v1224 = vadd.s32 %v615, 128
      %v1225 = vadd.s32 %v616, 128
      %vm1226 = vcmp.lt.s32.totalorder %v1210, 0
      %v1227 = vsub.s32 0, %v1210
      %v1228 = vsel %vm1226, %v1227, %v1210
      %v1229 = vshrl.u32 %v1228, 4
      %v1230 = vand.u32 %v1228, 15
      %v1231 = vsub.s32 0, %v1230
      %v1232 = vsel %vm1226, %v1231, %v1230
      %vm1233 = vcmp.lt.s32.totalorder %v1211, 0
      %v1234 = vsub.s32 0, %v1211
      %v1235 = vsel %vm1233, %v1234, %v1211
      %v1236 = vshrl.u32 %v1235, 4
      %v1237 = vand.u32 %v1235, 15
      %v1238 = vsub.s32 0, %v1237
      %v1239 = vsel %vm1233, %v1238, %v1237
      %vm1240 = vcmp.lt.s32.totalorder %v1212, 0
      %v1241 = vsub.s32 0, %v1212
      %v1242 = vsel %vm1240, %v1241, %v1212
      %v1243 = vshrl.u32 %v1242, 4
      %v1244 = vand.u32 %v1242, 15
      %v1245 = vsub.s32 0, %v1244
      %v1246 = vsel %vm1240, %v1245, %v1244
      %vm1247 = vcmp.lt.s32.totalorder %v1213, 0
      %v1248 = vsub.s32 0, %v1213
      %v1249 = vsel %vm1247, %v1248, %v1213
      %v1250 = vshrl.u32 %v1249, 4
      %v1251 = vand.u32 %v1249, 15
      %v1252 = vsub.s32 0, %v1251
      %v1253 = vsel %vm1247, %v1252, %v1251
      %vm1254 = vcmp.lt.s32.totalorder %v1214, 0
      %v1255 = vsub.s32 0, %v1214
      %v1256 = vsel %vm1254, %v1255, %v1214
      %v1257 = vshrl.u32 %v1256, 4
      %v1258 = vand.u32 %v1256, 15
      %v1259 = vsub.s32 0, %v1258
      %v1260 = vsel %vm1254, %v1259, %v1258
      %vm1261 = vcmp.lt.s32.totalorder %v1215, 0
      %v1262 = vsub.s32 0, %v1215
      %v1263 = vsel %vm1261, %v1262, %v1215
      %v1264 = vshrl.u32 %v1263, 4
      %v1265 = vand.u32 %v1263, 15
      %v1266 = vsub.s32 0, %v1265
      %v1267 = vsel %vm1261, %v1266, %v1265
      %vm1268 = vcmp.lt.s32.totalorder %v1216, 0
      %v1269 = vsub.s32 0, %v1216
      %v1270 = vsel %vm1268, %v1269, %v1216
      %v1271 = vshrl.u32 %v1270, 4
      %v1272 = vand.u32 %v1270, 15
      %v1273 = vsub.s32 0, %v1272
      %v1274 = vsel %vm1268, %v1273, %v1272
      %vm1275 = vcmp.lt.s32.totalorder %v1217, 0
      %v1276 = vsub.s32 0, %v1217
      %v1277 = vsel %vm1275, %v1276, %v1217
      %v1278 = vshrl.u32 %v1277, 4
      %v1279 = vand.u32 %v1277, 15
      %v1280 = vsub.s32 0, %v1279
      %v1281 = vsel %vm1275, %v1280, %v1279
      %vm1282 = vcmp.lt.s32.totalorder %v1218, 0
      %v1283 = vsub.s32 0, %v1218
      %v1284 = vsel %vm1282, %v1283, %v1218
      %v1285 = vshrl.u32 %v1284, 4
      %v1286 = vand.u32 %v1284, 15
      %v1287 = vsub.s32 0, %v1286
      %v1288 = vsel %vm1282, %v1287, %v1286
      %vm1289 = vcmp.lt.s32.totalorder %v1219, 0
      %v1290 = vsub.s32 0, %v1219
      %v1291 = vsel %vm1289, %v1290, %v1219
      %v1292 = vshrl.u32 %v1291, 4
      %v1293 = vand.u32 %v1291, 15
      %v1294 = vsub.s32 0, %v1293
      %v1295 = vsel %vm1289, %v1294, %v1293
      %vm1296 = vcmp.lt.s32.totalorder %v1220, 0
      %v1297 = vsub.s32 0, %v1220
      %v1298 = vsel %vm1296, %v1297, %v1220
      %v1299 = vshrl.u32 %v1298, 4
      %v1300 = vand.u32 %v1298, 15
      %v1301 = vsub.s32 0, %v1300
      %v1302 = vsel %vm1296, %v1301, %v1300
      %vm1303 = vcmp.lt.s32.totalorder %v1221, 0
      %v1304 = vsub.s32 0, %v1221
      %v1305 = vsel %vm1303, %v1304, %v1221
      %v1306 = vshrl.u32 %v1305, 4
      %v1307 = vand.u32 %v1305, 15
      %v1308 = vsub.s32 0, %v1307
      %v1309 = vsel %vm1303, %v1308, %v1307
      %vm1310 = vcmp.lt.s32.totalorder %v1222, 0
      %v1311 = vsub.s32 0, %v1222
      %v1312 = vsel %vm1310, %v1311, %v1222
      %v1313 = vshrl.u32 %v1312, 4
      %v1314 = vand.u32 %v1312, 15
      %v1315 = vsub.s32 0, %v1314
      %v1316 = vsel %vm1310, %v1315, %v1314
      %vm1317 = vcmp.lt.s32.totalorder %v1223, 0
      %v1318 = vsub.s32 0, %v1223
      %v1319 = vsel %vm1317, %v1318, %v1223
      %v1320 = vshrl.u32 %v1319, 4
      %v1321 = vand.u32 %v1319, 15
      %v1322 = vsub.s32 0, %v1321
      %v1323 = vsel %vm1317, %v1322, %v1321
      %vm1324 = vcmp.lt.s32.totalorder %v1224, 0
      %v1325 = vsub.s32 0, %v1224
      %v1326 = vsel %vm1324, %v1325, %v1224
      %v1327 = vshrl.u32 %v1326, 4
      %v1328 = vand.u32 %v1326, 15
      %v1329 = vsub.s32 0, %v1328
      %v1330 = vsel %vm1324, %v1329, %v1328
      %vm1331 = vcmp.lt.s32.totalorder %v1225, 0
      %v1332 = vsub.s32 0, %v1225
      %v1333 = vsel %vm1331, %v1332, %v1225
      %v1334 = vshrl.u32 %v1333, 4
      %v1335 = vand.u32 %v1333, 15
      %v1336 = vsub.s32 0, %v1335
      %v1337 = vsel %vm1331, %v1336, %v1335
      %vm1338 = vcmp.ne.s32.totalorder %v1232, 0
      %vm1339 = vcmp.ne.s32.totalorder %v1239, 0
      %vm1340 = vcmp.ne.s32.totalorder %v1246, 0
      %vm1341 = vcmp.ne.s32.totalorder %v1253, 0
      %vm1342 = vcmp.ne.s32.totalorder %v1260, 0
      %vm1343 = vcmp.ne.s32.totalorder %v1267, 0
      %vm1344 = vcmp.ne.s32.totalorder %v1274, 0
      %vm1345 = vcmp.ne.s32.totalorder %v1281, 0
      %vm1346 = vcmp.ne.s32.totalorder %v1288, 0
      %vm1347 = vcmp.ne.s32.totalorder %v1295, 0
      %vm1348 = vcmp.ne.s32.totalorder %v1302, 0
      %vm1349 = vcmp.ne.s32.totalorder %v1309, 0
      %vm1350 = vcmp.ne.s32.totalorder %v1316, 0
      %vm1351 = vcmp.ne.s32.totalorder %v1323, 0
      %vm1352 = vcmp.ne.s32.totalorder %v1330, 0
      %vm1353 = vcmp.ne.s32.totalorder %v1337, 0
      %vm1354 = vcmp.lt.s32.totalorder %v1232, 0
      %vm1355 = vcmp.lt.s32.totalorder %v1239, 0
      %vm1356 = vcmp.lt.s32.totalorder %v1246, 0
      %vm1357 = vcmp.lt.s32.totalorder %v1253, 0
      %vm1358 = vcmp.lt.s32.totalorder %v1260, 0
      %vm1359 = vcmp.lt.s32.totalorder %v1267, 0
      %vm1360 = vcmp.lt.s32.totalorder %v1274, 0
      %vm1361 = vcmp.lt.s32.totalorder %v1281, 0
      %vm1362 = vcmp.lt.s32.totalorder %v1288, 0
      %vm1363 = vcmp.lt.s32.totalorder %v1295, 0
      %vm1364 = vcmp.lt.s32.totalorder %v1302, 0
      %vm1365 = vcmp.lt.s32.totalorder %v1309, 0
      %vm1366 = vcmp.lt.s32.totalorder %v1316, 0
      %vm1367 = vcmp.lt.s32.totalorder %v1323, 0
      %vm1368 = vcmp.lt.s32.totalorder %v1330, 0
      %vm1369 = vcmp.lt.s32.totalorder %v1337, 0
      %vm1370 = vmand %vm1354, %vm1338
      %vm1371 = vmand %vm1355, %vm1339
      %vm1372 = vmand %vm1356, %vm1340
      %vm1373 = vmand %vm1357, %vm1341
      %vm1374 = vmand %vm1358, %vm1342
      %vm1375 = vmand %vm1359, %vm1343
      %vm1376 = vmand %vm1360, %vm1344
      %vm1377 = vmand %vm1361, %vm1345
      %vm1378 = vmand %vm1362, %vm1346
      %vm1379 = vmand %vm1363, %vm1347
      %vm1380 = vmand %vm1364, %vm1348
      %vm1381 = vmand %vm1365, %vm1349
      %vm1382 = vmand %vm1366, %vm1350
      %vm1383 = vmand %vm1367, %vm1351
      %vm1384 = vmand %vm1368, %vm1352
      %vm1385 = vmand %vm1369, %vm1353
      %v1386 = vadd.s32 %v1232, 16
      %v1387 = vadd.s32 %v1239, 16
      %v1388 = vadd.s32 %v1246, 16
      %v1389 = vadd.s32 %v1253, 16
      %v1390 = vadd.s32 %v1260, 16
      %v1391 = vadd.s32 %v1267, 16
      %v1392 = vadd.s32 %v1274, 16
      %v1393 = vadd.s32 %v1281, 16
      %v1394 = vadd.s32 %v1288, 16
      %v1395 = vadd.s32 %v1295, 16
      %v1396 = vadd.s32 %v1302, 16
      %v1397 = vadd.s32 %v1309, 16
      %v1398 = vadd.s32 %v1316, 16
      %v1399 = vadd.s32 %v1323, 16
      %v1400 = vadd.s32 %v1330, 16
      %v1401 = vadd.s32 %v1337, 16
      %v1402 = vsel %vm1370, %v1386, %v1232
      %v1403 = vsel %vm1371, %v1387, %v1239
      %v1404 = vsel %vm1372, %v1388, %v1246
      %v1405 = vsel %vm1373, %v1389, %v1253
      %v1406 = vsel %vm1374, %v1390, %v1260
      %v1407 = vsel %vm1375, %v1391, %v1267
      %v1408 = vsel %vm1376, %v1392, %v1274
      %v1409 = vsel %vm1377, %v1393, %v1281
      %v1410 = vsel %vm1378, %v1394, %v1288
      %v1411 = vsel %vm1379, %v1395, %v1295
      %v1412 = vsel %vm1380, %v1396, %v1302
      %v1413 = vsel %vm1381, %v1397, %v1309
      %v1414 = vsel %vm1382, %v1398, %v1316
      %v1415 = vsel %vm1383, %v1399, %v1323
      %v1416 = vsel %vm1384, %v1400, %v1330
      %v1417 = vsel %vm1385, %v1401, %v1337
      %vm1418 = vcmp.lt.s32.totalorder %v1402, 15
      %vm1419 = vcmp.lt.s32.totalorder %v1403, 15
      %vm1420 = vcmp.lt.s32.totalorder %v1404, 15
      %vm1421 = vcmp.lt.s32.totalorder %v1405, 15
      %vm1422 = vcmp.lt.s32.totalorder %v1406, 15
      %vm1423 = vcmp.lt.s32.totalorder %v1407, 15
      %vm1424 = vcmp.lt.s32.totalorder %v1408, 15
      %vm1425 = vcmp.lt.s32.totalorder %v1409, 15
      %vm1426 = vcmp.lt.s32.totalorder %v1410, 15
      %vm1427 = vcmp.lt.s32.totalorder %v1411, 15
      %vm1428 = vcmp.lt.s32.totalorder %v1412, 15
      %vm1429 = vcmp.lt.s32.totalorder %v1413, 15
      %vm1430 = vcmp.lt.s32.totalorder %v1414, 15
      %vm1431 = vcmp.lt.s32.totalorder %v1415, 15
      %vm1432 = vcmp.lt.s32.totalorder %v1416, 15
      %vm1433 = vcmp.lt.s32.totalorder %v1417, 15
      %vm1434 = vcmp.lt.s32.totalorder %v1210, 240
      %vm1435 = vcmp.lt.s32.totalorder %v1211, 240
      %vm1436 = vcmp.lt.s32.totalorder %v1212, 240
      %vm1437 = vcmp.lt.s32.totalorder %v1213, 240
      %vm1438 = vcmp.lt.s32.totalorder %v1214, 240
      %vm1439 = vcmp.lt.s32.totalorder %v1215, 240
      %vm1440 = vcmp.lt.s32.totalorder %v1216, 240
      %vm1441 = vcmp.lt.s32.totalorder %v1217, 240
      %vm1442 = vcmp.lt.s32.totalorder %v1218, 240
      %vm1443 = vcmp.lt.s32.totalorder %v1219, 240
      %vm1444 = vcmp.lt.s32.totalorder %v1220, 240
      %vm1445 = vcmp.lt.s32.totalorder %v1221, 240
      %vm1446 = vcmp.lt.s32.totalorder %v1222, 240
      %vm1447 = vcmp.lt.s32.totalorder %v1223, 240
      %vm1448 = vcmp.lt.s32.totalorder %v1224, 240
      %vm1449 = vcmp.lt.s32.totalorder %v1225, 240
      %vm1450 = vmand %vm1418, %vm1434
      %vm1451 = vmand %vm1419, %vm1435
      %vm1452 = vmand %vm1420, %vm1436
      %vm1453 = vmand %vm1421, %vm1437
      %vm1454 = vmand %vm1422, %vm1438
      %vm1455 = vmand %vm1423, %vm1439
      %vm1456 = vmand %vm1424, %vm1440
      %vm1457 = vmand %vm1425, %vm1441
      %vm1458 = vmand %vm1426, %vm1442
      %vm1459 = vmand %vm1427, %vm1443
      %vm1460 = vmand %vm1428, %vm1444
      %vm1461 = vmand %vm1429, %vm1445
      %vm1462 = vmand %vm1430, %vm1446
      %vm1463 = vmand %vm1431, %vm1447
      %vm1464 = vmand %vm1432, %vm1448
      %vm1465 = vmand %vm1433, %vm1449
      %v1466 = vld [vmem:[%s2] sm:$0x1]
      %v1468 = vlaneseq
      %v1469 = vshrl.u32 %v1468, 7
      %v1470 = vsub.s32 0, %v1469
      %v1471 = vrot.slane %v1466, %v1470
      %v1489 = vunpack.c.l.b16 %v1189
      %v1490 = vunpack.c.l.b16 %v1190
      %v1491 = vunpack.c.l.b16 %v1191
      %v1492 = vunpack.c.l.b16 %v1192
      %v1493 = vunpack.c.l.b16 %v1193
      %v1494 = vunpack.c.l.b16 %v1194
      %v1495 = vunpack.c.l.b16 %v1195
      %v1496 = vunpack.c.l.b16 %v1196
      %v1497 = vunpack.c.l.b16 %v1197
      %v1498 = vunpack.c.l.b16 %v1198
      %v1499 = vunpack.c.l.b16 %v1199
      %v1500 = vunpack.c.l.b16 %v1200
      %v1501 = vunpack.c.l.b16 %v1201
      %v1502 = vunpack.c.l.b16 %v1202
      %v1503 = vunpack.c.l.b16 %v1203
      %v1504 = vunpack.c.l.b16 %v1204
      %v1505 = vpack.c.b16 %v1490, %v1489
      %v1506 = vpack.c.b16 %v1492, %v1491
      %v1507 = vpack.c.b16 %v1494, %v1493
      %v1508 = vpack.c.b16 %v1496, %v1495
      %v1509 = vpack.c.b16 %v1498, %v1497
      %v1510 = vpack.c.b16 %v1500, %v1499
      %v1511 = vpack.c.b16 %v1502, %v1501
      %v1512 = vpack.c.b16 %v1504, %v1503
      %v1518 = vunpack.c.l.b16 %v1205
      %v1519 = vunpack.c.l.b16 %v1206
      %v1520 = vunpack.c.l.b16 %v1207
      %v1521 = vunpack.c.l.b16 %v1208
      %v1522 = vunpack.c.l.b16 %v1209
      %v1523 = vpack.c.b16 %v1519, %v1518
      %v1524 = vpack.c.b16 %v1521, %v1520
      %v1525 = vpack.c.b16 %v1522, %v1522
      %v1529 = vsel %vm919, %v1505, 0
      %v1532 = vsel %vm919, %v1506, 0
      %v1535 = vsel %vm919, %v1507, 0
      %v1538 = vsel %vm919, %v1508, 0
      %v1541 = vsel %vm919, %v1509, 0
      %v1544 = vsel %vm919, %v1510, 0
      %v1547 = vsel %vm919, %v1511, 0
      %v1550 = vsel %vm919, %v1512, 0
      %v1553 = vsel %vm944, %v1525, 0
      %1555 = vmatprep.subr.bf16.mxu0 0
      %1556 = vmatpush1.bf16.msra.mxu0 0
      %1557 = vmatprep.subr.bf16.mxu0 0
      %1558 = vmatpush1.bf16.msra.mxu0 0
      %1559 = vmatprep.subr.bf16.mxu0 0
      %1560 = vmatpush1.bf16.msra.mxu0 0
      %1561 = vmatprep.subr.bf16.mxu0 0
      %1562 = vmatpush1.bf16.msra.mxu0 0
      %1563 = vmatprep.subr.bf16.mxu0 0
      %1564 = vmatpush1.bf16.msra.mxu0 0
      %1565 = vmatprep.subr.bf16.mxu0 0
      %1566 = vmatpush1.bf16.msra.mxu0 %v1553
      %1567 = vmatprep.subr.bf16.mxu0 0
      %1568 = vmatpush1.bf16.msra.mxu0 %v1524
      %1569 = vmatprep.subr.bf16.mxu0 0
      %1570 = vmatpush1.bf16.msra.mxu0 %v1523
      %1571 = vmatprep.subr.bf16.mxu0 0
      %1572 = vmatpush2.bf16.msra.mxu0 0
      %1573 = vmatprep.subr.bf16.mxu0 0
      %1574 = vmatpush2.bf16.msra.mxu0 0
      %1575 = vmatprep.subr.bf16.mxu0 0
      %1576 = vmatpush2.bf16.msra.mxu0 0
      %1577 = vmatprep.subr.bf16.mxu0 0
      %1578 = vmatpush2.bf16.msra.mxu0 0
      %1579 = vmatprep.subr.bf16.mxu0 0
      %1580 = vmatpush2.bf16.msra.mxu0 0
      %1581 = vmatprep.subr.bf16.mxu0 0
      %1582 = vmatpush2.bf16.msra.mxu0 0
      %1583 = vmatprep.subr.bf16.mxu0 0
      %1584 = vmatpush2.bf16.msra.mxu0 0
      %1585 = vmatprep.subr.bf16.mxu0 0
      %1586 = vmatpush2.bf16.msra.mxu0 0
      %1587 = vmatprep.mubr.bf16.mxu0 0
      %1588 = vmatmul.mubr.bf16.gmra.mxu0 %v1529
      %v1589 = vpop.f32.mrf.mxu0
      %v1590 = vadd.f32 %v1471, %v1589
      %v1591 = vpop.f32.mrf.mxu0
      %v1592 = vpop.f32.mrf.mxu0
      %v1593 = vadd.f32 %v1471, %v1592
      %v1594 = vpop.f32.mrf.mxu0
      %1595 = vmatprep.mubr.bf16.mxu0 0
      %1596 = vmatmul.mubr.bf16.gmra.mxu0 %v1532
      %v1597 = vpop.f32.mrf.mxu0
      %v1598 = vadd.f32 %v1471, %v1597
      %v1599 = vpop.f32.mrf.mxu0
      %v1600 = vpop.f32.mrf.mxu0
      %v1601 = vadd.f32 %v1471, %v1600
      %v1602 = vpop.f32.mrf.mxu0
      %1603 = vmatprep.mubr.bf16.mxu0 0
      %1604 = vmatmul.mubr.bf16.gmra.mxu0 %v1535
      %v1605 = vpop.f32.mrf.mxu0
      %v1606 = vadd.f32 %v1471, %v1605
      %v1607 = vpop.f32.mrf.mxu0
      %v1608 = vpop.f32.mrf.mxu0
      %v1609 = vadd.f32 %v1471, %v1608
      %v1610 = vpop.f32.mrf.mxu0
      %1611 = vmatprep.mubr.bf16.mxu0 0
      %1612 = vmatmul.mubr.bf16.gmra.mxu0 %v1538
      %v1613 = vpop.f32.mrf.mxu0
      %v1614 = vadd.f32 %v1471, %v1613
      %v1615 = vpop.f32.mrf.mxu0
      %v1616 = vpop.f32.mrf.mxu0
      %v1617 = vadd.f32 %v1471, %v1616
      %v1618 = vpop.f32.mrf.mxu0
      %1619 = vmatprep.mubr.bf16.mxu0 0
      %1620 = vmatmul.mubr.bf16.gmra.mxu0 %v1541
      %v1621 = vpop.f32.mrf.mxu0
      %v1622 = vadd.f32 %v1471, %v1621
      %v1623 = vpop.f32.mrf.mxu0
      %v1624 = vpop.f32.mrf.mxu0
      %v1625 = vadd.f32 %v1471, %v1624
      %v1626 = vpop.f32.mrf.mxu0
      %1627 = vmatprep.mubr.bf16.mxu0 0
      %1628 = vmatmul.mubr.bf16.gmra.mxu0 %v1544
      %v1629 = vpop.f32.mrf.mxu0
      %v1630 = vadd.f32 %v1471, %v1629
      %v1631 = vpop.f32.mrf.mxu0
      %v1632 = vpop.f32.mrf.mxu0
      %v1633 = vadd.f32 %v1471, %v1632
      %v1634 = vpop.f32.mrf.mxu0
      %1635 = vmatprep.mubr.bf16.mxu0 0
      %1636 = vmatmul.mubr.bf16.gmra.mxu0 %v1547
      %v1637 = vpop.f32.mrf.mxu0
      %v1638 = vadd.f32 %v1471, %v1637
      %v1639 = vpop.f32.mrf.mxu0
      %v1640 = vpop.f32.mrf.mxu0
      %v1641 = vadd.f32 %v1471, %v1640
      %v1642 = vpop.f32.mrf.mxu0
      %1643 = vmatprep.mubr.bf16.mxu0 0
      %1644 = vmatmul.mubr.bf16.gmra.mxu0 %v1550
      %v1645 = vpop.f32.mrf.mxu0
      %v1646 = vadd.f32 %v1471, %v1645
      %v1647 = vpop.f32.mrf.mxu0
      %v1648 = vpop.f32.mrf.mxu0
      %v1649 = vadd.f32 %v1471, %v1648
      %v1650 = vpop.f32.mrf.mxu0
      %1651 = vdwg.mxu0
      %v1652 = vmax.f32 %v1590, 0.0
      %v1653 = vmax.f32 %v1593, 0.0
      %v1654 = vmax.f32 %v1598, 0.0
      %v1655 = vmax.f32 %v1601, 0.0
      %v1656 = vmax.f32 %v1606, 0.0
      %v1657 = vmax.f32 %v1609, 0.0
      %v1658 = vmax.f32 %v1614, 0.0
      %v1659 = vmax.f32 %v1617, 0.0
      %v1660 = vmax.f32 %v1622, 0.0
      %v1661 = vmax.f32 %v1625, 0.0
      %v1662 = vmax.f32 %v1630, 0.0
      %v1663 = vmax.f32 %v1633, 0.0
      %v1664 = vmax.f32 %v1638, 0.0
      %v1665 = vmax.f32 %v1641, 0.0
      %v1666 = vmax.f32 %v1646, 0.0
      %v1667 = vmax.f32 %v1649, 0.0
      %v1668 = vsel %vm1450, 1, 0
      %v1669 = vsel %vm1451, 1, 0
      %v1670 = vsel %vm1452, 1, 0
      %v1671 = vsel %vm1453, 1, 0
      %v1672 = vsel %vm1454, 1, 0
      %v1673 = vsel %vm1455, 1, 0
      %v1674 = vsel %vm1456, 1, 0
      %v1675 = vsel %vm1457, 1, 0
      %v1676 = vsel %vm1458, 1, 0
      %v1677 = vsel %vm1459, 1, 0
      %v1678 = vsel %vm1460, 1, 0
      %v1679 = vsel %vm1461, 1, 0
      %v1680 = vsel %vm1462, 1, 0
      %v1681 = vsel %vm1463, 1, 0
      %v1682 = vsel %vm1464, 1, 0
      %v1683 = vsel %vm1465, 1, 0
      %vm1684 = vcmp.eq.s32.totalorder %v1668, 1
      %vm1685 = vcmp.eq.s32.totalorder %v1669, 1
      %vm1686 = vcmp.eq.s32.totalorder %v1670, 1
      %vm1687 = vcmp.eq.s32.totalorder %v1671, 1
      %vm1688 = vcmp.eq.s32.totalorder %v1672, 1
      %vm1689 = vcmp.eq.s32.totalorder %v1673, 1
      %vm1690 = vcmp.eq.s32.totalorder %v1674, 1
      %vm1691 = vcmp.eq.s32.totalorder %v1675, 1
      %vm1692 = vcmp.eq.s32.totalorder %v1676, 1
      %vm1693 = vcmp.eq.s32.totalorder %v1677, 1
      %vm1694 = vcmp.eq.s32.totalorder %v1678, 1
      %vm1695 = vcmp.eq.s32.totalorder %v1679, 1
      %vm1696 = vcmp.eq.s32.totalorder %v1680, 1
      %vm1697 = vcmp.eq.s32.totalorder %v1681, 1
      %vm1698 = vcmp.eq.s32.totalorder %v1682, 1
      %vm1699 = vcmp.eq.s32.totalorder %v1683, 1
      %v1700 = vsel %vm1684, %v1652, 0.0
      %v1701 = vsel %vm1685, %v1653, 0.0
      %v1702 = vsel %vm1686, %v1654, 0.0
      %v1703 = vsel %vm1687, %v1655, 0.0
      %v1704 = vsel %vm1688, %v1656, 0.0
      %v1705 = vsel %vm1689, %v1657, 0.0
      %v1706 = vsel %vm1690, %v1658, 0.0
      %v1707 = vsel %vm1691, %v1659, 0.0
      %v1708 = vsel %vm1692, %v1660, 0.0
      %v1709 = vsel %vm1693, %v1661, 0.0
      %v1710 = vsel %vm1694, %v1662, 0.0
      %v1711 = vsel %vm1695, %v1663, 0.0
      %v1712 = vsel %vm1696, %v1664, 0.0
      %v1713 = vsel %vm1697, %v1665, 0.0
      %v1714 = vsel %vm1698, %v1666, 0.0
      %v1715 = vsel %vm1699, %v1667, 0.0
      %v1716 = vpack.c.bf16 %v1701, %v1700
      %v1717 = vpack.c.bf16 %v1703, %v1702
      %v1718 = vpack.c.bf16 %v1705, %v1704
      %v1719 = vpack.c.bf16 %v1707, %v1706
      %v1720 = vpack.c.bf16 %v1709, %v1708
      %v1721 = vpack.c.bf16 %v1711, %v1710
      %v1722 = vpack.c.bf16 %v1713, %v1712
      %v1723 = vpack.c.bf16 %v1715, %v1714
      %v1732 = vunpack.c.l.b16 %v1716
      %v1733 = vunpack.c.h.b16 %v1716
      %v1734 = vunpack.c.l.b16 %v1717
      %v1735 = vunpack.c.h.b16 %v1717
      %v1736 = vunpack.c.l.b16 %v1718
      %v1737 = vunpack.c.h.b16 %v1718
      %v1738 = vunpack.c.l.b16 %v1719
      %v1739 = vunpack.c.h.b16 %v1719
      %v1740 = vunpack.c.l.b16 %v1720
      %v1741 = vunpack.c.h.b16 %v1720
      %v1742 = vunpack.c.l.b16 %v1721
      %v1743 = vunpack.c.h.b16 %v1721
      %v1744 = vunpack.c.l.b16 %v1722
      %v1745 = vunpack.c.h.b16 %v1722
      %v1746 = vunpack.c.l.b16 %v1723
      %v1747 = vunpack.c.h.b16 %v1723
      %v1748 = vpack.c.b16 %v1732, %v1732
      %v1749 = vpack.c.b16 %v1733, %v1733
      %v1750 = vpack.c.b16 %v1734, %v1734
      %v1751 = vpack.c.b16 %v1735, %v1735
      %v1752 = vpack.c.b16 %v1736, %v1736
      %v1753 = vpack.c.b16 %v1737, %v1737
      %v1754 = vpack.c.b16 %v1738, %v1738
      %v1755 = vpack.c.b16 %v1739, %v1739
      %v1756 = vpack.c.b16 %v1740, %v1740
      %v1757 = vpack.c.b16 %v1741, %v1741
      %v1758 = vpack.c.b16 %v1742, %v1742
      %v1759 = vpack.c.b16 %v1743, %v1743
      %v1760 = vpack.c.b16 %v1744, %v1744
      %v1761 = vpack.c.b16 %v1745, %v1745
      %v1762 = vpack.c.b16 %v1746, %v1746
      %v1763 = vpack.c.b16 %v1747, %v1747
      %1780 = vst.msk [vmem:[#allocation2 + $0x50] sm:$0xf] %vm561, %v1748
      %1781 = vst.msk [vmem:[#allocation2 + $0x54] sm:$0xf] %vm561, %v1749
      %1782 = vst.msk [vmem:[#allocation2 + $0x58] sm:$0xf] %vm561, %v1750
      %1783 = vst.msk [vmem:[#allocation2 + $0x5c] sm:$0xf] %vm561, %v1751
      %1784 = vst.msk [vmem:[#allocation2 + $0x60] sm:$0xf] %vm561, %v1752
      %1785 = vst.msk [vmem:[#allocation2 + $0x64] sm:$0xf] %vm561, %v1753
      %1786 = vst.msk [vmem:[#allocation2 + $0x68] sm:$0xf] %vm561, %v1754
      %1787 = vst.msk [vmem:[#allocation2 + $0x6c] sm:$0xf] %vm561, %v1755
      %1788 = vst.msk [vmem:[#allocation2 + $0x70] sm:$0xf] %vm561, %v1756
      %1789 = vst.msk [vmem:[#allocation2 + $0x74] sm:$0xf] %vm561, %v1757
      %1790 = vst.msk [vmem:[#allocation2 + $0x78] sm:$0xf] %vm561, %v1758
      %1791 = vst.msk [vmem:[#allocation2 + $0x7c] sm:$0xf] %vm561, %v1759
      %1792 = vst.msk [vmem:[#allocation2 + $0x80] sm:$0xf] %vm561, %v1760
      %1793 = vst.msk [vmem:[#allocation2 + $0x84] sm:$0xf] %vm561, %v1761
      %1794 = vst.msk [vmem:[#allocation2 + $0x88] sm:$0xf] %vm561, %v1762
      %1795 = vst.msk [vmem:[#allocation2 + $0x8c] sm:$0xf] %vm561, %v1763
      %v1796 = vld [vmem:[#allocation2 + $0x4] sm:$0x8]
      %v1797 = vld [vmem:[#allocation2 + $0x8] sm:$0xf]
      %v1798 = vld [vmem:[#allocation2 + $0xc] sm:$0xf]
      %v1799 = vld [vmem:[#allocation2 + $0x10] sm:$0xf]
      %v1800 = vld [vmem:[#allocation2 + $0x14] sm:$0xf]
      %v1801 = vld [vmem:[#allocation2 + $0x18] sm:$0xf]
      %v1802 = vld [vmem:[#allocation2 + $0x1c] sm:$0xf]
      %v1803 = vld [vmem:[#allocation2 + $0x20] sm:$0xf]
      %v1804 = vld [vmem:[#allocation2 + $0x24] sm:$0xf]
      %v1805 = vld [vmem:[#allocation2 + $0x28] sm:$0xf]
      %v1806 = vld [vmem:[#allocation2 + $0x2c] sm:$0xf]
      %v1807 = vld [vmem:[#allocation2 + $0x30] sm:$0xf]
      %v1808 = vld [vmem:[#allocation2 + $0x34] sm:$0xf]
      %v1809 = vld [vmem:[#allocation2 + $0x38] sm:$0xf]
      %v1810 = vld [vmem:[#allocation2 + $0x3c] sm:$0xf]
      %v1811 = vld [vmem:[#allocation2 + $0x40] sm:$0xf]
      %v1812 = vld [vmem:[#allocation2 + $0x44] sm:$0xf]
      %v1813 = vld [vmem:[#allocation2 + $0x48] sm:$0x1]
      %v1814 = vld [vmem:[#allocation2 + $0xc] sm:$0x8]
      %v1815 = vld [vmem:[#allocation2 + $0x48] sm:$0xf]
      %v1816 = vld [vmem:[#allocation2 + $0x4c] sm:$0xf]
      %v1817 = vld [vmem:[#allocation2 + $0x50] sm:$0x1]
      %v1818 = vld [vmem:[#allocation2 + $0x14] sm:$0x8]
      %v1819 = vld [vmem:[#allocation2 + $0x50] sm:$0xf]
      %v1820 = vld [vmem:[#allocation2 + $0x54] sm:$0xf]
      %v1821 = vld [vmem:[#allocation2 + $0x58] sm:$0x1]
      %v1839 = vunpack.c.l.b16 %v1796
      %v1840 = vunpack.c.l.b16 %v1797
      %v1841 = vunpack.c.l.b16 %v1798
      %v1842 = vunpack.c.l.b16 %v1799
      %v1843 = vunpack.c.l.b16 %v1800
      %v1844 = vunpack.c.l.b16 %v1801
      %v1845 = vunpack.c.l.b16 %v1802
      %v1846 = vunpack.c.l.b16 %v1803
      %v1847 = vunpack.c.l.b16 %v1804
      %v1848 = vunpack.c.l.b16 %v1805
      %v1849 = vunpack.c.l.b16 %v1806
      %v1850 = vunpack.c.l.b16 %v1807
      %v1851 = vunpack.c.l.b16 %v1808
      %v1852 = vunpack.c.l.b16 %v1809
      %v1853 = vunpack.c.l.b16 %v1810
      %v1854 = vunpack.c.l.b16 %v1811
      %v1855 = vunpack.c.l.b16 %v1812
      %v1856 = vpack.c.b16 %v1840, %v1839
      %v1857 = vpack.c.b16 %v1842, %v1841
      %v1858 = vpack.c.b16 %v1844, %v1843
      %v1859 = vpack.c.b16 %v1846, %v1845
      %v1860 = vpack.c.b16 %v1848, %v1847
      %v1861 = vpack.c.b16 %v1850, %v1849
      %v1862 = vpack.c.b16 %v1852, %v1851
      %v1863 = vpack.c.b16 %v1854, %v1853
      %v1864 = vpack.c.b16 %v1855, %v1855
      %v1865 = vpack.c.b16 %v1841, %v1840
      %v1866 = vpack.c.b16 %v1843, %v1842
      %v1867 = vpack.c.b16 %v1845, %v1844
      %v1868 = vpack.c.b16 %v1847, %v1846
      %v1869 = vpack.c.b16 %v1849, %v1848
      %v1870 = vpack.c.b16 %v1851, %v1850
      %v1871 = vpack.c.b16 %v1853, %v1852
      %v1872 = vpack.c.b16 %v1855, %v1854
      %vm1873 = vsmask.f32 3328
      %v1875 = vshrl.u32 %v1865, 16
      %v1877 = vrot.slane %v1875, 4
      %v1878 = vshll.u32 %v1865, 16
      %v1880 = vrot.slane %v1878, 5
      %v1881 = vor.u32 %v1877, %v1880
      %v1883 = vshrl.u32 %v1866, 16
      %v1885 = vrot.slane %v1883, 4
      %v1886 = vshll.u32 %v1866, 16
      %v1888 = vrot.slane %v1886, 5
      %v1889 = vor.u32 %v1885, %v1888
      %v1890 = vsel %vm1873, %v1881, %v1889
      %v1892 = vshrl.u32 %v1867, 16
      %v1894 = vrot.slane %v1892, 4
      %v1895 = vshll.u32 %v1867, 16
      %v1897 = vrot.slane %v1895, 5
      %v1898 = vor.u32 %v1894, %v1897
      %v1899 = vsel %vm1873, %v1889, %v1898
      %v1901 = vshrl.u32 %v1868, 16
      %v1903 = vrot.slane %v1901, 4
      %v1904 = vshll.u32 %v1868, 16
      %v1906 = vrot.slane %v1904, 5
      %v1907 = vor.u32 %v1903, %v1906
      %v1908 = vsel %vm1873, %v1898, %v1907
      %v1910 = vshrl.u32 %v1869, 16
      %v1912 = vrot.slane %v1910, 4
      %v1913 = vshll.u32 %v1869, 16
      %v1915 = vrot.slane %v1913, 5
      %v1916 = vor.u32 %v1912, %v1915
      %v1917 = vsel %vm1873, %v1907, %v1916
      %v1919 = vshrl.u32 %v1870, 16
      %v1921 = vrot.slane %v1919, 4
      %v1922 = vshll.u32 %v1870, 16
      %v1924 = vrot.slane %v1922, 5
      %v1925 = vor.u32 %v1921, %v1924
      %v1926 = vsel %vm1873, %v1916, %v1925
      %v1928 = vshrl.u32 %v1871, 16
      %v1930 = vrot.slane %v1928, 4
      %v1931 = vshll.u32 %v1871, 16
      %v1933 = vrot.slane %v1931, 5
      %v1934 = vor.u32 %v1930, %v1933
      %v1935 = vsel %vm1873, %v1925, %v1934
      %v1937 = vshrl.u32 %v1872, 16
      %v1939 = vrot.slane %v1937, 4
      %v1940 = vshll.u32 %v1872, 16
      %v1942 = vrot.slane %v1940, 5
      %v1943 = vor.u32 %v1939, %v1942
      %v1944 = vsel %vm1873, %v1934, %v1943
      %1945 = vrot.lane.b32.xlu0 %v1881, 32
      %v1946 = vpop.permute.xlu0 %1945
      %1947 = vrot.lane.b32.xlu0 %v1890, 32
      %v1948 = vpop.permute.xlu0 %1947
      %1949 = vrot.lane.b32.xlu0 %v1899, 32
      %v1950 = vpop.permute.xlu0 %1949
      %1951 = vrot.lane.b32.xlu0 %v1908, 32
      %v1952 = vpop.permute.xlu0 %1951
      %1953 = vrot.lane.b32.xlu0 %v1917, 32
      %v1954 = vpop.permute.xlu0 %1953
      %1955 = vrot.lane.b32.xlu0 %v1926, 32
      %v1956 = vpop.permute.xlu0 %1955
      %1957 = vrot.lane.b32.xlu0 %v1935, 32
      %v1958 = vpop.permute.xlu0 %1957
      %1959 = vrot.lane.b32.xlu0 %v1944, 32
      %v1960 = vpop.permute.xlu0 %1959
      %1961 = vrot.lane.b32.xlu0 %v1943, 32
      %v1962 = vpop.permute.xlu0 %1961
      %v1964 = vunpack.c.l.b16 %v1813
      %v1965 = vpack.c.b16 %v1964, %v1964
      %vm1966 = vcmask 1042432
      %v1967 = vrot.slane %v1865, 5
      %v1968 = vrot.slane %v1866, 5
      %v1969 = vsel %vm1966, %v1967, %v1968
      %v1970 = vrot.slane %v1867, 5
      %v1971 = vsel %vm1966, %v1968, %v1970
      %v1972 = vrot.slane %v1868, 5
      %v1973 = vsel %vm1966, %v1970, %v1972
      %v1974 = vrot.slane %v1869, 5
      %v1975 = vsel %vm1966, %v1972, %v1974
      %v1976 = vrot.slane %v1870, 5
      %v1977 = vsel %vm1966, %v1974, %v1976
      %v1978 = vrot.slane %v1871, 5
      %v1979 = vsel %vm1966, %v1976, %v1978
      %v1980 = vrot.slane %v1872, 5
      %v1981 = vsel %vm1966, %v1978, %v1980
      %v1982 = vrot.slane %v1965, 5
      %v1983 = vsel %vm1966, %v1980, %v1982
      %1984 = vrot.lane.b32.xlu0 %v1967, 64
      %v1985 = vpop.permute.xlu0 %1984
      %1986 = vrot.lane.b32.xlu0 %v1969, 64
      %v1987 = vpop.permute.xlu0 %1986
      %1988 = vrot.lane.b32.xlu0 %v1971, 64
      %v1989 = vpop.permute.xlu0 %1988
      %1990 = vrot.lane.b32.xlu0 %v1973, 64
      %v1991 = vpop.permute.xlu0 %1990
      %1992 = vrot.lane.b32.xlu0 %v1975, 64
      %v1993 = vpop.permute.xlu0 %1992
      %1994 = vrot.lane.b32.xlu0 %v1977, 64
      %v1995 = vpop.permute.xlu0 %1994
      %1996 = vrot.lane.b32.xlu0 %v1979, 64
      %v1997 = vpop.permute.xlu0 %1996
      %1998 = vrot.lane.b32.xlu0 %v1981, 64
      %v1999 = vpop.permute.xlu0 %1998
      %2000 = vrot.lane.b32.xlu0 %v1983, 64
      %v2001 = vpop.permute.xlu0 %2000
      %v2005 = vunpack.c.l.b16 %v1814
      %v2006 = vunpack.c.l.b16 %v1815
      %v2007 = vunpack.c.l.b16 %v1816
      %v2008 = vpack.c.b16 %v1842, %v2005
      %v2009 = vpack.c.b16 %v2006, %v1855
      %v2010 = vpack.c.b16 %v2007, %v2007
      %2011 = vrot.lane.b32.xlu0 %v2008, 96
      %v2012 = vpop.permute.xlu0 %2011
      %2013 = vrot.lane.b32.xlu0 %v1858, 96
      %v2014 = vpop.permute.xlu0 %2013
      %2015 = vrot.lane.b32.xlu0 %v1859, 96
      %v2016 = vpop.permute.xlu0 %2015
      %2017 = vrot.lane.b32.xlu0 %v1860, 96
      %v2018 = vpop.permute.xlu0 %2017
      %2019 = vrot.lane.b32.xlu0 %v1861, 96
      %v2020 = vpop.permute.xlu0 %2019
      %2021 = vrot.lane.b32.xlu0 %v1862, 96
      %v2022 = vpop.permute.xlu0 %2021
      %2023 = vrot.lane.b32.xlu0 %v1863, 96
      %v2024 = vpop.permute.xlu0 %2023
      %2025 = vrot.lane.b32.xlu0 %v2009, 96
      %v2026 = vpop.permute.xlu0 %2025
      %2027 = vrot.lane.b32.xlu0 %v2010, 96
      %v2028 = vpop.permute.xlu0 %2027
      %v2029 = vpack.c.b16 %v2007, %v2006
      %v2031 = vshrl.u32 %v2029, 16
      %v2033 = vrot.slane %v2031, 4
      %v2034 = vshll.u32 %v2029, 16
      %v2036 = vrot.slane %v2034, 5
      %v2037 = vor.u32 %v2033, %v2036
      %v2038 = vsel %vm1873, %v1943, %v2037
      %v2040 = vunpack.c.l.b16 %v1817
      %v2041 = vpack.c.b16 %v2040, %v2040
      %v2042 = vrot.slane %v2029, 5
      %v2043 = vsel %vm1966, %v1980, %v2042
      %v2044 = vrot.slane %v2041, 5
      %v2045 = vsel %vm1966, %v2042, %v2044
      %2046 = vrot.lane.b32.xlu0 %v1968, 32
      %v2047 = vpop.permute.xlu0 %2046
      %2048 = vrot.lane.b32.xlu0 %v1971, 32
      %v2049 = vpop.permute.xlu0 %2048
      %2050 = vrot.lane.b32.xlu0 %v1973, 32
      %v2051 = vpop.permute.xlu0 %2050
      %2052 = vrot.lane.b32.xlu0 %v1975, 32
      %v2053 = vpop.permute.xlu0 %2052
      %2054 = vrot.lane.b32.xlu0 %v1977, 32
      %v2055 = vpop.permute.xlu0 %2054
      %2056 = vrot.lane.b32.xlu0 %v1979, 32
      %v2057 = vpop.permute.xlu0 %2056
      %2058 = vrot.lane.b32.xlu0 %v1981, 32
      %v2059 = vpop.permute.xlu0 %2058
      %2060 = vrot.lane.b32.xlu0 %v2043, 32
      %v2061 = vpop.permute.xlu0 %2060
      %2062 = vrot.lane.b32.xlu0 %v2045, 32
      %v2063 = vpop.permute.xlu0 %2062
      %v2067 = vunpack.c.l.b16 %v1818
      %v2068 = vunpack.c.l.b16 %v1819
      %v2069 = vunpack.c.l.b16 %v1820
      %v2070 = vpack.c.b16 %v1844, %v2067
      %v2071 = vpack.c.b16 %v2068, %v2007
      %v2072 = vpack.c.b16 %v2069, %v2069
      %2073 = vrot.lane.b32.xlu0 %v2070, 64
      %v2074 = vpop.permute.xlu0 %2073
      %2075 = vrot.lane.b32.xlu0 %v1859, 64
      %v2076 = vpop.permute.xlu0 %2075
      %2077 = vrot.lane.b32.xlu0 %v1860, 64
      %v2078 = vpop.permute.xlu0 %2077
      %2079 = vrot.lane.b32.xlu0 %v1861, 64
      %v2080 = vpop.permute.xlu0 %2079
      %2081 = vrot.lane.b32.xlu0 %v1862, 64
      %v2082 = vpop.permute.xlu0 %2081
      %2083 = vrot.lane.b32.xlu0 %v1863, 64
      %v2084 = vpop.permute.xlu0 %2083
      %2085 = vrot.lane.b32.xlu0 %v2009, 64
      %v2086 = vpop.permute.xlu0 %2085
      %2087 = vrot.lane.b32.xlu0 %v2071, 64
      %v2088 = vpop.permute.xlu0 %2087
      %2089 = vrot.lane.b32.xlu0 %v2072, 64
      %v2090 = vpop.permute.xlu0 %2089
      %v2091 = vpack.c.b16 %v2069, %v2068
      %v2093 = vshrl.u32 %v2091, 16
      %v2095 = vrot.slane %v2093, 4
      %v2096 = vshll.u32 %v2091, 16
      %v2098 = vrot.slane %v2096, 5
      %v2099 = vor.u32 %v2095, %v2098
      %v2100 = vsel %vm1873, %v2037, %v2099
      %2101 = vrot.lane.b32.xlu0 %v1898, 96
      %v2102 = vpop.permute.xlu0 %2101
      %2103 = vrot.lane.b32.xlu0 %v1908, 96
      %v2104 = vpop.permute.xlu0 %2103
      %2105 = vrot.lane.b32.xlu0 %v1917, 96
      %v2106 = vpop.permute.xlu0 %2105
      %2107 = vrot.lane.b32.xlu0 %v1926, 96
      %v2108 = vpop.permute.xlu0 %2107
      %2109 = vrot.lane.b32.xlu0 %v1935, 96
      %v2110 = vpop.permute.xlu0 %2109
      %2111 = vrot.lane.b32.xlu0 %v1944, 96
      %v2112 = vpop.permute.xlu0 %2111
      %2113 = vrot.lane.b32.xlu0 %v2038, 96
      %v2114 = vpop.permute.xlu0 %2113
      %2115 = vrot.lane.b32.xlu0 %v2100, 96
      %v2116 = vpop.permute.xlu0 %2115
      %2117 = vrot.lane.b32.xlu0 %v2099, 96
      %v2118 = vpop.permute.xlu0 %2117
      %v2120 = vunpack.c.l.b16 %v1821
      %v2121 = vpack.c.b16 %v2120, %v2120
      %v2122 = vrot.slane %v2091, 5
      %v2123 = vsel %vm1966, %v2042, %v2122
      %v2124 = vrot.slane %v2121, 5
      %v2125 = vsel %vm1966, %v2122, %v2124
      %vm2126 = vcmask 261120
      %v2129 = vsel %vm2126, %v1856, %v1946
      %v2132 = vsel %vm2126, %v1857, %v1948
      %v2135 = vsel %vm2126, %v1858, %v1950
      %v2138 = vsel %vm2126, %v1859, %v1952
      %v2141 = vsel %vm2126, %v1860, %v1954
      %v2144 = vsel %vm2126, %v1861, %v1956
      %v2147 = vsel %vm2126, %v1862, %v1958
      %v2150 = vsel %vm2126, %v1863, %v1960
      %v2153 = vsel %vm2126, %v1864, %v1962
      %vm2154 = vcmask 523264
      %v2156 = vsel %vm2154, %v2129, %v1985
      %v2158 = vsel %vm2154, %v2132, %v1987
      %v2160 = vsel %vm2154, %v2135, %v1989
      %v2162 = vsel %vm2154, %v2138, %v1991
      %v2164 = vsel %vm2154, %v2141, %v1993
      %v2166 = vsel %vm2154, %v2144, %v1995
      %v2168 = vsel %vm2154, %v2147, %v1997
      %v2170 = vsel %vm2154, %v2150, %v1999
      %v2172 = vsel %vm2154, %v2153, %v2001
      %vm2173 = vcmask 785408
      %v2175 = vsel %vm2173, %v2156, %v2012
      %v2177 = vsel %vm2173, %v2158, %v2014
      %v2179 = vsel %vm2173, %v2160, %v2016
      %v2181 = vsel %vm2173, %v2162, %v2018
      %v2183 = vsel %vm2173, %v2164, %v2020
      %v2185 = vsel %vm2173, %v2166, %v2022
      %v2187 = vsel %vm2173, %v2168, %v2024
      %v2189 = vsel %vm2173, %v2170, %v2026
      %v2191 = vsel %vm2173, %v2172, %v2028
      %v2194 = vsel %vm2126, %v1889, %v2047
      %v2197 = vsel %vm2126, %v1899, %v2049
      %v2200 = vsel %vm2126, %v1908, %v2051
      %v2203 = vsel %vm2126, %v1917, %v2053
      %v2206 = vsel %vm2126, %v1926, %v2055
      %v2209 = vsel %vm2126, %v1935, %v2057
      %v2212 = vsel %vm2126, %v1944, %v2059
      %v2215 = vsel %vm2126, %v2038, %v2061
      %v2218 = vsel %vm2126, %v2037, %v2063
      %v2220 = vsel %vm2154, %v2194, %v2074
      %v2222 = vsel %vm2154, %v2197, %v2076
      %v2224 = vsel %vm2154, %v2200, %v2078
      %v2226 = vsel %vm2154, %v2203, %v2080
      %v2228 = vsel %vm2154, %v2206, %v2082
      %v2230 = vsel %vm2154, %v2209, %v2084
      %v2232 = vsel %vm2154, %v2212, %v2086
      %v2234 = vsel %vm2154, %v2215, %v2088
      %v2236 = vsel %vm2154, %v2218, %v2090
      %v2238 = vsel %vm2173, %v2220, %v2102
      %v2240 = vsel %vm2173, %v2222, %v2104
      %v2242 = vsel %vm2173, %v2224, %v2106
      %v2244 = vsel %vm2173, %v2226, %v2108
      %v2246 = vsel %vm2173, %v2228, %v2110
      %v2248 = vsel %vm2173, %v2230, %v2112
      %v2250 = vsel %vm2173, %v2232, %v2114
      %v2252 = vsel %vm2173, %v2234, %v2116
      %v2254 = vsel %vm2173, %v2236, %v2118
      %v2255 = vld [vmem:[%s3] sm:$0xf]
      %v2256 = vld [vmem:[%s3 + $0x4] sm:$0xf]
      %v2257 = vld [vmem:[%s3 + $0x8] sm:$0xf]
      %v2258 = vld [vmem:[%s3 + $0xc] sm:$0xf]
      %v2259 = vld [vmem:[%s3 + $0x10] sm:$0xf]
      %v2260 = vld [vmem:[%s3 + $0x14] sm:$0xf]
      %v2261 = vld [vmem:[%s3 + $0x18] sm:$0xf]
      %v2262 = vld [vmem:[%s3 + $0x1c] sm:$0xf]
      %v2263 = vld [vmem:[%s3 + $0x20] sm:$0xf]
      %v2264 = vld [vmem:[%s3 + $0x24] sm:$0xf]
      %v2265 = vld [vmem:[%s3 + $0x28] sm:$0xf]
      %v2266 = vld [vmem:[%s3 + $0x2c] sm:$0xf]
      %v2267 = vld [vmem:[%s3 + $0x30] sm:$0xf]
      %v2268 = vld [vmem:[%s3 + $0x34] sm:$0xf]
      %v2269 = vld [vmem:[%s3 + $0x38] sm:$0xf]
      %v2270 = vld [vmem:[%s3 + $0x3c] sm:$0xf]
      %v2271 = vld [vmem:[%s3 + $0x40] sm:$0xf]
      %v2272 = vld [vmem:[%s3 + $0x44] sm:$0xf]
      %v2273 = vld [vmem:[%s3 + $0x48] sm:$0xf]
      %v2274 = vld [vmem:[%s3 + $0x4c] sm:$0xf]
      %v2275 = vld [vmem:[%s3 + $0x50] sm:$0xf]
      %v2276 = vld [vmem:[%s3 + $0x54] sm:$0xf]
      %v2277 = vld [vmem:[%s3 + $0x58] sm:$0xf]
      %v2278 = vld [vmem:[%s3 + $0x5c] sm:$0xf]
      %v2279 = vld [vmem:[%s3 + $0x60] sm:$0xf]
      %v2280 = vld [vmem:[%s3 + $0x64] sm:$0xf]
      %v2281 = vld [vmem:[%s3 + $0x68] sm:$0xf]
      %v2282 = vld [vmem:[%s3 + $0x6c] sm:$0xf]
      %v2283 = vld [vmem:[%s3 + $0x70] sm:$0xf]
      %v2284 = vld [vmem:[%s3 + $0x74] sm:$0xf]
      %v2285 = vld [vmem:[%s3 + $0x78] sm:$0xf]
      %v2286 = vld [vmem:[%s3 + $0x7c] sm:$0xf]
      %v2287 = vld [vmem:[%s3 + $0x80] sm:$0xf]
      %v2288 = vld [vmem:[%s3 + $0x84] sm:$0xf]
      %v2289 = vld [vmem:[%s3 + $0x88] sm:$0xf]
      %v2290 = vld [vmem:[%s3 + $0x8c] sm:$0xf]
      %v2291 = vld [vmem:[%s4] sm:$0x1]
      %v2293 = vlaneseq
      %v2294 = vshrl.u32 %v2293, 7
      %v2295 = vsub.s32 0, %v2294
      %v2296 = vrot.slane %v2291, %v2295
      %vm2298 = vsmask.f32 4352
      %v2299 = vshrl.u32 %v2175, 16
      %v2301 = vrot.slane %v2299, 3
      %v2302 = vshll.u32 %v2175, 16
      %v2304 = vrot.slane %v2302, 4
      %v2305 = vor.u32 %v2301, %v2304
      %v2306 = vshrl.u32 %v2177, 16
      %v2308 = vrot.slane %v2306, 3
      %v2309 = vshll.u32 %v2177, 16
      %v2311 = vrot.slane %v2309, 4
      %v2312 = vor.u32 %v2308, %v2311
      %v2313 = vsel %vm2298, %v2305, %v2312
      %v2314 = vshrl.u32 %v2238, 16
      %v2316 = vrot.slane %v2314, 3
      %v2317 = vshll.u32 %v2238, 16
      %v2319 = vrot.slane %v2317, 4
      %v2320 = vor.u32 %v2316, %v2319
      %v2321 = vshrl.u32 %v2240, 16
      %v2323 = vrot.slane %v2321, 3
      %v2324 = vshll.u32 %v2240, 16
      %v2326 = vrot.slane %v2324, 4
      %v2327 = vor.u32 %v2323, %v2326
      %v2328 = vsel %vm2298, %v2320, %v2327
      %v2330 = vshrl.u32 %v1970, 16
      %v2332 = vrot.slane %v2330, 3
      %v2333 = vshll.u32 %v1970, 16
      %v2335 = vrot.slane %v2333, 4
      %v2336 = vor.u32 %v2332, %v2335
      %v2338 = vshrl.u32 %v1973, 16
      %v2340 = vrot.slane %v2338, 3
      %v2341 = vshll.u32 %v1973, 16
      %v2343 = vrot.slane %v2341, 4
      %v2344 = vor.u32 %v2340, %v2343
      %v2345 = vsel %vm2298, %v2336, %v2344
      %v2346 = vshrl.u32 %v2179, 16
      %v2348 = vrot.slane %v2346, 3
      %v2349 = vshll.u32 %v2179, 16
      %v2351 = vrot.slane %v2349, 4
      %v2352 = vor.u32 %v2348, %v2351
      %v2353 = vsel %vm2298, %v2312, %v2352
      %v2354 = vshrl.u32 %v2242, 16
      %v2356 = vrot.slane %v2354, 3
      %v2357 = vshll.u32 %v2242, 16
      %v2359 = vrot.slane %v2357, 4
      %v2360 = vor.u32 %v2356, %v2359
      %v2361 = vsel %vm2298, %v2327, %v2360
      %v2363 = vshrl.u32 %v1975, 16
      %v2365 = vrot.slane %v2363, 3
      %v2366 = vshll.u32 %v1975, 16
      %v2368 = vrot.slane %v2366, 4
      %v2369 = vor.u32 %v2365, %v2368
      %v2370 = vsel %vm2298, %v2344, %v2369
      %v2371 = vshrl.u32 %v2181, 16
      %v2373 = vrot.slane %v2371, 3
      %v2374 = vshll.u32 %v2181, 16
      %v2376 = vrot.slane %v2374, 4
      %v2377 = vor.u32 %v2373, %v2376
      %v2378 = vsel %vm2298, %v2352, %v2377
      %v2379 = vshrl.u32 %v2244, 16
      %v2381 = vrot.slane %v2379, 3
      %v2382 = vshll.u32 %v2244, 16
      %v2384 = vrot.slane %v2382, 4
      %v2385 = vor.u32 %v2381, %v2384
      %v2386 = vsel %vm2298, %v2360, %v2385
      %v2388 = vshrl.u32 %v1977, 16
      %v2390 = vrot.slane %v2388, 3
      %v2391 = vshll.u32 %v1977, 16
      %v2393 = vrot.slane %v2391, 4
      %v2394 = vor.u32 %v2390, %v2393
      %v2395 = vsel %vm2298, %v2369, %v2394
      %v2396 = vshrl.u32 %v2183, 16
      %v2398 = vrot.slane %v2396, 3
      %v2399 = vshll.u32 %v2183, 16
      %v2401 = vrot.slane %v2399, 4
      %v2402 = vor.u32 %v2398, %v2401
      %v2403 = vsel %vm2298, %v2377, %v2402
      %v2404 = vshrl.u32 %v2246, 16
      %v2406 = vrot.slane %v2404, 3
      %v2407 = vshll.u32 %v2246, 16
      %v2409 = vrot.slane %v2407, 4
      %v2410 = vor.u32 %v2406, %v2409
      %v2411 = vsel %vm2298, %v2385, %v2410
      %v2413 = vshrl.u32 %v1979, 16
      %v2415 = vrot.slane %v2413, 3
      %v2416 = vshll.u32 %v1979, 16
      %v2418 = vrot.slane %v2416, 4
      %v2419 = vor.u32 %v2415, %v2418
      %v2420 = vsel %vm2298, %v2394, %v2419
      %v2421 = vshrl.u32 %v2185, 16
      %v2423 = vrot.slane %v2421, 3
      %v2424 = vshll.u32 %v2185, 16
      %v2426 = vrot.slane %v2424, 4
      %v2427 = vor.u32 %v2423, %v2426
      %v2428 = vsel %vm2298, %v2402, %v2427
      %v2429 = vshrl.u32 %v2248, 16
      %v2431 = vrot.slane %v2429, 3
      %v2432 = vshll.u32 %v2248, 16
      %v2434 = vrot.slane %v2432, 4
      %v2435 = vor.u32 %v2431, %v2434
      %v2436 = vsel %vm2298, %v2410, %v2435
      %v2438 = vshrl.u32 %v1981, 16
      %v2440 = vrot.slane %v2438, 3
      %v2441 = vshll.u32 %v1981, 16
      %v2443 = vrot.slane %v2441, 4
      %v2444 = vor.u32 %v2440, %v2443
      %v2445 = vsel %vm2298, %v2419, %v2444
      %v2446 = vshrl.u32 %v2187, 16
      %v2448 = vrot.slane %v2446, 3
      %v2449 = vshll.u32 %v2187, 16
      %v2451 = vrot.slane %v2449, 4
      %v2452 = vor.u32 %v2448, %v2451
      %v2453 = vsel %vm2298, %v2427, %v2452
      %v2454 = vshrl.u32 %v2250, 16
      %v2456 = vrot.slane %v2454, 3
      %v2457 = vshll.u32 %v2250, 16
      %v2459 = vrot.slane %v2457, 4
      %v2460 = vor.u32 %v2456, %v2459
      %v2461 = vsel %vm2298, %v2435, %v2460
      %v2463 = vshrl.u32 %v2043, 16
      %v2465 = vrot.slane %v2463, 3
      %v2466 = vshll.u32 %v2043, 16
      %v2468 = vrot.slane %v2466, 4
      %v2469 = vor.u32 %v2465, %v2468
      %v2470 = vsel %vm2298, %v2444, %v2469
      %v2471 = vshrl.u32 %v2189, 16
      %v2473 = vrot.slane %v2471, 3
      %v2474 = vshll.u32 %v2189, 16
      %v2476 = vrot.slane %v2474, 4
      %v2477 = vor.u32 %v2473, %v2476
      %v2478 = vsel %vm2298, %v2452, %v2477
      %v2479 = vshrl.u32 %v2252, 16
      %v2481 = vrot.slane %v2479, 3
      %v2482 = vshll.u32 %v2252, 16
      %v2484 = vrot.slane %v2482, 4
      %v2485 = vor.u32 %v2481, %v2484
      %v2486 = vsel %vm2298, %v2460, %v2485
      %v2488 = vshrl.u32 %v2123, 16
      %v2490 = vrot.slane %v2488, 3
      %v2491 = vshll.u32 %v2123, 16
      %v2493 = vrot.slane %v2491, 4
      %v2494 = vor.u32 %v2490, %v2493
      %v2495 = vsel %vm2298, %v2469, %v2494
      %v2496 = vshrl.u32 %v2191, 16
      %v2498 = vrot.slane %v2496, 3
      %v2499 = vshll.u32 %v2191, 16
      %v2501 = vrot.slane %v2499, 4
      %v2502 = vor.u32 %v2498, %v2501
      %v2503 = vsel %vm2298, %v2477, %v2502
      %v2504 = vshrl.u32 %v2254, 16
      %v2506 = vrot.slane %v2504, 3
      %v2507 = vshll.u32 %v2254, 16
      %v2509 = vrot.slane %v2507, 4
      %v2510 = vor.u32 %v2506, %v2509
      %v2511 = vsel %vm2298, %v2485, %v2510
      %v2513 = vshrl.u32 %v2125, 16
      %v2515 = vrot.slane %v2513, 3
      %v2516 = vshll.u32 %v2125, 16
      %v2518 = vrot.slane %v2516, 4
      %v2519 = vor.u32 %v2515, %v2518
      %v2520 = vsel %vm2298, %v2494, %v2519
      %v2573 = vunpack.c.l.b16 %v2255
      %v2574 = vunpack.c.l.b16 %v2256
      %v2575 = vunpack.c.l.b16 %v2257
      %v2576 = vunpack.c.l.b16 %v2258
      %v2577 = vunpack.c.l.b16 %v2259
      %v2578 = vunpack.c.l.b16 %v2260
      %v2579 = vunpack.c.l.b16 %v2261
      %v2580 = vunpack.c.l.b16 %v2262
      %v2581 = vunpack.c.l.b16 %v2263
      %v2582 = vunpack.c.l.b16 %v2264
      %v2583 = vunpack.c.l.b16 %v2265
      %v2584 = vunpack.c.l.b16 %v2266
      %v2585 = vunpack.c.l.b16 %v2267
      %v2586 = vunpack.c.l.b16 %v2268
      %v2587 = vunpack.c.l.b16 %v2269
      %v2588 = vunpack.c.l.b16 %v2270
      %v2589 = vunpack.c.l.b16 %v2271
      %v2590 = vunpack.c.l.b16 %v2272
      %v2591 = vunpack.c.l.b16 %v2273
      %v2592 = vunpack.c.l.b16 %v2274
      %v2593 = vunpack.c.l.b16 %v2275
      %v2594 = vunpack.c.l.b16 %v2276
      %v2595 = vunpack.c.l.b16 %v2277
      %v2596 = vunpack.c.l.b16 %v2278
      %v2597 = vunpack.c.l.b16 %v2279
      %v2598 = vunpack.c.l.b16 %v2280
      %v2599 = vunpack.c.l.b16 %v2281
      %v2600 = vunpack.c.l.b16 %v2282
      %v2601 = vunpack.c.l.b16 %v2283
      %v2602 = vunpack.c.l.b16 %v2284
      %v2603 = vunpack.c.l.b16 %v2285
      %v2604 = vunpack.c.l.b16 %v2286
      %v2605 = vunpack.c.l.b16 %v2287
      %v2606 = vunpack.c.l.b16 %v2288
      %v2607 = vunpack.c.l.b16 %v2289
      %v2608 = vunpack.c.l.b16 %v2290
      %v2609 = vpack.c.b16 %v2574, %v2573
      %v2610 = vpack.c.b16 %v2576, %v2575
      %v2611 = vpack.c.b16 %v2578, %v2577
      %v2612 = vpack.c.b16 %v2580, %v2579
      %v2613 = vpack.c.b16 %v2582, %v2581
      %v2614 = vpack.c.b16 %v2584, %v2583
      %v2615 = vpack.c.b16 %v2586, %v2585
      %v2616 = vpack.c.b16 %v2588, %v2587
      %v2617 = vpack.c.b16 %v2590, %v2589
      %v2618 = vpack.c.b16 %v2592, %v2591
      %v2619 = vpack.c.b16 %v2594, %v2593
      %v2620 = vpack.c.b16 %v2596, %v2595
      %v2621 = vpack.c.b16 %v2598, %v2597
      %v2622 = vpack.c.b16 %v2600, %v2599
      %v2623 = vpack.c.b16 %v2602, %v2601
      %v2624 = vpack.c.b16 %v2604, %v2603
      %v2625 = vpack.c.b16 %v2606, %v2605
      %v2626 = vpack.c.b16 %v2608, %v2607
      %v2646 = vsel %vm2126, %v2345, 0
      %v2649 = vsel %vm2126, %v2370, 0
      %v2652 = vsel %vm2126, %v2395, 0
      %v2655 = vsel %vm2126, %v2420, 0
      %v2658 = vsel %vm2126, %v2445, 0
      %v2661 = vsel %vm2126, %v2470, 0
      %v2664 = vsel %vm2126, %v2495, 0
      %v2667 = vsel %vm2126, %v2520, 0
      %2669 = vmatprep.subr.bf16.mxu0 0
      %2670 = vmatpush1.bf16.msra.mxu0 %v2616
      %2671 = vmatprep.subr.bf16.mxu0 0
      %2672 = vmatpush1.bf16.msra.mxu0 %v2615
      %2673 = vmatprep.subr.bf16.mxu0 0
      %2674 = vmatpush1.bf16.msra.mxu0 %v2614
      %2675 = vmatprep.subr.bf16.mxu0 0
      %2676 = vmatpush1.bf16.msra.mxu0 %v2613
      %2677 = vmatprep.subr.bf16.mxu0 0
      %2678 = vmatpush1.bf16.msra.mxu0 %v2612
      %2679 = vmatprep.subr.bf16.mxu0 0
      %2680 = vmatpush1.bf16.msra.mxu0 %v2611
      %2681 = vmatprep.subr.bf16.mxu0 0
      %2682 = vmatpush1.bf16.msra.mxu0 %v2610
      %2683 = vmatprep.subr.bf16.mxu0 0
      %2684 = vmatpush1.bf16.msra.mxu0 %v2609
      %2685 = vmatprep.subr.bf16.mxu0 0
      %2686 = vmatpush2.bf16.msra.mxu0 %v2624
      %2687 = vmatprep.subr.bf16.mxu0 0
      %2688 = vmatpush2.bf16.msra.mxu0 %v2623
      %2689 = vmatprep.subr.bf16.mxu0 0
      %2690 = vmatpush2.bf16.msra.mxu0 %v2622
      %2691 = vmatprep.subr.bf16.mxu0 0
      %2692 = vmatpush2.bf16.msra.mxu0 %v2621
      %2693 = vmatprep.subr.bf16.mxu0 0
      %2694 = vmatpush2.bf16.msra.mxu0 %v2620
      %2695 = vmatprep.subr.bf16.mxu0 0
      %2696 = vmatpush2.bf16.msra.mxu0 %v2619
      %2697 = vmatprep.subr.bf16.mxu0 0
      %2698 = vmatpush2.bf16.msra.mxu0 %v2618
      %2699 = vmatprep.subr.bf16.mxu0 0
      %2700 = vmatpush2.bf16.msra.mxu0 %v2617
      %2701 = vmatprep.mubr.bf16.mxu0 %v2328
      %2702 = vmatmul.mubr.bf16.gmra.mxu0 %v2313
      %v2703 = vpop.f32.mrf.mxu0
      %v2704 = vadd.f32 %v2296, %v2703
      %v2705 = vpop.f32.mrf.mxu0
      %v2706 = vpop.f32.mrf.mxu0
      %v2707 = vadd.f32 %v2296, %v2706
      %v2708 = vpop.f32.mrf.mxu0
      %2709 = vmatprep.mubr.bf16.mxu0 %v2361
      %2710 = vmatmul.mubr.bf16.gmra.mxu0 %v2353
      %v2711 = vpop.f32.mrf.mxu0
      %v2712 = vadd.f32 %v2296, %v2711
      %v2713 = vpop.f32.mrf.mxu0
      %v2714 = vpop.f32.mrf.mxu0
      %v2715 = vadd.f32 %v2296, %v2714
      %v2716 = vpop.f32.mrf.mxu0
      %2717 = vmatprep.mubr.bf16.mxu0 %v2386
      %2718 = vmatmul.mubr.bf16.gmra.mxu0 %v2378
      %v2719 = vpop.f32.mrf.mxu0
      %v2720 = vadd.f32 %v2296, %v2719
      %v2721 = vpop.f32.mrf.mxu0
      %v2722 = vpop.f32.mrf.mxu0
      %v2723 = vadd.f32 %v2296, %v2722
      %v2724 = vpop.f32.mrf.mxu0
      %2725 = vmatprep.mubr.bf16.mxu0 %v2411
      %2726 = vmatmul.mubr.bf16.gmra.mxu0 %v2403
      %v2727 = vpop.f32.mrf.mxu0
      %v2728 = vadd.f32 %v2296, %v2727
      %v2729 = vpop.f32.mrf.mxu0
      %v2730 = vpop.f32.mrf.mxu0
      %v2731 = vadd.f32 %v2296, %v2730
      %v2732 = vpop.f32.mrf.mxu0
      %2733 = vmatprep.mubr.bf16.mxu0 %v2436
      %2734 = vmatmul.mubr.bf16.gmra.mxu0 %v2428
      %v2735 = vpop.f32.mrf.mxu0
      %v2736 = vadd.f32 %v2296, %v2735
      %v2737 = vpop.f32.mrf.mxu0
      %v2738 = vpop.f32.mrf.mxu0
      %v2739 = vadd.f32 %v2296, %v2738
      %v2740 = vpop.f32.mrf.mxu0
      %2741 = vmatprep.mubr.bf16.mxu0 %v2461
      %2742 = vmatmul.mubr.bf16.gmra.mxu0 %v2453
      %v2743 = vpop.f32.mrf.mxu0
      %v2744 = vadd.f32 %v2296, %v2743
      %v2745 = vpop.f32.mrf.mxu0
      %v2746 = vpop.f32.mrf.mxu0
      %v2747 = vadd.f32 %v2296, %v2746
      %v2748 = vpop.f32.mrf.mxu0
      %2749 = vmatprep.mubr.bf16.mxu0 %v2486
      %2750 = vmatmul.mubr.bf16.gmra.mxu0 %v2478
      %v2751 = vpop.f32.mrf.mxu0
      %v2752 = vadd.f32 %v2296, %v2751
      %v2753 = vpop.f32.mrf.mxu0
      %v2754 = vpop.f32.mrf.mxu0
      %v2755 = vadd.f32 %v2296, %v2754
      %v2756 = vpop.f32.mrf.mxu0
      %2757 = vmatprep.mubr.bf16.mxu0 %v2511
      %2758 = vmatmul.mubr.bf16.gmra.mxu0 %v2503
      %v2759 = vpop.f32.mrf.mxu0
      %v2760 = vadd.f32 %v2296, %v2759
      %v2761 = vpop.f32.mrf.mxu0
      %v2762 = vpop.f32.mrf.mxu0
      %v2763 = vadd.f32 %v2296, %v2762
      %v2764 = vpop.f32.mrf.mxu0
      %2765 = vdwg.mxu0
      %2766 = vmatprep.subr.bf16.mxu0 0
      %2767 = vmatpush1.bf16.msra.mxu0 0
      %2768 = vmatprep.subr.bf16.mxu0 0
      %2769 = vmatpush1.bf16.msra.mxu0 0
      %2770 = vmatprep.subr.bf16.mxu0 0
      %2771 = vmatpush1.bf16.msra.mxu0 0
      %2772 = vmatprep.subr.bf16.mxu0 0
      %2773 = vmatpush1.bf16.msra.mxu0 0
      %2774 = vmatprep.subr.bf16.mxu0 0
      %2775 = vmatpush1.bf16.msra.mxu0 0
      %2776 = vmatprep.subr.bf16.mxu0 0
      %2777 = vmatpush1.bf16.msra.mxu0 0
      %2778 = vmatprep.subr.bf16.mxu0 0
      %2779 = vmatpush1.bf16.msra.mxu0 %v2626
      %2780 = vmatprep.subr.bf16.mxu0 0
      %2781 = vmatpush1.bf16.msra.mxu0 %v2625
      %2782 = vmatprep.subr.bf16.mxu0 0
      %2783 = vmatpush2.bf16.msra.mxu0 0
      %2784 = vmatprep.subr.bf16.mxu0 0
      %2785 = vmatpush2.bf16.msra.mxu0 0
      %2786 = vmatprep.subr.bf16.mxu0 0
      %2787 = vmatpush2.bf16.msra.mxu0 0
      %2788 = vmatprep.subr.bf16.mxu0 0
      %2789 = vmatpush2.bf16.msra.mxu0 0
      %2790 = vmatprep.subr.bf16.mxu0 0
      %2791 = vmatpush2.bf16.msra.mxu0 0
      %2792 = vmatprep.subr.bf16.mxu0 0
      %2793 = vmatpush2.bf16.msra.mxu0 0
      %2794 = vmatprep.subr.bf16.mxu0 0
      %2795 = vmatpush2.bf16.msra.mxu0 0
      %2796 = vmatprep.subr.bf16.mxu0 0
      %2797 = vmatpush2.bf16.msra.mxu0 0
      %2798 = vmatprep.mubr.bf16.mxu0 0
      %2799 = vmatmul.mubr.bf16.gmra.mxu0 %v2646
      %v2800 = vpop.f32.mrf.mxu0
      %v2801 = vadd.f32 %v2704, %v2800
      %v2802 = vpop.f32.mrf.mxu0
      %v2803 = vpop.f32.mrf.mxu0
      %v2804 = vadd.f32 %v2707, %v2803
      %v2805 = vpop.f32.mrf.mxu0
      %2806 = vmatprep.mubr.bf16.mxu0 0
      %2807 = vmatmul.mubr.bf16.gmra.mxu0 %v2649
      %v2808 = vpop.f32.mrf.mxu0
      %v2809 = vadd.f32 %v2712, %v2808
      %v2810 = vpop.f32.mrf.mxu0
      %v2811 = vpop.f32.mrf.mxu0
      %v2812 = vadd.f32 %v2715, %v2811
      %v2813 = vpop.f32.mrf.mxu0
      %2814 = vmatprep.mubr.bf16.mxu0 0
      %2815 = vmatmul.mubr.bf16.gmra.mxu0 %v2652
      %v2816 = vpop.f32.mrf.mxu0
      %v2817 = vadd.f32 %v2720, %v2816
      %v2818 = vpop.f32.mrf.mxu0
      %v2819 = vpop.f32.mrf.mxu0
      %v2820 = vadd.f32 %v2723, %v2819
      %v2821 = vpop.f32.mrf.mxu0
      %2822 = vmatprep.mubr.bf16.mxu0 0
      %2823 = vmatmul.mubr.bf16.gmra.mxu0 %v2655
      %v2824 = vpop.f32.mrf.mxu0
      %v2825 = vadd.f32 %v2728, %v2824
      %v2826 = vpop.f32.mrf.mxu0
      %v2827 = vpop.f32.mrf.mxu0
      %v2828 = vadd.f32 %v2731, %v2827
      %v2829 = vpop.f32.mrf.mxu0
      %2830 = vmatprep.mubr.bf16.mxu0 0
      %2831 = vmatmul.mubr.bf16.gmra.mxu0 %v2658
      %v2832 = vpop.f32.mrf.mxu0
      %v2833 = vadd.f32 %v2736, %v2832
      %v2834 = vpop.f32.mrf.mxu0
      %v2835 = vpop.f32.mrf.mxu0
      %v2836 = vadd.f32 %v2739, %v2835
      %v2837 = vpop.f32.mrf.mxu0
      %2838 = vmatprep.mubr.bf16.mxu0 0
      %2839 = vmatmul.mubr.bf16.gmra.mxu0 %v2661
      %v2840 = vpop.f32.mrf.mxu0
      %v2841 = vadd.f32 %v2744, %v2840
      %v2842 = vpop.f32.mrf.mxu0
      %v2843 = vpop.f32.mrf.mxu0
      %v2844 = vadd.f32 %v2747, %v2843
      %v2845 = vpop.f32.mrf.mxu0
      %2846 = vmatprep.mubr.bf16.mxu0 0
      %2847 = vmatmul.mubr.bf16.gmra.mxu0 %v2664
      %v2848 = vpop.f32.mrf.mxu0
      %v2849 = vadd.f32 %v2752, %v2848
      %v2850 = vpop.f32.mrf.mxu0
      %v2851 = vpop.f32.mrf.mxu0
      %v2852 = vadd.f32 %v2755, %v2851
      %v2853 = vpop.f32.mrf.mxu0
      %2854 = vmatprep.mubr.bf16.mxu0 0
      %2855 = vmatmul.mubr.bf16.gmra.mxu0 %v2667
      %v2856 = vpop.f32.mrf.mxu0
      %v2857 = vadd.f32 %v2760, %v2856
      %v2858 = vpop.f32.mrf.mxu0
      %v2859 = vpop.f32.mrf.mxu0
      %v2860 = vadd.f32 %v2763, %v2859
      %v2861 = vpop.f32.mrf.mxu0
      %2862 = vdwg.mxu0
      %v2863 = vmax.f32 %v2801, 0.0
      %v2864 = vmax.f32 %v2804, 0.0
      %v2865 = vmax.f32 %v2809, 0.0
      %v2866 = vmax.f32 %v2812, 0.0
      %v2867 = vmax.f32 %v2817, 0.0
      %v2868 = vmax.f32 %v2820, 0.0
      %v2869 = vmax.f32 %v2825, 0.0
      %v2870 = vmax.f32 %v2828, 0.0
      %v2871 = vmax.f32 %v2833, 0.0
      %v2872 = vmax.f32 %v2836, 0.0
      %v2873 = vmax.f32 %v2841, 0.0
      %v2874 = vmax.f32 %v2844, 0.0
      %v2875 = vmax.f32 %v2849, 0.0
      %v2876 = vmax.f32 %v2852, 0.0
      %v2877 = vmax.f32 %v2857, 0.0
      %v2878 = vmax.f32 %v2860, 0.0
      %v2879 = vsel %vm1077, %v2863, 0.0
      %v2880 = vsel %vm1078, %v2864, 0.0
      %v2881 = vsel %vm1079, %v2865, 0.0
      %v2882 = vsel %vm1080, %v2866, 0.0
      %v2883 = vsel %vm1081, %v2867, 0.0
      %v2884 = vsel %vm1082, %v2868, 0.0
      %v2885 = vsel %vm1083, %v2869, 0.0
      %v2886 = vsel %vm1084, %v2870, 0.0
      %v2887 = vsel %vm1085, %v2871, 0.0
      %v2888 = vsel %vm1086, %v2872, 0.0
      %v2889 = vsel %vm1087, %v2873, 0.0
      %v2890 = vsel %vm1088, %v2874, 0.0
      %v2891 = vsel %vm1089, %v2875, 0.0
      %v2892 = vsel %vm1090, %v2876, 0.0
      %v2893 = vsel %vm1091, %v2877, 0.0
      %v2894 = vsel %vm1092, %v2878, 0.0
      %v2895 = vpack.c.bf16 %v2880, %v2879
      %v2896 = vpack.c.bf16 %v2882, %v2881
      %v2897 = vpack.c.bf16 %v2884, %v2883
      %v2898 = vpack.c.bf16 %v2886, %v2885
      %v2899 = vpack.c.bf16 %v2888, %v2887
      %v2900 = vpack.c.bf16 %v2890, %v2889
      %v2901 = vpack.c.bf16 %v2892, %v2891
      %v2902 = vpack.c.bf16 %v2894, %v2893
      %v2911 = vunpack.c.l.b16 %v2895
      %v2912 = vunpack.c.h.b16 %v2895
      %v2913 = vunpack.c.l.b16 %v2896
      %v2914 = vunpack.c.h.b16 %v2896
      %v2915 = vunpack.c.l.b16 %v2897
      %v2916 = vunpack.c.h.b16 %v2897
      %v2917 = vunpack.c.l.b16 %v2898
      %v2918 = vunpack.c.h.b16 %v2898
      %v2919 = vunpack.c.l.b16 %v2899
      %v2920 = vunpack.c.h.b16 %v2899
      %v2921 = vunpack.c.l.b16 %v2900
      %v2922 = vunpack.c.h.b16 %v2900
      %v2923 = vunpack.c.l.b16 %v2901
      %v2924 = vunpack.c.h.b16 %v2901
      %v2925 = vunpack.c.l.b16 %v2902
      %v2926 = vunpack.c.h.b16 %v2902
      %v2927 = vpack.c.b16 %v2911, %v2911
      %v2928 = vpack.c.b16 %v2912, %v2912
      %v2929 = vpack.c.b16 %v2913, %v2913
      %v2930 = vpack.c.b16 %v2914, %v2914
      %v2931 = vpack.c.b16 %v2915, %v2915
      %v2932 = vpack.c.b16 %v2916, %v2916
      %v2933 = vpack.c.b16 %v2917, %v2917
      %v2934 = vpack.c.b16 %v2918, %v2918
      %v2935 = vpack.c.b16 %v2919, %v2919
      %v2936 = vpack.c.b16 %v2920, %v2920
      %v2937 = vpack.c.b16 %v2921, %v2921
      %v2938 = vpack.c.b16 %v2922, %v2922
      %v2939 = vpack.c.b16 %v2923, %v2923
      %v2940 = vpack.c.b16 %v2924, %v2924
      %v2941 = vpack.c.b16 %v2925, %v2925
      %v2942 = vpack.c.b16 %v2926, %v2926
      %2959 = vst.msk [vmem:[#allocation3 + $0x10] sm:$0xf] %vm570, %v2927
      %2960 = vst.msk [vmem:[#allocation3 + $0x14] sm:$0xf] %vm570, %v2928
      %2961 = vst.msk [vmem:[#allocation3 + $0x18] sm:$0xf] %vm570, %v2929
      %2962 = vst.msk [vmem:[#allocation3 + $0x1c] sm:$0xf] %vm570, %v2930
      %2963 = vst.msk [vmem:[#allocation3 + $0x20] sm:$0xf] %vm570, %v2931
      %2964 = vst.msk [vmem:[#allocation3 + $0x24] sm:$0xf] %vm570, %v2932
      %2965 = vst.msk [vmem:[#allocation3 + $0x28] sm:$0xf] %vm570, %v2933
      %2966 = vst.msk [vmem:[#allocation3 + $0x2c] sm:$0xf] %vm570, %v2934
      %2967 = vst.msk [vmem:[#allocation3 + $0x30] sm:$0xf] %vm570, %v2935
      %2968 = vst.msk [vmem:[#allocation3 + $0x34] sm:$0xf] %vm570, %v2936
      %2969 = vst.msk [vmem:[#allocation3 + $0x38] sm:$0xf] %vm570, %v2937
      %2970 = vst.msk [vmem:[#allocation3 + $0x3c] sm:$0xf] %vm570, %v2938
      %2971 = vst.msk [vmem:[#allocation3 + $0x40] sm:$0xf] %vm570, %v2939
      %2972 = vst.msk [vmem:[#allocation3 + $0x44] sm:$0xf] %vm570, %v2940
      %2973 = vst.msk [vmem:[#allocation3 + $0x48] sm:$0xf] %vm570, %v2941
      %2974 = vst.msk [vmem:[#allocation3 + $0x4c] sm:$0xf] %vm570, %v2942
      %v2975 = vld [vmem:[#allocation2 + $0x44] sm:$0x8]
      %v2976 = vld [vmem:[#allocation2 + $0x48] sm:$0xf]
      %v2977 = vld [vmem:[#allocation2 + $0x4c] sm:$0xf]
      %v2978 = vld [vmem:[#allocation2 + $0x50] sm:$0xf]
      %v2979 = vld [vmem:[#allocation2 + $0x54] sm:$0xf]
      %v2980 = vld [vmem:[#allocation2 + $0x58] sm:$0xf]
      %v2981 = vld [vmem:[#allocation2 + $0x5c] sm:$0xf]
      %v2982 = vld [vmem:[#allocation2 + $0x60] sm:$0xf]
      %v2983 = vld [vmem:[#allocation2 + $0x64] sm:$0xf]
      %v2984 = vld [vmem:[#allocation2 + $0x68] sm:$0xf]
      %v2985 = vld [vmem:[#allocation2 + $0x6c] sm:$0xf]
      %v2986 = vld [vmem:[#allocation2 + $0x70] sm:$0xf]
      %v2987 = vld [vmem:[#allocation2 + $0x74] sm:$0xf]
      %v2988 = vld [vmem:[#allocation2 + $0x78] sm:$0xf]
      %v2989 = vld [vmem:[#allocation2 + $0x7c] sm:$0xf]
      %v2990 = vld [vmem:[#allocation2 + $0x80] sm:$0xf]
      %v2991 = vld [vmem:[#allocation2 + $0x84] sm:$0xf]
      %v2992 = vld [vmem:[#allocation2 + $0x88] sm:$0x1]
      %v2993 = vld [vmem:[#allocation2 + $0x4c] sm:$0x8]
      %v2994 = vld [vmem:[#allocation2 + $0x88] sm:$0xf]
      %v2995 = vld [vmem:[#allocation2 + $0x8c] sm:$0xf]
      %v2996 = vld [vmem:[#allocation2 + $0x90] sm:$0x1]
      %v2997 = vld [vmem:[#allocation2 + $0x54] sm:$0x8]
      %v2998 = vld [vmem:[#allocation2 + $0x90] sm:$0xf]
      %v2999 = vld [vmem:[#allocation2 + $0x94] sm:$0xf]
      %v3000 = vld [vmem:[#allocation2 + $0x98] sm:$0x1]
      %v3018 = vunpack.c.l.b16 %v2975
      %v3019 = vunpack.c.l.b16 %v2976
      %v3020 = vunpack.c.l.b16 %v2977
      %v3021 = vunpack.c.l.b16 %v2978
      %v3022 = vunpack.c.l.b16 %v2979
      %v3023 = vunpack.c.l.b16 %v2980
      %v3024 = vunpack.c.l.b16 %v2981
      %v3025 = vunpack.c.l.b16 %v2982
      %v3026 = vunpack.c.l.b16 %v2983
      %v3027 = vunpack.c.l.b16 %v2984
      %v3028 = vunpack.c.l.b16 %v2985
      %v3029 = vunpack.c.l.b16 %v2986
      %v3030 = vunpack.c.l.b16 %v2987
      %v3031 = vunpack.c.l.b16 %v2988
      %v3032 = vunpack.c.l.b16 %v2989
      %v3033 = vunpack.c.l.b16 %v2990
      %v3034 = vunpack.c.l.b16 %v2991
      %v3035 = vpack.c.b16 %v3019, %v3018
      %v3036 = vpack.c.b16 %v3021, %v3020
      %v3037 = vpack.c.b16 %v3023, %v3022
      %v3038 = vpack.c.b16 %v3025, %v3024
      %v3039 = vpack.c.b16 %v3027, %v3026
      %v3040 = vpack.c.b16 %v3029, %v3028
      %v3041 = vpack.c.b16 %v3031, %v3030
      %v3042 = vpack.c.b16 %v3033, %v3032
      %v3043 = vpack.c.b16 %v3034, %v3034
      %v3044 = vpack.c.b16 %v3020, %v3019
      %v3045 = vpack.c.b16 %v3022, %v3021
      %v3046 = vpack.c.b16 %v3024, %v3023
      %v3047 = vpack.c.b16 %v3026, %v3025
      %v3048 = vpack.c.b16 %v3028, %v3027
      %v3049 = vpack.c.b16 %v3030, %v3029
      %v3050 = vpack.c.b16 %v3032, %v3031
      %v3051 = vpack.c.b16 %v3034, %v3033
      %v3053 = vshrl.u32 %v3044, 16
      %v3055 = vrot.slane %v3053, 4
      %v3056 = vshll.u32 %v3044, 16
      %v3058 = vrot.slane %v3056, 5
      %v3059 = vor.u32 %v3055, %v3058
      %v3061 = vshrl.u32 %v3045, 16
      %v3063 = vrot.slane %v3061, 4
      %v3064 = vshll.u32 %v3045, 16
      %v3066 = vrot.slane %v3064, 5
      %v3067 = vor.u32 %v3063, %v3066
      %v3068 = vsel %vm1873, %v3059, %v3067
      %v3070 = vshrl.u32 %v3046, 16
      %v3072 = vrot.slane %v3070, 4
      %v3073 = vshll.u32 %v3046, 16
      %v3075 = vrot.slane %v3073, 5
      %v3076 = vor.u32 %v3072, %v3075
      %v3077 = vsel %vm1873, %v3067, %v3076
      %v3079 = vshrl.u32 %v3047, 16
      %v3081 = vrot.slane %v3079, 4
      %v3082 = vshll.u32 %v3047, 16
      %v3084 = vrot.slane %v3082, 5
      %v3085 = vor.u32 %v3081, %v3084
      %v3086 = vsel %vm1873, %v3076, %v3085
      %v3088 = vshrl.u32 %v3048, 16
      %v3090 = vrot.slane %v3088, 4
      %v3091 = vshll.u32 %v3048, 16
      %v3093 = vrot.slane %v3091, 5
      %v3094 = vor.u32 %v3090, %v3093
      %v3095 = vsel %vm1873, %v3085, %v3094
      %v3097 = vshrl.u32 %v3049, 16
      %v3099 = vrot.slane %v3097, 4
      %v3100 = vshll.u32 %v3049, 16
      %v3102 = vrot.slane %v3100, 5
      %v3103 = vor.u32 %v3099, %v3102
      %v3104 = vsel %vm1873, %v3094, %v3103
      %v3106 = vshrl.u32 %v3050, 16
      %v3108 = vrot.slane %v3106, 4
      %v3109 = vshll.u32 %v3050, 16
      %v3111 = vrot.slane %v3109, 5
      %v3112 = vor.u32 %v3108, %v3111
      %v3113 = vsel %vm1873, %v3103, %v3112
      %v3115 = vshrl.u32 %v3051, 16
      %v3117 = vrot.slane %v3115, 4
      %v3118 = vshll.u32 %v3051, 16
      %v3120 = vrot.slane %v3118, 5
      %v3121 = vor.u32 %v3117, %v3120
      %v3122 = vsel %vm1873, %v3112, %v3121
      %3123 = vrot.lane.b32.xlu0 %v3059, 32
      %v3124 = vpop.permute.xlu0 %3123
      %3125 = vrot.lane.b32.xlu0 %v3068, 32
      %v3126 = vpop.permute.xlu0 %3125
      %3127 = vrot.lane.b32.xlu0 %v3077, 32
      %v3128 = vpop.permute.xlu0 %3127
      %3129 = vrot.lane.b32.xlu0 %v3086, 32
      %v3130 = vpop.permute.xlu0 %3129
      %3131 = vrot.lane.b32.xlu0 %v3095, 32
      %v3132 = vpop.permute.xlu0 %3131
      %3133 = vrot.lane.b32.xlu0 %v3104, 32
      %v3134 = vpop.permute.xlu0 %3133
      %3135 = vrot.lane.b32.xlu0 %v3113, 32
      %v3136 = vpop.permute.xlu0 %3135
      %3137 = vrot.lane.b32.xlu0 %v3122, 32
      %v3138 = vpop.permute.xlu0 %3137
      %3139 = vrot.lane.b32.xlu0 %v3121, 32
      %v3140 = vpop.permute.xlu0 %3139
      %v3142 = vunpack.c.l.b16 %v2992
      %v3143 = vpack.c.b16 %v3142, %v3142
      %v3144 = vrot.slane %v3044, 5
      %v3145 = vrot.slane %v3045, 5
      %v3146 = vsel %vm1966, %v3144, %v3145
      %v3147 = vrot.slane %v3046, 5
      %v3148 = vsel %vm1966, %v3145, %v3147
      %v3149 = vrot.slane %v3047, 5
      %v3150 = vsel %vm1966, %v3147, %v3149
      %v3151 = vrot.slane %v3048, 5
      %v3152 = vsel %vm1966, %v3149, %v3151
      %v3153 = vrot.slane %v3049, 5
      %v3154 = vsel %vm1966, %v3151, %v3153
      %v3155 = vrot.slane %v3050, 5
      %v3156 = vsel %vm1966, %v3153, %v3155
      %v3157 = vrot.slane %v3051, 5
      %v3158 = vsel %vm1966, %v3155, %v3157
      %v3159 = vrot.slane %v3143, 5
      %v3160 = vsel %vm1966, %v3157, %v3159
      %3161 = vrot.lane.b32.xlu0 %v3144, 64
      %v3162 = vpop.permute.xlu0 %3161
      %3163 = vrot.lane.b32.xlu0 %v3146, 64
      %v3164 = vpop.permute.xlu0 %3163
      %3165 = vrot.lane.b32.xlu0 %v3148, 64
      %v3166 = vpop.permute.xlu0 %3165
      %3167 = vrot.lane.b32.xlu0 %v3150, 64
      %v3168 = vpop.permute.xlu0 %3167
      %3169 = vrot.lane.b32.xlu0 %v3152, 64
      %v3170 = vpop.permute.xlu0 %3169
      %3171 = vrot.lane.b32.xlu0 %v3154, 64
      %v3172 = vpop.permute.xlu0 %3171
      %3173 = vrot.lane.b32.xlu0 %v3156, 64
      %v3174 = vpop.permute.xlu0 %3173
      %3175 = vrot.lane.b32.xlu0 %v3158, 64
      %v3176 = vpop.permute.xlu0 %3175
      %3177 = vrot.lane.b32.xlu0 %v3160, 64
      %v3178 = vpop.permute.xlu0 %3177
      %v3182 = vunpack.c.l.b16 %v2993
      %v3183 = vunpack.c.l.b16 %v2994
      %v3184 = vunpack.c.l.b16 %v2995
      %v3185 = vpack.c.b16 %v3021, %v3182
      %v3186 = vpack.c.b16 %v3183, %v3034
      %v3187 = vpack.c.b16 %v3184, %v3184
      %3188 = vrot.lane.b32.xlu0 %v3185, 96
      %v3189 = vpop.permute.xlu0 %3188
      %3190 = vrot.lane.b32.xlu0 %v3037, 96
      %v3191 = vpop.permute.xlu0 %3190
      %3192 = vrot.lane.b32.xlu0 %v3038, 96
      %v3193 = vpop.permute.xlu0 %3192
      %3194 = vrot.lane.b32.xlu0 %v3039, 96
      %v3195 = vpop.permute.xlu0 %3194
      %3196 = vrot.lane.b32.xlu0 %v3040, 96
      %v3197 = vpop.permute.xlu0 %3196
      %3198 = vrot.lane.b32.xlu0 %v3041, 96
      %v3199 = vpop.permute.xlu0 %3198
      %3200 = vrot.lane.b32.xlu0 %v3042, 96
      %v3201 = vpop.permute.xlu0 %3200
      %3202 = vrot.lane.b32.xlu0 %v3186, 96
      %v3203 = vpop.permute.xlu0 %3202
      %3204 = vrot.lane.b32.xlu0 %v3187, 96
      %v3205 = vpop.permute.xlu0 %3204
      %v3206 = vpack.c.b16 %v3184, %v3183
      %v3208 = vshrl.u32 %v3206, 16
      %v3210 = vrot.slane %v3208, 4
      %v3211 = vshll.u32 %v3206, 16
      %v3213 = vrot.slane %v3211, 5
      %v3214 = vor.u32 %v3210, %v3213
      %v3215 = vsel %vm1873, %v3121, %v3214
      %v3217 = vunpack.c.l.b16 %v2996
      %v3218 = vpack.c.b16 %v3217, %v3217
      %v3219 = vrot.slane %v3206, 5
      %v3220 = vsel %vm1966, %v3157, %v3219
      %v3221 = vrot.slane %v3218, 5
      %v3222 = vsel %vm1966, %v3219, %v3221
      %3223 = vrot.lane.b32.xlu0 %v3145, 32
      %v3224 = vpop.permute.xlu0 %3223
      %3225 = vrot.lane.b32.xlu0 %v3148, 32
      %v3226 = vpop.permute.xlu0 %3225
      %3227 = vrot.lane.b32.xlu0 %v3150, 32
      %v3228 = vpop.permute.xlu0 %3227
      %3229 = vrot.lane.b32.xlu0 %v3152, 32
      %v3230 = vpop.permute.xlu0 %3229
      %3231 = vrot.lane.b32.xlu0 %v3154, 32
      %v3232 = vpop.permute.xlu0 %3231
      %3233 = vrot.lane.b32.xlu0 %v3156, 32
      %v3234 = vpop.permute.xlu0 %3233
      %3235 = vrot.lane.b32.xlu0 %v3158, 32
      %v3236 = vpop.permute.xlu0 %3235
      %3237 = vrot.lane.b32.xlu0 %v3220, 32
      %v3238 = vpop.permute.xlu0 %3237
      %3239 = vrot.lane.b32.xlu0 %v3222, 32
      %v3240 = vpop.permute.xlu0 %3239
      %v3244 = vunpack.c.l.b16 %v2997
      %v3245 = vunpack.c.l.b16 %v2998
      %v3246 = vunpack.c.l.b16 %v2999
      %v3247 = vpack.c.b16 %v3023, %v3244
      %v3248 = vpack.c.b16 %v3245, %v3184
      %v3249 = vpack.c.b16 %v3246, %v3246
      %3250 = vrot.lane.b32.xlu0 %v3247, 64
      %v3251 = vpop.permute.xlu0 %3250
      %3252 = vrot.lane.b32.xlu0 %v3038, 64
      %v3253 = vpop.permute.xlu0 %3252
      %3254 = vrot.lane.b32.xlu0 %v3039, 64
      %v3255 = vpop.permute.xlu0 %3254
      %3256 = vrot.lane.b32.xlu0 %v3040, 64
      %v3257 = vpop.permute.xlu0 %3256
      %3258 = vrot.lane.b32.xlu0 %v3041, 64
      %v3259 = vpop.permute.xlu0 %3258
      %3260 = vrot.lane.b32.xlu0 %v3042, 64
      %v3261 = vpop.permute.xlu0 %3260
      %3262 = vrot.lane.b32.xlu0 %v3186, 64
      %v3263 = vpop.permute.xlu0 %3262
      %3264 = vrot.lane.b32.xlu0 %v3248, 64
      %v3265 = vpop.permute.xlu0 %3264
      %3266 = vrot.lane.b32.xlu0 %v3249, 64
      %v3267 = vpop.permute.xlu0 %3266
      %v3268 = vpack.c.b16 %v3246, %v3245
      %v3270 = vshrl.u32 %v3268, 16
      %v3272 = vrot.slane %v3270, 4
      %v3273 = vshll.u32 %v3268, 16
      %v3275 = vrot.slane %v3273, 5
      %v3276 = vor.u32 %v3272, %v3275
      %v3277 = vsel %vm1873, %v3214, %v3276
      %3278 = vrot.lane.b32.xlu0 %v3076, 96
      %v3279 = vpop.permute.xlu0 %3278
      %3280 = vrot.lane.b32.xlu0 %v3086, 96
      %v3281 = vpop.permute.xlu0 %3280
      %3282 = vrot.lane.b32.xlu0 %v3095, 96
      %v3283 = vpop.permute.xlu0 %3282
      %3284 = vrot.lane.b32.xlu0 %v3104, 96
      %v3285 = vpop.permute.xlu0 %3284
      %3286 = vrot.lane.b32.xlu0 %v3113, 96
      %v3287 = vpop.permute.xlu0 %3286
      %3288 = vrot.lane.b32.xlu0 %v3122, 96
      %v3289 = vpop.permute.xlu0 %3288
      %3290 = vrot.lane.b32.xlu0 %v3215, 96
      %v3291 = vpop.permute.xlu0 %3290
      %3292 = vrot.lane.b32.xlu0 %v3277, 96
      %v3293 = vpop.permute.xlu0 %3292
      %3294 = vrot.lane.b32.xlu0 %v3276, 96
      %v3295 = vpop.permute.xlu0 %3294
      %v3297 = vunpack.c.l.b16 %v3000
      %v3298 = vpack.c.b16 %v3297, %v3297
      %v3299 = vrot.slane %v3268, 5
      %v3300 = vsel %vm1966, %v3219, %v3299
      %v3301 = vrot.slane %v3298, 5
      %v3302 = vsel %vm1966, %v3299, %v3301
      %v3305 = vsel %vm2126, %v3035, %v3124
      %v3308 = vsel %vm2126, %v3036, %v3126
      %v3311 = vsel %vm2126, %v3037, %v3128
      %v3314 = vsel %vm2126, %v3038, %v3130
      %v3317 = vsel %vm2126, %v3039, %v3132
      %v3320 = vsel %vm2126, %v3040, %v3134
      %v3323 = vsel %vm2126, %v3041, %v3136
      %v3326 = vsel %vm2126, %v3042, %v3138
      %v3329 = vsel %vm2126, %v3043, %v3140
      %v3331 = vsel %vm2154, %v3305, %v3162
      %v3333 = vsel %vm2154, %v3308, %v3164
      %v3335 = vsel %vm2154, %v3311, %v3166
      %v3337 = vsel %vm2154, %v3314, %v3168
      %v3339 = vsel %vm2154, %v3317, %v3170
      %v3341 = vsel %vm2154, %v3320, %v3172
      %v3343 = vsel %vm2154, %v3323, %v3174
      %v3345 = vsel %vm2154, %v3326, %v3176
      %v3347 = vsel %vm2154, %v3329, %v3178
      %v3349 = vsel %vm2173, %v3331, %v3189
      %v3351 = vsel %vm2173, %v3333, %v3191
      %v3353 = vsel %vm2173, %v3335, %v3193
      %v3355 = vsel %vm2173, %v3337, %v3195
      %v3357 = vsel %vm2173, %v3339, %v3197
      %v3359 = vsel %vm2173, %v3341, %v3199
      %v3361 = vsel %vm2173, %v3343, %v3201
      %v3363 = vsel %vm2173, %v3345, %v3203
      %v3365 = vsel %vm2173, %v3347, %v3205
      %v3368 = vsel %vm2126, %v3067, %v3224
      %v3371 = vsel %vm2126, %v3077, %v3226
      %v3374 = vsel %vm2126, %v3086, %v3228
      %v3377 = vsel %vm2126, %v3095, %v3230
      %v3380 = vsel %vm2126, %v3104, %v3232
      %v3383 = vsel %vm2126, %v3113, %v3234
      %v3386 = vsel %vm2126, %v3122, %v3236
      %v3389 = vsel %vm2126, %v3215, %v3238
      %v3392 = vsel %vm2126, %v3214, %v3240
      %v3394 = vsel %vm2154, %v3368, %v3251
      %v3396 = vsel %vm2154, %v3371, %v3253
      %v3398 = vsel %vm2154, %v3374, %v3255
      %v3400 = vsel %vm2154, %v3377, %v3257
      %v3402 = vsel %vm2154, %v3380, %v3259
      %v3404 = vsel %vm2154, %v3383, %v3261
      %v3406 = vsel %vm2154, %v3386, %v3263
      %v3408 = vsel %vm2154, %v3389, %v3265
      %v3410 = vsel %vm2154, %v3392, %v3267
      %v3412 = vsel %vm2173, %v3394, %v3279
      %v3414 = vsel %vm2173, %v3396, %v3281
      %v3416 = vsel %vm2173, %v3398, %v3283
      %v3418 = vsel %vm2173, %v3400, %v3285
      %v3420 = vsel %vm2173, %v3402, %v3287
      %v3422 = vsel %vm2173, %v3404, %v3289
      %v3424 = vsel %vm2173, %v3406, %v3291
      %v3426 = vsel %vm2173, %v3408, %v3293
      %v3428 = vsel %vm2173, %v3410, %v3295
      %v3429 = vld [vmem:[%s3] sm:$0xf]
      %v3430 = vld [vmem:[%s3 + $0x4] sm:$0xf]
      %v3431 = vld [vmem:[%s3 + $0x8] sm:$0xf]
      %v3432 = vld [vmem:[%s3 + $0xc] sm:$0xf]
      %v3433 = vld [vmem:[%s3 + $0x10] sm:$0xf]
      %v3434 = vld [vmem:[%s3 + $0x14] sm:$0xf]
      %v3435 = vld [vmem:[%s3 + $0x18] sm:$0xf]
      %v3436 = vld [vmem:[%s3 + $0x1c] sm:$0xf]
      %v3437 = vld [vmem:[%s3 + $0x20] sm:$0xf]
      %v3438 = vld [vmem:[%s3 + $0x24] sm:$0xf]
      %v3439 = vld [vmem:[%s3 + $0x28] sm:$0xf]
      %v3440 = vld [vmem:[%s3 + $0x2c] sm:$0xf]
      %v3441 = vld [vmem:[%s3 + $0x30] sm:$0xf]
      %v3442 = vld [vmem:[%s3 + $0x34] sm:$0xf]
      %v3443 = vld [vmem:[%s3 + $0x38] sm:$0xf]
      %v3444 = vld [vmem:[%s3 + $0x3c] sm:$0xf]
      %v3445 = vld [vmem:[%s3 + $0x40] sm:$0xf]
      %v3446 = vld [vmem:[%s3 + $0x44] sm:$0xf]
      %v3447 = vld [vmem:[%s3 + $0x48] sm:$0xf]
      %v3448 = vld [vmem:[%s3 + $0x4c] sm:$0xf]
      %v3449 = vld [vmem:[%s3 + $0x50] sm:$0xf]
      %v3450 = vld [vmem:[%s3 + $0x54] sm:$0xf]
      %v3451 = vld [vmem:[%s3 + $0x58] sm:$0xf]
      %v3452 = vld [vmem:[%s3 + $0x5c] sm:$0xf]
      %v3453 = vld [vmem:[%s3 + $0x60] sm:$0xf]
      %v3454 = vld [vmem:[%s3 + $0x64] sm:$0xf]
      %v3455 = vld [vmem:[%s3 + $0x68] sm:$0xf]
      %v3456 = vld [vmem:[%s3 + $0x6c] sm:$0xf]
      %v3457 = vld [vmem:[%s3 + $0x70] sm:$0xf]
      %v3458 = vld [vmem:[%s3 + $0x74] sm:$0xf]
      %v3459 = vld [vmem:[%s3 + $0x78] sm:$0xf]
      %v3460 = vld [vmem:[%s3 + $0x7c] sm:$0xf]
      %v3461 = vld [vmem:[%s3 + $0x80] sm:$0xf]
      %v3462 = vld [vmem:[%s3 + $0x84] sm:$0xf]
      %v3463 = vld [vmem:[%s3 + $0x88] sm:$0xf]
      %v3464 = vld [vmem:[%s3 + $0x8c] sm:$0xf]
      %v3465 = vld [vmem:[%s4] sm:$0x1]
      %v3467 = vlaneseq
      %v3468 = vshrl.u32 %v3467, 7
      %v3469 = vsub.s32 0, %v3468
      %v3470 = vrot.slane %v3465, %v3469
      %v3472 = vshrl.u32 %v3349, 16
      %v3474 = vrot.slane %v3472, 3
      %v3475 = vshll.u32 %v3349, 16
      %v3477 = vrot.slane %v3475, 4
      %v3478 = vor.u32 %v3474, %v3477
      %v3479 = vshrl.u32 %v3351, 16
      %v3481 = vrot.slane %v3479, 3
      %v3482 = vshll.u32 %v3351, 16
      %v3484 = vrot.slane %v3482, 4
      %v3485 = vor.u32 %v3481, %v3484
      %v3486 = vsel %vm2298, %v3478, %v3485
      %v3487 = vshrl.u32 %v3412, 16
      %v3489 = vrot.slane %v3487, 3
      %v3490 = vshll.u32 %v3412, 16
      %v3492 = vrot.slane %v3490, 4
      %v3493 = vor.u32 %v3489, %v3492
      %v3494 = vshrl.u32 %v3414, 16
      %v3496 = vrot.slane %v3494, 3
      %v3497 = vshll.u32 %v3414, 16
      %v3499 = vrot.slane %v3497, 4
      %v3500 = vor.u32 %v3496, %v3499
      %v3501 = vsel %vm2298, %v3493, %v3500
      %v3503 = vshrl.u32 %v3147, 16
      %v3505 = vrot.slane %v3503, 3
      %v3506 = vshll.u32 %v3147, 16
      %v3508 = vrot.slane %v3506, 4
      %v3509 = vor.u32 %v3505, %v3508
      %v3511 = vshrl.u32 %v3150, 16
      %v3513 = vrot.slane %v3511, 3
      %v3514 = vshll.u32 %v3150, 16
      %v3516 = vrot.slane %v3514, 4
      %v3517 = vor.u32 %v3513, %v3516
      %v3518 = vsel %vm2298, %v3509, %v3517
      %v3519 = vshrl.u32 %v3353, 16
      %v3521 = vrot.slane %v3519, 3
      %v3522 = vshll.u32 %v3353, 16
      %v3524 = vrot.slane %v3522, 4
      %v3525 = vor.u32 %v3521, %v3524
      %v3526 = vsel %vm2298, %v3485, %v3525
      %v3527 = vshrl.u32 %v3416, 16
      %v3529 = vrot.slane %v3527, 3
      %v3530 = vshll.u32 %v3416, 16
      %v3532 = vrot.slane %v3530, 4
      %v3533 = vor.u32 %v3529, %v3532
      %v3534 = vsel %vm2298, %v3500, %v3533
      %v3536 = vshrl.u32 %v3152, 16
      %v3538 = vrot.slane %v3536, 3
      %v3539 = vshll.u32 %v3152, 16
      %v3541 = vrot.slane %v3539, 4
      %v3542 = vor.u32 %v3538, %v3541
      %v3543 = vsel %vm2298, %v3517, %v3542
      %v3544 = vshrl.u32 %v3355, 16
      %v3546 = vrot.slane %v3544, 3
      %v3547 = vshll.u32 %v3355, 16
      %v3549 = vrot.slane %v3547, 4
      %v3550 = vor.u32 %v3546, %v3549
      %v3551 = vsel %vm2298, %v3525, %v3550
      %v3552 = vshrl.u32 %v3418, 16
      %v3554 = vrot.slane %v3552, 3
      %v3555 = vshll.u32 %v3418, 16
      %v3557 = vrot.slane %v3555, 4
      %v3558 = vor.u32 %v3554, %v3557
      %v3559 = vsel %vm2298, %v3533, %v3558
      %v3561 = vshrl.u32 %v3154, 16
      %v3563 = vrot.slane %v3561, 3
      %v3564 = vshll.u32 %v3154, 16
      %v3566 = vrot.slane %v3564, 4
      %v3567 = vor.u32 %v3563, %v3566
      %v3568 = vsel %vm2298, %v3542, %v3567
      %v3569 = vshrl.u32 %v3357, 16
      %v3571 = vrot.slane %v3569, 3
      %v3572 = vshll.u32 %v3357, 16
      %v3574 = vrot.slane %v3572, 4
      %v3575 = vor.u32 %v3571, %v3574
      %v3576 = vsel %vm2298, %v3550, %v3575
      %v3577 = vshrl.u32 %v3420, 16
      %v3579 = vrot.slane %v3577, 3
      %v3580 = vshll.u32 %v3420, 16
      %v3582 = vrot.slane %v3580, 4
      %v3583 = vor.u32 %v3579, %v3582
      %v3584 = vsel %vm2298, %v3558, %v3583
      %v3586 = vshrl.u32 %v3156, 16
      %v3588 = vrot.slane %v3586, 3
      %v3589 = vshll.u32 %v3156, 16
      %v3591 = vrot.slane %v3589, 4
      %v3592 = vor.u32 %v3588, %v3591
      %v3593 = vsel %vm2298, %v3567, %v3592
      %v3594 = vshrl.u32 %v3359, 16
      %v3596 = vrot.slane %v3594, 3
      %v3597 = vshll.u32 %v3359, 16
      %v3599 = vrot.slane %v3597, 4
      %v3600 = vor.u32 %v3596, %v3599
      %v3601 = vsel %vm2298, %v3575, %v3600
      %v3602 = vshrl.u32 %v3422, 16
      %v3604 = vrot.slane %v3602, 3
      %v3605 = vshll.u32 %v3422, 16
      %v3607 = vrot.slane %v3605, 4
      %v3608 = vor.u32 %v3604, %v3607
      %v3609 = vsel %vm2298, %v3583, %v3608
      %v3611 = vshrl.u32 %v3158, 16
      %v3613 = vrot.slane %v3611, 3
      %v3614 = vshll.u32 %v3158, 16
      %v3616 = vrot.slane %v3614, 4
      %v3617 = vor.u32 %v3613, %v3616
      %v3618 = vsel %vm2298, %v3592, %v3617
      %v3619 = vshrl.u32 %v3361, 16
      %v3621 = vrot.slane %v3619, 3
      %v3622 = vshll.u32 %v3361, 16
      %v3624 = vrot.slane %v3622, 4
      %v3625 = vor.u32 %v3621, %v3624
      %v3626 = vsel %vm2298, %v3600, %v3625
      %v3627 = vshrl.u32 %v3424, 16
      %v3629 = vrot.slane %v3627, 3
      %v3630 = vshll.u32 %v3424, 16
      %v3632 = vrot.slane %v3630, 4
      %v3633 = vor.u32 %v3629, %v3632
      %v3634 = vsel %vm2298, %v3608, %v3633
      %v3636 = vshrl.u32 %v3220, 16
      %v3638 = vrot.slane %v3636, 3
      %v3639 = vshll.u32 %v3220, 16
      %v3641 = vrot.slane %v3639, 4
      %v3642 = vor.u32 %v3638, %v3641
      %v3643 = vsel %vm2298, %v3617, %v3642
      %v3644 = vshrl.u32 %v3363, 16
      %v3646 = vrot.slane %v3644, 3
      %v3647 = vshll.u32 %v3363, 16
      %v3649 = vrot.slane %v3647, 4
      %v3650 = vor.u32 %v3646, %v3649
      %v3651 = vsel %vm2298, %v3625, %v3650
      %v3652 = vshrl.u32 %v3426, 16
      %v3654 = vrot.slane %v3652, 3
      %v3655 = vshll.u32 %v3426, 16
      %v3657 = vrot.slane %v3655, 4
      %v3658 = vor.u32 %v3654, %v3657
      %v3659 = vsel %vm2298, %v3633, %v3658
      %v3661 = vshrl.u32 %v3300, 16
      %v3663 = vrot.slane %v3661, 3
      %v3664 = vshll.u32 %v3300, 16
      %v3666 = vrot.slane %v3664, 4
      %v3667 = vor.u32 %v3663, %v3666
      %v3668 = vsel %vm2298, %v3642, %v3667
      %v3669 = vshrl.u32 %v3365, 16
      %v3671 = vrot.slane %v3669, 3
      %v3672 = vshll.u32 %v3365, 16
      %v3674 = vrot.slane %v3672, 4
      %v3675 = vor.u32 %v3671, %v3674
      %v3676 = vsel %vm2298, %v3650, %v3675
      %v3677 = vshrl.u32 %v3428, 16
      %v3679 = vrot.slane %v3677, 3
      %v3680 = vshll.u32 %v3428, 16
      %v3682 = vrot.slane %v3680, 4
      %v3683 = vor.u32 %v3679, %v3682
      %v3684 = vsel %vm2298, %v3658, %v3683
      %v3686 = vshrl.u32 %v3302, 16
      %v3688 = vrot.slane %v3686, 3
      %v3689 = vshll.u32 %v3302, 16
      %v3691 = vrot.slane %v3689, 4
      %v3692 = vor.u32 %v3688, %v3691
      %v3693 = vsel %vm2298, %v3667, %v3692
      %v3746 = vunpack.c.l.b16 %v3429
      %v3747 = vunpack.c.l.b16 %v3430
      %v3748 = vunpack.c.l.b16 %v3431
      %v3749 = vunpack.c.l.b16 %v3432
      %v3750 = vunpack.c.l.b16 %v3433
      %v3751 = vunpack.c.l.b16 %v3434
      %v3752 = vunpack.c.l.b16 %v3435
      %v3753 = vunpack.c.l.b16 %v3436
      %v3754 = vunpack.c.l.b16 %v3437
      %v3755 = vunpack.c.l.b16 %v3438
      %v3756 = vunpack.c.l.b16 %v3439
      %v3757 = vunpack.c.l.b16 %v3440
      %v3758 = vunpack.c.l.b16 %v3441
      %v3759 = vunpack.c.l.b16 %v3442
      %v3760 = vunpack.c.l.b16 %v3443
      %v3761 = vunpack.c.l.b16 %v3444
      %v3762 = vunpack.c.l.b16 %v3445
      %v3763 = vunpack.c.l.b16 %v3446
      %v3764 = vunpack.c.l.b16 %v3447
      %v3765 = vunpack.c.l.b16 %v3448
      %v3766 = vunpack.c.l.b16 %v3449
      %v3767 = vunpack.c.l.b16 %v3450
      %v3768 = vunpack.c.l.b16 %v3451
      %v3769 = vunpack.c.l.b16 %v3452
      %v3770 = vunpack.c.l.b16 %v3453
      %v3771 = vunpack.c.l.b16 %v3454
      %v3772 = vunpack.c.l.b16 %v3455
      %v3773 = vunpack.c.l.b16 %v3456
      %v3774 = vunpack.c.l.b16 %v3457
      %v3775 = vunpack.c.l.b16 %v3458
      %v3776 = vunpack.c.l.b16 %v3459
      %v3777 = vunpack.c.l.b16 %v3460
      %v3778 = vunpack.c.l.b16 %v3461
      %v3779 = vunpack.c.l.b16 %v3462
      %v3780 = vunpack.c.l.b16 %v3463
      %v3781 = vunpack.c.l.b16 %v3464
      %v3782 = vpack.c.b16 %v3747, %v3746
      %v3783 = vpack.c.b16 %v3749, %v3748
      %v3784 = vpack.c.b16 %v3751, %v3750
      %v3785 = vpack.c.b16 %v3753, %v3752
      %v3786 = vpack.c.b16 %v3755, %v3754
      %v3787 = vpack.c.b16 %v3757, %v3756
      %v3788 = vpack.c.b16 %v3759, %v3758
      %v3789 = vpack.c.b16 %v3761, %v3760
      %v3790 = vpack.c.b16 %v3763, %v3762
      %v3791 = vpack.c.b16 %v3765, %v3764
      %v3792 = vpack.c.b16 %v3767, %v3766
      %v3793 = vpack.c.b16 %v3769, %v3768
      %v3794 = vpack.c.b16 %v3771, %v3770
      %v3795 = vpack.c.b16 %v3773, %v3772
      %v3796 = vpack.c.b16 %v3775, %v3774
      %v3797 = vpack.c.b16 %v3777, %v3776
      %v3798 = vpack.c.b16 %v3779, %v3778
      %v3799 = vpack.c.b16 %v3781, %v3780
      %v3819 = vsel %vm2126, %v3518, 0
      %v3822 = vsel %vm2126, %v3543, 0
      %v3825 = vsel %vm2126, %v3568, 0
      %v3828 = vsel %vm2126, %v3593, 0
      %v3831 = vsel %vm2126, %v3618, 0
      %v3834 = vsel %vm2126, %v3643, 0
      %v3837 = vsel %vm2126, %v3668, 0
      %v3840 = vsel %vm2126, %v3693, 0
      %3842 = vmatprep.subr.bf16.mxu0 0
      %3843 = vmatpush1.bf16.msra.mxu0 %v3789
      %3844 = vmatprep.subr.bf16.mxu0 0
      %3845 = vmatpush1.bf16.msra.mxu0 %v3788
      %3846 = vmatprep.subr.bf16.mxu0 0
      %3847 = vmatpush1.bf16.msra.mxu0 %v3787
      %3848 = vmatprep.subr.bf16.mxu0 0
      %3849 = vmatpush1.bf16.msra.mxu0 %v3786
      %3850 = vmatprep.subr.bf16.mxu0 0
      %3851 = vmatpush1.bf16.msra.mxu0 %v3785
      %3852 = vmatprep.subr.bf16.mxu0 0
      %3853 = vmatpush1.bf16.msra.mxu0 %v3784
      %3854 = vmatprep.subr.bf16.mxu0 0
      %3855 = vmatpush1.bf16.msra.mxu0 %v3783
      %3856 = vmatprep.subr.bf16.mxu0 0
      %3857 = vmatpush1.bf16.msra.mxu0 %v3782
      %3858 = vmatprep.subr.bf16.mxu0 0
      %3859 = vmatpush2.bf16.msra.mxu0 %v3797
      %3860 = vmatprep.subr.bf16.mxu0 0
      %3861 = vmatpush2.bf16.msra.mxu0 %v3796
      %3862 = vmatprep.subr.bf16.mxu0 0
      %3863 = vmatpush2.bf16.msra.mxu0 %v3795
      %3864 = vmatprep.subr.bf16.mxu0 0
      %3865 = vmatpush2.bf16.msra.mxu0 %v3794
      %3866 = vmatprep.subr.bf16.mxu0 0
      %3867 = vmatpush2.bf16.msra.mxu0 %v3793
      %3868 = vmatprep.subr.bf16.mxu0 0
      %3869 = vmatpush2.bf16.msra.mxu0 %v3792
      %3870 = vmatprep.subr.bf16.mxu0 0
      %3871 = vmatpush2.bf16.msra.mxu0 %v3791
      %3872 = vmatprep.subr.bf16.mxu0 0
      %3873 = vmatpush2.bf16.msra.mxu0 %v3790
      %3874 = vmatprep.mubr.bf16.mxu0 %v3501
      %3875 = vmatmul.mubr.bf16.gmra.mxu0 %v3486
      %v3876 = vpop.f32.mrf.mxu0
      %v3877 = vadd.f32 %v3470, %v3876
      %v3878 = vpop.f32.mrf.mxu0
      %v3879 = vpop.f32.mrf.mxu0
      %v3880 = vadd.f32 %v3470, %v3879
      %v3881 = vpop.f32.mrf.mxu0
      %3882 = vmatprep.mubr.bf16.mxu0 %v3534
      %3883 = vmatmul.mubr.bf16.gmra.mxu0 %v3526
      %v3884 = vpop.f32.mrf.mxu0
      %v3885 = vadd.f32 %v3470, %v3884
      %v3886 = vpop.f32.mrf.mxu0
      %v3887 = vpop.f32.mrf.mxu0
      %v3888 = vadd.f32 %v3470, %v3887
      %v3889 = vpop.f32.mrf.mxu0
      %3890 = vmatprep.mubr.bf16.mxu0 %v3559
      %3891 = vmatmul.mubr.bf16.gmra.mxu0 %v3551
      %v3892 = vpop.f32.mrf.mxu0
      %v3893 = vadd.f32 %v3470, %v3892
      %v3894 = vpop.f32.mrf.mxu0
      %v3895 = vpop.f32.mrf.mxu0
      %v3896 = vadd.f32 %v3470, %v3895
      %v3897 = vpop.f32.mrf.mxu0
      %3898 = vmatprep.mubr.bf16.mxu0 %v3584
      %3899 = vmatmul.mubr.bf16.gmra.mxu0 %v3576
      %v3900 = vpop.f32.mrf.mxu0
      %v3901 = vadd.f32 %v3470, %v3900
      %v3902 = vpop.f32.mrf.mxu0
      %v3903 = vpop.f32.mrf.mxu0
      %v3904 = vadd.f32 %v3470, %v3903
      %v3905 = vpop.f32.mrf.mxu0
      %3906 = vmatprep.mubr.bf16.mxu0 %v3609
      %3907 = vmatmul.mubr.bf16.gmra.mxu0 %v3601
      %v3908 = vpop.f32.mrf.mxu0
      %v3909 = vadd.f32 %v3470, %v3908
      %v3910 = vpop.f32.mrf.mxu0
      %v3911 = vpop.f32.mrf.mxu0
      %v3912 = vadd.f32 %v3470, %v3911
      %v3913 = vpop.f32.mrf.mxu0
      %3914 = vmatprep.mubr.bf16.mxu0 %v3634
      %3915 = vmatmul.mubr.bf16.gmra.mxu0 %v3626
      %v3916 = vpop.f32.mrf.mxu0
      %v3917 = vadd.f32 %v3470, %v3916
      %v3918 = vpop.f32.mrf.mxu0
      %v3919 = vpop.f32.mrf.mxu0
      %v3920 = vadd.f32 %v3470, %v3919
      %v3921 = vpop.f32.mrf.mxu0
      %3922 = vmatprep.mubr.bf16.mxu0 %v3659
      %3923 = vmatmul.mubr.bf16.gmra.mxu0 %v3651
      %v3924 = vpop.f32.mrf.mxu0
      %v3925 = vadd.f32 %v3470, %v3924
      %v3926 = vpop.f32.mrf.mxu0
      %v3927 = vpop.f32.mrf.mxu0
      %v3928 = vadd.f32 %v3470, %v3927
      %v3929 = vpop.f32.mrf.mxu0
      %3930 = vmatprep.mubr.bf16.mxu0 %v3684
      %3931 = vmatmul.mubr.bf16.gmra.mxu0 %v3676
      %v3932 = vpop.f32.mrf.mxu0
      %v3933 = vadd.f32 %v3470, %v3932
      %v3934 = vpop.f32.mrf.mxu0
      %v3935 = vpop.f32.mrf.mxu0
      %v3936 = vadd.f32 %v3470, %v3935
      %v3937 = vpop.f32.mrf.mxu0
      %3938 = vdwg.mxu0
      %3939 = vmatprep.subr.bf16.mxu0 0
      %3940 = vmatpush1.bf16.msra.mxu0 0
      %3941 = vmatprep.subr.bf16.mxu0 0
      %3942 = vmatpush1.bf16.msra.mxu0 0
      %3943 = vmatprep.subr.bf16.mxu0 0
      %3944 = vmatpush1.bf16.msra.mxu0 0
      %3945 = vmatprep.subr.bf16.mxu0 0
      %3946 = vmatpush1.bf16.msra.mxu0 0
      %3947 = vmatprep.subr.bf16.mxu0 0
      %3948 = vmatpush1.bf16.msra.mxu0 0
      %3949 = vmatprep.subr.bf16.mxu0 0
      %3950 = vmatpush1.bf16.msra.mxu0 0
      %3951 = vmatprep.subr.bf16.mxu0 0
      %3952 = vmatpush1.bf16.msra.mxu0 %v3799
      %3953 = vmatprep.subr.bf16.mxu0 0
      %3954 = vmatpush1.bf16.msra.mxu0 %v3798
      %3955 = vmatprep.subr.bf16.mxu0 0
      %3956 = vmatpush2.bf16.msra.mxu0 0
      %3957 = vmatprep.subr.bf16.mxu0 0
      %3958 = vmatpush2.bf16.msra.mxu0 0
      %3959 = vmatprep.subr.bf16.mxu0 0
      %3960 = vmatpush2.bf16.msra.mxu0 0
      %3961 = vmatprep.subr.bf16.mxu0 0
      %3962 = vmatpush2.bf16.msra.mxu0 0
      %3963 = vmatprep.subr.bf16.mxu0 0
      %3964 = vmatpush2.bf16.msra.mxu0 0
      %3965 = vmatprep.subr.bf16.mxu0 0
      %3966 = vmatpush2.bf16.msra.mxu0 0
      %3967 = vmatprep.subr.bf16.mxu0 0
      %3968 = vmatpush2.bf16.msra.mxu0 0
      %3969 = vmatprep.subr.bf16.mxu0 0
      %3970 = vmatpush2.bf16.msra.mxu0 0
      %3971 = vmatprep.mubr.bf16.mxu0 0
      %3972 = vmatmul.mubr.bf16.gmra.mxu0 %v3819
      %v3973 = vpop.f32.mrf.mxu0
      %v3974 = vadd.f32 %v3877, %v3973
      %v3975 = vpop.f32.mrf.mxu0
      %v3976 = vpop.f32.mrf.mxu0
      %v3977 = vadd.f32 %v3880, %v3976
      %v3978 = vpop.f32.mrf.mxu0
      %3979 = vmatprep.mubr.bf16.mxu0 0
      %3980 = vmatmul.mubr.bf16.gmra.mxu0 %v3822
      %v3981 = vpop.f32.mrf.mxu0
      %v3982 = vadd.f32 %v3885, %v3981
      %v3983 = vpop.f32.mrf.mxu0
      %v3984 = vpop.f32.mrf.mxu0
      %v3985 = vadd.f32 %v3888, %v3984
      %v3986 = vpop.f32.mrf.mxu0
      %3987 = vmatprep.mubr.bf16.mxu0 0
      %3988 = vmatmul.mubr.bf16.gmra.mxu0 %v3825
      %v3989 = vpop.f32.mrf.mxu0
      %v3990 = vadd.f32 %v3893, %v3989
      %v3991 = vpop.f32.mrf.mxu0
      %v3992 = vpop.f32.mrf.mxu0
      %v3993 = vadd.f32 %v3896, %v3992
      %v3994 = vpop.f32.mrf.mxu0
      %3995 = vmatprep.mubr.bf16.mxu0 0
      %3996 = vmatmul.mubr.bf16.gmra.mxu0 %v3828
      %v3997 = vpop.f32.mrf.mxu0
      %v3998 = vadd.f32 %v3901, %v3997
      %v3999 = vpop.f32.mrf.mxu0
      %v4000 = vpop.f32.mrf.mxu0
      %v4001 = vadd.f32 %v3904, %v4000
      %v4002 = vpop.f32.mrf.mxu0
      %4003 = vmatprep.mubr.bf16.mxu0 0
      %4004 = vmatmul.mubr.bf16.gmra.mxu0 %v3831
      %v4005 = vpop.f32.mrf.mxu0
      %v4006 = vadd.f32 %v3909, %v4005
      %v4007 = vpop.f32.mrf.mxu0
      %v4008 = vpop.f32.mrf.mxu0
      %v4009 = vadd.f32 %v3912, %v4008
      %v4010 = vpop.f32.mrf.mxu0
      %4011 = vmatprep.mubr.bf16.mxu0 0
      %4012 = vmatmul.mubr.bf16.gmra.mxu0 %v3834
      %v4013 = vpop.f32.mrf.mxu0
      %v4014 = vadd.f32 %v3917, %v4013
      %v4015 = vpop.f32.mrf.mxu0
      %v4016 = vpop.f32.mrf.mxu0
      %v4017 = vadd.f32 %v3920, %v4016
      %v4018 = vpop.f32.mrf.mxu0
      %4019 = vmatprep.mubr.bf16.mxu0 0
      %4020 = vmatmul.mubr.bf16.gmra.mxu0 %v3837
      %v4021 = vpop.f32.mrf.mxu0
      %v4022 = vadd.f32 %v3925, %v4021
      %v4023 = vpop.f32.mrf.mxu0
      %v4024 = vpop.f32.mrf.mxu0
      %v4025 = vadd.f32 %v3928, %v4024
      %v4026 = vpop.f32.mrf.mxu0
      %4027 = vmatprep.mubr.bf16.mxu0 0
      %4028 = vmatmul.mubr.bf16.gmra.mxu0 %v3840
      %v4029 = vpop.f32.mrf.mxu0
      %v4030 = vadd.f32 %v3933, %v4029
      %v4031 = vpop.f32.mrf.mxu0
      %v4032 = vpop.f32.mrf.mxu0
      %v4033 = vadd.f32 %v3936, %v4032
      %v4034 = vpop.f32.mrf.mxu0
      %4035 = vdwg.mxu0
      %v4036 = vmax.f32 %v3974, 0.0
      %v4037 = vmax.f32 %v3977, 0.0
      %v4038 = vmax.f32 %v3982, 0.0
      %v4039 = vmax.f32 %v3985, 0.0
      %v4040 = vmax.f32 %v3990, 0.0
      %v4041 = vmax.f32 %v3993, 0.0
      %v4042 = vmax.f32 %v3998, 0.0
      %v4043 = vmax.f32 %v4001, 0.0
      %v4044 = vmax.f32 %v4006, 0.0
      %v4045 = vmax.f32 %v4009, 0.0
      %v4046 = vmax.f32 %v4014, 0.0
      %v4047 = vmax.f32 %v4017, 0.0
      %v4048 = vmax.f32 %v4022, 0.0
      %v4049 = vmax.f32 %v4025, 0.0
      %v4050 = vmax.f32 %v4030, 0.0
      %v4051 = vmax.f32 %v4033, 0.0
      %v4052 = vsel %vm1684, %v4036, 0.0
      %v4053 = vsel %vm1685, %v4037, 0.0
      %v4054 = vsel %vm1686, %v4038, 0.0
      %v4055 = vsel %vm1687, %v4039, 0.0
      %v4056 = vsel %vm1688, %v4040, 0.0
      %v4057 = vsel %vm1689, %v4041, 0.0
      %v4058 = vsel %vm1690, %v4042, 0.0
      %v4059 = vsel %vm1691, %v4043, 0.0
      %v4060 = vsel %vm1692, %v4044, 0.0
      %v4061 = vsel %vm1693, %v4045, 0.0
      %v4062 = vsel %vm1694, %v4046, 0.0
      %v4063 = vsel %vm1695, %v4047, 0.0
      %v4064 = vsel %vm1696, %v4048, 0.0
      %v4065 = vsel %vm1697, %v4049, 0.0
      %v4066 = vsel %vm1698, %v4050, 0.0
      %v4067 = vsel %vm1699, %v4051, 0.0
      %v4068 = vpack.c.bf16 %v4053, %v4052
      %v4069 = vpack.c.bf16 %v4055, %v4054
      %v4070 = vpack.c.bf16 %v4057, %v4056
      %v4071 = vpack.c.bf16 %v4059, %v4058
      %v4072 = vpack.c.bf16 %v4061, %v4060
      %v4073 = vpack.c.bf16 %v4063, %v4062
      %v4074 = vpack.c.bf16 %v4065, %v4064
      %v4075 = vpack.c.bf16 %v4067, %v4066
      %v4084 = vunpack.c.l.b16 %v4068
      %v4085 = vunpack.c.h.b16 %v4068
      %v4086 = vunpack.c.l.b16 %v4069
      %v4087 = vunpack.c.h.b16 %v4069
      %v4088 = vunpack.c.l.b16 %v4070
      %v4089 = vunpack.c.h.b16 %v4070
      %v4090 = vunpack.c.l.b16 %v4071
      %v4091 = vunpack.c.h.b16 %v4071
      %v4092 = vunpack.c.l.b16 %v4072
      %v4093 = vunpack.c.h.b16 %v4072
      %v4094 = vunpack.c.l.b16 %v4073
      %v4095 = vunpack.c.h.b16 %v4073
      %v4096 = vunpack.c.l.b16 %v4074
      %v4097 = vunpack.c.h.b16 %v4074
      %v4098 = vunpack.c.l.b16 %v4075
      %v4099 = vunpack.c.h.b16 %v4075
      %v4100 = vpack.c.b16 %v4084, %v4084
      %v4101 = vpack.c.b16 %v4085, %v4085
      %v4102 = vpack.c.b16 %v4086, %v4086
      %v4103 = vpack.c.b16 %v4087, %v4087
      %v4104 = vpack.c.b16 %v4088, %v4088
      %v4105 = vpack.c.b16 %v4089, %v4089
      %v4106 = vpack.c.b16 %v4090, %v4090
      %v4107 = vpack.c.b16 %v4091, %v4091
      %v4108 = vpack.c.b16 %v4092, %v4092
      %v4109 = vpack.c.b16 %v4093, %v4093
      %v4110 = vpack.c.b16 %v4094, %v4094
      %v4111 = vpack.c.b16 %v4095, %v4095
      %v4112 = vpack.c.b16 %v4096, %v4096
      %v4113 = vpack.c.b16 %v4097, %v4097
      %v4114 = vpack.c.b16 %v4098, %v4098
      %v4115 = vpack.c.b16 %v4099, %v4099
      %4132 = vst.msk [vmem:[#allocation3 + $0x50] sm:$0xf] %vm570, %v4100
      %4133 = vst.msk [vmem:[#allocation3 + $0x54] sm:$0xf] %vm570, %v4101
      %4134 = vst.msk [vmem:[#allocation3 + $0x58] sm:$0xf] %vm570, %v4102
      %4135 = vst.msk [vmem:[#allocation3 + $0x5c] sm:$0xf] %vm570, %v4103
      %4136 = vst.msk [vmem:[#allocation3 + $0x60] sm:$0xf] %vm570, %v4104
      %4137 = vst.msk [vmem:[#allocation3 + $0x64] sm:$0xf] %vm570, %v4105
      %4138 = vst.msk [vmem:[#allocation3 + $0x68] sm:$0xf] %vm570, %v4106
      %4139 = vst.msk [vmem:[#allocation3 + $0x6c] sm:$0xf] %vm570, %v4107
      %4140 = vst.msk [vmem:[#allocation3 + $0x70] sm:$0xf] %vm570, %v4108
      %4141 = vst.msk [vmem:[#allocation3 + $0x74] sm:$0xf] %vm570, %v4109
      %4142 = vst.msk [vmem:[#allocation3 + $0x78] sm:$0xf] %vm570, %v4110
      %4143 = vst.msk [vmem:[#allocation3 + $0x7c] sm:$0xf] %vm570, %v4111
      %4144 = vst.msk [vmem:[#allocation3 + $0x80] sm:$0xf] %vm570, %v4112
      %4145 = vst.msk [vmem:[#allocation3 + $0x84] sm:$0xf] %vm570, %v4113
      %4146 = vst.msk [vmem:[#allocation3 + $0x88] sm:$0xf] %vm570, %v4114
      %4147 = vst.msk [vmem:[#allocation3 + $0x8c] sm:$0xf] %vm570, %v4115
      %v4148 = vld [vmem:[#allocation3 + $0x4] sm:$0x8]
      %v4149 = vld [vmem:[#allocation3 + $0x8] sm:$0xf]
      %v4150 = vld [vmem:[#allocation3 + $0xc] sm:$0xf]
      %v4151 = vld [vmem:[#allocation3 + $0x10] sm:$0xf]
      %v4152 = vld [vmem:[#allocation3 + $0x14] sm:$0xf]
      %v4153 = vld [vmem:[#allocation3 + $0x18] sm:$0xf]
      %v4154 = vld [vmem:[#allocation3 + $0x1c] sm:$0xf]
      %v4155 = vld [vmem:[#allocation3 + $0x20] sm:$0xf]
      %v4156 = vld [vmem:[#allocation3 + $0x24] sm:$0xf]
      %v4157 = vld [vmem:[#allocation3 + $0x28] sm:$0xf]
      %v4158 = vld [vmem:[#allocation3 + $0x2c] sm:$0xf]
      %v4159 = vld [vmem:[#allocation3 + $0x30] sm:$0xf]
      %v4160 = vld [vmem:[#allocation3 + $0x34] sm:$0xf]
      %v4161 = vld [vmem:[#allocation3 + $0x38] sm:$0xf]
      %v4162 = vld [vmem:[#allocation3 + $0x3c] sm:$0xf]
      %v4163 = vld [vmem:[#allocation3 + $0x40] sm:$0xf]
      %v4164 = vld [vmem:[#allocation3 + $0x44] sm:$0xf]
      %v4165 = vld [vmem:[#allocation3 + $0x48] sm:$0x1]
      %v4166 = vld [vmem:[#allocation3 + $0xc] sm:$0x8]
      %v4167 = vld [vmem:[#allocation3 + $0x48] sm:$0xf]
      %v4168 = vld [vmem:[#allocation3 + $0x4c] sm:$0xf]
      %v4169 = vld [vmem:[#allocation3 + $0x50] sm:$0x1]
      %v4170 = vld [vmem:[#allocation3 + $0x14] sm:$0x8]
      %v4171 = vld [vmem:[#allocation3 + $0x50] sm:$0xf]
      %v4172 = vld [vmem:[#allocation3 + $0x54] sm:$0xf]
      %v4173 = vld [vmem:[#allocation3 + $0x58] sm:$0x1]
      %v4191 = vunpack.c.l.b16 %v4148
      %v4192 = vunpack.c.l.b16 %v4149
      %v4193 = vunpack.c.l.b16 %v4150
      %v4194 = vunpack.c.l.b16 %v4151
      %v4195 = vunpack.c.l.b16 %v4152
      %v4196 = vunpack.c.l.b16 %v4153
      %v4197 = vunpack.c.l.b16 %v4154
      %v4198 = vunpack.c.l.b16 %v4155
      %v4199 = vunpack.c.l.b16 %v4156
      %v4200 = vunpack.c.l.b16 %v4157
      %v4201 = vunpack.c.l.b16 %v4158
      %v4202 = vunpack.c.l.b16 %v4159
      %v4203 = vunpack.c.l.b16 %v4160
      %v4204 = vunpack.c.l.b16 %v4161
      %v4205 = vunpack.c.l.b16 %v4162
      %v4206 = vunpack.c.l.b16 %v4163
      %v4207 = vunpack.c.l.b16 %v4164
      %v4208 = vpack.c.b16 %v4192, %v4191
      %v4209 = vpack.c.b16 %v4194, %v4193
      %v4210 = vpack.c.b16 %v4196, %v4195
      %v4211 = vpack.c.b16 %v4198, %v4197
      %v4212 = vpack.c.b16 %v4200, %v4199
      %v4213 = vpack.c.b16 %v4202, %v4201
      %v4214 = vpack.c.b16 %v4204, %v4203
      %v4215 = vpack.c.b16 %v4206, %v4205
      %v4216 = vpack.c.b16 %v4207, %v4207
      %v4217 = vpack.c.b16 %v4193, %v4192
      %v4218 = vpack.c.b16 %v4195, %v4194
      %v4219 = vpack.c.b16 %v4197, %v4196
      %v4220 = vpack.c.b16 %v4199, %v4198
      %v4221 = vpack.c.b16 %v4201, %v4200
      %v4222 = vpack.c.b16 %v4203, %v4202
      %v4223 = vpack.c.b16 %v4205, %v4204
      %v4224 = vpack.c.b16 %v4207, %v4206
      %v4226 = vshrl.u32 %v4217, 16
      %v4228 = vrot.slane %v4226, 4
      %v4229 = vshll.u32 %v4217, 16
      %v4231 = vrot.slane %v4229, 5
      %v4232 = vor.u32 %v4228, %v4231
      %v4234 = vshrl.u32 %v4218, 16
      %v4236 = vrot.slane %v4234, 4
      %v4237 = vshll.u32 %v4218, 16
      %v4239 = vrot.slane %v4237, 5
      %v4240 = vor.u32 %v4236, %v4239
      %v4241 = vsel %vm1873, %v4232, %v4240
      %v4243 = vshrl.u32 %v4219, 16
      %v4245 = vrot.slane %v4243, 4
      %v4246 = vshll.u32 %v4219, 16
      %v4248 = vrot.slane %v4246, 5
      %v4249 = vor.u32 %v4245, %v4248
      %v4250 = vsel %vm1873, %v4240, %v4249
      %v4252 = vshrl.u32 %v4220, 16
      %v4254 = vrot.slane %v4252, 4
      %v4255 = vshll.u32 %v4220, 16
      %v4257 = vrot.slane %v4255, 5
      %v4258 = vor.u32 %v4254, %v4257
      %v4259 = vsel %vm1873, %v4249, %v4258
      %v4261 = vshrl.u32 %v4221, 16
      %v4263 = vrot.slane %v4261, 4
      %v4264 = vshll.u32 %v4221, 16
      %v4266 = vrot.slane %v4264, 5
      %v4267 = vor.u32 %v4263, %v4266
      %v4268 = vsel %vm1873, %v4258, %v4267
      %v4270 = vshrl.u32 %v4222, 16
      %v4272 = vrot.slane %v4270, 4
      %v4273 = vshll.u32 %v4222, 16
      %v4275 = vrot.slane %v4273, 5
      %v4276 = vor.u32 %v4272, %v4275
      %v4277 = vsel %vm1873, %v4267, %v4276
      %v4279 = vshrl.u32 %v4223, 16
      %v4281 = vrot.slane %v4279, 4
      %v4282 = vshll.u32 %v4223, 16
      %v4284 = vrot.slane %v4282, 5
      %v4285 = vor.u32 %v4281, %v4284
      %v4286 = vsel %vm1873, %v4276, %v4285
      %v4288 = vshrl.u32 %v4224, 16
      %v4290 = vrot.slane %v4288, 4
      %v4291 = vshll.u32 %v4224, 16
      %v4293 = vrot.slane %v4291, 5
      %v4294 = vor.u32 %v4290, %v4293
      %v4295 = vsel %vm1873, %v4285, %v4294
      %4296 = vrot.lane.b32.xlu0 %v4232, 64
      %v4297 = vpop.permute.xlu0 %4296
      %4298 = vrot.lane.b32.xlu0 %v4241, 64
      %v4299 = vpop.permute.xlu0 %4298
      %4300 = vrot.lane.b32.xlu0 %v4250, 64
      %v4301 = vpop.permute.xlu0 %4300
      %4302 = vrot.lane.b32.xlu0 %v4259, 64
      %v4303 = vpop.permute.xlu0 %4302
      %4304 = vrot.lane.b32.xlu0 %v4268, 64
      %v4305 = vpop.permute.xlu0 %4304
      %4306 = vrot.lane.b32.xlu0 %v4277, 64
      %v4307 = vpop.permute.xlu0 %4306
      %4308 = vrot.lane.b32.xlu0 %v4286, 64
      %v4309 = vpop.permute.xlu0 %4308
      %4310 = vrot.lane.b32.xlu0 %v4295, 64
      %v4311 = vpop.permute.xlu0 %4310
      %4312 = vrot.lane.b32.xlu0 %v4294, 64
      %v4313 = vpop.permute.xlu0 %4312
      %v4315 = vunpack.c.l.b16 %v4165
      %v4316 = vpack.c.b16 %v4315, %v4315
      %v4317 = vrot.slane %v4217, 5
      %v4318 = vrot.slane %v4218, 5
      %v4319 = vsel %vm1966, %v4317, %v4318
      %v4320 = vrot.slane %v4219, 5
      %v4321 = vsel %vm1966, %v4318, %v4320
      %v4322 = vrot.slane %v4220, 5
      %v4323 = vsel %vm1966, %v4320, %v4322
      %v4324 = vrot.slane %v4221, 5
      %v4325 = vsel %vm1966, %v4322, %v4324
      %v4326 = vrot.slane %v4222, 5
      %v4327 = vsel %vm1966, %v4324, %v4326
      %v4328 = vrot.slane %v4223, 5
      %v4329 = vsel %vm1966, %v4326, %v4328
      %v4330 = vrot.slane %v4224, 5
      %v4331 = vsel %vm1966, %v4328, %v4330
      %v4332 = vrot.slane %v4316, 5
      %v4333 = vsel %vm1966, %v4330, %v4332
      %v4337 = vunpack.c.l.b16 %v4166
      %v4338 = vunpack.c.l.b16 %v4167
      %v4339 = vunpack.c.l.b16 %v4168
      %v4340 = vpack.c.b16 %v4194, %v4337
      %v4341 = vpack.c.b16 %v4338, %v4207
      %v4342 = vpack.c.b16 %v4339, %v4339
      %4343 = vrot.lane.b32.xlu0 %v4340, 64
      %v4344 = vpop.permute.xlu0 %4343
      %4345 = vrot.lane.b32.xlu0 %v4210, 64
      %v4346 = vpop.permute.xlu0 %4345
      %4347 = vrot.lane.b32.xlu0 %v4211, 64
      %v4348 = vpop.permute.xlu0 %4347
      %4349 = vrot.lane.b32.xlu0 %v4212, 64
      %v4350 = vpop.permute.xlu0 %4349
      %4351 = vrot.lane.b32.xlu0 %v4213, 64
      %v4352 = vpop.permute.xlu0 %4351
      %4353 = vrot.lane.b32.xlu0 %v4214, 64
      %v4354 = vpop.permute.xlu0 %4353
      %4355 = vrot.lane.b32.xlu0 %v4215, 64
      %v4356 = vpop.permute.xlu0 %4355
      %4357 = vrot.lane.b32.xlu0 %v4341, 64
      %v4358 = vpop.permute.xlu0 %4357
      %4359 = vrot.lane.b32.xlu0 %v4342, 64
      %v4360 = vpop.permute.xlu0 %4359
      %v4361 = vpack.c.b16 %v4339, %v4338
      %v4363 = vshrl.u32 %v4361, 16
      %v4365 = vrot.slane %v4363, 4
      %v4366 = vshll.u32 %v4361, 16
      %v4368 = vrot.slane %v4366, 5
      %v4369 = vor.u32 %v4365, %v4368
      %v4370 = vsel %vm1873, %v4294, %v4369
      %v4372 = vunpack.c.l.b16 %v4169
      %v4373 = vpack.c.b16 %v4372, %v4372
      %v4374 = vrot.slane %v4361, 5
      %v4375 = vsel %vm1966, %v4330, %v4374
      %v4376 = vrot.slane %v4373, 5
      %v4377 = vsel %vm1966, %v4374, %v4376
      %4378 = vrot.lane.b32.xlu0 %v4318, 64
      %v4379 = vpop.permute.xlu0 %4378
      %4380 = vrot.lane.b32.xlu0 %v4321, 64
      %v4381 = vpop.permute.xlu0 %4380
      %4382 = vrot.lane.b32.xlu0 %v4323, 64
      %v4383 = vpop.permute.xlu0 %4382
      %4384 = vrot.lane.b32.xlu0 %v4325, 64
      %v4385 = vpop.permute.xlu0 %4384
      %4386 = vrot.lane.b32.xlu0 %v4327, 64
      %v4387 = vpop.permute.xlu0 %4386
      %4388 = vrot.lane.b32.xlu0 %v4329, 64
      %v4389 = vpop.permute.xlu0 %4388
      %4390 = vrot.lane.b32.xlu0 %v4331, 64
      %v4391 = vpop.permute.xlu0 %4390
      %4392 = vrot.lane.b32.xlu0 %v4375, 64
      %v4393 = vpop.permute.xlu0 %4392
      %4394 = vrot.lane.b32.xlu0 %v4377, 64
      %v4395 = vpop.permute.xlu0 %4394
      %v4399 = vunpack.c.l.b16 %v4170
      %v4400 = vunpack.c.l.b16 %v4171
      %v4401 = vunpack.c.l.b16 %v4172
      %v4402 = vpack.c.b16 %v4196, %v4399
      %v4403 = vpack.c.b16 %v4400, %v4339
      %v4404 = vpack.c.b16 %v4401, %v4401
      %v4405 = vpack.c.b16 %v4401, %v4400
      %v4407 = vshrl.u32 %v4405, 16
      %v4409 = vrot.slane %v4407, 4
      %v4410 = vshll.u32 %v4405, 16
      %v4412 = vrot.slane %v4410, 5
      %v4413 = vor.u32 %v4409, %v4412
      %v4414 = vsel %vm1873, %v4369, %v4413
      %4415 = vrot.lane.b32.xlu0 %v4249, 64
      %v4416 = vpop.permute.xlu0 %4415
      %4417 = vrot.lane.b32.xlu0 %v4370, 64
      %v4418 = vpop.permute.xlu0 %4417
      %4419 = vrot.lane.b32.xlu0 %v4414, 64
      %v4420 = vpop.permute.xlu0 %4419
      %4421 = vrot.lane.b32.xlu0 %v4413, 64
      %v4422 = vpop.permute.xlu0 %4421
      %v4424 = vunpack.c.l.b16 %v4173
      %v4425 = vpack.c.b16 %v4424, %v4424
      %v4426 = vrot.slane %v4405, 5
      %v4427 = vsel %vm1966, %v4374, %v4426
      %v4428 = vrot.slane %v4425, 5
      %v4429 = vsel %vm1966, %v4426, %v4428
      %v4432 = vsel %vm2154, %v4208, %v4297
      %v4435 = vsel %vm2154, %v4209, %v4299
      %v4438 = vsel %vm2154, %v4210, %v4301
      %v4441 = vsel %vm2154, %v4211, %v4303
      %v4444 = vsel %vm2154, %v4212, %v4305
      %v4447 = vsel %vm2154, %v4213, %v4307
      %v4450 = vsel %vm2154, %v4214, %v4309
      %v4453 = vsel %vm2154, %v4215, %v4311
      %v4456 = vsel %vm2154, %v4216, %v4313
      %v4459 = vsel %vm2154, %v4317, %v4344
      %v4462 = vsel %vm2154, %v4319, %v4346
      %v4465 = vsel %vm2154, %v4321, %v4348
      %v4468 = vsel %vm2154, %v4323, %v4350
      %v4471 = vsel %vm2154, %v4325, %v4352
      %v4474 = vsel %vm2154, %v4327, %v4354
      %v4477 = vsel %vm2154, %v4329, %v4356
      %v4480 = vsel %vm2154, %v4331, %v4358
      %v4483 = vsel %vm2154, %v4333, %v4360
      %v4486 = vsel %vm2154, %v4240, %v4379
      %v4489 = vsel %vm2154, %v4250, %v4381
      %v4492 = vsel %vm2154, %v4259, %v4383
      %v4495 = vsel %vm2154, %v4268, %v4385
      %v4498 = vsel %vm2154, %v4277, %v4387
      %v4501 = vsel %vm2154, %v4286, %v4389
      %v4504 = vsel %vm2154, %v4295, %v4391
      %v4507 = vsel %vm2154, %v4370, %v4393
      %v4510 = vsel %vm2154, %v4369, %v4395
      %v4513 = vsel %vm2154, %v4402, %v4416
      %v4516 = vsel %vm2154, %v4341, %v4418
      %v4519 = vsel %vm2154, %v4403, %v4420
      %v4522 = vsel %vm2154, %v4404, %v4422
      %v4523 = vld [vmem:[%s5] sm:$0xf]
      %v4524 = vld [vmem:[%s5 + $0x4] sm:$0xf]
      %v4525 = vld [vmem:[%s5 + $0x8] sm:$0xf]
      %v4526 = vld [vmem:[%s5 + $0xc] sm:$0xf]
      %v4527 = vld [vmem:[%s5 + $0x10] sm:$0xf]
      %v4528 = vld [vmem:[%s5 + $0x14] sm:$0xf]
      %v4529 = vld [vmem:[%s5 + $0x18] sm:$0xf]
      %v4530 = vld [vmem:[%s5 + $0x1c] sm:$0xf]
      %v4531 = vld [vmem:[%s5 + $0x20] sm:$0xf]
      %v4532 = vld [vmem:[%s5 + $0x24] sm:$0xf]
      %v4533 = vld [vmem:[%s5 + $0x28] sm:$0xf]
      %v4534 = vld [vmem:[%s5 + $0x2c] sm:$0xf]
      %v4535 = vld [vmem:[%s5 + $0x30] sm:$0xf]
      %v4536 = vld [vmem:[%s5 + $0x34] sm:$0xf]
      %v4537 = vld [vmem:[%s5 + $0x38] sm:$0xf]
      %v4538 = vld [vmem:[%s5 + $0x3c] sm:$0xf]
      %v4539 = vld [vmem:[%s5 + $0x40] sm:$0xf]
      %v4540 = vld [vmem:[%s5 + $0x44] sm:$0xf]
      %v4541 = vld [vmem:[%s5 + $0x48] sm:$0xf]
      %v4542 = vld [vmem:[%s5 + $0x4c] sm:$0xf]
      %v4543 = vld [vmem:[%s5 + $0x50] sm:$0xf]
      %v4544 = vld [vmem:[%s5 + $0x54] sm:$0xf]
      %v4545 = vld [vmem:[%s5 + $0x58] sm:$0xf]
      %v4546 = vld [vmem:[%s5 + $0x5c] sm:$0xf]
      %v4547 = vld [vmem:[%s5 + $0x60] sm:$0xf]
      %v4548 = vld [vmem:[%s5 + $0x64] sm:$0xf]
      %v4549 = vld [vmem:[%s5 + $0x68] sm:$0xf]
      %v4550 = vld [vmem:[%s5 + $0x6c] sm:$0xf]
      %v4551 = vld [vmem:[%s5 + $0x70] sm:$0xf]
      %v4552 = vld [vmem:[%s5 + $0x74] sm:$0xf]
      %v4553 = vld [vmem:[%s5 + $0x78] sm:$0xf]
      %v4554 = vld [vmem:[%s5 + $0x7c] sm:$0xf]
      %v4555 = vld [vmem:[%s5 + $0x80] sm:$0xf]
      %v4556 = vld [vmem:[%s5 + $0x84] sm:$0xf]
      %v4557 = vld [vmem:[%s5 + $0x88] sm:$0xf]
      %v4558 = vld [vmem:[%s5 + $0x8c] sm:$0xf]
      %v4559 = vld [vmem:[%s5 + $0x90] sm:$0xf]
      %v4560 = vld [vmem:[%s5 + $0x94] sm:$0xf]
      %v4561 = vld [vmem:[%s5 + $0x98] sm:$0xf]
      %v4562 = vld [vmem:[%s5 + $0x9c] sm:$0xf]
      %v4563 = vld [vmem:[%s5 + $0xa0] sm:$0xf]
      %v4564 = vld [vmem:[%s5 + $0xa4] sm:$0xf]
      %v4565 = vld [vmem:[%s5 + $0xa8] sm:$0xf]
      %v4566 = vld [vmem:[%s5 + $0xac] sm:$0xf]
      %v4567 = vld [vmem:[%s5 + $0xb0] sm:$0xf]
      %v4568 = vld [vmem:[%s5 + $0xb4] sm:$0xf]
      %v4569 = vld [vmem:[%s5 + $0xb8] sm:$0xf]
      %v4570 = vld [vmem:[%s5 + $0xbc] sm:$0xf]
      %v4571 = vld [vmem:[%s5 + $0xc0] sm:$0xf]
      %v4572 = vld [vmem:[%s5 + $0xc4] sm:$0xf]
      %v4573 = vld [vmem:[%s5 + $0xc8] sm:$0xf]
      %v4574 = vld [vmem:[%s5 + $0xcc] sm:$0xf]
      %v4575 = vld [vmem:[%s5 + $0xd0] sm:$0xf]
      %v4576 = vld [vmem:[%s5 + $0xd4] sm:$0xf]
      %v4577 = vld [vmem:[%s5 + $0xd8] sm:$0xf]
      %v4578 = vld [vmem:[%s5 + $0xdc] sm:$0xf]
      %v4579 = vld [vmem:[%s5 + $0xe0] sm:$0xf]
      %v4580 = vld [vmem:[%s5 + $0xe4] sm:$0xf]
      %v4581 = vld [vmem:[%s5 + $0xe8] sm:$0xf]
      %v4582 = vld [vmem:[%s5 + $0xec] sm:$0xf]
      %v4583 = vld [vmem:[%s5 + $0xf0] sm:$0xf]
      %v4584 = vld [vmem:[%s5 + $0xf4] sm:$0xf]
      %v4585 = vld [vmem:[%s5 + $0xf8] sm:$0xf]
      %v4586 = vld [vmem:[%s5 + $0xfc] sm:$0xf]
      %v4587 = vld [vmem:[%s5 + $0x100] sm:$0xf]
      %v4588 = vld [vmem:[%s5 + $0x104] sm:$0xf]
      %v4589 = vld [vmem:[%s5 + $0x108] sm:$0xf]
      %v4590 = vld [vmem:[%s5 + $0x10c] sm:$0xf]
      %v4591 = vld [vmem:[%s5 + $0x110] sm:$0xf]
      %v4592 = vld [vmem:[%s5 + $0x114] sm:$0xf]
      %v4593 = vld [vmem:[%s5 + $0x118] sm:$0xf]
      %v4594 = vld [vmem:[%s5 + $0x11c] sm:$0xf]
      %v4595 = vld [vmem:[%s6] sm:$0x1]
      %v4597 = vlaneseq
      %v4598 = vshrl.u32 %v4597, 7
      %v4599 = vsub.s32 0, %v4598
      %v4600 = vrot.slane %v4595, %v4599
      %v4602 = vshrl.u32 %v4432, 16
      %v4604 = vrot.slane %v4602, 3
      %v4605 = vshll.u32 %v4432, 16
      %v4607 = vrot.slane %v4605, 4
      %v4608 = vor.u32 %v4604, %v4607
      %v4609 = vshrl.u32 %v4435, 16
      %v4611 = vrot.slane %v4609, 3
      %v4612 = vshll.u32 %v4435, 16
      %v4614 = vrot.slane %v4612, 4
      %v4615 = vor.u32 %v4611, %v4614
      %v4616 = vsel %vm2298, %v4608, %v4615
      %v4617 = vshrl.u32 %v4459, 16
      %v4619 = vrot.slane %v4617, 3
      %v4620 = vshll.u32 %v4459, 16
      %v4622 = vrot.slane %v4620, 4
      %v4623 = vor.u32 %v4619, %v4622
      %v4624 = vshrl.u32 %v4462, 16
      %v4626 = vrot.slane %v4624, 3
      %v4627 = vshll.u32 %v4462, 16
      %v4629 = vrot.slane %v4627, 4
      %v4630 = vor.u32 %v4626, %v4629
      %v4631 = vsel %vm2298, %v4623, %v4630
      %v4632 = vshrl.u32 %v4486, 16
      %v4634 = vrot.slane %v4632, 3
      %v4635 = vshll.u32 %v4486, 16
      %v4637 = vrot.slane %v4635, 4
      %v4638 = vor.u32 %v4634, %v4637
      %v4639 = vshrl.u32 %v4489, 16
      %v4641 = vrot.slane %v4639, 3
      %v4642 = vshll.u32 %v4489, 16
      %v4644 = vrot.slane %v4642, 4
      %v4645 = vor.u32 %v4641, %v4644
      %v4646 = vsel %vm2298, %v4638, %v4645
      %v4647 = vshrl.u32 %v4513, 16
      %v4649 = vrot.slane %v4647, 3
      %v4650 = vshll.u32 %v4513, 16
      %v4652 = vrot.slane %v4650, 4
      %v4653 = vor.u32 %v4649, %v4652
      %v4654 = vshrl.u32 %v4441, 16
      %v4656 = vrot.slane %v4654, 3
      %v4657 = vshll.u32 %v4441, 16
      %v4659 = vrot.slane %v4657, 4
      %v4660 = vor.u32 %v4656, %v4659
      %v4661 = vsel %vm2298, %v4653, %v4660
      %v4663 = vshrl.u32 %v4320, 16
      %v4665 = vrot.slane %v4663, 3
      %v4666 = vshll.u32 %v4320, 16
      %v4668 = vrot.slane %v4666, 4
      %v4669 = vor.u32 %v4665, %v4668
      %v4670 = vshrl.u32 %v4323, 16
      %v4672 = vrot.slane %v4670, 3
      %v4673 = vshll.u32 %v4323, 16
      %v4675 = vrot.slane %v4673, 4
      %v4676 = vor.u32 %v4672, %v4675
      %v4677 = vsel %vm2298, %v4669, %v4676
      %v4678 = vshrl.u32 %v4438, 16
      %v4680 = vrot.slane %v4678, 3
      %v4681 = vshll.u32 %v4438, 16
      %v4683 = vrot.slane %v4681, 4
      %v4684 = vor.u32 %v4680, %v4683
      %v4685 = vsel %vm2298, %v4615, %v4684
      %v4686 = vshrl.u32 %v4465, 16
      %v4688 = vrot.slane %v4686, 3
      %v4689 = vshll.u32 %v4465, 16
      %v4691 = vrot.slane %v4689, 4
      %v4692 = vor.u32 %v4688, %v4691
      %v4693 = vsel %vm2298, %v4630, %v4692
      %v4694 = vshrl.u32 %v4492, 16
      %v4696 = vrot.slane %v4694, 3
      %v4697 = vshll.u32 %v4492, 16
      %v4699 = vrot.slane %v4697, 4
      %v4700 = vor.u32 %v4696, %v4699
      %v4701 = vsel %vm2298, %v4645, %v4700
      %v4702 = vshrl.u32 %v4444, 16
      %v4704 = vrot.slane %v4702, 3
      %v4705 = vshll.u32 %v4444, 16
      %v4707 = vrot.slane %v4705, 4
      %v4708 = vor.u32 %v4704, %v4707
      %v4709 = vsel %vm2298, %v4660, %v4708
      %v4710 = vshrl.u32 %v4325, 16
      %v4712 = vrot.slane %v4710, 3
      %v4713 = vshll.u32 %v4325, 16
      %v4715 = vrot.slane %v4713, 4
      %v4716 = vor.u32 %v4712, %v4715
      %v4717 = vsel %vm2298, %v4676, %v4716
      %v4718 = vsel %vm2298, %v4684, %v4660
      %v4719 = vshrl.u32 %v4468, 16
      %v4721 = vrot.slane %v4719, 3
      %v4722 = vshll.u32 %v4468, 16
      %v4724 = vrot.slane %v4722, 4
      %v4725 = vor.u32 %v4721, %v4724
      %v4726 = vsel %vm2298, %v4692, %v4725
      %v4727 = vshrl.u32 %v4495, 16
      %v4729 = vrot.slane %v4727, 3
      %v4730 = vshll.u32 %v4495, 16
      %v4732 = vrot.slane %v4730, 4
      %v4733 = vor.u32 %v4729, %v4732
      %v4734 = vsel %vm2298, %v4700, %v4733
      %v4735 = vshrl.u32 %v4447, 16
      %v4737 = vrot.slane %v4735, 3
      %v4738 = vshll.u32 %v4447, 16
      %v4740 = vrot.slane %v4738, 4
      %v4741 = vor.u32 %v4737, %v4740
      %v4742 = vsel %vm2298, %v4708, %v4741
      %v4743 = vshrl.u32 %v4327, 16
      %v4745 = vrot.slane %v4743, 3
      %v4746 = vshll.u32 %v4327, 16
      %v4748 = vrot.slane %v4746, 4
      %v4749 = vor.u32 %v4745, %v4748
      %v4750 = vsel %vm2298, %v4716, %v4749
      %v4751 = vshrl.u32 %v4471, 16
      %v4753 = vrot.slane %v4751, 3
      %v4754 = vshll.u32 %v4471, 16
      %v4756 = vrot.slane %v4754, 4
      %v4757 = vor.u32 %v4753, %v4756
      %v4758 = vsel %vm2298, %v4725, %v4757
      %v4759 = vshrl.u32 %v4498, 16
      %v4761 = vrot.slane %v4759, 3
      %v4762 = vshll.u32 %v4498, 16
      %v4764 = vrot.slane %v4762, 4
      %v4765 = vor.u32 %v4761, %v4764
      %v4766 = vsel %vm2298, %v4733, %v4765
      %v4767 = vshrl.u32 %v4450, 16
      %v4769 = vrot.slane %v4767, 3
      %v4770 = vshll.u32 %v4450, 16
      %v4772 = vrot.slane %v4770, 4
      %v4773 = vor.u32 %v4769, %v4772
      %v4774 = vsel %vm2298, %v4741, %v4773
      %v4775 = vshrl.u32 %v4329, 16
      %v4777 = vrot.slane %v4775, 3
      %v4778 = vshll.u32 %v4329, 16
      %v4780 = vrot.slane %v4778, 4
      %v4781 = vor.u32 %v4777, %v4780
      %v4782 = vsel %vm2298, %v4749, %v4781
      %v4783 = vshrl.u32 %v4474, 16
      %v4785 = vrot.slane %v4783, 3
      %v4786 = vshll.u32 %v4474, 16
      %v4788 = vrot.slane %v4786, 4
      %v4789 = vor.u32 %v4785, %v4788
      %v4790 = vsel %vm2298, %v4757, %v4789
      %v4791 = vshrl.u32 %v4501, 16
      %v4793 = vrot.slane %v4791, 3
      %v4794 = vshll.u32 %v4501, 16
      %v4796 = vrot.slane %v4794, 4
      %v4797 = vor.u32 %v4793, %v4796
      %v4798 = vsel %vm2298, %v4765, %v4797
      %v4799 = vshrl.u32 %v4453, 16
      %v4801 = vrot.slane %v4799, 3
      %v4802 = vshll.u32 %v4453, 16
      %v4804 = vrot.slane %v4802, 4
      %v4805 = vor.u32 %v4801, %v4804
      %v4806 = vsel %vm2298, %v4773, %v4805
      %v4807 = vshrl.u32 %v4331, 16
      %v4809 = vrot.slane %v4807, 3
      %v4810 = vshll.u32 %v4331, 16
      %v4812 = vrot.slane %v4810, 4
      %v4813 = vor.u32 %v4809, %v4812
      %v4814 = vsel %vm2298, %v4781, %v4813
      %v4815 = vshrl.u32 %v4477, 16
      %v4817 = vrot.slane %v4815, 3
      %v4818 = vshll.u32 %v4477, 16
      %v4820 = vrot.slane %v4818, 4
      %v4821 = vor.u32 %v4817, %v4820
      %v4822 = vsel %vm2298, %v4789, %v4821
      %v4823 = vshrl.u32 %v4504, 16
      %v4825 = vrot.slane %v4823, 3
      %v4826 = vshll.u32 %v4504, 16
      %v4828 = vrot.slane %v4826, 4
      %v4829 = vor.u32 %v4825, %v4828
      %v4830 = vsel %vm2298, %v4797, %v4829
      %v4831 = vshrl.u32 %v4516, 16
      %v4833 = vrot.slane %v4831, 3
      %v4834 = vshll.u32 %v4516, 16
      %v4836 = vrot.slane %v4834, 4
      %v4837 = vor.u32 %v4833, %v4836
      %v4838 = vsel %vm2298, %v4805, %v4837
      %v4840 = vshrl.u32 %v4375, 16
      %v4842 = vrot.slane %v4840, 3
      %v4843 = vshll.u32 %v4375, 16
      %v4845 = vrot.slane %v4843, 4
      %v4846 = vor.u32 %v4842, %v4845
      %v4847 = vsel %vm2298, %v4813, %v4846
      %v4848 = vshrl.u32 %v4480, 16
      %v4850 = vrot.slane %v4848, 3
      %v4851 = vshll.u32 %v4480, 16
      %v4853 = vrot.slane %v4851, 4
      %v4854 = vor.u32 %v4850, %v4853
      %v4855 = vsel %vm2298, %v4821, %v4854
      %v4856 = vshrl.u32 %v4507, 16
      %v4858 = vrot.slane %v4856, 3
      %v4859 = vshll.u32 %v4507, 16
      %v4861 = vrot.slane %v4859, 4
      %v4862 = vor.u32 %v4858, %v4861
      %v4863 = vsel %vm2298, %v4829, %v4862
      %v4864 = vshrl.u32 %v4519, 16
      %v4866 = vrot.slane %v4864, 3
      %v4867 = vshll.u32 %v4519, 16
      %v4869 = vrot.slane %v4867, 4
      %v4870 = vor.u32 %v4866, %v4869
      %v4871 = vsel %vm2298, %v4837, %v4870
      %v4873 = vshrl.u32 %v4427, 16
      %v4875 = vrot.slane %v4873, 3
      %v4876 = vshll.u32 %v4427, 16
      %v4878 = vrot.slane %v4876, 4
      %v4879 = vor.u32 %v4875, %v4878
      %v4880 = vsel %vm2298, %v4846, %v4879
      %v4881 = vshrl.u32 %v4456, 16
      %v4883 = vrot.slane %v4881, 3
      %v4884 = vshll.u32 %v4456, 16
      %v4886 = vrot.slane %v4884, 4
      %v4887 = vor.u32 %v4883, %v4886
      %v4888 = vsel %vm2298, %v4805, %v4887
      %v4889 = vshrl.u32 %v4483, 16
      %v4891 = vrot.slane %v4889, 3
      %v4892 = vshll.u32 %v4483, 16
      %v4894 = vrot.slane %v4892, 4
      %v4895 = vor.u32 %v4891, %v4894
      %v4896 = vsel %vm2298, %v4854, %v4895
      %v4897 = vshrl.u32 %v4510, 16
      %v4899 = vrot.slane %v4897, 3
      %v4900 = vshll.u32 %v4510, 16
      %v4902 = vrot.slane %v4900, 4
      %v4903 = vor.u32 %v4899, %v4902
      %v4904 = vsel %vm2298, %v4862, %v4903
      %v4905 = vshrl.u32 %v4522, 16
      %v4907 = vrot.slane %v4905, 3
      %v4908 = vshll.u32 %v4522, 16
      %v4910 = vrot.slane %v4908, 4
      %v4911 = vor.u32 %v4907, %v4910
      %v4912 = vsel %vm2298, %v4870, %v4911
      %v4914 = vshrl.u32 %v4429, 16
      %v4916 = vrot.slane %v4914, 3
      %v4917 = vshll.u32 %v4429, 16
      %v4919 = vrot.slane %v4917, 4
      %v4920 = vor.u32 %v4916, %v4919
      %v4921 = vsel %vm2298, %v4879, %v4920
      %v5022 = vunpack.c.l.b16 %v4523
      %v5023 = vunpack.c.l.b16 %v4524
      %v5024 = vunpack.c.l.b16 %v4525
      %v5025 = vunpack.c.l.b16 %v4526
      %v5026 = vunpack.c.l.b16 %v4527
      %v5027 = vunpack.c.l.b16 %v4528
      %v5028 = vunpack.c.l.b16 %v4529
      %v5029 = vunpack.c.l.b16 %v4530
      %v5030 = vunpack.c.l.b16 %v4531
      %v5031 = vunpack.c.l.b16 %v4532
      %v5032 = vunpack.c.l.b16 %v4533
      %v5033 = vunpack.c.l.b16 %v4534
      %v5034 = vunpack.c.l.b16 %v4535
      %v5035 = vunpack.c.l.b16 %v4536
      %v5036 = vunpack.c.l.b16 %v4537
      %v5037 = vunpack.c.l.b16 %v4538
      %v5038 = vunpack.c.l.b16 %v4539
      %v5039 = vunpack.c.l.b16 %v4540
      %v5040 = vunpack.c.l.b16 %v4541
      %v5041 = vunpack.c.l.b16 %v4542
      %v5042 = vunpack.c.l.b16 %v4543
      %v5043 = vunpack.c.l.b16 %v4544
      %v5044 = vunpack.c.l.b16 %v4545
      %v5045 = vunpack.c.l.b16 %v4546
      %v5046 = vunpack.c.l.b16 %v4547
      %v5047 = vunpack.c.l.b16 %v4548
      %v5048 = vunpack.c.l.b16 %v4549
      %v5049 = vunpack.c.l.b16 %v4550
      %v5050 = vunpack.c.l.b16 %v4551
      %v5051 = vunpack.c.l.b16 %v4552
      %v5052 = vunpack.c.l.b16 %v4553
      %v5053 = vunpack.c.l.b16 %v4554
      %v5054 = vunpack.c.l.b16 %v4555
      %v5055 = vunpack.c.l.b16 %v4556
      %v5056 = vunpack.c.l.b16 %v4557
      %v5057 = vunpack.c.l.b16 %v4558
      %v5058 = vunpack.c.l.b16 %v4559
      %v5059 = vunpack.c.l.b16 %v4560
      %v5060 = vunpack.c.l.b16 %v4561
      %v5061 = vunpack.c.l.b16 %v4562
      %v5062 = vunpack.c.l.b16 %v4563
      %v5063 = vunpack.c.l.b16 %v4564
      %v5064 = vunpack.c.l.b16 %v4565
      %v5065 = vunpack.c.l.b16 %v4566
      %v5066 = vunpack.c.l.b16 %v4567
      %v5067 = vunpack.c.l.b16 %v4568
      %v5068 = vunpack.c.l.b16 %v4569
      %v5069 = vunpack.c.l.b16 %v4570
      %v5070 = vunpack.c.l.b16 %v4571
      %v5071 = vunpack.c.l.b16 %v4572
      %v5072 = vunpack.c.l.b16 %v4573
      %v5073 = vunpack.c.l.b16 %v4574
      %v5074 = vunpack.c.l.b16 %v4575
      %v5075 = vunpack.c.l.b16 %v4576
      %v5076 = vunpack.c.l.b16 %v4577
      %v5077 = vunpack.c.l.b16 %v4578
      %v5078 = vunpack.c.l.b16 %v4579
      %v5079 = vunpack.c.l.b16 %v4580
      %v5080 = vunpack.c.l.b16 %v4581
      %v5081 = vunpack.c.l.b16 %v4582
      %v5082 = vunpack.c.l.b16 %v4583
      %v5083 = vunpack.c.l.b16 %v4584
      %v5084 = vunpack.c.l.b16 %v4585
      %v5085 = vunpack.c.l.b16 %v4586
      %v5086 = vunpack.c.l.b16 %v4587
      %v5087 = vunpack.c.l.b16 %v4588
      %v5088 = vunpack.c.l.b16 %v4589
      %v5089 = vunpack.c.l.b16 %v4590
      %v5090 = vunpack.c.l.b16 %v4591
      %v5091 = vunpack.c.l.b16 %v4592
      %v5092 = vunpack.c.l.b16 %v4593
      %v5093 = vunpack.c.l.b16 %v4594
      %v5094 = vpack.c.b16 %v5023, %v5022
      %v5095 = vpack.c.b16 %v5025, %v5024
      %v5096 = vpack.c.b16 %v5027, %v5026
      %v5097 = vpack.c.b16 %v5029, %v5028
      %v5098 = vpack.c.b16 %v5031, %v5030
      %v5099 = vpack.c.b16 %v5033, %v5032
      %v5100 = vpack.c.b16 %v5035, %v5034
      %v5101 = vpack.c.b16 %v5037, %v5036
      %v5102 = vpack.c.b16 %v5039, %v5038
      %v5103 = vpack.c.b16 %v5041, %v5040
      %v5104 = vpack.c.b16 %v5043, %v5042
      %v5105 = vpack.c.b16 %v5045, %v5044
      %v5106 = vpack.c.b16 %v5047, %v5046
      %v5107 = vpack.c.b16 %v5049, %v5048
      %v5108 = vpack.c.b16 %v5051, %v5050
      %v5109 = vpack.c.b16 %v5053, %v5052
      %v5110 = vpack.c.b16 %v5055, %v5054
      %v5111 = vpack.c.b16 %v5057, %v5056
      %v5112 = vpack.c.b16 %v5059, %v5058
      %v5113 = vpack.c.b16 %v5061, %v5060
      %v5114 = vpack.c.b16 %v5063, %v5062
      %v5115 = vpack.c.b16 %v5065, %v5064
      %v5116 = vpack.c.b16 %v5067, %v5066
      %v5117 = vpack.c.b16 %v5069, %v5068
      %v5118 = vpack.c.b16 %v5071, %v5070
      %v5119 = vpack.c.b16 %v5073, %v5072
      %v5120 = vpack.c.b16 %v5075, %v5074
      %v5121 = vpack.c.b16 %v5077, %v5076
      %v5122 = vpack.c.b16 %v5079, %v5078
      %v5123 = vpack.c.b16 %v5081, %v5080
      %v5124 = vpack.c.b16 %v5083, %v5082
      %v5125 = vpack.c.b16 %v5085, %v5084
      %v5126 = vpack.c.b16 %v5087, %v5086
      %v5127 = vpack.c.b16 %v5089, %v5088
      %v5128 = vpack.c.b16 %v5091, %v5090
      %v5129 = vpack.c.b16 %v5093, %v5092
      %v5167 = vsel %vm2154, %v4677, 0
      %v5170 = vsel %vm2154, %v4717, 0
      %v5173 = vsel %vm2154, %v4750, 0
      %v5176 = vsel %vm2154, %v4782, 0
      %v5179 = vsel %vm2154, %v4814, 0
      %v5182 = vsel %vm2154, %v4847, 0
      %v5185 = vsel %vm2154, %v4880, 0
      %v5188 = vsel %vm2154, %v4921, 0
      %5190 = vmatprep.subr.bf16.mxu0 0
      %5191 = vmatpush1.bf16.msra.mxu0 %v5101
      %5192 = vmatprep.subr.bf16.mxu0 0
      %5193 = vmatpush1.bf16.msra.mxu0 %v5100
      %5194 = vmatprep.subr.bf16.mxu0 0
      %5195 = vmatpush1.bf16.msra.mxu0 %v5099
      %5196 = vmatprep.subr.bf16.mxu0 0
      %5197 = vmatpush1.bf16.msra.mxu0 %v5098
      %5198 = vmatprep.subr.bf16.mxu0 0
      %5199 = vmatpush1.bf16.msra.mxu0 %v5097
      %5200 = vmatprep.subr.bf16.mxu0 0
      %5201 = vmatpush1.bf16.msra.mxu0 %v5096
      %5202 = vmatprep.subr.bf16.mxu0 0
      %5203 = vmatpush1.bf16.msra.mxu0 %v5095
      %5204 = vmatprep.subr.bf16.mxu0 0
      %5205 = vmatpush1.bf16.msra.mxu0 %v5094
      %5206 = vmatprep.subr.bf16.mxu0 0
      %5207 = vmatpush2.bf16.msra.mxu0 %v5109
      %5208 = vmatprep.subr.bf16.mxu0 0
      %5209 = vmatpush2.bf16.msra.mxu0 %v5108
      %5210 = vmatprep.subr.bf16.mxu0 0
      %5211 = vmatpush2.bf16.msra.mxu0 %v5107
      %5212 = vmatprep.subr.bf16.mxu0 0
      %5213 = vmatpush2.bf16.msra.mxu0 %v5106
      %5214 = vmatprep.subr.bf16.mxu0 0
      %5215 = vmatpush2.bf16.msra.mxu0 %v5105
      %5216 = vmatprep.subr.bf16.mxu0 0
      %5217 = vmatpush2.bf16.msra.mxu0 %v5104
      %5218 = vmatprep.subr.bf16.mxu0 0
      %5219 = vmatpush2.bf16.msra.mxu0 %v5103
      %5220 = vmatprep.subr.bf16.mxu0 0
      %5221 = vmatpush2.bf16.msra.mxu0 %v5102
      %5222 = vmatprep.mubr.bf16.mxu0 %v4631
      %5223 = vmatmul.mubr.bf16.gmra.mxu0 %v4616
      %v5224 = vpop.f32.mrf.mxu0
      %v5225 = vadd.f32 %v4600, %v5224
      %v5226 = vpop.f32.mrf.mxu0
      %v5227 = vpop.f32.mrf.mxu0
      %v5228 = vadd.f32 %v4600, %v5227
      %v5229 = vpop.f32.mrf.mxu0
      %5230 = vmatprep.mubr.bf16.mxu0 %v4693
      %5231 = vmatmul.mubr.bf16.gmra.mxu0 %v4685
      %v5232 = vpop.f32.mrf.mxu0
      %v5233 = vadd.f32 %v4600, %v5232
      %v5234 = vpop.f32.mrf.mxu0
      %v5235 = vpop.f32.mrf.mxu0
      %v5236 = vadd.f32 %v4600, %v5235
      %v5237 = vpop.f32.mrf.mxu0
      %5238 = vmatprep.mubr.bf16.mxu0 %v4726
      %5239 = vmatmul.mubr.bf16.gmra.mxu0 %v4718
      %v5240 = vpop.f32.mrf.mxu0
      %v5241 = vadd.f32 %v4600, %v5240
      %v5242 = vpop.f32.mrf.mxu0
      %v5243 = vpop.f32.mrf.mxu0
      %v5244 = vadd.f32 %v4600, %v5243
      %v5245 = vpop.f32.mrf.mxu0
      %5246 = vmatprep.mubr.bf16.mxu0 %v4758
      %5247 = vmatmul.mubr.bf16.gmra.mxu0 %v4709
      %v5248 = vpop.f32.mrf.mxu0
      %v5249 = vadd.f32 %v4600, %v5248
      %v5250 = vpop.f32.mrf.mxu0
      %v5251 = vpop.f32.mrf.mxu0
      %v5252 = vadd.f32 %v4600, %v5251
      %v5253 = vpop.f32.mrf.mxu0
      %5254 = vmatprep.mubr.bf16.mxu0 %v4790
      %5255 = vmatmul.mubr.bf16.gmra.mxu0 %v4742
      %v5256 = vpop.f32.mrf.mxu0
      %v5257 = vadd.f32 %v4600, %v5256
      %v5258 = vpop.f32.mrf.mxu0
      %v5259 = vpop.f32.mrf.mxu0
      %v5260 = vadd.f32 %v4600, %v5259
      %v5261 = vpop.f32.mrf.mxu0
      %5262 = vmatprep.mubr.bf16.mxu0 %v4822
      %5263 = vmatmul.mubr.bf16.gmra.mxu0 %v4774
      %v5264 = vpop.f32.mrf.mxu0
      %v5265 = vadd.f32 %v4600, %v5264
      %v5266 = vpop.f32.mrf.mxu0
      %v5267 = vpop.f32.mrf.mxu0
      %v5268 = vadd.f32 %v4600, %v5267
      %v5269 = vpop.f32.mrf.mxu0
      %5270 = vmatprep.mubr.bf16.mxu0 %v4855
      %5271 = vmatmul.mubr.bf16.gmra.mxu0 %v4806
      %v5272 = vpop.f32.mrf.mxu0
      %v5273 = vadd.f32 %v4600, %v5272
      %v5274 = vpop.f32.mrf.mxu0
      %v5275 = vpop.f32.mrf.mxu0
      %v5276 = vadd.f32 %v4600, %v5275
      %v5277 = vpop.f32.mrf.mxu0
      %5278 = vmatprep.mubr.bf16.mxu0 %v4896
      %5279 = vmatmul.mubr.bf16.gmra.mxu0 %v4888
      %v5280 = vpop.f32.mrf.mxu0
      %v5281 = vadd.f32 %v4600, %v5280
      %v5282 = vpop.f32.mrf.mxu0
      %v5283 = vpop.f32.mrf.mxu0
      %v5284 = vadd.f32 %v4600, %v5283
      %v5285 = vpop.f32.mrf.mxu0
      %5286 = vdwg.mxu0
      %5287 = vmatprep.subr.bf16.mxu0 0
      %5288 = vmatpush1.bf16.msra.mxu0 %v5117
      %5289 = vmatprep.subr.bf16.mxu0 0
      %5290 = vmatpush1.bf16.msra.mxu0 %v5116
      %5291 = vmatprep.subr.bf16.mxu0 0
      %5292 = vmatpush1.bf16.msra.mxu0 %v5115
      %5293 = vmatprep.subr.bf16.mxu0 0
      %5294 = vmatpush1.bf16.msra.mxu0 %v5114
      %5295 = vmatprep.subr.bf16.mxu0 0
      %5296 = vmatpush1.bf16.msra.mxu0 %v5113
      %5297 = vmatprep.subr.bf16.mxu0 0
      %5298 = vmatpush1.bf16.msra.mxu0 %v5112
      %5299 = vmatprep.subr.bf16.mxu0 0
      %5300 = vmatpush1.bf16.msra.mxu0 %v5111
      %5301 = vmatprep.subr.bf16.mxu0 0
      %5302 = vmatpush1.bf16.msra.mxu0 %v5110
      %5303 = vmatprep.subr.bf16.mxu0 0
      %5304 = vmatpush2.bf16.msra.mxu0 %v5125
      %5305 = vmatprep.subr.bf16.mxu0 0
      %5306 = vmatpush2.bf16.msra.mxu0 %v5124
      %5307 = vmatprep.subr.bf16.mxu0 0
      %5308 = vmatpush2.bf16.msra.mxu0 %v5123
      %5309 = vmatprep.subr.bf16.mxu0 0
      %5310 = vmatpush2.bf16.msra.mxu0 %v5122
      %5311 = vmatprep.subr.bf16.mxu0 0
      %5312 = vmatpush2.bf16.msra.mxu0 %v5121
      %5313 = vmatprep.subr.bf16.mxu0 0
      %5314 = vmatpush2.bf16.msra.mxu0 %v5120
      %5315 = vmatprep.subr.bf16.mxu0 0
      %5316 = vmatpush2.bf16.msra.mxu0 %v5119
      %5317 = vmatprep.subr.bf16.mxu0 0
      %5318 = vmatpush2.bf16.msra.mxu0 %v5118
      %5319 = vmatprep.mubr.bf16.mxu0 %v4661
      %5320 = vmatmul.mubr.bf16.gmra.mxu0 %v4646
      %v5321 = vpop.f32.mrf.mxu0
      %v5322 = vadd.f32 %v5225, %v5321
      %v5323 = vpop.f32.mrf.mxu0
      %v5324 = vpop.f32.mrf.mxu0
      %v5325 = vadd.f32 %v5228, %v5324
      %v5326 = vpop.f32.mrf.mxu0
      %5327 = vmatprep.mubr.bf16.mxu0 %v4709
      %5328 = vmatmul.mubr.bf16.gmra.mxu0 %v4701
      %v5329 = vpop.f32.mrf.mxu0
      %v5330 = vadd.f32 %v5233, %v5329
      %v5331 = vpop.f32.mrf.mxu0
      %v5332 = vpop.f32.mrf.mxu0
      %v5333 = vadd.f32 %v5236, %v5332
      %v5334 = vpop.f32.mrf.mxu0
      %5335 = vmatprep.mubr.bf16.mxu0 %v4742
      %5336 = vmatmul.mubr.bf16.gmra.mxu0 %v4734
      %v5337 = vpop.f32.mrf.mxu0
      %v5338 = vadd.f32 %v5241, %v5337
      %v5339 = vpop.f32.mrf.mxu0
      %v5340 = vpop.f32.mrf.mxu0
      %v5341 = vadd.f32 %v5244, %v5340
      %v5342 = vpop.f32.mrf.mxu0
      %5343 = vmatprep.mubr.bf16.mxu0 %v4774
      %5344 = vmatmul.mubr.bf16.gmra.mxu0 %v4766
      %v5345 = vpop.f32.mrf.mxu0
      %v5346 = vadd.f32 %v5249, %v5345
      %v5347 = vpop.f32.mrf.mxu0
      %v5348 = vpop.f32.mrf.mxu0
      %v5349 = vadd.f32 %v5252, %v5348
      %v5350 = vpop.f32.mrf.mxu0
      %5351 = vmatprep.mubr.bf16.mxu0 %v4806
      %5352 = vmatmul.mubr.bf16.gmra.mxu0 %v4798
      %v5353 = vpop.f32.mrf.mxu0
      %v5354 = vadd.f32 %v5257, %v5353
      %v5355 = vpop.f32.mrf.mxu0
      %v5356 = vpop.f32.mrf.mxu0
      %v5357 = vadd.f32 %v5260, %v5356
      %v5358 = vpop.f32.mrf.mxu0
      %5359 = vmatprep.mubr.bf16.mxu0 %v4838
      %5360 = vmatmul.mubr.bf16.gmra.mxu0 %v4830
      %v5361 = vpop.f32.mrf.mxu0
      %v5362 = vadd.f32 %v5265, %v5361
      %v5363 = vpop.f32.mrf.mxu0
      %v5364 = vpop.f32.mrf.mxu0
      %v5365 = vadd.f32 %v5268, %v5364
      %v5366 = vpop.f32.mrf.mxu0
      %5367 = vmatprep.mubr.bf16.mxu0 %v4871
      %5368 = vmatmul.mubr.bf16.gmra.mxu0 %v4863
      %v5369 = vpop.f32.mrf.mxu0
      %v5370 = vadd.f32 %v5273, %v5369
      %v5371 = vpop.f32.mrf.mxu0
      %v5372 = vpop.f32.mrf.mxu0
      %v5373 = vadd.f32 %v5276, %v5372
      %v5374 = vpop.f32.mrf.mxu0
      %5375 = vmatprep.mubr.bf16.mxu0 %v4912
      %5376 = vmatmul.mubr.bf16.gmra.mxu0 %v4904
      %v5377 = vpop.f32.mrf.mxu0
      %v5378 = vadd.f32 %v5281, %v5377
      %v5379 = vpop.f32.mrf.mxu0
      %v5380 = vpop.f32.mrf.mxu0
      %v5381 = vadd.f32 %v5284, %v5380
      %v5382 = vpop.f32.mrf.mxu0
      %5383 = vdwg.mxu0
      %5384 = vmatprep.subr.bf16.mxu0 0
      %5385 = vmatpush1.bf16.msra.mxu0 0
      %5386 = vmatprep.subr.bf16.mxu0 0
      %5387 = vmatpush1.bf16.msra.mxu0 0
      %5388 = vmatprep.subr.bf16.mxu0 0
      %5389 = vmatpush1.bf16.msra.mxu0 0
      %5390 = vmatprep.subr.bf16.mxu0 0
      %5391 = vmatpush1.bf16.msra.mxu0 0
      %5392 = vmatprep.subr.bf16.mxu0 0
      %5393 = vmatpush1.bf16.msra.mxu0 %v5129
      %5394 = vmatprep.subr.bf16.mxu0 0
      %5395 = vmatpush1.bf16.msra.mxu0 %v5128
      %5396 = vmatprep.subr.bf16.mxu0 0
      %5397 = vmatpush1.bf16.msra.mxu0 %v5127
      %5398 = vmatprep.subr.bf16.mxu0 0
      %5399 = vmatpush1.bf16.msra.mxu0 %v5126
      %5400 = vmatprep.subr.bf16.mxu0 0
      %5401 = vmatpush2.bf16.msra.mxu0 0
      %5402 = vmatprep.subr.bf16.mxu0 0
      %5403 = vmatpush2.bf16.msra.mxu0 0
      %5404 = vmatprep.subr.bf16.mxu0 0
      %5405 = vmatpush2.bf16.msra.mxu0 0
      %5406 = vmatprep.subr.bf16.mxu0 0
      %5407 = vmatpush2.bf16.msra.mxu0 0
      %5408 = vmatprep.subr.bf16.mxu0 0
      %5409 = vmatpush2.bf16.msra.mxu0 0
      %5410 = vmatprep.subr.bf16.mxu0 0
      %5411 = vmatpush2.bf16.msra.mxu0 0
      %5412 = vmatprep.subr.bf16.mxu0 0
      %5413 = vmatpush2.bf16.msra.mxu0 0
      %5414 = vmatprep.subr.bf16.mxu0 0
      %5415 = vmatpush2.bf16.msra.mxu0 0
      %5416 = vmatprep.mubr.bf16.mxu0 0
      %5417 = vmatmul.mubr.bf16.gmra.mxu0 %v5167
      %v5418 = vpop.f32.mrf.mxu0
      %v5419 = vadd.f32 %v5322, %v5418
      %v5420 = vpop.f32.mrf.mxu0
      %v5421 = vpop.f32.mrf.mxu0
      %v5422 = vadd.f32 %v5325, %v5421
      %v5423 = vpop.f32.mrf.mxu0
      %5424 = vmatprep.mubr.bf16.mxu0 0
      %5425 = vmatmul.mubr.bf16.gmra.mxu0 %v5170
      %v5426 = vpop.f32.mrf.mxu0
      %v5427 = vadd.f32 %v5330, %v5426
      %v5428 = vpop.f32.mrf.mxu0
      %v5429 = vpop.f32.mrf.mxu0
      %v5430 = vadd.f32 %v5333, %v5429
      %v5431 = vpop.f32.mrf.mxu0
      %5432 = vmatprep.mubr.bf16.mxu0 0
      %5433 = vmatmul.mubr.bf16.gmra.mxu0 %v5173
      %v5434 = vpop.f32.mrf.mxu0
      %v5435 = vadd.f32 %v5338, %v5434
      %v5436 = vpop.f32.mrf.mxu0
      %v5437 = vpop.f32.mrf.mxu0
      %v5438 = vadd.f32 %v5341, %v5437
      %v5439 = vpop.f32.mrf.mxu0
      %5440 = vmatprep.mubr.bf16.mxu0 0
      %5441 = vmatmul.mubr.bf16.gmra.mxu0 %v5176
      %v5442 = vpop.f32.mrf.mxu0
      %v5443 = vadd.f32 %v5346, %v5442
      %v5444 = vpop.f32.mrf.mxu0
      %v5445 = vpop.f32.mrf.mxu0
      %v5446 = vadd.f32 %v5349, %v5445
      %v5447 = vpop.f32.mrf.mxu0
      %5448 = vmatprep.mubr.bf16.mxu0 0
      %5449 = vmatmul.mubr.bf16.gmra.mxu0 %v5179
      %v5450 = vpop.f32.mrf.mxu0
      %v5451 = vadd.f32 %v5354, %v5450
      %v5452 = vpop.f32.mrf.mxu0
      %v5453 = vpop.f32.mrf.mxu0
      %v5454 = vadd.f32 %v5357, %v5453
      %v5455 = vpop.f32.mrf.mxu0
      %5456 = vmatprep.mubr.bf16.mxu0 0
      %5457 = vmatmul.mubr.bf16.gmra.mxu0 %v5182
      %v5458 = vpop.f32.mrf.mxu0
      %v5459 = vadd.f32 %v5362, %v5458
      %v5460 = vpop.f32.mrf.mxu0
      %v5461 = vpop.f32.mrf.mxu0
      %v5462 = vadd.f32 %v5365, %v5461
      %v5463 = vpop.f32.mrf.mxu0
      %5464 = vmatprep.mubr.bf16.mxu0 0
      %5465 = vmatmul.mubr.bf16.gmra.mxu0 %v5185
      %v5466 = vpop.f32.mrf.mxu0
      %v5467 = vadd.f32 %v5370, %v5466
      %v5468 = vpop.f32.mrf.mxu0
      %v5469 = vpop.f32.mrf.mxu0
      %v5470 = vadd.f32 %v5373, %v5469
      %v5471 = vpop.f32.mrf.mxu0
      %5472 = vmatprep.mubr.bf16.mxu0 0
      %5473 = vmatmul.mubr.bf16.gmra.mxu0 %v5188
      %v5474 = vpop.f32.mrf.mxu0
      %v5475 = vadd.f32 %v5378, %v5474
      %v5476 = vpop.f32.mrf.mxu0
      %v5477 = vpop.f32.mrf.mxu0
      %v5478 = vadd.f32 %v5381, %v5477
      %v5479 = vpop.f32.mrf.mxu0
      %5480 = vdwg.mxu0
      %v5481 = vmax.f32 %v5419, 0.0
      %v5482 = vmax.f32 %v5422, 0.0
      %v5483 = vmax.f32 %v5427, 0.0
      %v5484 = vmax.f32 %v5430, 0.0
      %v5485 = vmax.f32 %v5435, 0.0
      %v5486 = vmax.f32 %v5438, 0.0
      %v5487 = vmax.f32 %v5443, 0.0
      %v5488 = vmax.f32 %v5446, 0.0
      %v5489 = vmax.f32 %v5451, 0.0
      %v5490 = vmax.f32 %v5454, 0.0
      %v5491 = vmax.f32 %v5459, 0.0
      %v5492 = vmax.f32 %v5462, 0.0
      %v5493 = vmax.f32 %v5467, 0.0
      %v5494 = vmax.f32 %v5470, 0.0
      %v5495 = vmax.f32 %v5475, 0.0
      %v5496 = vmax.f32 %v5478, 0.0
      %v5497 = vpack.c.bf16 %v5482, %v5481
      %v5498 = vpack.c.bf16 %v5484, %v5483
      %v5499 = vpack.c.bf16 %v5486, %v5485
      %v5500 = vpack.c.bf16 %v5488, %v5487
      %v5501 = vpack.c.bf16 %v5490, %v5489
      %v5502 = vpack.c.bf16 %v5492, %v5491
      %v5503 = vpack.c.bf16 %v5494, %v5493
      %v5504 = vpack.c.bf16 %v5496, %v5495
      %v5505 = vld [vmem:[%s7] sm:$0xf]
      %v5506 = vld [vmem:[%s7 + $0x4] sm:$0xf]
      %v5507 = vld [vmem:[%s7 + $0x8] sm:$0xf]
      %v5508 = vld [vmem:[%s7 + $0xc] sm:$0xf]
      %v5509 = vld [vmem:[%s7 + $0x10] sm:$0xf]
      %v5510 = vld [vmem:[%s7 + $0x14] sm:$0xf]
      %v5511 = vld [vmem:[%s7 + $0x18] sm:$0xf]
      %v5512 = vld [vmem:[%s7 + $0x1c] sm:$0xf]
      %v5513 = vld [vmem:[%s7 + $0x20] sm:$0xf]
      %v5514 = vld [vmem:[%s7 + $0x24] sm:$0xf]
      %v5515 = vld [vmem:[%s7 + $0x28] sm:$0xf]
      %v5516 = vld [vmem:[%s7 + $0x2c] sm:$0xf]
      %v5517 = vld [vmem:[%s7 + $0x30] sm:$0xf]
      %v5518 = vld [vmem:[%s7 + $0x34] sm:$0xf]
      %v5519 = vld [vmem:[%s7 + $0x38] sm:$0xf]
      %v5520 = vld [vmem:[%s7 + $0x3c] sm:$0xf]
      %v5521 = vld [vmem:[%s8] sm:$0x1]
      %v5523 = vlaneseq
      %v5524 = vshrl.u32 %v5523, 7
      %v5525 = vsub.s32 0, %v5524
      %v5526 = vrot.slane %v5521, %v5525
      %v5544 = vunpack.c.l.b16 %v5505
      %v5545 = vunpack.c.l.b16 %v5506
      %v5546 = vunpack.c.l.b16 %v5507
      %v5547 = vunpack.c.l.b16 %v5508
      %v5548 = vunpack.c.l.b16 %v5509
      %v5549 = vunpack.c.l.b16 %v5510
      %v5550 = vunpack.c.l.b16 %v5511
      %v5551 = vunpack.c.l.b16 %v5512
      %v5552 = vunpack.c.l.b16 %v5513
      %v5553 = vunpack.c.l.b16 %v5514
      %v5554 = vunpack.c.l.b16 %v5515
      %v5555 = vunpack.c.l.b16 %v5516
      %v5556 = vunpack.c.l.b16 %v5517
      %v5557 = vunpack.c.l.b16 %v5518
      %v5558 = vunpack.c.l.b16 %v5519
      %v5559 = vunpack.c.l.b16 %v5520
      %v5560 = vpack.c.b16 %v5545, %v5544
      %v5561 = vpack.c.b16 %v5547, %v5546
      %v5562 = vpack.c.b16 %v5549, %v5548
      %v5563 = vpack.c.b16 %v5551, %v5550
      %v5564 = vpack.c.b16 %v5553, %v5552
      %v5565 = vpack.c.b16 %v5555, %v5554
      %v5566 = vpack.c.b16 %v5557, %v5556
      %v5567 = vpack.c.b16 %v5559, %v5558
      %5576 = vmatprep.subr.bf16.mxu0 0
      %5577 = vmatpush1.bf16.msra.mxu0 %v5567
      %5578 = vmatprep.subr.bf16.mxu0 0
      %5579 = vmatpush1.bf16.msra.mxu0 %v5566
      %5580 = vmatprep.subr.bf16.mxu0 0
      %5581 = vmatpush1.bf16.msra.mxu0 %v5565
      %5582 = vmatprep.subr.bf16.mxu0 0
      %5583 = vmatpush1.bf16.msra.mxu0 %v5564
      %5584 = vmatprep.subr.bf16.mxu0 0
      %5585 = vmatpush1.bf16.msra.mxu0 %v5563
      %5586 = vmatprep.subr.bf16.mxu0 0
      %5587 = vmatpush1.bf16.msra.mxu0 %v5562
      %5588 = vmatprep.subr.bf16.mxu0 0
      %5589 = vmatpush1.bf16.msra.mxu0 %v5561
      %5590 = vmatprep.subr.bf16.mxu0 0
      %5591 = vmatpush1.bf16.msra.mxu0 %v5560
      %5592 = vmatprep.subr.bf16.mxu0 0
      %5593 = vmatpush2.bf16.msra.mxu0 0
      %5594 = vmatprep.subr.bf16.mxu0 0
      %5595 = vmatpush2.bf16.msra.mxu0 0
      %5596 = vmatprep.subr.bf16.mxu0 0
      %5597 = vmatpush2.bf16.msra.mxu0 0
      %5598 = vmatprep.subr.bf16.mxu0 0
      %5599 = vmatpush2.bf16.msra.mxu0 0
      %5600 = vmatprep.subr.bf16.mxu0 0
      %5601 = vmatpush2.bf16.msra.mxu0 0
      %5602 = vmatprep.subr.bf16.mxu0 0
      %5603 = vmatpush2.bf16.msra.mxu0 0
      %5604 = vmatprep.subr.bf16.mxu0 0
      %5605 = vmatpush2.bf16.msra.mxu0 0
      %5606 = vmatprep.subr.bf16.mxu0 0
      %5607 = vmatpush2.bf16.msra.mxu0 0
      %5608 = vmatprep.mubr.bf16.mxu0 0
      %5609 = vmatmul.mubr.bf16.gmra.mxu0 %v5497
      %v5610 = vpop.f32.mrf.mxu0
      %v5611 = vadd.f32 %v5526, %v5610
      %v5612 = vpop.f32.mrf.mxu0
      %v5613 = vpop.f32.mrf.mxu0
      %v5614 = vadd.f32 %v5526, %v5613
      %v5615 = vpop.f32.mrf.mxu0
      %5616 = vmatprep.mubr.bf16.mxu0 0
      %5617 = vmatmul.mubr.bf16.gmra.mxu0 %v5498
      %v5618 = vpop.f32.mrf.mxu0
      %v5619 = vadd.f32 %v5526, %v5618
      %v5620 = vpop.f32.mrf.mxu0
      %v5621 = vpop.f32.mrf.mxu0
      %v5622 = vadd.f32 %v5526, %v5621
      %v5623 = vpop.f32.mrf.mxu0
      %5624 = vmatprep.mubr.bf16.mxu0 0
      %5625 = vmatmul.mubr.bf16.gmra.mxu0 %v5499
      %v5626 = vpop.f32.mrf.mxu0
      %v5627 = vadd.f32 %v5526, %v5626
      %v5628 = vpop.f32.mrf.mxu0
      %v5629 = vpop.f32.mrf.mxu0
      %v5630 = vadd.f32 %v5526, %v5629
      %v5631 = vpop.f32.mrf.mxu0
      %5632 = vmatprep.mubr.bf16.mxu0 0
      %5633 = vmatmul.mubr.bf16.gmra.mxu0 %v5500
      %v5634 = vpop.f32.mrf.mxu0
      %v5635 = vadd.f32 %v5526, %v5634
      %v5636 = vpop.f32.mrf.mxu0
      %v5637 = vpop.f32.mrf.mxu0
      %v5638 = vadd.f32 %v5526, %v5637
      %v5639 = vpop.f32.mrf.mxu0
      %5640 = vmatprep.mubr.bf16.mxu0 0
      %5641 = vmatmul.mubr.bf16.gmra.mxu0 %v5501
      %v5642 = vpop.f32.mrf.mxu0
      %v5643 = vadd.f32 %v5526, %v5642
      %v5644 = vpop.f32.mrf.mxu0
      %v5645 = vpop.f32.mrf.mxu0
      %v5646 = vadd.f32 %v5526, %v5645
      %v5647 = vpop.f32.mrf.mxu0
      %5648 = vmatprep.mubr.bf16.mxu0 0
      %5649 = vmatmul.mubr.bf16.gmra.mxu0 %v5502
      %v5650 = vpop.f32.mrf.mxu0
      %v5651 = vadd.f32 %v5526, %v5650
      %v5652 = vpop.f32.mrf.mxu0
      %v5653 = vpop.f32.mrf.mxu0
      %v5654 = vadd.f32 %v5526, %v5653
      %v5655 = vpop.f32.mrf.mxu0
      %5656 = vmatprep.mubr.bf16.mxu0 0
      %5657 = vmatmul.mubr.bf16.gmra.mxu0 %v5503
      %v5658 = vpop.f32.mrf.mxu0
      %v5659 = vadd.f32 %v5526, %v5658
      %v5660 = vpop.f32.mrf.mxu0
      %v5661 = vpop.f32.mrf.mxu0
      %v5662 = vadd.f32 %v5526, %v5661
      %v5663 = vpop.f32.mrf.mxu0
      %5664 = vmatprep.mubr.bf16.mxu0 0
      %5665 = vmatmul.mubr.bf16.gmra.mxu0 %v5504
      %v5666 = vpop.f32.mrf.mxu0
      %v5667 = vadd.f32 %v5526, %v5666
      %v5668 = vpop.f32.mrf.mxu0
      %v5669 = vpop.f32.mrf.mxu0
      %v5670 = vadd.f32 %v5526, %v5669
      %v5671 = vpop.f32.mrf.mxu0
      %5672 = vdwg.mxu0
      %v5673 = vmax.f32 %v5611, 0.0
      %v5674 = vmax.f32 %v5614, 0.0
      %v5675 = vmax.f32 %v5619, 0.0
      %v5676 = vmax.f32 %v5622, 0.0
      %v5677 = vmax.f32 %v5627, 0.0
      %v5678 = vmax.f32 %v5630, 0.0
      %v5679 = vmax.f32 %v5635, 0.0
      %v5680 = vmax.f32 %v5638, 0.0
      %v5681 = vmax.f32 %v5643, 0.0
      %v5682 = vmax.f32 %v5646, 0.0
      %v5683 = vmax.f32 %v5651, 0.0
      %v5684 = vmax.f32 %v5654, 0.0
      %v5685 = vmax.f32 %v5659, 0.0
      %v5686 = vmax.f32 %v5662, 0.0
      %v5687 = vmax.f32 %v5667, 0.0
      %v5688 = vmax.f32 %v5670, 0.0
      %v5689 = vpack.c.bf16 %v5674, %v5673
      %v5690 = vpack.c.bf16 %v5676, %v5675
      %v5691 = vpack.c.bf16 %v5678, %v5677
      %v5692 = vpack.c.bf16 %v5680, %v5679
      %v5693 = vpack.c.bf16 %v5682, %v5681
      %v5694 = vpack.c.bf16 %v5684, %v5683
      %v5695 = vpack.c.bf16 %v5686, %v5685
      %v5696 = vpack.c.bf16 %v5688, %v5687
      %v5705 = vunpack.c.l.b16 %v5689
      %v5706 = vunpack.c.h.b16 %v5689
      %v5707 = vunpack.c.l.b16 %v5690
      %v5708 = vunpack.c.h.b16 %v5690
      %v5709 = vunpack.c.l.b16 %v5691
      %v5710 = vunpack.c.h.b16 %v5691
      %v5711 = vunpack.c.l.b16 %v5692
      %v5712 = vunpack.c.h.b16 %v5692
      %v5713 = vunpack.c.l.b16 %v5693
      %v5714 = vunpack.c.h.b16 %v5693
      %v5715 = vunpack.c.l.b16 %v5694
      %v5716 = vunpack.c.h.b16 %v5694
      %v5717 = vunpack.c.l.b16 %v5695
      %v5718 = vunpack.c.h.b16 %v5695
      %v5719 = vunpack.c.l.b16 %v5696
      %v5720 = vunpack.c.h.b16 %v5696
      %v5721 = vpack.c.b16 %v5705, %v5705
      %v5722 = vpack.c.b16 %v5706, %v5706
      %v5723 = vpack.c.b16 %v5707, %v5707
      %v5724 = vpack.c.b16 %v5708, %v5708
      %v5725 = vpack.c.b16 %v5709, %v5709
      %v5726 = vpack.c.b16 %v5710, %v5710
      %v5727 = vpack.c.b16 %v5711, %v5711
      %v5728 = vpack.c.b16 %v5712, %v5712
      %v5729 = vpack.c.b16 %v5713, %v5713
      %v5730 = vpack.c.b16 %v5714, %v5714
      %v5731 = vpack.c.b16 %v5715, %v5715
      %v5732 = vpack.c.b16 %v5716, %v5716
      %v5733 = vpack.c.b16 %v5717, %v5717
      %v5734 = vpack.c.b16 %v5718, %v5718
      %v5735 = vpack.c.b16 %v5719, %v5719
      %v5736 = vpack.c.b16 %v5720, %v5720
      %vm5753 = vcmask 27648
      %5754 = vst.msk [vmem:[#allocation4] sm:$0xf] %vm5753, %v5721
      %5755 = vst.msk [vmem:[#allocation4 + $0x4] sm:$0xf] %vm5753, %v5722
      %5756 = vst.msk [vmem:[#allocation4 + $0x8] sm:$0xf] %vm5753, %v5723
      %5757 = vst.msk [vmem:[#allocation4 + $0xc] sm:$0xf] %vm5753, %v5724
      %5758 = vst.msk [vmem:[#allocation4 + $0x10] sm:$0xf] %vm5753, %v5725
      %5759 = vst.msk [vmem:[#allocation4 + $0x14] sm:$0xf] %vm5753, %v5726
      %5760 = vst.msk [vmem:[#allocation4 + $0x18] sm:$0xf] %vm5753, %v5727
      %5761 = vst.msk [vmem:[#allocation4 + $0x1c] sm:$0xf] %vm5753, %v5728
      %5762 = vst.msk [vmem:[#allocation4 + $0x20] sm:$0xf] %vm5753, %v5729
      %5763 = vst.msk [vmem:[#allocation4 + $0x24] sm:$0xf] %vm5753, %v5730
      %5764 = vst.msk [vmem:[#allocation4 + $0x28] sm:$0xf] %vm5753, %v5731
      %5765 = vst.msk [vmem:[#allocation4 + $0x2c] sm:$0xf] %vm5753, %v5732
      %5766 = vst.msk [vmem:[#allocation4 + $0x30] sm:$0xf] %vm5753, %v5733
      %5767 = vst.msk [vmem:[#allocation4 + $0x34] sm:$0xf] %vm5753, %v5734
      %5768 = vst.msk [vmem:[#allocation4 + $0x38] sm:$0xf] %vm5753, %v5735
      %5769 = vst.msk [vmem:[#allocation4 + $0x3c] sm:$0xf] %vm5753, %v5736
      %v5770 = vld [vmem:[#allocation3 + $0x44] sm:$0x8]
      %v5771 = vld [vmem:[#allocation3 + $0x48] sm:$0xf]
      %v5772 = vld [vmem:[#allocation3 + $0x4c] sm:$0xf]
      %v5773 = vld [vmem:[#allocation3 + $0x50] sm:$0xf]
      %v5774 = vld [vmem:[#allocation3 + $0x54] sm:$0xf]
      %v5775 = vld [vmem:[#allocation3 + $0x58] sm:$0xf]
      %v5776 = vld [vmem:[#allocation3 + $0x5c] sm:$0xf]
      %v5777 = vld [vmem:[#allocation3 + $0x60] sm:$0xf]
      %v5778 = vld [vmem:[#allocation3 + $0x64] sm:$0xf]
      %v5779 = vld [vmem:[#allocation3 + $0x68] sm:$0xf]
      %v5780 = vld [vmem:[#allocation3 + $0x6c] sm:$0xf]
      %v5781 = vld [vmem:[#allocation3 + $0x70] sm:$0xf]
      %v5782 = vld [vmem:[#allocation3 + $0x74] sm:$0xf]
      %v5783 = vld [vmem:[#allocation3 + $0x78] sm:$0xf]
      %v5784 = vld [vmem:[#allocation3 + $0x7c] sm:$0xf]
      %v5785 = vld [vmem:[#allocation3 + $0x80] sm:$0xf]
      %v5786 = vld [vmem:[#allocation3 + $0x84] sm:$0xf]
      %v5787 = vld [vmem:[#allocation3 + $0x88] sm:$0x1]
      %v5788 = vld [vmem:[#allocation3 + $0x4c] sm:$0x8]
      %v5789 = vld [vmem:[#allocation3 + $0x88] sm:$0xf]
      %v5790 = vld [vmem:[#allocation3 + $0x8c] sm:$0xf]
      %v5791 = vld [vmem:[#allocation3 + $0x90] sm:$0x1]
      %v5792 = vld [vmem:[#allocation3 + $0x54] sm:$0x8]
      %v5793 = vld [vmem:[#allocation3 + $0x90] sm:$0xf]
      %v5794 = vld [vmem:[#allocation3 + $0x94] sm:$0xf]
      %v5795 = vld [vmem:[#allocation3 + $0x98] sm:$0x1]
      %v5813 = vunpack.c.l.b16 %v5770
      %v5814 = vunpack.c.l.b16 %v5771
      %v5815 = vunpack.c.l.b16 %v5772
      %v5816 = vunpack.c.l.b16 %v5773
      %v5817 = vunpack.c.l.b16 %v5774
      %v5818 = vunpack.c.l.b16 %v5775
      %v5819 = vunpack.c.l.b16 %v5776
      %v5820 = vunpack.c.l.b16 %v5777
      %v5821 = vunpack.c.l.b16 %v5778
      %v5822 = vunpack.c.l.b16 %v5779
      %v5823 = vunpack.c.l.b16 %v5780
      %v5824 = vunpack.c.l.b16 %v5781
      %v5825 = vunpack.c.l.b16 %v5782
      %v5826 = vunpack.c.l.b16 %v5783
      %v5827 = vunpack.c.l.b16 %v5784
      %v5828 = vunpack.c.l.b16 %v5785
      %v5829 = vunpack.c.l.b16 %v5786
      %v5830 = vpack.c.b16 %v5814, %v5813
      %v5831 = vpack.c.b16 %v5816, %v5815
      %v5832 = vpack.c.b16 %v5818, %v5817
      %v5833 = vpack.c.b16 %v5820, %v5819
      %v5834 = vpack.c.b16 %v5822, %v5821
      %v5835 = vpack.c.b16 %v5824, %v5823
      %v5836 = vpack.c.b16 %v5826, %v5825
      %v5837 = vpack.c.b16 %v5828, %v5827
      %v5838 = vpack.c.b16 %v5829, %v5829
      %v5839 = vpack.c.b16 %v5815, %v5814
      %v5840 = vpack.c.b16 %v5817, %v5816
      %v5841 = vpack.c.b16 %v5819, %v5818
      %v5842 = vpack.c.b16 %v5821, %v5820
      %v5843 = vpack.c.b16 %v5823, %v5822
      %v5844 = vpack.c.b16 %v5825, %v5824
      %v5845 = vpack.c.b16 %v5827, %v5826
      %v5846 = vpack.c.b16 %v5829, %v5828
      %v5848 = vshrl.u32 %v5839, 16
      %v5850 = vrot.slane %v5848, 4
      %v5851 = vshll.u32 %v5839, 16
      %v5853 = vrot.slane %v5851, 5
      %v5854 = vor.u32 %v5850, %v5853
      %v5856 = vshrl.u32 %v5840, 16
      %v5858 = vrot.slane %v5856, 4
      %v5859 = vshll.u32 %v5840, 16
      %v5861 = vrot.slane %v5859, 5
      %v5862 = vor.u32 %v5858, %v5861
      %v5863 = vsel %vm1873, %v5854, %v5862
      %v5865 = vshrl.u32 %v5841, 16
      %v5867 = vrot.slane %v5865, 4
      %v5868 = vshll.u32 %v5841, 16
      %v5870 = vrot.slane %v5868, 5
      %v5871 = vor.u32 %v5867, %v5870
      %v5872 = vsel %vm1873, %v5862, %v5871
      %v5874 = vshrl.u32 %v5842, 16
      %v5876 = vrot.slane %v5874, 4
      %v5877 = vshll.u32 %v5842, 16
      %v5879 = vrot.slane %v5877, 5
      %v5880 = vor.u32 %v5876, %v5879
      %v5881 = vsel %vm1873, %v5871, %v5880
      %v5883 = vshrl.u32 %v5843, 16
      %v5885 = vrot.slane %v5883, 4
      %v5886 = vshll.u32 %v5843, 16
      %v5888 = vrot.slane %v5886, 5
      %v5889 = vor.u32 %v5885, %v5888
      %v5890 = vsel %vm1873, %v5880, %v5889
      %v5892 = vshrl.u32 %v5844, 16
      %v5894 = vrot.slane %v5892, 4
      %v5895 = vshll.u32 %v5844, 16
      %v5897 = vrot.slane %v5895, 5
      %v5898 = vor.u32 %v5894, %v5897
      %v5899 = vsel %vm1873, %v5889, %v5898
      %v5901 = vshrl.u32 %v5845, 16
      %v5903 = vrot.slane %v5901, 4
      %v5904 = vshll.u32 %v5845, 16
      %v5906 = vrot.slane %v5904, 5
      %v5907 = vor.u32 %v5903, %v5906
      %v5908 = vsel %vm1873, %v5898, %v5907
      %v5910 = vshrl.u32 %v5846, 16
      %v5912 = vrot.slane %v5910, 4
      %v5913 = vshll.u32 %v5846, 16
      %v5915 = vrot.slane %v5913, 5
      %v5916 = vor.u32 %v5912, %v5915
      %v5917 = vsel %vm1873, %v5907, %v5916
      %5918 = vrot.lane.b32.xlu0 %v5854, 64
      %v5919 = vpop.permute.xlu0 %5918
      %5920 = vrot.lane.b32.xlu0 %v5863, 64
      %v5921 = vpop.permute.xlu0 %5920
      %5922 = vrot.lane.b32.xlu0 %v5872, 64
      %v5923 = vpop.permute.xlu0 %5922
      %5924 = vrot.lane.b32.xlu0 %v5881, 64
      %v5925 = vpop.permute.xlu0 %5924
      %5926 = vrot.lane.b32.xlu0 %v5890, 64
      %v5927 = vpop.permute.xlu0 %5926
      %5928 = vrot.lane.b32.xlu0 %v5899, 64
      %v5929 = vpop.permute.xlu0 %5928
      %5930 = vrot.lane.b32.xlu0 %v5908, 64
      %v5931 = vpop.permute.xlu0 %5930
      %5932 = vrot.lane.b32.xlu0 %v5917, 64
      %v5933 = vpop.permute.xlu0 %5932
      %5934 = vrot.lane.b32.xlu0 %v5916, 64
      %v5935 = vpop.permute.xlu0 %5934
      %v5937 = vunpack.c.l.b16 %v5787
      %v5938 = vpack.c.b16 %v5937, %v5937
      %v5939 = vrot.slane %v5839, 5
      %v5940 = vrot.slane %v5840, 5
      %v5941 = vsel %vm1966, %v5939, %v5940
      %v5942 = vrot.slane %v5841, 5
      %v5943 = vsel %vm1966, %v5940, %v5942
      %v5944 = vrot.slane %v5842, 5
      %v5945 = vsel %vm1966, %v5942, %v5944
      %v5946 = vrot.slane %v5843, 5
      %v5947 = vsel %vm1966, %v5944, %v5946
      %v5948 = vrot.slane %v5844, 5
      %v5949 = vsel %vm1966, %v5946, %v5948
      %v5950 = vrot.slane %v5845, 5
      %v5951 = vsel %vm1966, %v5948, %v5950
      %v5952 = vrot.slane %v5846, 5
      %v5953 = vsel %vm1966, %v5950, %v5952
      %v5954 = vrot.slane %v5938, 5
      %v5955 = vsel %vm1966, %v5952, %v5954
      %v5959 = vunpack.c.l.b16 %v5788
      %v5960 = vunpack.c.l.b16 %v5789
      %v5961 = vunpack.c.l.b16 %v5790
      %v5962 = vpack.c.b16 %v5816, %v5959
      %v5963 = vpack.c.b16 %v5960, %v5829
      %v5964 = vpack.c.b16 %v5961, %v5961
      %5965 = vrot.lane.b32.xlu0 %v5962, 64
      %v5966 = vpop.permute.xlu0 %5965
      %5967 = vrot.lane.b32.xlu0 %v5832, 64
      %v5968 = vpop.permute.xlu0 %5967
      %5969 = vrot.lane.b32.xlu0 %v5833, 64
      %v5970 = vpop.permute.xlu0 %5969
      %5971 = vrot.lane.b32.xlu0 %v5834, 64
      %v5972 = vpop.permute.xlu0 %5971
      %5973 = vrot.lane.b32.xlu0 %v5835, 64
      %v5974 = vpop.permute.xlu0 %5973
      %5975 = vrot.lane.b32.xlu0 %v5836, 64
      %v5976 = vpop.permute.xlu0 %5975
      %5977 = vrot.lane.b32.xlu0 %v5837, 64
      %v5978 = vpop.permute.xlu0 %5977
      %5979 = vrot.lane.b32.xlu0 %v5963, 64
      %v5980 = vpop.permute.xlu0 %5979
      %5981 = vrot.lane.b32.xlu0 %v5964, 64
      %v5982 = vpop.permute.xlu0 %5981
      %v5983 = vpack.c.b16 %v5961, %v5960
      %v5985 = vshrl.u32 %v5983, 16
      %v5987 = vrot.slane %v5985, 4
      %v5988 = vshll.u32 %v5983, 16
      %v5990 = vrot.slane %v5988, 5
      %v5991 = vor.u32 %v5987, %v5990
      %v5992 = vsel %vm1873, %v5916, %v5991
      %v5994 = vunpack.c.l.b16 %v5791
      %v5995 = vpack.c.b16 %v5994, %v5994
      %v5996 = vrot.slane %v5983, 5
      %v5997 = vsel %vm1966, %v5952, %v5996
      %v5998 = vrot.slane %v5995, 5
      %v5999 = vsel %vm1966, %v5996, %v5998
      %6000 = vrot.lane.b32.xlu0 %v5940, 64
      %v6001 = vpop.permute.xlu0 %6000
      %6002 = vrot.lane.b32.xlu0 %v5943, 64
      %v6003 = vpop.permute.xlu0 %6002
      %6004 = vrot.lane.b32.xlu0 %v5945, 64
      %v6005 = vpop.permute.xlu0 %6004
      %6006 = vrot.lane.b32.xlu0 %v5947, 64
      %v6007 = vpop.permute.xlu0 %6006
      %6008 = vrot.lane.b32.xlu0 %v5949, 64
      %v6009 = vpop.permute.xlu0 %6008
      %6010 = vrot.lane.b32.xlu0 %v5951, 64
      %v6011 = vpop.permute.xlu0 %6010
      %6012 = vrot.lane.b32.xlu0 %v5953, 64
      %v6013 = vpop.permute.xlu0 %6012
      %6014 = vrot.lane.b32.xlu0 %v5997, 64
      %v6015 = vpop.permute.xlu0 %6014
      %6016 = vrot.lane.b32.xlu0 %v5999, 64
      %v6017 = vpop.permute.xlu0 %6016
      %v6021 = vunpack.c.l.b16 %v5792
      %v6022 = vunpack.c.l.b16 %v5793
      %v6023 = vunpack.c.l.b16 %v5794
      %v6024 = vpack.c.b16 %v5818, %v6021
      %v6025 = vpack.c.b16 %v6022, %v5961
      %v6026 = vpack.c.b16 %v6023, %v6023
      %v6027 = vpack.c.b16 %v6023, %v6022
      %v6029 = vshrl.u32 %v6027, 16
      %v6031 = vrot.slane %v6029, 4
      %v6032 = vshll.u32 %v6027, 16
      %v6034 = vrot.slane %v6032, 5
      %v6035 = vor.u32 %v6031, %v6034
      %v6036 = vsel %vm1873, %v5991, %v6035
      %6037 = vrot.lane.b32.xlu0 %v5871, 64
      %v6038 = vpop.permute.xlu0 %6037
      %6039 = vrot.lane.b32.xlu0 %v5992, 64
      %v6040 = vpop.permute.xlu0 %6039
      %6041 = vrot.lane.b32.xlu0 %v6036, 64
      %v6042 = vpop.permute.xlu0 %6041
      %6043 = vrot.lane.b32.xlu0 %v6035, 64
      %v6044 = vpop.permute.xlu0 %6043
      %v6046 = vunpack.c.l.b16 %v5795
      %v6047 = vpack.c.b16 %v6046, %v6046
      %v6048 = vrot.slane %v6027, 5
      %v6049 = vsel %vm1966, %v5996, %v6048
      %v6050 = vrot.slane %v6047, 5
      %v6051 = vsel %vm1966, %v6048, %v6050
      %v6054 = vsel %vm2154, %v5830, %v5919
      %v6057 = vsel %vm2154, %v5831, %v5921
      %v6060 = vsel %vm2154, %v5832, %v5923
      %v6063 = vsel %vm2154, %v5833, %v5925
      %v6066 = vsel %vm2154, %v5834, %v5927
      %v6069 = vsel %vm2154, %v5835, %v5929
      %v6072 = vsel %vm2154, %v5836, %v5931
      %v6075 = vsel %vm2154, %v5837, %v5933
      %v6078 = vsel %vm2154, %v5838, %v5935
      %v6081 = vsel %vm2154, %v5939, %v5966
      %v6084 = vsel %vm2154, %v5941, %v5968
      %v6087 = vsel %vm2154, %v5943, %v5970
      %v6090 = vsel %vm2154, %v5945, %v5972
      %v6093 = vsel %vm2154, %v5947, %v5974
      %v6096 = vsel %vm2154, %v5949, %v5976
      %v6099 = vsel %vm2154, %v5951, %v5978
      %v6102 = vsel %vm2154, %v5953, %v5980
      %v6105 = vsel %vm2154, %v5955, %v5982
      %v6108 = vsel %vm2154, %v5862, %v6001
      %v6111 = vsel %vm2154, %v5872, %v6003
      %v6114 = vsel %vm2154, %v5881, %v6005
      %v6117 = vsel %vm2154, %v5890, %v6007
      %v6120 = vsel %vm2154, %v5899, %v6009
      %v6123 = vsel %vm2154, %v5908, %v6011
      %v6126 = vsel %vm2154, %v5917, %v6013
      %v6129 = vsel %vm2154, %v5992, %v6015
      %v6132 = vsel %vm2154, %v5991, %v6017
      %v6135 = vsel %vm2154, %v6024, %v6038
      %v6138 = vsel %vm2154, %v5963, %v6040
      %v6141 = vsel %vm2154, %v6025, %v6042
      %v6144 = vsel %vm2154, %v6026, %v6044
      %v6145 = vld [vmem:[%s5] sm:$0xf]
      %v6146 = vld [vmem:[%s5 + $0x4] sm:$0xf]
      %v6147 = vld [vmem:[%s5 + $0x8] sm:$0xf]
      %v6148 = vld [vmem:[%s5 + $0xc] sm:$0xf]
      %v6149 = vld [vmem:[%s5 + $0x10] sm:$0xf]
      %v6150 = vld [vmem:[%s5 + $0x14] sm:$0xf]
      %v6151 = vld [vmem:[%s5 + $0x18] sm:$0xf]
      %v6152 = vld [vmem:[%s5 + $0x1c] sm:$0xf]
      %v6153 = vld [vmem:[%s5 + $0x20] sm:$0xf]
      %v6154 = vld [vmem:[%s5 + $0x24] sm:$0xf]
      %v6155 = vld [vmem:[%s5 + $0x28] sm:$0xf]
      %v6156 = vld [vmem:[%s5 + $0x2c] sm:$0xf]
      %v6157 = vld [vmem:[%s5 + $0x30] sm:$0xf]
      %v6158 = vld [vmem:[%s5 + $0x34] sm:$0xf]
      %v6159 = vld [vmem:[%s5 + $0x38] sm:$0xf]
      %v6160 = vld [vmem:[%s5 + $0x3c] sm:$0xf]
      %v6161 = vld [vmem:[%s5 + $0x40] sm:$0xf]
      %v6162 = vld [vmem:[%s5 + $0x44] sm:$0xf]
      %v6163 = vld [vmem:[%s5 + $0x48] sm:$0xf]
      %v6164 = vld [vmem:[%s5 + $0x4c] sm:$0xf]
      %v6165 = vld [vmem:[%s5 + $0x50] sm:$0xf]
      %v6166 = vld [vmem:[%s5 + $0x54] sm:$0xf]
      %v6167 = vld [vmem:[%s5 + $0x58] sm:$0xf]
      %v6168 = vld [vmem:[%s5 + $0x5c] sm:$0xf]
      %v6169 = vld [vmem:[%s5 + $0x60] sm:$0xf]
      %v6170 = vld [vmem:[%s5 + $0x64] sm:$0xf]
      %v6171 = vld [vmem:[%s5 + $0x68] sm:$0xf]
      %v6172 = vld [vmem:[%s5 + $0x6c] sm:$0xf]
      %v6173 = vld [vmem:[%s5 + $0x70] sm:$0xf]
      %v6174 = vld [vmem:[%s5 + $0x74] sm:$0xf]
      %v6175 = vld [vmem:[%s5 + $0x78] sm:$0xf]
      %v6176 = vld [vmem:[%s5 + $0x7c] sm:$0xf]
      %v6177 = vld [vmem:[%s5 + $0x80] sm:$0xf]
      %v6178 = vld [vmem:[%s5 + $0x84] sm:$0xf]
      %v6179 = vld [vmem:[%s5 + $0x88] sm:$0xf]
      %v6180 = vld [vmem:[%s5 + $0x8c] sm:$0xf]
      %v6181 = vld [vmem:[%s5 + $0x90] sm:$0xf]
      %v6182 = vld [vmem:[%s5 + $0x94] sm:$0xf]
      %v6183 = vld [vmem:[%s5 + $0x98] sm:$0xf]
      %v6184 = vld [vmem:[%s5 + $0x9c] sm:$0xf]
      %v6185 = vld [vmem:[%s5 + $0xa0] sm:$0xf]
      %v6186 = vld [vmem:[%s5 + $0xa4] sm:$0xf]
      %v6187 = vld [vmem:[%s5 + $0xa8] sm:$0xf]
      %v6188 = vld [vmem:[%s5 + $0xac] sm:$0xf]
      %v6189 = vld [vmem:[%s5 + $0xb0] sm:$0xf]
      %v6190 = vld [vmem:[%s5 + $0xb4] sm:$0xf]
      %v6191 = vld [vmem:[%s5 + $0xb8] sm:$0xf]
      %v6192 = vld [vmem:[%s5 + $0xbc] sm:$0xf]
      %v6193 = vld [vmem:[%s5 + $0xc0] sm:$0xf]
      %v6194 = vld [vmem:[%s5 + $0xc4] sm:$0xf]
      %v6195 = vld [vmem:[%s5 + $0xc8] sm:$0xf]
      %v6196 = vld [vmem:[%s5 + $0xcc] sm:$0xf]
      %v6197 = vld [vmem:[%s5 + $0xd0] sm:$0xf]
      %v6198 = vld [vmem:[%s5 + $0xd4] sm:$0xf]
      %v6199 = vld [vmem:[%s5 + $0xd8] sm:$0xf]
      %v6200 = vld [vmem:[%s5 + $0xdc] sm:$0xf]
      %v6201 = vld [vmem:[%s5 + $0xe0] sm:$0xf]
      %v6202 = vld [vmem:[%s5 + $0xe4] sm:$0xf]
      %v6203 = vld [vmem:[%s5 + $0xe8] sm:$0xf]
      %v6204 = vld [vmem:[%s5 + $0xec] sm:$0xf]
      %v6205 = vld [vmem:[%s5 + $0xf0] sm:$0xf]
      %v6206 = vld [vmem:[%s5 + $0xf4] sm:$0xf]
      %v6207 = vld [vmem:[%s5 + $0xf8] sm:$0xf]
      %v6208 = vld [vmem:[%s5 + $0xfc] sm:$0xf]
      %v6209 = vld [vmem:[%s5 + $0x100] sm:$0xf]
      %v6210 = vld [vmem:[%s5 + $0x104] sm:$0xf]
      %v6211 = vld [vmem:[%s5 + $0x108] sm:$0xf]
      %v6212 = vld [vmem:[%s5 + $0x10c] sm:$0xf]
      %v6213 = vld [vmem:[%s5 + $0x110] sm:$0xf]
      %v6214 = vld [vmem:[%s5 + $0x114] sm:$0xf]
      %v6215 = vld [vmem:[%s5 + $0x118] sm:$0xf]
      %v6216 = vld [vmem:[%s5 + $0x11c] sm:$0xf]
      %v6217 = vld [vmem:[%s6] sm:$0x1]
      %v6219 = vlaneseq
      %v6220 = vshrl.u32 %v6219, 7
      %v6221 = vsub.s32 0, %v6220
      %v6222 = vrot.slane %v6217, %v6221
      %v6224 = vshrl.u32 %v6054, 16
      %v6226 = vrot.slane %v6224, 3
      %v6227 = vshll.u32 %v6054, 16
      %v6229 = vrot.slane %v6227, 4
      %v6230 = vor.u32 %v6226, %v6229
      %v6231 = vshrl.u32 %v6057, 16
      %v6233 = vrot.slane %v6231, 3
      %v6234 = vshll.u32 %v6057, 16
      %v6236 = vrot.slane %v6234, 4
      %v6237 = vor.u32 %v6233, %v6236
      %v6238 = vsel %vm2298, %v6230, %v6237
      %v6239 = vshrl.u32 %v6081, 16
      %v6241 = vrot.slane %v6239, 3
      %v6242 = vshll.u32 %v6081, 16
      %v6244 = vrot.slane %v6242, 4
      %v6245 = vor.u32 %v6241, %v6244
      %v6246 = vshrl.u32 %v6084, 16
      %v6248 = vrot.slane %v6246, 3
      %v6249 = vshll.u32 %v6084, 16
      %v6251 = vrot.slane %v6249, 4
      %v6252 = vor.u32 %v6248, %v6251
      %v6253 = vsel %vm2298, %v6245, %v6252
      %v6254 = vshrl.u32 %v6108, 16
      %v6256 = vrot.slane %v6254, 3
      %v6257 = vshll.u32 %v6108, 16
      %v6259 = vrot.slane %v6257, 4
      %v6260 = vor.u32 %v6256, %v6259
      %v6261 = vshrl.u32 %v6111, 16
      %v6263 = vrot.slane %v6261, 3
      %v6264 = vshll.u32 %v6111, 16
      %v6266 = vrot.slane %v6264, 4
      %v6267 = vor.u32 %v6263, %v6266
      %v6268 = vsel %vm2298, %v6260, %v6267
      %v6269 = vshrl.u32 %v6135, 16
      %v6271 = vrot.slane %v6269, 3
      %v6272 = vshll.u32 %v6135, 16
      %v6274 = vrot.slane %v6272, 4
      %v6275 = vor.u32 %v6271, %v6274
      %v6276 = vshrl.u32 %v6063, 16
      %v6278 = vrot.slane %v6276, 3
      %v6279 = vshll.u32 %v6063, 16
      %v6281 = vrot.slane %v6279, 4
      %v6282 = vor.u32 %v6278, %v6281
      %v6283 = vsel %vm2298, %v6275, %v6282
      %v6285 = vshrl.u32 %v5942, 16
      %v6287 = vrot.slane %v6285, 3
      %v6288 = vshll.u32 %v5942, 16
      %v6290 = vrot.slane %v6288, 4
      %v6291 = vor.u32 %v6287, %v6290
      %v6292 = vshrl.u32 %v5945, 16
      %v6294 = vrot.slane %v6292, 3
      %v6295 = vshll.u32 %v5945, 16
      %v6297 = vrot.slane %v6295, 4
      %v6298 = vor.u32 %v6294, %v6297
      %v6299 = vsel %vm2298, %v6291, %v6298
      %v6300 = vshrl.u32 %v6060, 16
      %v6302 = vrot.slane %v6300, 3
      %v6303 = vshll.u32 %v6060, 16
      %v6305 = vrot.slane %v6303, 4
      %v6306 = vor.u32 %v6302, %v6305
      %v6307 = vsel %vm2298, %v6237, %v6306
      %v6308 = vshrl.u32 %v6087, 16
      %v6310 = vrot.slane %v6308, 3
      %v6311 = vshll.u32 %v6087, 16
      %v6313 = vrot.slane %v6311, 4
      %v6314 = vor.u32 %v6310, %v6313
      %v6315 = vsel %vm2298, %v6252, %v6314
      %v6316 = vshrl.u32 %v6114, 16
      %v6318 = vrot.slane %v6316, 3
      %v6319 = vshll.u32 %v6114, 16
      %v6321 = vrot.slane %v6319, 4
      %v6322 = vor.u32 %v6318, %v6321
      %v6323 = vsel %vm2298, %v6267, %v6322
      %v6324 = vshrl.u32 %v6066, 16
      %v6326 = vrot.slane %v6324, 3
      %v6327 = vshll.u32 %v6066, 16
      %v6329 = vrot.slane %v6327, 4
      %v6330 = vor.u32 %v6326, %v6329
      %v6331 = vsel %vm2298, %v6282, %v6330
      %v6332 = vshrl.u32 %v5947, 16
      %v6334 = vrot.slane %v6332, 3
      %v6335 = vshll.u32 %v5947, 16
      %v6337 = vrot.slane %v6335, 4
      %v6338 = vor.u32 %v6334, %v6337
      %v6339 = vsel %vm2298, %v6298, %v6338
      %v6340 = vsel %vm2298, %v6306, %v6282
      %v6341 = vshrl.u32 %v6090, 16
      %v6343 = vrot.slane %v6341, 3
      %v6344 = vshll.u32 %v6090, 16
      %v6346 = vrot.slane %v6344, 4
      %v6347 = vor.u32 %v6343, %v6346
      %v6348 = vsel %vm2298, %v6314, %v6347
      %v6349 = vshrl.u32 %v6117, 16
      %v6351 = vrot.slane %v6349, 3
      %v6352 = vshll.u32 %v6117, 16
      %v6354 = vrot.slane %v6352, 4
      %v6355 = vor.u32 %v6351, %v6354
      %v6356 = vsel %vm2298, %v6322, %v6355
      %v6357 = vshrl.u32 %v6069, 16
      %v6359 = vrot.slane %v6357, 3
      %v6360 = vshll.u32 %v6069, 16
      %v6362 = vrot.slane %v6360, 4
      %v6363 = vor.u32 %v6359, %v6362
      %v6364 = vsel %vm2298, %v6330, %v6363
      %v6365 = vshrl.u32 %v5949, 16
      %v6367 = vrot.slane %v6365, 3
      %v6368 = vshll.u32 %v5949, 16
      %v6370 = vrot.slane %v6368, 4
      %v6371 = vor.u32 %v6367, %v6370
      %v6372 = vsel %vm2298, %v6338, %v6371
      %v6373 = vshrl.u32 %v6093, 16
      %v6375 = vrot.slane %v6373, 3
      %v6376 = vshll.u32 %v6093, 16
      %v6378 = vrot.slane %v6376, 4
      %v6379 = vor.u32 %v6375, %v6378
      %v6380 = vsel %vm2298, %v6347, %v6379
      %v6381 = vshrl.u32 %v6120, 16
      %v6383 = vrot.slane %v6381, 3
      %v6384 = vshll.u32 %v6120, 16
      %v6386 = vrot.slane %v6384, 4
      %v6387 = vor.u32 %v6383, %v6386
      %v6388 = vsel %vm2298, %v6355, %v6387
      %v6389 = vshrl.u32 %v6072, 16
      %v6391 = vrot.slane %v6389, 3
      %v6392 = vshll.u32 %v6072, 16
      %v6394 = vrot.slane %v6392, 4
      %v6395 = vor.u32 %v6391, %v6394
      %v6396 = vsel %vm2298, %v6363, %v6395
      %v6397 = vshrl.u32 %v5951, 16
      %v6399 = vrot.slane %v6397, 3
      %v6400 = vshll.u32 %v5951, 16
      %v6402 = vrot.slane %v6400, 4
      %v6403 = vor.u32 %v6399, %v6402
      %v6404 = vsel %vm2298, %v6371, %v6403
      %v6405 = vshrl.u32 %v6096, 16
      %v6407 = vrot.slane %v6405, 3
      %v6408 = vshll.u32 %v6096, 16
      %v6410 = vrot.slane %v6408, 4
      %v6411 = vor.u32 %v6407, %v6410
      %v6412 = vsel %vm2298, %v6379, %v6411
      %v6413 = vshrl.u32 %v6123, 16
      %v6415 = vrot.slane %v6413, 3
      %v6416 = vshll.u32 %v6123, 16
      %v6418 = vrot.slane %v6416, 4
      %v6419 = vor.u32 %v6415, %v6418
      %v6420 = vsel %vm2298, %v6387, %v6419
      %v6421 = vshrl.u32 %v6075, 16
      %v6423 = vrot.slane %v6421, 3
      %v6424 = vshll.u32 %v6075, 16
      %v6426 = vrot.slane %v6424, 4
      %v6427 = vor.u32 %v6423, %v6426
      %v6428 = vsel %vm2298, %v6395, %v6427
      %v6429 = vshrl.u32 %v5953, 16
      %v6431 = vrot.slane %v6429, 3
      %v6432 = vshll.u32 %v5953, 16
      %v6434 = vrot.slane %v6432, 4
      %v6435 = vor.u32 %v6431, %v6434
      %v6436 = vsel %vm2298, %v6403, %v6435
      %v6437 = vshrl.u32 %v6099, 16
      %v6439 = vrot.slane %v6437, 3
      %v6440 = vshll.u32 %v6099, 16
      %v6442 = vrot.slane %v6440, 4
      %v6443 = vor.u32 %v6439, %v6442
      %v6444 = vsel %vm2298, %v6411, %v6443
      %v6445 = vshrl.u32 %v6126, 16
      %v6447 = vrot.slane %v6445, 3
      %v6448 = vshll.u32 %v6126, 16
      %v6450 = vrot.slane %v6448, 4
      %v6451 = vor.u32 %v6447, %v6450
      %v6452 = vsel %vm2298, %v6419, %v6451
      %v6453 = vshrl.u32 %v6138, 16
      %v6455 = vrot.slane %v6453, 3
      %v6456 = vshll.u32 %v6138, 16
      %v6458 = vrot.slane %v6456, 4
      %v6459 = vor.u32 %v6455, %v6458
      %v6460 = vsel %vm2298, %v6427, %v6459
      %v6462 = vshrl.u32 %v5997, 16
      %v6464 = vrot.slane %v6462, 3
      %v6465 = vshll.u32 %v5997, 16
      %v6467 = vrot.slane %v6465, 4
      %v6468 = vor.u32 %v6464, %v6467
      %v6469 = vsel %vm2298, %v6435, %v6468
      %v6470 = vshrl.u32 %v6102, 16
      %v6472 = vrot.slane %v6470, 3
      %v6473 = vshll.u32 %v6102, 16
      %v6475 = vrot.slane %v6473, 4
      %v6476 = vor.u32 %v6472, %v6475
      %v6477 = vsel %vm2298, %v6443, %v6476
      %v6478 = vshrl.u32 %v6129, 16
      %v6480 = vrot.slane %v6478, 3
      %v6481 = vshll.u32 %v6129, 16
      %v6483 = vrot.slane %v6481, 4
      %v6484 = vor.u32 %v6480, %v6483
      %v6485 = vsel %vm2298, %v6451, %v6484
      %v6486 = vshrl.u32 %v6141, 16
      %v6488 = vrot.slane %v6486, 3
      %v6489 = vshll.u32 %v6141, 16
      %v6491 = vrot.slane %v6489, 4
      %v6492 = vor.u32 %v6488, %v6491
      %v6493 = vsel %vm2298, %v6459, %v6492
      %v6495 = vshrl.u32 %v6049, 16
      %v6497 = vrot.slane %v6495, 3
      %v6498 = vshll.u32 %v6049, 16
      %v6500 = vrot.slane %v6498, 4
      %v6501 = vor.u32 %v6497, %v6500
      %v6502 = vsel %vm2298, %v6468, %v6501
      %v6503 = vshrl.u32 %v6078, 16
      %v6505 = vrot.slane %v6503, 3
      %v6506 = vshll.u32 %v6078, 16
      %v6508 = vrot.slane %v6506, 4
      %v6509 = vor.u32 %v6505, %v6508
      %v6510 = vsel %vm2298, %v6427, %v6509
      %v6511 = vshrl.u32 %v6105, 16
      %v6513 = vrot.slane %v6511, 3
      %v6514 = vshll.u32 %v6105, 16
      %v6516 = vrot.slane %v6514, 4
      %v6517 = vor.u32 %v6513, %v6516
      %v6518 = vsel %vm2298, %v6476, %v6517
      %v6519 = vshrl.u32 %v6132, 16
      %v6521 = vrot.slane %v6519, 3
      %v6522 = vshll.u32 %v6132, 16
      %v6524 = vrot.slane %v6522, 4
      %v6525 = vor.u32 %v6521, %v6524
      %v6526 = vsel %vm2298, %v6484, %v6525
      %v6527 = vshrl.u32 %v6144, 16
      %v6529 = vrot.slane %v6527, 3
      %v6530 = vshll.u32 %v6144, 16
      %v6532 = vrot.slane %v6530, 4
      %v6533 = vor.u32 %v6529, %v6532
      %v6534 = vsel %vm2298, %v6492, %v6533
      %v6536 = vshrl.u32 %v6051, 16
      %v6538 = vrot.slane %v6536, 3
      %v6539 = vshll.u32 %v6051, 16
      %v6541 = vrot.slane %v6539, 4
      %v6542 = vor.u32 %v6538, %v6541
      %v6543 = vsel %vm2298, %v6501, %v6542
      %v6644 = vunpack.c.l.b16 %v6145
      %v6645 = vunpack.c.l.b16 %v6146
      %v6646 = vunpack.c.l.b16 %v6147
      %v6647 = vunpack.c.l.b16 %v6148
      %v6648 = vunpack.c.l.b16 %v6149
      %v6649 = vunpack.c.l.b16 %v6150
      %v6650 = vunpack.c.l.b16 %v6151
      %v6651 = vunpack.c.l.b16 %v6152
      %v6652 = vunpack.c.l.b16 %v6153
      %v6653 = vunpack.c.l.b16 %v6154
      %v6654 = vunpack.c.l.b16 %v6155
      %v6655 = vunpack.c.l.b16 %v6156
      %v6656 = vunpack.c.l.b16 %v6157
      %v6657 = vunpack.c.l.b16 %v6158
      %v6658 = vunpack.c.l.b16 %v6159
      %v6659 = vunpack.c.l.b16 %v6160
      %v6660 = vunpack.c.l.b16 %v6161
      %v6661 = vunpack.c.l.b16 %v6162
      %v6662 = vunpack.c.l.b16 %v6163
      %v6663 = vunpack.c.l.b16 %v6164
      %v6664 = vunpack.c.l.b16 %v6165
      %v6665 = vunpack.c.l.b16 %v6166
      %v6666 = vunpack.c.l.b16 %v6167
      %v6667 = vunpack.c.l.b16 %v6168
      %v6668 = vunpack.c.l.b16 %v6169
      %v6669 = vunpack.c.l.b16 %v6170
      %v6670 = vunpack.c.l.b16 %v6171
      %v6671 = vunpack.c.l.b16 %v6172
      %v6672 = vunpack.c.l.b16 %v6173
      %v6673 = vunpack.c.l.b16 %v6174
      %v6674 = vunpack.c.l.b16 %v6175
      %v6675 = vunpack.c.l.b16 %v6176
      %v6676 = vunpack.c.l.b16 %v6177
      %v6677 = vunpack.c.l.b16 %v6178
      %v6678 = vunpack.c.l.b16 %v6179
      %v6679 = vunpack.c.l.b16 %v6180
      %v6680 = vunpack.c.l.b16 %v6181
      %v6681 = vunpack.c.l.b16 %v6182
      %v6682 = vunpack.c.l.b16 %v6183
      %v6683 = vunpack.c.l.b16 %v6184
      %v6684 = vunpack.c.l.b16 %v6185
      %v6685 = vunpack.c.l.b16 %v6186
      %v6686 = vunpack.c.l.b16 %v6187
      %v6687 = vunpack.c.l.b16 %v6188
      %v6688 = vunpack.c.l.b16 %v6189
      %v6689 = vunpack.c.l.b16 %v6190
      %v6690 = vunpack.c.l.b16 %v6191
      %v6691 = vunpack.c.l.b16 %v6192
      %v6692 = vunpack.c.l.b16 %v6193
      %v6693 = vunpack.c.l.b16 %v6194
      %v6694 = vunpack.c.l.b16 %v6195
      %v6695 = vunpack.c.l.b16 %v6196
      %v6696 = vunpack.c.l.b16 %v6197
      %v6697 = vunpack.c.l.b16 %v6198
      %v6698 = vunpack.c.l.b16 %v6199
      %v6699 = vunpack.c.l.b16 %v6200
      %v6700 = vunpack.c.l.b16 %v6201
      %v6701 = vunpack.c.l.b16 %v6202
      %v6702 = vunpack.c.l.b16 %v6203
      %v6703 = vunpack.c.l.b16 %v6204
      %v6704 = vunpack.c.l.b16 %v6205
      %v6705 = vunpack.c.l.b16 %v6206
      %v6706 = vunpack.c.l.b16 %v6207
      %v6707 = vunpack.c.l.b16 %v6208
      %v6708 = vunpack.c.l.b16 %v6209
      %v6709 = vunpack.c.l.b16 %v6210
      %v6710 = vunpack.c.l.b16 %v6211
      %v6711 = vunpack.c.l.b16 %v6212
      %v6712 = vunpack.c.l.b16 %v6213
      %v6713 = vunpack.c.l.b16 %v6214
      %v6714 = vunpack.c.l.b16 %v6215
      %v6715 = vunpack.c.l.b16 %v6216
      %v6716 = vpack.c.b16 %v6645, %v6644
      %v6717 = vpack.c.b16 %v6647, %v6646
      %v6718 = vpack.c.b16 %v6649, %v6648
      %v6719 = vpack.c.b16 %v6651, %v6650
      %v6720 = vpack.c.b16 %v6653, %v6652
      %v6721 = vpack.c.b16 %v6655, %v6654
      %v6722 = vpack.c.b16 %v6657, %v6656
      %v6723 = vpack.c.b16 %v6659, %v6658
      %v6724 = vpack.c.b16 %v6661, %v6660
      %v6725 = vpack.c.b16 %v6663, %v6662
      %v6726 = vpack.c.b16 %v6665, %v6664
      %v6727 = vpack.c.b16 %v6667, %v6666
      %v6728 = vpack.c.b16 %v6669, %v6668
      %v6729 = vpack.c.b16 %v6671, %v6670
      %v6730 = vpack.c.b16 %v6673, %v6672
      %v6731 = vpack.c.b16 %v6675, %v6674
      %v6732 = vpack.c.b16 %v6677, %v6676
      %v6733 = vpack.c.b16 %v6679, %v6678
      %v6734 = vpack.c.b16 %v6681, %v6680
      %v6735 = vpack.c.b16 %v6683, %v6682
      %v6736 = vpack.c.b16 %v6685, %v6684
      %v6737 = vpack.c.b16 %v6687, %v6686
      %v6738 = vpack.c.b16 %v6689, %v6688
      %v6739 = vpack.c.b16 %v6691, %v6690
      %v6740 = vpack.c.b16 %v6693, %v6692
      %v6741 = vpack.c.b16 %v6695, %v6694
      %v6742 = vpack.c.b16 %v6697, %v6696
      %v6743 = vpack.c.b16 %v6699, %v6698
      %v6744 = vpack.c.b16 %v6701, %v6700
      %v6745 = vpack.c.b16 %v6703, %v6702
      %v6746 = vpack.c.b16 %v6705, %v6704
      %v6747 = vpack.c.b16 %v6707, %v6706
      %v6748 = vpack.c.b16 %v6709, %v6708
      %v6749 = vpack.c.b16 %v6711, %v6710
      %v6750 = vpack.c.b16 %v6713, %v6712
      %v6751 = vpack.c.b16 %v6715, %v6714
      %v6789 = vsel %vm2154, %v6299, 0
      %v6792 = vsel %vm2154, %v6339, 0
      %v6795 = vsel %vm2154, %v6372, 0
      %v6798 = vsel %vm2154, %v6404, 0
      %v6801 = vsel %vm2154, %v6436, 0
      %v6804 = vsel %vm2154, %v6469, 0
      %v6807 = vsel %vm2154, %v6502, 0
      %v6810 = vsel %vm2154, %v6543, 0
      %6812 = vmatprep.subr.bf16.mxu0 0
      %6813 = vmatpush1.bf16.msra.mxu0 %v6723
      %6814 = vmatprep.subr.bf16.mxu0 0
      %6815 = vmatpush1.bf16.msra.mxu0 %v6722
      %6816 = vmatprep.subr.bf16.mxu0 0
      %6817 = vmatpush1.bf16.msra.mxu0 %v6721
      %6818 = vmatprep.subr.bf16.mxu0 0
      %6819 = vmatpush1.bf16.msra.mxu0 %v6720
      %6820 = vmatprep.subr.bf16.mxu0 0
      %6821 = vmatpush1.bf16.msra.mxu0 %v6719
      %6822 = vmatprep.subr.bf16.mxu0 0
      %6823 = vmatpush1.bf16.msra.mxu0 %v6718
      %6824 = vmatprep.subr.bf16.mxu0 0
      %6825 = vmatpush1.bf16.msra.mxu0 %v6717
      %6826 = vmatprep.subr.bf16.mxu0 0
      %6827 = vmatpush1.bf16.msra.mxu0 %v6716
      %6828 = vmatprep.subr.bf16.mxu0 0
      %6829 = vmatpush2.bf16.msra.mxu0 %v6731
      %6830 = vmatprep.subr.bf16.mxu0 0
      %6831 = vmatpush2.bf16.msra.mxu0 %v6730
      %6832 = vmatprep.subr.bf16.mxu0 0
      %6833 = vmatpush2.bf16.msra.mxu0 %v6729
      %6834 = vmatprep.subr.bf16.mxu0 0
      %6835 = vmatpush2.bf16.msra.mxu0 %v6728
      %6836 = vmatprep.subr.bf16.mxu0 0
      %6837 = vmatpush2.bf16.msra.mxu0 %v6727
      %6838 = vmatprep.subr.bf16.mxu0 0
      %6839 = vmatpush2.bf16.msra.mxu0 %v6726
      %6840 = vmatprep.subr.bf16.mxu0 0
      %6841 = vmatpush2.bf16.msra.mxu0 %v6725
      %6842 = vmatprep.subr.bf16.mxu0 0
      %6843 = vmatpush2.bf16.msra.mxu0 %v6724
      %6844 = vmatprep.mubr.bf16.mxu0 %v6253
      %6845 = vmatmul.mubr.bf16.gmra.mxu0 %v6238
      %v6846 = vpop.f32.mrf.mxu0
      %v6847 = vadd.f32 %v6222, %v6846
      %v6848 = vpop.f32.mrf.mxu0
      %v6849 = vpop.f32.mrf.mxu0
      %v6850 = vadd.f32 %v6222, %v6849
      %v6851 = vpop.f32.mrf.mxu0
      %6852 = vmatprep.mubr.bf16.mxu0 %v6315
      %6853 = vmatmul.mubr.bf16.gmra.mxu0 %v6307
      %v6854 = vpop.f32.mrf.mxu0
      %v6855 = vadd.f32 %v6222, %v6854
      %v6856 = vpop.f32.mrf.mxu0
      %v6857 = vpop.f32.mrf.mxu0
      %v6858 = vadd.f32 %v6222, %v6857
      %v6859 = vpop.f32.mrf.mxu0
      %6860 = vmatprep.mubr.bf16.mxu0 %v6348
      %6861 = vmatmul.mubr.bf16.gmra.mxu0 %v6340
      %v6862 = vpop.f32.mrf.mxu0
      %v6863 = vadd.f32 %v6222, %v6862
      %v6864 = vpop.f32.mrf.mxu0
      %v6865 = vpop.f32.mrf.mxu0
      %v6866 = vadd.f32 %v6222, %v6865
      %v6867 = vpop.f32.mrf.mxu0
      %6868 = vmatprep.mubr.bf16.mxu0 %v6380
      %6869 = vmatmul.mubr.bf16.gmra.mxu0 %v6331
      %v6870 = vpop.f32.mrf.mxu0
      %v6871 = vadd.f32 %v6222, %v6870
      %v6872 = vpop.f32.mrf.mxu0
      %v6873 = vpop.f32.mrf.mxu0
      %v6874 = vadd.f32 %v6222, %v6873
      %v6875 = vpop.f32.mrf.mxu0
      %6876 = vmatprep.mubr.bf16.mxu0 %v6412
      %6877 = vmatmul.mubr.bf16.gmra.mxu0 %v6364
      %v6878 = vpop.f32.mrf.mxu0
      %v6879 = vadd.f32 %v6222, %v6878
      %v6880 = vpop.f32.mrf.mxu0
      %v6881 = vpop.f32.mrf.mxu0
      %v6882 = vadd.f32 %v6222, %v6881
      %v6883 = vpop.f32.mrf.mxu0
      %6884 = vmatprep.mubr.bf16.mxu0 %v6444
      %6885 = vmatmul.mubr.bf16.gmra.mxu0 %v6396
      %v6886 = vpop.f32.mrf.mxu0
      %v6887 = vadd.f32 %v6222, %v6886
      %v6888 = vpop.f32.mrf.mxu0
      %v6889 = vpop.f32.mrf.mxu0
      %v6890 = vadd.f32 %v6222, %v6889
      %v6891 = vpop.f32.mrf.mxu0
      %6892 = vmatprep.mubr.bf16.mxu0 %v6477
      %6893 = vmatmul.mubr.bf16.gmra.mxu0 %v6428
      %v6894 = vpop.f32.mrf.mxu0
      %v6895 = vadd.f32 %v6222, %v6894
      %v6896 = vpop.f32.mrf.mxu0
      %v6897 = vpop.f32.mrf.mxu0
      %v6898 = vadd.f32 %v6222, %v6897
      %v6899 = vpop.f32.mrf.mxu0
      %6900 = vmatprep.mubr.bf16.mxu0 %v6518
      %6901 = vmatmul.mubr.bf16.gmra.mxu0 %v6510
      %v6902 = vpop.f32.mrf.mxu0
      %v6903 = vadd.f32 %v6222, %v6902
      %v6904 = vpop.f32.mrf.mxu0
      %v6905 = vpop.f32.mrf.mxu0
      %v6906 = vadd.f32 %v6222, %v6905
      %v6907 = vpop.f32.mrf.mxu0
      %6908 = vdwg.mxu0
      %6909 = vmatprep.subr.bf16.mxu0 0
      %6910 = vmatpush1.bf16.msra.mxu0 %v6739
      %6911 = vmatprep.subr.bf16.mxu0 0
      %6912 = vmatpush1.bf16.msra.mxu0 %v6738
      %6913 = vmatprep.subr.bf16.mxu0 0
      %6914 = vmatpush1.bf16.msra.mxu0 %v6737
      %6915 = vmatprep.subr.bf16.mxu0 0
      %6916 = vmatpush1.bf16.msra.mxu0 %v6736
      %6917 = vmatprep.subr.bf16.mxu0 0
      %6918 = vmatpush1.bf16.msra.mxu0 %v6735
      %6919 = vmatprep.subr.bf16.mxu0 0
      %6920 = vmatpush1.bf16.msra.mxu0 %v6734
      %6921 = vmatprep.subr.bf16.mxu0 0
      %6922 = vmatpush1.bf16.msra.mxu0 %v6733
      %6923 = vmatprep.subr.bf16.mxu0 0
      %6924 = vmatpush1.bf16.msra.mxu0 %v6732
      %6925 = vmatprep.subr.bf16.mxu0 0
      %6926 = vmatpush2.bf16.msra.mxu0 %v6747
      %6927 = vmatprep.subr.bf16.mxu0 0
      %6928 = vmatpush2.bf16.msra.mxu0 %v6746
      %6929 = vmatprep.subr.bf16.mxu0 0
      %6930 = vmatpush2.bf16.msra.mxu0 %v6745
      %6931 = vmatprep.subr.bf16.mxu0 0
      %6932 = vmatpush2.bf16.msra.mxu0 %v6744
      %6933 = vmatprep.subr.bf16.mxu0 0
      %6934 = vmatpush2.bf16.msra.mxu0 %v6743
      %6935 = vmatprep.subr.bf16.mxu0 0
      %6936 = vmatpush2.bf16.msra.mxu0 %v6742
      %6937 = vmatprep.subr.bf16.mxu0 0
      %6938 = vmatpush2.bf16.msra.mxu0 %v6741
      %6939 = vmatprep.subr.bf16.mxu0 0
      %6940 = vmatpush2.bf16.msra.mxu0 %v6740
      %6941 = vmatprep.mubr.bf16.mxu0 %v6283
      %6942 = vmatmul.mubr.bf16.gmra.mxu0 %v6268
      %v6943 = vpop.f32.mrf.mxu0
      %v6944 = vadd.f32 %v6847, %v6943
      %v6945 = vpop.f32.mrf.mxu0
      %v6946 = vpop.f32.mrf.mxu0
      %v6947 = vadd.f32 %v6850, %v6946
      %v6948 = vpop.f32.mrf.mxu0
      %6949 = vmatprep.mubr.bf16.mxu0 %v6331
      %6950 = vmatmul.mubr.bf16.gmra.mxu0 %v6323
      %v6951 = vpop.f32.mrf.mxu0
      %v6952 = vadd.f32 %v6855, %v6951
      %v6953 = vpop.f32.mrf.mxu0
      %v6954 = vpop.f32.mrf.mxu0
      %v6955 = vadd.f32 %v6858, %v6954
      %v6956 = vpop.f32.mrf.mxu0
      %6957 = vmatprep.mubr.bf16.mxu0 %v6364
      %6958 = vmatmul.mubr.bf16.gmra.mxu0 %v6356
      %v6959 = vpop.f32.mrf.mxu0
      %v6960 = vadd.f32 %v6863, %v6959
      %v6961 = vpop.f32.mrf.mxu0
      %v6962 = vpop.f32.mrf.mxu0
      %v6963 = vadd.f32 %v6866, %v6962
      %v6964 = vpop.f32.mrf.mxu0
      %6965 = vmatprep.mubr.bf16.mxu0 %v6396
      %6966 = vmatmul.mubr.bf16.gmra.mxu0 %v6388
      %v6967 = vpop.f32.mrf.mxu0
      %v6968 = vadd.f32 %v6871, %v6967
      %v6969 = vpop.f32.mrf.mxu0
      %v6970 = vpop.f32.mrf.mxu0
      %v6971 = vadd.f32 %v6874, %v6970
      %v6972 = vpop.f32.mrf.mxu0
      %6973 = vmatprep.mubr.bf16.mxu0 %v6428
      %6974 = vmatmul.mubr.bf16.gmra.mxu0 %v6420
      %v6975 = vpop.f32.mrf.mxu0
      %v6976 = vadd.f32 %v6879, %v6975
      %v6977 = vpop.f32.mrf.mxu0
      %v6978 = vpop.f32.mrf.mxu0
      %v6979 = vadd.f32 %v6882, %v6978
      %v6980 = vpop.f32.mrf.mxu0
      %6981 = vmatprep.mubr.bf16.mxu0 %v6460
      %6982 = vmatmul.mubr.bf16.gmra.mxu0 %v6452
      %v6983 = vpop.f32.mrf.mxu0
      %v6984 = vadd.f32 %v6887, %v6983
      %v6985 = vpop.f32.mrf.mxu0
      %v6986 = vpop.f32.mrf.mxu0
      %v6987 = vadd.f32 %v6890, %v6986
      %v6988 = vpop.f32.mrf.mxu0
      %6989 = vmatprep.mubr.bf16.mxu0 %v6493
      %6990 = vmatmul.mubr.bf16.gmra.mxu0 %v6485
      %v6991 = vpop.f32.mrf.mxu0
      %v6992 = vadd.f32 %v6895, %v6991
      %v6993 = vpop.f32.mrf.mxu0
      %v6994 = vpop.f32.mrf.mxu0
      %v6995 = vadd.f32 %v6898, %v6994
      %v6996 = vpop.f32.mrf.mxu0
      %6997 = vmatprep.mubr.bf16.mxu0 %v6534
      %6998 = vmatmul.mubr.bf16.gmra.mxu0 %v6526
      %v6999 = vpop.f32.mrf.mxu0
      %v7000 = vadd.f32 %v6903, %v6999
      %v7001 = vpop.f32.mrf.mxu0
      %v7002 = vpop.f32.mrf.mxu0
      %v7003 = vadd.f32 %v6906, %v7002
      %v7004 = vpop.f32.mrf.mxu0
      %7005 = vdwg.mxu0
      %7006 = vmatprep.subr.bf16.mxu0 0
      %7007 = vmatpush1.bf16.msra.mxu0 0
      %7008 = vmatprep.subr.bf16.mxu0 0
      %7009 = vmatpush1.bf16.msra.mxu0 0
      %7010 = vmatprep.subr.bf16.mxu0 0
      %7011 = vmatpush1.bf16.msra.mxu0 0
      %7012 = vmatprep.subr.bf16.mxu0 0
      %7013 = vmatpush1.bf16.msra.mxu0 0
      %7014 = vmatprep.subr.bf16.mxu0 0
      %7015 = vmatpush1.bf16.msra.mxu0 %v6751
      %7016 = vmatprep.subr.bf16.mxu0 0
      %7017 = vmatpush1.bf16.msra.mxu0 %v6750
      %7018 = vmatprep.subr.bf16.mxu0 0
      %7019 = vmatpush1.bf16.msra.mxu0 %v6749
      %7020 = vmatprep.subr.bf16.mxu0 0
      %7021 = vmatpush1.bf16.msra.mxu0 %v6748
      %7022 = vmatprep.subr.bf16.mxu0 0
      %7023 = vmatpush2.bf16.msra.mxu0 0
      %7024 = vmatprep.subr.bf16.mxu0 0
      %7025 = vmatpush2.bf16.msra.mxu0 0
      %7026 = vmatprep.subr.bf16.mxu0 0
      %7027 = vmatpush2.bf16.msra.mxu0 0
      %7028 = vmatprep.subr.bf16.mxu0 0
      %7029 = vmatpush2.bf16.msra.mxu0 0
      %7030 = vmatprep.subr.bf16.mxu0 0
      %7031 = vmatpush2.bf16.msra.mxu0 0
      %7032 = vmatprep.subr.bf16.mxu0 0
      %7033 = vmatpush2.bf16.msra.mxu0 0
      %7034 = vmatprep.subr.bf16.mxu0 0
      %7035 = vmatpush2.bf16.msra.mxu0 0
      %7036 = vmatprep.subr.bf16.mxu0 0
      %7037 = vmatpush2.bf16.msra.mxu0 0
      %7038 = vmatprep.mubr.bf16.mxu0 0
      %7039 = vmatmul.mubr.bf16.gmra.mxu0 %v6789
      %v7040 = vpop.f32.mrf.mxu0
      %v7041 = vadd.f32 %v6944, %v7040
      %v7042 = vpop.f32.mrf.mxu0
      %v7043 = vpop.f32.mrf.mxu0
      %v7044 = vadd.f32 %v6947, %v7043
      %v7045 = vpop.f32.mrf.mxu0
      %7046 = vmatprep.mubr.bf16.mxu0 0
      %7047 = vmatmul.mubr.bf16.gmra.mxu0 %v6792
      %v7048 = vpop.f32.mrf.mxu0
      %v7049 = vadd.f32 %v6952, %v7048
      %v7050 = vpop.f32.mrf.mxu0
      %v7051 = vpop.f32.mrf.mxu0
      %v7052 = vadd.f32 %v6955, %v7051
      %v7053 = vpop.f32.mrf.mxu0
      %7054 = vmatprep.mubr.bf16.mxu0 0
      %7055 = vmatmul.mubr.bf16.gmra.mxu0 %v6795
      %v7056 = vpop.f32.mrf.mxu0
      %v7057 = vadd.f32 %v6960, %v7056
      %v7058 = vpop.f32.mrf.mxu0
      %v7059 = vpop.f32.mrf.mxu0
      %v7060 = vadd.f32 %v6963, %v7059
      %v7061 = vpop.f32.mrf.mxu0
      %7062 = vmatprep.mubr.bf16.mxu0 0
      %7063 = vmatmul.mubr.bf16.gmra.mxu0 %v6798
      %v7064 = vpop.f32.mrf.mxu0
      %v7065 = vadd.f32 %v6968, %v7064
      %v7066 = vpop.f32.mrf.mxu0
      %v7067 = vpop.f32.mrf.mxu0
      %v7068 = vadd.f32 %v6971, %v7067
      %v7069 = vpop.f32.mrf.mxu0
      %7070 = vmatprep.mubr.bf16.mxu0 0
      %7071 = vmatmul.mubr.bf16.gmra.mxu0 %v6801
      %v7072 = vpop.f32.mrf.mxu0
      %v7073 = vadd.f32 %v6976, %v7072
      %v7074 = vpop.f32.mrf.mxu0
      %v7075 = vpop.f32.mrf.mxu0
      %v7076 = vadd.f32 %v6979, %v7075
      %v7077 = vpop.f32.mrf.mxu0
      %7078 = vmatprep.mubr.bf16.mxu0 0
      %7079 = vmatmul.mubr.bf16.gmra.mxu0 %v6804
      %v7080 = vpop.f32.mrf.mxu0
      %v7081 = vadd.f32 %v6984, %v7080
      %v7082 = vpop.f32.mrf.mxu0
      %v7083 = vpop.f32.mrf.mxu0
      %v7084 = vadd.f32 %v6987, %v7083
      %v7085 = vpop.f32.mrf.mxu0
      %7086 = vmatprep.mubr.bf16.mxu0 0
      %7087 = vmatmul.mubr.bf16.gmra.mxu0 %v6807
      %v7088 = vpop.f32.mrf.mxu0
      %v7089 = vadd.f32 %v6992, %v7088
      %v7090 = vpop.f32.mrf.mxu0
      %v7091 = vpop.f32.mrf.mxu0
      %v7092 = vadd.f32 %v6995, %v7091
      %v7093 = vpop.f32.mrf.mxu0
      %7094 = vmatprep.mubr.bf16.mxu0 0
      %7095 = vmatmul.mubr.bf16.gmra.mxu0 %v6810
      %v7096 = vpop.f32.mrf.mxu0
      %v7097 = vadd.f32 %v7000, %v7096
      %v7098 = vpop.f32.mrf.mxu0
      %v7099 = vpop.f32.mrf.mxu0
      %v7100 = vadd.f32 %v7003, %v7099
      %v7101 = vpop.f32.mrf.mxu0
      %7102 = vdwg.mxu0
      %v7103 = vmax.f32 %v7041, 0.0
      %v7104 = vmax.f32 %v7044, 0.0
      %v7105 = vmax.f32 %v7049, 0.0
      %v7106 = vmax.f32 %v7052, 0.0
      %v7107 = vmax.f32 %v7057, 0.0
      %v7108 = vmax.f32 %v7060, 0.0
      %v7109 = vmax.f32 %v7065, 0.0
      %v7110 = vmax.f32 %v7068, 0.0
      %v7111 = vmax.f32 %v7073, 0.0
      %v7112 = vmax.f32 %v7076, 0.0
      %v7113 = vmax.f32 %v7081, 0.0
      %v7114 = vmax.f32 %v7084, 0.0
      %v7115 = vmax.f32 %v7089, 0.0
      %v7116 = vmax.f32 %v7092, 0.0
      %v7117 = vmax.f32 %v7097, 0.0
      %v7118 = vmax.f32 %v7100, 0.0
      %v7119 = vpack.c.bf16 %v7104, %v7103
      %v7120 = vpack.c.bf16 %v7106, %v7105
      %v7121 = vpack.c.bf16 %v7108, %v7107
      %v7122 = vpack.c.bf16 %v7110, %v7109
      %v7123 = vpack.c.bf16 %v7112, %v7111
      %v7124 = vpack.c.bf16 %v7114, %v7113
      %v7125 = vpack.c.bf16 %v7116, %v7115
      %v7126 = vpack.c.bf16 %v7118, %v7117
      %v7127 = vld [vmem:[%s7] sm:$0xf]
      %v7128 = vld [vmem:[%s7 + $0x4] sm:$0xf]
      %v7129 = vld [vmem:[%s7 + $0x8] sm:$0xf]
      %v7130 = vld [vmem:[%s7 + $0xc] sm:$0xf]
      %v7131 = vld [vmem:[%s7 + $0x10] sm:$0xf]
      %v7132 = vld [vmem:[%s7 + $0x14] sm:$0xf]
      %v7133 = vld [vmem:[%s7 + $0x18] sm:$0xf]
      %v7134 = vld [vmem:[%s7 + $0x1c] sm:$0xf]
      %v7135 = vld [vmem:[%s7 + $0x20] sm:$0xf]
      %v7136 = vld [vmem:[%s7 + $0x24] sm:$0xf]
      %v7137 = vld [vmem:[%s7 + $0x28] sm:$0xf]
      %v7138 = vld [vmem:[%s7 + $0x2c] sm:$0xf]
      %v7139 = vld [vmem:[%s7 + $0x30] sm:$0xf]
      %v7140 = vld [vmem:[%s7 + $0x34] sm:$0xf]
      %v7141 = vld [vmem:[%s7 + $0x38] sm:$0xf]
      %v7142 = vld [vmem:[%s7 + $0x3c] sm:$0xf]
      %v7143 = vld [vmem:[%s8] sm:$0x1]
      %v7145 = vlaneseq
      %v7146 = vshrl.u32 %v7145, 7
      %v7147 = vsub.s32 0, %v7146
      %v7148 = vrot.slane %v7143, %v7147
      %v7166 = vunpack.c.l.b16 %v7127
      %v7167 = vunpack.c.l.b16 %v7128
      %v7168 = vunpack.c.l.b16 %v7129
      %v7169 = vunpack.c.l.b16 %v7130
      %v7170 = vunpack.c.l.b16 %v7131
      %v7171 = vunpack.c.l.b16 %v7132
      %v7172 = vunpack.c.l.b16 %v7133
      %v7173 = vunpack.c.l.b16 %v7134
      %v7174 = vunpack.c.l.b16 %v7135
      %v7175 = vunpack.c.l.b16 %v7136
      %v7176 = vunpack.c.l.b16 %v7137
      %v7177 = vunpack.c.l.b16 %v7138
      %v7178 = vunpack.c.l.b16 %v7139
      %v7179 = vunpack.c.l.b16 %v7140
      %v7180 = vunpack.c.l.b16 %v7141
      %v7181 = vunpack.c.l.b16 %v7142
      %v7182 = vpack.c.b16 %v7167, %v7166
      %v7183 = vpack.c.b16 %v7169, %v7168
      %v7184 = vpack.c.b16 %v7171, %v7170
      %v7185 = vpack.c.b16 %v7173, %v7172
      %v7186 = vpack.c.b16 %v7175, %v7174
      %v7187 = vpack.c.b16 %v7177, %v7176
      %v7188 = vpack.c.b16 %v7179, %v7178
      %v7189 = vpack.c.b16 %v7181, %v7180
      %7198 = vmatprep.subr.bf16.mxu0 0
      %7199 = vmatpush1.bf16.msra.mxu0 %v7189
      %7200 = vmatprep.subr.bf16.mxu0 0
      %7201 = vmatpush1.bf16.msra.mxu0 %v7188
      %7202 = vmatprep.subr.bf16.mxu0 0
      %7203 = vmatpush1.bf16.msra.mxu0 %v7187
      %7204 = vmatprep.subr.bf16.mxu0 0
      %7205 = vmatpush1.bf16.msra.mxu0 %v7186
      %7206 = vmatprep.subr.bf16.mxu0 0
      %7207 = vmatpush1.bf16.msra.mxu0 %v7185
      %7208 = vmatprep.subr.bf16.mxu0 0
      %7209 = vmatpush1.bf16.msra.mxu0 %v7184
      %7210 = vmatprep.subr.bf16.mxu0 0
      %7211 = vmatpush1.bf16.msra.mxu0 %v7183
      %7212 = vmatprep.subr.bf16.mxu0 0
      %7213 = vmatpush1.bf16.msra.mxu0 %v7182
      %7214 = vmatprep.subr.bf16.mxu0 0
      %7215 = vmatpush2.bf16.msra.mxu0 0
      %7216 = vmatprep.subr.bf16.mxu0 0
      %7217 = vmatpush2.bf16.msra.mxu0 0
      %7218 = vmatprep.subr.bf16.mxu0 0
      %7219 = vmatpush2.bf16.msra.mxu0 0
      %7220 = vmatprep.subr.bf16.mxu0 0
      %7221 = vmatpush2.bf16.msra.mxu0 0
      %7222 = vmatprep.subr.bf16.mxu0 0
      %7223 = vmatpush2.bf16.msra.mxu0 0
      %7224 = vmatprep.subr.bf16.mxu0 0
      %7225 = vmatpush2.bf16.msra.mxu0 0
      %7226 = vmatprep.subr.bf16.mxu0 0
      %7227 = vmatpush2.bf16.msra.mxu0 0
      %7228 = vmatprep.subr.bf16.mxu0 0
      %7229 = vmatpush2.bf16.msra.mxu0 0
      %7230 = vmatprep.mubr.bf16.mxu0 0
      %7231 = vmatmul.mubr.bf16.gmra.mxu0 %v7119
      %v7232 = vpop.f32.mrf.mxu0
      %v7233 = vadd.f32 %v7148, %v7232
      %v7234 = vpop.f32.mrf.mxu0
      %v7235 = vpop.f32.mrf.mxu0
      %v7236 = vadd.f32 %v7148, %v7235
      %v7237 = vpop.f32.mrf.mxu0
      %7238 = vmatprep.mubr.bf16.mxu0 0
      %7239 = vmatmul.mubr.bf16.gmra.mxu0 %v7120
      %v7240 = vpop.f32.mrf.mxu0
      %v7241 = vadd.f32 %v7148, %v7240
      %v7242 = vpop.f32.mrf.mxu0
      %v7243 = vpop.f32.mrf.mxu0
      %v7244 = vadd.f32 %v7148, %v7243
      %v7245 = vpop.f32.mrf.mxu0
      %7246 = vmatprep.mubr.bf16.mxu0 0
      %7247 = vmatmul.mubr.bf16.gmra.mxu0 %v7121
      %v7248 = vpop.f32.mrf.mxu0
      %v7249 = vadd.f32 %v7148, %v7248
      %v7250 = vpop.f32.mrf.mxu0
      %v7251 = vpop.f32.mrf.mxu0
      %v7252 = vadd.f32 %v7148, %v7251
      %v7253 = vpop.f32.mrf.mxu0
      %7254 = vmatprep.mubr.bf16.mxu0 0
      %7255 = vmatmul.mubr.bf16.gmra.mxu0 %v7122
      %v7256 = vpop.f32.mrf.mxu0
      %v7257 = vadd.f32 %v7148, %v7256
      %v7258 = vpop.f32.mrf.mxu0
      %v7259 = vpop.f32.mrf.mxu0
      %v7260 = vadd.f32 %v7148, %v7259
      %v7261 = vpop.f32.mrf.mxu0
      %7262 = vmatprep.mubr.bf16.mxu0 0
      %7263 = vmatmul.mubr.bf16.gmra.mxu0 %v7123
      %v7264 = vpop.f32.mrf.mxu0
      %v7265 = vadd.f32 %v7148, %v7264
      %v7266 = vpop.f32.mrf.mxu0
      %v7267 = vpop.f32.mrf.mxu0
      %v7268 = vadd.f32 %v7148, %v7267
      %v7269 = vpop.f32.mrf.mxu0
      %7270 = vmatprep.mubr.bf16.mxu0 0
      %7271 = vmatmul.mubr.bf16.gmra.mxu0 %v7124
      %v7272 = vpop.f32.mrf.mxu0
      %v7273 = vadd.f32 %v7148, %v7272
      %v7274 = vpop.f32.mrf.mxu0
      %v7275 = vpop.f32.mrf.mxu0
      %v7276 = vadd.f32 %v7148, %v7275
      %v7277 = vpop.f32.mrf.mxu0
      %7278 = vmatprep.mubr.bf16.mxu0 0
      %7279 = vmatmul.mubr.bf16.gmra.mxu0 %v7125
      %v7280 = vpop.f32.mrf.mxu0
      %v7281 = vadd.f32 %v7148, %v7280
      %v7282 = vpop.f32.mrf.mxu0
      %v7283 = vpop.f32.mrf.mxu0
      %v7284 = vadd.f32 %v7148, %v7283
      %v7285 = vpop.f32.mrf.mxu0
      %7286 = vmatprep.mubr.bf16.mxu0 0
      %7287 = vmatmul.mubr.bf16.gmra.mxu0 %v7126
      %v7288 = vpop.f32.mrf.mxu0
      %v7289 = vadd.f32 %v7148, %v7288
      %v7290 = vpop.f32.mrf.mxu0
      %v7291 = vpop.f32.mrf.mxu0
      %v7292 = vadd.f32 %v7148, %v7291
      %v7293 = vpop.f32.mrf.mxu0
      %7294 = vdwg.mxu0
      %v7295 = vmax.f32 %v7233, 0.0
      %v7296 = vmax.f32 %v7236, 0.0
      %v7297 = vmax.f32 %v7241, 0.0
      %v7298 = vmax.f32 %v7244, 0.0
      %v7299 = vmax.f32 %v7249, 0.0
      %v7300 = vmax.f32 %v7252, 0.0
      %v7301 = vmax.f32 %v7257, 0.0
      %v7302 = vmax.f32 %v7260, 0.0
      %v7303 = vmax.f32 %v7265, 0.0
      %v7304 = vmax.f32 %v7268, 0.0
      %v7305 = vmax.f32 %v7273, 0.0
      %v7306 = vmax.f32 %v7276, 0.0
      %v7307 = vmax.f32 %v7281, 0.0
      %v7308 = vmax.f32 %v7284, 0.0
      %v7309 = vmax.f32 %v7289, 0.0
      %v7310 = vmax.f32 %v7292, 0.0
      %v7311 = vpack.c.bf16 %v7296, %v7295
      %v7312 = vpack.c.bf16 %v7298, %v7297
      %v7313 = vpack.c.bf16 %v7300, %v7299
      %v7314 = vpack.c.bf16 %v7302, %v7301
      %v7315 = vpack.c.bf16 %v7304, %v7303
      %v7316 = vpack.c.bf16 %v7306, %v7305
      %v7317 = vpack.c.bf16 %v7308, %v7307
      %v7318 = vpack.c.bf16 %v7310, %v7309
      %v7327 = vunpack.c.l.b16 %v7311
      %v7328 = vunpack.c.h.b16 %v7311
      %v7329 = vunpack.c.l.b16 %v7312
      %v7330 = vunpack.c.h.b16 %v7312
      %v7331 = vunpack.c.l.b16 %v7313
      %v7332 = vunpack.c.h.b16 %v7313
      %v7333 = vunpack.c.l.b16 %v7314
      %v7334 = vunpack.c.h.b16 %v7314
      %v7335 = vunpack.c.l.b16 %v7315
      %v7336 = vunpack.c.h.b16 %v7315
      %v7337 = vunpack.c.l.b16 %v7316
      %v7338 = vunpack.c.h.b16 %v7316
      %v7339 = vunpack.c.l.b16 %v7317
      %v7340 = vunpack.c.h.b16 %v7317
      %v7341 = vunpack.c.l.b16 %v7318
      %v7342 = vunpack.c.h.b16 %v7318
      %v7343 = vpack.c.b16 %v7327, %v7327
      %v7344 = vpack.c.b16 %v7328, %v7328
      %v7345 = vpack.c.b16 %v7329, %v7329
      %v7346 = vpack.c.b16 %v7330, %v7330
      %v7347 = vpack.c.b16 %v7331, %v7331
      %v7348 = vpack.c.b16 %v7332, %v7332
      %v7349 = vpack.c.b16 %v7333, %v7333
      %v7350 = vpack.c.b16 %v7334, %v7334
      %v7351 = vpack.c.b16 %v7335, %v7335
      %v7352 = vpack.c.b16 %v7336, %v7336
      %v7353 = vpack.c.b16 %v7337, %v7337
      %v7354 = vpack.c.b16 %v7338, %v7338
      %v7355 = vpack.c.b16 %v7339, %v7339
      %v7356 = vpack.c.b16 %v7340, %v7340
      %v7357 = vpack.c.b16 %v7341, %v7341
      %v7358 = vpack.c.b16 %v7342, %v7342
      %7375 = vst.msk [vmem:[#allocation4 + $0x40] sm:$0xf] %vm5753, %v7343
      %7376 = vst.msk [vmem:[#allocation4 + $0x44] sm:$0xf] %vm5753, %v7344
      %7377 = vst.msk [vmem:[#allocation4 + $0x48] sm:$0xf] %vm5753, %v7345
      %7378 = vst.msk [vmem:[#allocation4 + $0x4c] sm:$0xf] %vm5753, %v7346
      %7379 = vst.msk [vmem:[#allocation4 + $0x50] sm:$0xf] %vm5753, %v7347
      %7380 = vst.msk [vmem:[#allocation4 + $0x54] sm:$0xf] %vm5753, %v7348
      %7381 = vst.msk [vmem:[#allocation4 + $0x58] sm:$0xf] %vm5753, %v7349
      %7382 = vst.msk [vmem:[#allocation4 + $0x5c] sm:$0xf] %vm5753, %v7350
      %7383 = vst.msk [vmem:[#allocation4 + $0x60] sm:$0xf] %vm5753, %v7351
      %7384 = vst.msk [vmem:[#allocation4 + $0x64] sm:$0xf] %vm5753, %v7352
      %7385 = vst.msk [vmem:[#allocation4 + $0x68] sm:$0xf] %vm5753, %v7353
      %7386 = vst.msk [vmem:[#allocation4 + $0x6c] sm:$0xf] %vm5753, %v7354
      %7387 = vst.msk [vmem:[#allocation4 + $0x70] sm:$0xf] %vm5753, %v7355
      %7388 = vst.msk [vmem:[#allocation4 + $0x74] sm:$0xf] %vm5753, %v7356
      %7389 = vst.msk [vmem:[#allocation4 + $0x78] sm:$0xf] %vm5753, %v7357
      %7390 = vst.msk [vmem:[#allocation4 + $0x7c] sm:$0xf] %vm5753, %v7358
      %v7391 = vld [vmem:[#allocation4] sm:$0xf]
      %v7392 = vld [vmem:[#allocation4 + $0x4] sm:$0xf]
      %v7393 = vld [vmem:[#allocation4 + $0x8] sm:$0xf]
      %v7394 = vld [vmem:[#allocation4 + $0xc] sm:$0xf]
      %v7395 = vld [vmem:[#allocation4 + $0x10] sm:$0xf]
      %v7396 = vld [vmem:[#allocation4 + $0x14] sm:$0xf]
      %v7397 = vld [vmem:[#allocation4 + $0x18] sm:$0xf]
      %v7398 = vld [vmem:[#allocation4 + $0x1c] sm:$0xf]
      %v7399 = vld [vmem:[#allocation4 + $0x20] sm:$0xf]
      %v7400 = vld [vmem:[#allocation4 + $0x24] sm:$0xf]
      %v7401 = vld [vmem:[#allocation4 + $0x28] sm:$0xf]
      %v7402 = vld [vmem:[#allocation4 + $0x2c] sm:$0xf]
      %v7403 = vld [vmem:[#allocation4 + $0x30] sm:$0xf]
      %v7404 = vld [vmem:[#allocation4 + $0x34] sm:$0xf]
      %v7405 = vld [vmem:[#allocation4 + $0x38] sm:$0xf]
      %v7406 = vld [vmem:[#allocation4 + $0x3c] sm:$0xf]
      %v7407 = vld [vmem:[#allocation4 + $0x40] sm:$0xf]
      %v7408 = vld [vmem:[#allocation4 + $0x44] sm:$0xf]
      %v7409 = vld [vmem:[#allocation4 + $0x48] sm:$0xf]
      %v7410 = vld [vmem:[#allocation4 + $0x4c] sm:$0xf]
      %v7411 = vld [vmem:[#allocation4 + $0x50] sm:$0xf]
      %v7412 = vld [vmem:[#allocation4 + $0x54] sm:$0xf]
      %v7413 = vld [vmem:[#allocation4 + $0x58] sm:$0xf]
      %v7414 = vld [vmem:[#allocation4 + $0x5c] sm:$0xf]
      %v7415 = vld [vmem:[#allocation4 + $0x60] sm:$0xf]
      %v7416 = vld [vmem:[#allocation4 + $0x64] sm:$0xf]
      %v7417 = vld [vmem:[#allocation4 + $0x68] sm:$0xf]
      %v7418 = vld [vmem:[#allocation4 + $0x6c] sm:$0xf]
      %v7419 = vld [vmem:[#allocation4 + $0x70] sm:$0xf]
      %v7420 = vld [vmem:[#allocation4 + $0x74] sm:$0xf]
      %v7421 = vld [vmem:[#allocation4 + $0x78] sm:$0xf]
      %v7422 = vld [vmem:[#allocation4 + $0x7c] sm:$0xf]
      %v7423 = vld [vmem:[%s9] sm:$0xff]
      %v7424 = vld [vmem:[%s9 + $0x8] sm:$0xff]
      %v7425 = vld [vmem:[%s9 + $0x10] sm:$0xff]
      %v7426 = vld [vmem:[%s9 + $0x18] sm:$0xff]
      %v7427 = vld [vmem:[%s9 + $0x20] sm:$0xff]
      %v7428 = vld [vmem:[%s9 + $0x28] sm:$0xff]
      %v7429 = vld [vmem:[%s9 + $0x30] sm:$0xff]
      %v7430 = vld [vmem:[%s9 + $0x38] sm:$0xff]
      %v7431 = vld [vmem:[%s9 + $0x40] sm:$0xff]
      %v7432 = vld [vmem:[%s9 + $0x48] sm:$0xff]
      %v7433 = vld [vmem:[%s9 + $0x50] sm:$0xff]
      %v7434 = vld [vmem:[%s9 + $0x58] sm:$0xff]
      %v7435 = vld [vmem:[%s9 + $0x60] sm:$0xff]
      %v7436 = vld [vmem:[%s9 + $0x68] sm:$0xff]
      %v7437 = vld [vmem:[%s9 + $0x70] sm:$0xff]
      %v7438 = vld [vmem:[%s9 + $0x78] sm:$0xff]
      %v7439 = vld [vmem:[%s9 + $0x80] sm:$0xff]
      %v7440 = vld [vmem:[%s9 + $0x88] sm:$0xff]
      %v7441 = vld [vmem:[%s9 + $0x90] sm:$0xff]
      %v7442 = vld [vmem:[%s9 + $0x98] sm:$0xff]
      %v7443 = vld [vmem:[%s9 + $0xa0] sm:$0xff]
      %v7444 = vld [vmem:[%s9 + $0xa8] sm:$0xff]
      %v7445 = vld [vmem:[%s9 + $0xb0] sm:$0xff]
      %v7446 = vld [vmem:[%s9 + $0xb8] sm:$0xff]
      %v7447 = vld [vmem:[%s9 + $0xc0] sm:$0xff]
      %v7448 = vld [vmem:[%s9 + $0xc8] sm:$0xff]
      %v7449 = vld [vmem:[%s9 + $0xd0] sm:$0xff]
      %v7450 = vld [vmem:[%s9 + $0xd8] sm:$0xff]
      %v7451 = vld [vmem:[%s9 + $0xe0] sm:$0x11]
      %v7452 = vld [vmem:[%s10] sm:$0xff]
      %v7453 = vld [vmem:[%s10 + $0x8] sm:$0xff]
      %v7454 = vld [vmem:[%s10 + $0x10] sm:$0xff]
      %v7455 = vld [vmem:[%s10 + $0x18] sm:$0xff]
      %v7456 = vld [vmem:[%s10 + $0x20] sm:$0xff]
      %v7457 = vld [vmem:[%s10 + $0x28] sm:$0xff]
      %v7458 = vld [vmem:[%s10 + $0x30] sm:$0xff]
      %v7459 = vld [vmem:[%s10 + $0x38] sm:$0xff]
      %v7460 = vld [vmem:[%s10 + $0x40] sm:$0xff]
      %v7461 = vld [vmem:[%s10 + $0x48] sm:$0xff]
      %v7462 = vld [vmem:[%s10 + $0x50] sm:$0xff]
      %v7463 = vld [vmem:[%s10 + $0x58] sm:$0xff]
      %v7464 = vld [vmem:[%s10 + $0x60] sm:$0xff]
      %v7465 = vld [vmem:[%s10 + $0x68] sm:$0xff]
      %v7466 = vld [vmem:[%s10 + $0x70] sm:$0xff]
      %v7467 = vld [vmem:[%s10 + $0x78] sm:$0xff]
      %v7468 = vld [vmem:[%s10 + $0x80] sm:$0xff]
      %v7469 = vld [vmem:[%s10 + $0x88] sm:$0xff]
      %v7470 = vld [vmem:[%s10 + $0x90] sm:$0xff]
      %v7471 = vld [vmem:[%s10 + $0x98] sm:$0xff]
      %v7472 = vld [vmem:[%s10 + $0xa0] sm:$0xff]
      %v7473 = vld [vmem:[%s10 + $0xa8] sm:$0xff]
      %v7474 = vld [vmem:[%s10 + $0xb0] sm:$0xff]
      %v7475 = vld [vmem:[%s10 + $0xb8] sm:$0xff]
      %v7476 = vld [vmem:[%s10 + $0xc0] sm:$0xff]
      %v7477 = vld [vmem:[%s10 + $0xc8] sm:$0xff]
      %v7478 = vld [vmem:[%s10 + $0xd0] sm:$0xff]
      %v7479 = vld [vmem:[%s10 + $0xd8] sm:$0xff]
      %v7480 = vld [vmem:[%s10 + $0xe0] sm:$0x11]
      %v7510 = vunpack.c.l.b16 %v7452
      %v7511 = vunpack.c.h.b16 %v7452
      %v7512 = vunpack.c.l.b16 %v7453
      %v7513 = vunpack.c.h.b16 %v7453
      %v7514 = vunpack.c.l.b16 %v7454
      %v7515 = vunpack.c.h.b16 %v7454
      %v7516 = vunpack.c.l.b16 %v7455
      %v7517 = vunpack.c.h.b16 %v7455
      %v7518 = vunpack.c.l.b16 %v7456
      %v7519 = vunpack.c.h.b16 %v7456
      %v7520 = vunpack.c.l.b16 %v7457
      %v7521 = vunpack.c.h.b16 %v7457
      %v7522 = vunpack.c.l.b16 %v7458
      %v7523 = vunpack.c.h.b16 %v7458
      %v7524 = vunpack.c.l.b16 %v7459
      %v7525 = vunpack.c.h.b16 %v7459
      %v7526 = vunpack.c.l.b16 %v7460
      %v7527 = vunpack.c.h.b16 %v7460
      %v7528 = vunpack.c.l.b16 %v7461
      %v7529 = vunpack.c.h.b16 %v7461
      %v7530 = vunpack.c.l.b16 %v7462
      %v7531 = vunpack.c.h.b16 %v7462
      %v7532 = vunpack.c.l.b16 %v7463
      %v7533 = vunpack.c.h.b16 %v7463
      %v7534 = vunpack.c.l.b16 %v7464
      %v7535 = vunpack.c.h.b16 %v7464
      %v7536 = vunpack.c.l.b16 %v7465
      %v7537 = vunpack.c.h.b16 %v7465
      %v7538 = vunpack.c.l.b16 %v7466
      %v7539 = vunpack.c.h.b16 %v7466
      %v7540 = vunpack.c.l.b16 %v7467
      %v7541 = vunpack.c.h.b16 %v7467
      %v7542 = vunpack.c.l.b16 %v7468
      %v7543 = vunpack.c.h.b16 %v7468
      %v7544 = vunpack.c.l.b16 %v7469
      %v7545 = vunpack.c.h.b16 %v7469
      %v7546 = vunpack.c.l.b16 %v7470
      %v7547 = vunpack.c.h.b16 %v7470
      %v7548 = vunpack.c.l.b16 %v7471
      %v7549 = vunpack.c.h.b16 %v7471
      %v7550 = vunpack.c.l.b16 %v7472
      %v7551 = vunpack.c.h.b16 %v7472
      %v7552 = vunpack.c.l.b16 %v7473
      %v7553 = vunpack.c.h.b16 %v7473
      %v7554 = vunpack.c.l.b16 %v7474
      %v7555 = vunpack.c.h.b16 %v7474
      %v7556 = vunpack.c.l.b16 %v7475
      %v7557 = vunpack.c.h.b16 %v7475
      %v7558 = vunpack.c.l.b16 %v7476
      %v7559 = vunpack.c.h.b16 %v7476
      %v7560 = vunpack.c.l.b16 %v7477
      %v7561 = vunpack.c.h.b16 %v7477
      %v7562 = vunpack.c.l.b16 %v7478
      %v7563 = vunpack.c.h.b16 %v7478
      %v7564 = vunpack.c.l.b16 %v7479
      %v7565 = vunpack.c.h.b16 %v7479
      %v7566 = vunpack.c.l.b16 %v7480
      %v7567 = vunpack.c.h.b16 %v7480
      %v7568 = vpack.c.b16 %v7512, %v7510
      %v7569 = vpack.c.b16 %v7513, %v7511
      %v7570 = vpack.c.b16 %v7516, %v7514
      %v7571 = vpack.c.b16 %v7517, %v7515
      %v7572 = vpack.c.b16 %v7520, %v7518
      %v7573 = vpack.c.b16 %v7521, %v7519
      %v7574 = vpack.c.b16 %v7524, %v7522
      %v7575 = vpack.c.b16 %v7525, %v7523
      %v7576 = vpack.c.b16 %v7528, %v7526
      %v7577 = vpack.c.b16 %v7529, %v7527
      %v7578 = vpack.c.b16 %v7532, %v7530
      %v7579 = vpack.c.b16 %v7533, %v7531
      %v7580 = vpack.c.b16 %v7536, %v7534
      %v7581 = vpack.c.b16 %v7537, %v7535
      %v7582 = vpack.c.b16 %v7540, %v7538
      %v7583 = vpack.c.b16 %v7541, %v7539
      %v7584 = vpack.c.b16 %v7544, %v7542
      %v7585 = vpack.c.b16 %v7545, %v7543
      %v7586 = vpack.c.b16 %v7548, %v7546
      %v7587 = vpack.c.b16 %v7549, %v7547
      %v7588 = vpack.c.b16 %v7552, %v7550
      %v7589 = vpack.c.b16 %v7553, %v7551
      %v7590 = vpack.c.b16 %v7556, %v7554
      %v7591 = vpack.c.b16 %v7557, %v7555
      %v7592 = vpack.c.b16 %v7560, %v7558
      %v7593 = vpack.c.b16 %v7561, %v7559
      %v7594 = vpack.c.b16 %v7564, %v7562
      %v7595 = vpack.c.b16 %v7565, %v7563
      %v7596 = vpack.c.b16 %v7566, %v7566
      %v7597 = vpack.c.b16 %v7567, %v7567
      %v7660 = vunpack.c.l.b16 %v7391
      %v7661 = vunpack.c.l.b16 %v7392
      %v7662 = vunpack.c.l.b16 %v7393
      %v7663 = vunpack.c.l.b16 %v7394
      %v7664 = vunpack.c.l.b16 %v7395
      %v7665 = vunpack.c.l.b16 %v7396
      %v7666 = vunpack.c.l.b16 %v7397
      %v7667 = vunpack.c.l.b16 %v7398
      %v7668 = vunpack.c.l.b16 %v7399
      %v7669 = vunpack.c.l.b16 %v7400
      %v7670 = vunpack.c.l.b16 %v7401
      %v7671 = vunpack.c.l.b16 %v7402
      %v7672 = vunpack.c.l.b16 %v7403
      %v7673 = vunpack.c.l.b16 %v7404
      %v7674 = vunpack.c.l.b16 %v7405
      %v7675 = vunpack.c.l.b16 %v7406
      %v7676 = vunpack.c.l.b16 %v7407
      %v7677 = vunpack.c.l.b16 %v7408
      %v7678 = vunpack.c.l.b16 %v7409
      %v7679 = vunpack.c.l.b16 %v7410
      %v7680 = vunpack.c.l.b16 %v7411
      %v7681 = vunpack.c.l.b16 %v7412
      %v7682 = vunpack.c.l.b16 %v7413
      %v7683 = vunpack.c.l.b16 %v7414
      %v7684 = vunpack.c.l.b16 %v7415
      %v7685 = vunpack.c.l.b16 %v7416
      %v7686 = vunpack.c.l.b16 %v7417
      %v7687 = vunpack.c.l.b16 %v7418
      %v7688 = vunpack.c.l.b16 %v7419
      %v7689 = vunpack.c.l.b16 %v7420
      %v7690 = vunpack.c.l.b16 %v7421
      %v7691 = vunpack.c.l.b16 %v7422
      %v7692 = vpack.c.b16 %v7661, %v7660
      %v7693 = vpack.c.b16 %v7663, %v7662
      %v7694 = vpack.c.b16 %v7665, %v7664
      %v7695 = vpack.c.b16 %v7667, %v7666
      %v7696 = vpack.c.b16 %v7669, %v7668
      %v7697 = vpack.c.b16 %v7671, %v7670
      %v7698 = vpack.c.b16 %v7673, %v7672
      %v7699 = vpack.c.b16 %v7675, %v7674
      %v7700 = vpack.c.b16 %v7677, %v7676
      %v7701 = vpack.c.b16 %v7679, %v7678
      %v7702 = vpack.c.b16 %v7681, %v7680
      %v7703 = vpack.c.b16 %v7683, %v7682
      %v7704 = vpack.c.b16 %v7685, %v7684
      %v7705 = vpack.c.b16 %v7687, %v7686
      %v7706 = vpack.c.b16 %v7689, %v7688
      %v7707 = vpack.c.b16 %v7691, %v7690
      %7708 = vrot.lane.b32.xlu0 %v7692, 127
      %v7709 = vpop.permute.xlu0 %7708
      %7710 = vrot.lane.b32.xlu0 %v7693, 127
      %v7711 = vpop.permute.xlu0 %7710
      %7712 = vrot.lane.b32.xlu0 %v7694, 127
      %v7713 = vpop.permute.xlu0 %7712
      %7714 = vrot.lane.b32.xlu0 %v7695, 127
      %v7715 = vpop.permute.xlu0 %7714
      %7716 = vrot.lane.b32.xlu0 %v7696, 127
      %v7717 = vpop.permute.xlu0 %7716
      %7718 = vrot.lane.b32.xlu0 %v7697, 127
      %v7719 = vpop.permute.xlu0 %7718
      %7720 = vrot.lane.b32.xlu0 %v7698, 127
      %v7721 = vpop.permute.xlu0 %7720
      %7722 = vrot.lane.b32.xlu0 %v7699, 127
      %v7723 = vpop.permute.xlu0 %7722
      %7724 = vrot.lane.b32.xlu0 %v7700, 127
      %v7725 = vpop.permute.xlu0 %7724
      %7726 = vrot.lane.b32.xlu0 %v7701, 127
      %v7727 = vpop.permute.xlu0 %7726
      %7728 = vrot.lane.b32.xlu0 %v7702, 127
      %v7729 = vpop.permute.xlu0 %7728
      %7730 = vrot.lane.b32.xlu0 %v7703, 127
      %v7731 = vpop.permute.xlu0 %7730
      %7732 = vrot.lane.b32.xlu0 %v7704, 127
      %v7733 = vpop.permute.xlu0 %7732
      %7734 = vrot.lane.b32.xlu0 %v7705, 127
      %v7735 = vpop.permute.xlu0 %7734
      %7736 = vrot.lane.b32.xlu0 %v7706, 127
      %v7737 = vpop.permute.xlu0 %7736
      %7738 = vrot.lane.b32.xlu0 %v7707, 127
      %v7739 = vpop.permute.xlu0 %7738
      %7756 = vmatprep.subr.bf16.mxu0 0
      %7757 = vmatpush1.bf16.msra.mxu0 %v7723
      %7758 = vmatprep.subr.bf16.mxu0 0
      %7759 = vmatpush1.bf16.msra.mxu0 %v7721
      %7760 = vmatprep.subr.bf16.mxu0 0
      %7761 = vmatpush1.bf16.msra.mxu0 %v7719
      %7762 = vmatprep.subr.bf16.mxu0 0
      %7763 = vmatpush1.bf16.msra.mxu0 %v7717
      %7764 = vmatprep.subr.bf16.mxu0 0
      %7765 = vmatpush1.bf16.msra.mxu0 %v7715
      %7766 = vmatprep.subr.bf16.mxu0 0
      %7767 = vmatpush1.bf16.msra.mxu0 %v7713
      %7768 = vmatprep.subr.bf16.mxu0 0
      %7769 = vmatpush1.bf16.msra.mxu0 %v7711
      %7770 = vmatprep.subr.bf16.mxu0 0
      %7771 = vmatpush1.bf16.msra.mxu0 %v7709
      %7772 = vmatprep.subr.bf16.mxu0 0
      %7773 = vmatpush2.bf16.msra.mxu0 %v7739
      %7774 = vmatprep.subr.bf16.mxu0 0
      %7775 = vmatpush2.bf16.msra.mxu0 %v7737
      %7776 = vmatprep.subr.bf16.mxu0 0
      %7777 = vmatpush2.bf16.msra.mxu0 %v7735
      %7778 = vmatprep.subr.bf16.mxu0 0
      %7779 = vmatpush2.bf16.msra.mxu0 %v7733
      %7780 = vmatprep.subr.bf16.mxu0 0
      %7781 = vmatpush2.bf16.msra.mxu0 %v7731
      %7782 = vmatprep.subr.bf16.mxu0 0
      %7783 = vmatpush2.bf16.msra.mxu0 %v7729
      %7784 = vmatprep.subr.bf16.mxu0 0
      %7785 = vmatpush2.bf16.msra.mxu0 %v7727
      %7786 = vmatprep.subr.bf16.mxu0 0
      %7787 = vmatpush2.bf16.msra.mxu0 %v7725
      %7788 = vmatprep.mubr.bf16.mxu0 %v7569
      %7789 = vmatmul.mubr.bf16.gmra.mxu0 %v7568
      %v7790 = vpop.f32.mrf.mxu0
      %v7791 = vadd.f32 0.0, %v7790
      %v7792 = vpop.f32.mrf.mxu0
      %v7793 = vpop.f32.mrf.mxu0
      %v7794 = vadd.f32 0.0, %v7793
      %v7795 = vpop.f32.mrf.mxu0
      %7796 = vmatprep.mubr.bf16.mxu0 %v7571
      %7797 = vmatmul.mubr.bf16.gmra.mxu0 %v7570
      %v7798 = vpop.f32.mrf.mxu0
      %v7799 = vadd.f32 0.0, %v7798
      %v7800 = vpop.f32.mrf.mxu0
      %v7801 = vpop.f32.mrf.mxu0
      %v7802 = vadd.f32 0.0, %v7801
      %v7803 = vpop.f32.mrf.mxu0
      %7804 = vmatprep.mubr.bf16.mxu0 %v7573
      %7805 = vmatmul.mubr.bf16.gmra.mxu0 %v7572
      %v7806 = vpop.f32.mrf.mxu0
      %v7807 = vadd.f32 0.0, %v7806
      %v7808 = vpop.f32.mrf.mxu0
      %v7809 = vpop.f32.mrf.mxu0
      %v7810 = vadd.f32 0.0, %v7809
      %v7811 = vpop.f32.mrf.mxu0
      %7812 = vmatprep.mubr.bf16.mxu0 %v7575
      %7813 = vmatmul.mubr.bf16.gmra.mxu0 %v7574
      %v7814 = vpop.f32.mrf.mxu0
      %v7815 = vadd.f32 0.0, %v7814
      %v7816 = vpop.f32.mrf.mxu0
      %v7817 = vpop.f32.mrf.mxu0
      %v7818 = vadd.f32 0.0, %v7817
      %v7819 = vpop.f32.mrf.mxu0
      %7820 = vmatprep.mubr.bf16.mxu0 %v7577
      %7821 = vmatmul.mubr.bf16.gmra.mxu0 %v7576
      %v7822 = vpop.f32.mrf.mxu0
      %v7823 = vadd.f32 0.0, %v7822
      %v7824 = vpop.f32.mrf.mxu0
      %v7825 = vpop.f32.mrf.mxu0
      %v7826 = vadd.f32 0.0, %v7825
      %v7827 = vpop.f32.mrf.mxu0
      %7828 = vmatprep.mubr.bf16.mxu0 %v7579
      %7829 = vmatmul.mubr.bf16.gmra.mxu0 %v7578
      %v7830 = vpop.f32.mrf.mxu0
      %v7831 = vadd.f32 0.0, %v7830
      %v7832 = vpop.f32.mrf.mxu0
      %v7833 = vpop.f32.mrf.mxu0
      %v7834 = vadd.f32 0.0, %v7833
      %v7835 = vpop.f32.mrf.mxu0
      %7836 = vmatprep.mubr.bf16.mxu0 %v7581
      %7837 = vmatmul.mubr.bf16.gmra.mxu0 %v7580
      %v7838 = vpop.f32.mrf.mxu0
      %v7839 = vadd.f32 0.0, %v7838
      %v7840 = vpop.f32.mrf.mxu0
      %v7841 = vpop.f32.mrf.mxu0
      %v7842 = vadd.f32 0.0, %v7841
      %v7843 = vpop.f32.mrf.mxu0
      %7844 = vmatprep.mubr.bf16.mxu0 %v7583
      %7845 = vmatmul.mubr.bf16.gmra.mxu0 %v7582
      %v7846 = vpop.f32.mrf.mxu0
      %v7847 = vadd.f32 0.0, %v7846
      %v7848 = vpop.f32.mrf.mxu0
      %v7849 = vpop.f32.mrf.mxu0
      %v7850 = vadd.f32 0.0, %v7849
      %v7851 = vpop.f32.mrf.mxu0
      %7852 = vmatprep.mubr.bf16.mxu0 %v7585
      %7853 = vmatmul.mubr.bf16.gmra.mxu0 %v7584
      %v7854 = vpop.f32.mrf.mxu0
      %v7855 = vadd.f32 0.0, %v7854
      %v7856 = vpop.f32.mrf.mxu0
      %v7857 = vpop.f32.mrf.mxu0
      %v7858 = vadd.f32 0.0, %v7857
      %v7859 = vpop.f32.mrf.mxu0
      %7860 = vmatprep.mubr.bf16.mxu0 %v7587
      %7861 = vmatmul.mubr.bf16.gmra.mxu0 %v7586
      %v7862 = vpop.f32.mrf.mxu0
      %v7863 = vadd.f32 0.0, %v7862
      %v7864 = vpop.f32.mrf.mxu0
      %v7865 = vpop.f32.mrf.mxu0
      %v7866 = vadd.f32 0.0, %v7865
      %v7867 = vpop.f32.mrf.mxu0
      %7868 = vmatprep.mubr.bf16.mxu0 %v7589
      %7869 = vmatmul.mubr.bf16.gmra.mxu0 %v7588
      %v7870 = vpop.f32.mrf.mxu0
      %v7871 = vadd.f32 0.0, %v7870
      %v7872 = vpop.f32.mrf.mxu0
      %v7873 = vpop.f32.mrf.mxu0
      %v7874 = vadd.f32 0.0, %v7873
      %v7875 = vpop.f32.mrf.mxu0
      %7876 = vmatprep.mubr.bf16.mxu0 %v7591
      %7877 = vmatmul.mubr.bf16.gmra.mxu0 %v7590
      %v7878 = vpop.f32.mrf.mxu0
      %v7879 = vadd.f32 0.0, %v7878
      %v7880 = vpop.f32.mrf.mxu0
      %v7881 = vpop.f32.mrf.mxu0
      %v7882 = vadd.f32 0.0, %v7881
      %v7883 = vpop.f32.mrf.mxu0
      %7884 = vmatprep.mubr.bf16.mxu0 %v7593
      %7885 = vmatmul.mubr.bf16.gmra.mxu0 %v7592
      %v7886 = vpop.f32.mrf.mxu0
      %v7887 = vadd.f32 0.0, %v7886
      %v7888 = vpop.f32.mrf.mxu0
      %v7889 = vpop.f32.mrf.mxu0
      %v7890 = vadd.f32 0.0, %v7889
      %v7891 = vpop.f32.mrf.mxu0
      %7892 = vmatprep.mubr.bf16.mxu0 %v7595
      %7893 = vmatmul.mubr.bf16.gmra.mxu0 %v7594
      %v7894 = vpop.f32.mrf.mxu0
      %v7895 = vadd.f32 0.0, %v7894
      %v7896 = vpop.f32.mrf.mxu0
      %v7897 = vpop.f32.mrf.mxu0
      %v7898 = vadd.f32 0.0, %v7897
      %v7899 = vpop.f32.mrf.mxu0
      %7900 = vmatprep.mubr.bf16.mxu0 %v7597
      %7901 = vmatmul.mubr.bf16.gmra.mxu0 %v7596
      %v7902 = vpop.f32.mrf.mxu0
      %v7903 = vadd.f32 0.0, %v7902
      %v7904 = vpop.f32.mrf.mxu0
      %v7905 = vpop.f32.mrf.mxu0
      %v7906 = vpop.f32.mrf.mxu0
      %7907 = vdwg.mxu0
      %v7937 = vunpack.c.l.b16 %v7423
      %v7938 = vunpack.c.h.b16 %v7423
      %v7939 = vunpack.c.l.b16 %v7424
      %v7940 = vunpack.c.h.b16 %v7424
      %v7941 = vunpack.c.l.b16 %v7425
      %v7942 = vunpack.c.h.b16 %v7425
      %v7943 = vunpack.c.l.b16 %v7426
      %v7944 = vunpack.c.h.b16 %v7426
      %v7945 = vunpack.c.l.b16 %v7427
      %v7946 = vunpack.c.h.b16 %v7427
      %v7947 = vunpack.c.l.b16 %v7428
      %v7948 = vunpack.c.h.b16 %v7428
      %v7949 = vunpack.c.l.b16 %v7429
      %v7950 = vunpack.c.h.b16 %v7429
      %v7951 = vunpack.c.l.b16 %v7430
      %v7952 = vunpack.c.h.b16 %v7430
      %v7953 = vunpack.c.l.b16 %v7431
      %v7954 = vunpack.c.h.b16 %v7431
      %v7955 = vunpack.c.l.b16 %v7432
      %v7956 = vunpack.c.h.b16 %v7432
      %v7957 = vunpack.c.l.b16 %v7433
      %v7958 = vunpack.c.h.b16 %v7433
      %v7959 = vunpack.c.l.b16 %v7434
      %v7960 = vunpack.c.h.b16 %v7434
      %v7961 = vunpack.c.l.b16 %v7435
      %v7962 = vunpack.c.h.b16 %v7435
      %v7963 = vunpack.c.l.b16 %v7436
      %v7964 = vunpack.c.h.b16 %v7436
      %v7965 = vunpack.c.l.b16 %v7437
      %v7966 = vunpack.c.h.b16 %v7437
      %v7967 = vunpack.c.l.b16 %v7438
      %v7968 = vunpack.c.h.b16 %v7438
      %v7969 = vunpack.c.l.b16 %v7439
      %v7970 = vunpack.c.h.b16 %v7439
      %v7971 = vunpack.c.l.b16 %v7440
      %v7972 = vunpack.c.h.b16 %v7440
      %v7973 = vunpack.c.l.b16 %v7441
      %v7974 = vunpack.c.h.b16 %v7441
      %v7975 = vunpack.c.l.b16 %v7442
      %v7976 = vunpack.c.h.b16 %v7442
      %v7977 = vunpack.c.l.b16 %v7443
      %v7978 = vunpack.c.h.b16 %v7443
      %v7979 = vunpack.c.l.b16 %v7444
      %v7980 = vunpack.c.h.b16 %v7444
      %v7981 = vunpack.c.l.b16 %v7445
      %v7982 = vunpack.c.h.b16 %v7445
      %v7983 = vunpack.c.l.b16 %v7446
      %v7984 = vunpack.c.h.b16 %v7446
      %v7985 = vunpack.c.l.b16 %v7447
      %v7986 = vunpack.c.h.b16 %v7447
      %v7987 = vunpack.c.l.b16 %v7448
      %v7988 = vunpack.c.h.b16 %v7448
      %v7989 = vunpack.c.l.b16 %v7449
      %v7990 = vunpack.c.h.b16 %v7449
      %v7991 = vunpack.c.l.b16 %v7450
      %v7992 = vunpack.c.h.b16 %v7450
      %v7993 = vunpack.c.l.b16 %v7451
      %v7994 = vunpack.c.h.b16 %v7451
      %v7995 = vpack.c.b16 %v7939, %v7937
      %v7996 = vpack.c.b16 %v7940, %v7938
      %v7997 = vpack.c.b16 %v7943, %v7941
      %v7998 = vpack.c.b16 %v7944, %v7942
      %v7999 = vpack.c.b16 %v7947, %v7945
      %v8000 = vpack.c.b16 %v7948, %v7946
      %v8001 = vpack.c.b16 %v7951, %v7949
      %v8002 = vpack.c.b16 %v7952, %v7950
      %v8003 = vpack.c.b16 %v7955, %v7953
      %v8004 = vpack.c.b16 %v7956, %v7954
      %v8005 = vpack.c.b16 %v7959, %v7957
      %v8006 = vpack.c.b16 %v7960, %v7958
      %v8007 = vpack.c.b16 %v7963, %v7961
      %v8008 = vpack.c.b16 %v7964, %v7962
      %v8009 = vpack.c.b16 %v7967, %v7965
      %v8010 = vpack.c.b16 %v7968, %v7966
      %v8011 = vpack.c.b16 %v7971, %v7969
      %v8012 = vpack.c.b16 %v7972, %v7970
      %v8013 = vpack.c.b16 %v7975, %v7973
      %v8014 = vpack.c.b16 %v7976, %v7974
      %v8015 = vpack.c.b16 %v7979, %v7977
      %v8016 = vpack.c.b16 %v7980, %v7978
      %v8017 = vpack.c.b16 %v7983, %v7981
      %v8018 = vpack.c.b16 %v7984, %v7982
      %v8019 = vpack.c.b16 %v7987, %v7985
      %v8020 = vpack.c.b16 %v7988, %v7986
      %v8021 = vpack.c.b16 %v7991, %v7989
      %v8022 = vpack.c.b16 %v7992, %v7990
      %v8023 = vpack.c.b16 %v7993, %v7993
      %v8024 = vpack.c.b16 %v7994, %v7994
      %8071 = vmatprep.subr.bf16.mxu0 0
      %8072 = vmatpush1.bf16.msra.mxu0 %v7699
      %8073 = vmatprep.subr.bf16.mxu0 0
      %8074 = vmatpush1.bf16.msra.mxu0 %v7698
      %8075 = vmatprep.subr.bf16.mxu0 0
      %8076 = vmatpush1.bf16.msra.mxu0 %v7697
      %8077 = vmatprep.subr.bf16.mxu0 0
      %8078 = vmatpush1.bf16.msra.mxu0 %v7696
      %8079 = vmatprep.subr.bf16.mxu0 0
      %8080 = vmatpush1.bf16.msra.mxu0 %v7695
      %8081 = vmatprep.subr.bf16.mxu0 0
      %8082 = vmatpush1.bf16.msra.mxu0 %v7694
      %8083 = vmatprep.subr.bf16.mxu0 0
      %8084 = vmatpush1.bf16.msra.mxu0 %v7693
      %8085 = vmatprep.subr.bf16.mxu0 0
      %8086 = vmatpush1.bf16.msra.mxu0 %v7692
      %8087 = vmatprep.subr.bf16.mxu0 0
      %8088 = vmatpush2.bf16.msra.mxu0 %v7707
      %8089 = vmatprep.subr.bf16.mxu0 0
      %8090 = vmatpush2.bf16.msra.mxu0 %v7706
      %8091 = vmatprep.subr.bf16.mxu0 0
      %8092 = vmatpush2.bf16.msra.mxu0 %v7705
      %8093 = vmatprep.subr.bf16.mxu0 0
      %8094 = vmatpush2.bf16.msra.mxu0 %v7704
      %8095 = vmatprep.subr.bf16.mxu0 0
      %8096 = vmatpush2.bf16.msra.mxu0 %v7703
      %8097 = vmatprep.subr.bf16.mxu0 0
      %8098 = vmatpush2.bf16.msra.mxu0 %v7702
      %8099 = vmatprep.subr.bf16.mxu0 0
      %8100 = vmatpush2.bf16.msra.mxu0 %v7701
      %8101 = vmatprep.subr.bf16.mxu0 0
      %8102 = vmatpush2.bf16.msra.mxu0 %v7700
      %8103 = vmatprep.mubr.bf16.mxu0 %v7996
      %8104 = vmatmul.mubr.bf16.gmra.mxu0 %v7995
      %v8105 = vpop.f32.mrf.mxu0
      %v8106 = vadd.f32 %v7791, %v8105
      %v8107 = vpop.f32.mrf.mxu0
      %v8108 = vpop.f32.mrf.mxu0
      %v8109 = vadd.f32 %v7794, %v8108
      %v8110 = vpop.f32.mrf.mxu0
      %8111 = vmatprep.mubr.bf16.mxu0 %v7998
      %8112 = vmatmul.mubr.bf16.gmra.mxu0 %v7997
      %v8113 = vpop.f32.mrf.mxu0
      %v8114 = vadd.f32 %v7799, %v8113
      %v8115 = vpop.f32.mrf.mxu0
      %v8116 = vpop.f32.mrf.mxu0
      %v8117 = vadd.f32 %v7802, %v8116
      %v8118 = vpop.f32.mrf.mxu0
      %8119 = vmatprep.mubr.bf16.mxu0 %v8000
      %8120 = vmatmul.mubr.bf16.gmra.mxu0 %v7999
      %v8121 = vpop.f32.mrf.mxu0
      %v8122 = vadd.f32 %v7807, %v8121
      %v8123 = vpop.f32.mrf.mxu0
      %v8124 = vpop.f32.mrf.mxu0
      %v8125 = vadd.f32 %v7810, %v8124
      %v8126 = vpop.f32.mrf.mxu0
      %8127 = vmatprep.mubr.bf16.mxu0 %v8002
      %8128 = vmatmul.mubr.bf16.gmra.mxu0 %v8001
      %v8129 = vpop.f32.mrf.mxu0
      %v8130 = vadd.f32 %v7815, %v8129
      %v8131 = vpop.f32.mrf.mxu0
      %v8132 = vpop.f32.mrf.mxu0
      %v8133 = vadd.f32 %v7818, %v8132
      %v8134 = vpop.f32.mrf.mxu0
      %8135 = vmatprep.mubr.bf16.mxu0 %v8004
      %8136 = vmatmul.mubr.bf16.gmra.mxu0 %v8003
      %v8137 = vpop.f32.mrf.mxu0
      %v8138 = vadd.f32 %v7823, %v8137
      %v8139 = vpop.f32.mrf.mxu0
      %v8140 = vpop.f32.mrf.mxu0
      %v8141 = vadd.f32 %v7826, %v8140
      %v8142 = vpop.f32.mrf.mxu0
      %8143 = vmatprep.mubr.bf16.mxu0 %v8006
      %8144 = vmatmul.mubr.bf16.gmra.mxu0 %v8005
      %v8145 = vpop.f32.mrf.mxu0
      %v8146 = vadd.f32 %v7831, %v8145
      %v8147 = vpop.f32.mrf.mxu0
      %v8148 = vpop.f32.mrf.mxu0
      %v8149 = vadd.f32 %v7834, %v8148
      %v8150 = vpop.f32.mrf.mxu0
      %8151 = vmatprep.mubr.bf16.mxu0 %v8008
      %8152 = vmatmul.mubr.bf16.gmra.mxu0 %v8007
      %v8153 = vpop.f32.mrf.mxu0
      %v8154 = vadd.f32 %v7839, %v8153
      %v8155 = vpop.f32.mrf.mxu0
      %v8156 = vpop.f32.mrf.mxu0
      %v8157 = vadd.f32 %v7842, %v8156
      %v8158 = vpop.f32.mrf.mxu0
      %8159 = vmatprep.mubr.bf16.mxu0 %v8010
      %8160 = vmatmul.mubr.bf16.gmra.mxu0 %v8009
      %v8161 = vpop.f32.mrf.mxu0
      %v8162 = vadd.f32 %v7847, %v8161
      %v8163 = vpop.f32.mrf.mxu0
      %v8164 = vpop.f32.mrf.mxu0
      %v8165 = vadd.f32 %v7850, %v8164
      %v8166 = vpop.f32.mrf.mxu0
      %8167 = vmatprep.mubr.bf16.mxu0 %v8012
      %8168 = vmatmul.mubr.bf16.gmra.mxu0 %v8011
      %v8169 = vpop.f32.mrf.mxu0
      %v8170 = vadd.f32 %v7855, %v8169
      %v8171 = vpop.f32.mrf.mxu0
      %v8172 = vpop.f32.mrf.mxu0
      %v8173 = vadd.f32 %v7858, %v8172
      %v8174 = vpop.f32.mrf.mxu0
      %8175 = vmatprep.mubr.bf16.mxu0 %v8014
      %8176 = vmatmul.mubr.bf16.gmra.mxu0 %v8013
      %v8177 = vpop.f32.mrf.mxu0
      %v8178 = vadd.f32 %v7863, %v8177
      %v8179 = vpop.f32.mrf.mxu0
      %v8180 = vpop.f32.mrf.mxu0
      %v8181 = vadd.f32 %v7866, %v8180
      %v8182 = vpop.f32.mrf.mxu0
      %8183 = vmatprep.mubr.bf16.mxu0 %v8016
      %8184 = vmatmul.mubr.bf16.gmra.mxu0 %v8015
      %v8185 = vpop.f32.mrf.mxu0
      %v8186 = vadd.f32 %v7871, %v8185
      %v8187 = vpop.f32.mrf.mxu0
      %v8188 = vpop.f32.mrf.mxu0
      %v8189 = vadd.f32 %v7874, %v8188
      %v8190 = vpop.f32.mrf.mxu0
      %8191 = vmatprep.mubr.bf16.mxu0 %v8018
      %8192 = vmatmul.mubr.bf16.gmra.mxu0 %v8017
      %v8193 = vpop.f32.mrf.mxu0
      %v8194 = vadd.f32 %v7879, %v8193
      %v8195 = vpop.f32.mrf.mxu0
      %v8196 = vpop.f32.mrf.mxu0
      %v8197 = vadd.f32 %v7882, %v8196
      %v8198 = vpop.f32.mrf.mxu0
      %8199 = vmatprep.mubr.bf16.mxu0 %v8020
      %8200 = vmatmul.mubr.bf16.gmra.mxu0 %v8019
      %v8201 = vpop.f32.mrf.mxu0
      %v8202 = vadd.f32 %v7887, %v8201
      %v8203 = vpop.f32.mrf.mxu0
      %v8204 = vpop.f32.mrf.mxu0
      %v8205 = vadd.f32 %v7890, %v8204
      %v8206 = vpop.f32.mrf.mxu0
      %8207 = vmatprep.mubr.bf16.mxu0 %v8022
      %8208 = vmatmul.mubr.bf16.gmra.mxu0 %v8021
      %v8209 = vpop.f32.mrf.mxu0
      %v8210 = vadd.f32 %v7895, %v8209
      %v8211 = vpop.f32.mrf.mxu0
      %v8212 = vpop.f32.mrf.mxu0
      %v8213 = vadd.f32 %v7898, %v8212
      %v8214 = vpop.f32.mrf.mxu0
      %8215 = vmatprep.mubr.bf16.mxu0 %v8024
      %8216 = vmatmul.mubr.bf16.gmra.mxu0 %v8023
      %v8217 = vpop.f32.mrf.mxu0
      %v8218 = vadd.f32 %v7903, %v8217
      %v8219 = vpop.f32.mrf.mxu0
      %v8220 = vpop.f32.mrf.mxu0
      %v8221 = vpop.f32.mrf.mxu0
      %8222 = vdwg.mxu0
      %v8223 = vld [vmem:[%s11] sm:$0xff]
      %v8224 = vld [vmem:[%s11 + $0x8] sm:$0xff]
      %v8225 = vld [vmem:[%s11 + $0x10] sm:$0xff]
      %v8226 = vld [vmem:[%s11 + $0x18] sm:$0xff]
      %v8227 = vld [vmem:[%s11 + $0x20] sm:$0xff]
      %v8228 = vld [vmem:[%s11 + $0x28] sm:$0xff]
      %v8229 = vld [vmem:[%s11 + $0x30] sm:$0xff]
      %v8230 = vld [vmem:[%s11 + $0x38] sm:$0xff]
      %v8231 = vld [vmem:[%s11 + $0x40] sm:$0xff]
      %v8232 = vld [vmem:[%s11 + $0x48] sm:$0xff]
      %v8233 = vld [vmem:[%s11 + $0x50] sm:$0xff]
      %v8234 = vld [vmem:[%s11 + $0x58] sm:$0xff]
      %v8235 = vld [vmem:[%s11 + $0x60] sm:$0xff]
      %v8236 = vld [vmem:[%s11 + $0x68] sm:$0xff]
      %v8237 = vld [vmem:[%s11 + $0x70] sm:$0xff]
      %v8238 = vld [vmem:[%s11 + $0x78] sm:$0xff]
      %v8239 = vld [vmem:[%s11 + $0x80] sm:$0xff]
      %v8240 = vld [vmem:[%s11 + $0x88] sm:$0xff]
      %v8241 = vld [vmem:[%s11 + $0x90] sm:$0xff]
      %v8242 = vld [vmem:[%s11 + $0x98] sm:$0xff]
      %v8243 = vld [vmem:[%s11 + $0xa0] sm:$0xff]
      %v8244 = vld [vmem:[%s11 + $0xa8] sm:$0xff]
      %v8245 = vld [vmem:[%s11 + $0xb0] sm:$0xff]
      %v8246 = vld [vmem:[%s11 + $0xb8] sm:$0xff]
      %v8247 = vld [vmem:[%s11 + $0xc0] sm:$0xff]
      %v8248 = vld [vmem:[%s11 + $0xc8] sm:$0xff]
      %v8249 = vld [vmem:[%s11 + $0xd0] sm:$0xff]
      %v8250 = vld [vmem:[%s11 + $0xd8] sm:$0xff]
      %v8251 = vld [vmem:[%s11 + $0xe0] sm:$0x1]
      %v8252 = vadd.f32 %v8106, %v8223
      %v8253 = vadd.f32 %v8109, %v8224
      %v8254 = vadd.f32 %v8114, %v8225
      %v8255 = vadd.f32 %v8117, %v8226
      %v8256 = vadd.f32 %v8122, %v8227
      %v8257 = vadd.f32 %v8125, %v8228
      %v8258 = vadd.f32 %v8130, %v8229
      %v8259 = vadd.f32 %v8133, %v8230
      %v8260 = vadd.f32 %v8138, %v8231
      %v8261 = vadd.f32 %v8141, %v8232
      %v8262 = vadd.f32 %v8146, %v8233
      %v8263 = vadd.f32 %v8149, %v8234
      %v8264 = vadd.f32 %v8154, %v8235
      %v8265 = vadd.f32 %v8157, %v8236
      %v8266 = vadd.f32 %v8162, %v8237
      %v8267 = vadd.f32 %v8165, %v8238
      %v8268 = vadd.f32 %v8170, %v8239
      %v8269 = vadd.f32 %v8173, %v8240
      %v8270 = vadd.f32 %v8178, %v8241
      %v8271 = vadd.f32 %v8181, %v8242
      %v8272 = vadd.f32 %v8186, %v8243
      %v8273 = vadd.f32 %v8189, %v8244
      %v8274 = vadd.f32 %v8194, %v8245
      %v8275 = vadd.f32 %v8197, %v8246
      %v8276 = vadd.f32 %v8202, %v8247
      %v8277 = vadd.f32 %v8205, %v8248
      %v8278 = vadd.f32 %v8210, %v8249
      %v8279 = vadd.f32 %v8213, %v8250
      %v8280 = vadd.f32 %v8218, %v8251
      %vm8281 = vcmask 7168
      %v8282 = vsel %vm8281, %v8252, -inf
      %v8283 = vsel %vm8281, %v8253, -inf
      %v8284 = vsel %vm8281, %v8254, -inf
      %v8285 = vsel %vm8281, %v8255, -inf
      %v8286 = vsel %vm8281, %v8256, -inf
      %v8287 = vmax.f32 %v8282, %v8286
      %v8288 = vsel %vm8281, %v8257, -inf
      %v8289 = vmax.f32 %v8283, %v8288
      %v8290 = vsel %vm8281, %v8258, -inf
      %v8291 = vmax.f32 %v8284, %v8290
      %v8292 = vsel %vm8281, %v8259, -inf
      %v8293 = vmax.f32 %v8285, %v8292
      %v8294 = vsel %vm8281, %v8260, -inf
      %v8295 = vmax.f32 %v8287, %v8294
      %v8296 = vsel %vm8281, %v8261, -inf
      %v8297 = vmax.f32 %v8289, %v8296
      %v8298 = vsel %vm8281, %v8262, -inf
      %v8299 = vmax.f32 %v8291, %v8298
      %v8300 = vsel %vm8281, %v8263, -inf
      %v8301 = vmax.f32 %v8293, %v8300
      %v8302 = vsel %vm8281, %v8264, -inf
      %v8303 = vmax.f32 %v8295, %v8302
      %v8304 = vsel %vm8281, %v8265, -inf
      %v8305 = vmax.f32 %v8297, %v8304
      %v8306 = vsel %vm8281, %v8266, -inf
      %v8307 = vmax.f32 %v8299, %v8306
      %v8308 = vsel %vm8281, %v8267, -inf
      %v8309 = vmax.f32 %v8301, %v8308
      %v8310 = vsel %vm8281, %v8268, -inf
      %v8311 = vmax.f32 %v8303, %v8310
      %v8312 = vsel %vm8281, %v8269, -inf
      %v8313 = vmax.f32 %v8305, %v8312
      %v8314 = vsel %vm8281, %v8270, -inf
      %v8315 = vmax.f32 %v8307, %v8314
      %v8316 = vsel %vm8281, %v8271, -inf
      %v8317 = vmax.f32 %v8309, %v8316
      %v8318 = vsel %vm8281, %v8272, -inf
      %v8319 = vmax.f32 %v8311, %v8318
      %v8320 = vsel %vm8281, %v8273, -inf
      %v8321 = vmax.f32 %v8313, %v8320
      %v8322 = vsel %vm8281, %v8274, -inf
      %v8323 = vmax.f32 %v8315, %v8322
      %v8324 = vsel %vm8281, %v8275, -inf
      %v8325 = vmax.f32 %v8317, %v8324
      %v8326 = vsel %vm8281, %v8276, -inf
      %v8327 = vmax.f32 %v8319, %v8326
      %v8328 = vsel %vm8281, %v8277, -inf
      %v8329 = vmax.f32 %v8321, %v8328
      %v8330 = vsel %vm8281, %v8278, -inf
      %v8331 = vmax.f32 %v8323, %v8330
      %v8332 = vsel %vm8281, %v8279, -inf
      %v8333 = vmax.f32 %v8325, %v8332
      %vm8334 = vcmask 0
      %v8335 = vsel %vm8334, %v8280, -inf
      %v8336 = vmax.f32 %v8327, %v8335
      %v8337 = vmax.f32 %v8336, %v8329
      %v8338 = vmax.f32 %v8331, %v8333
      %v8339 = vmax.f32 %v8337, %v8338
      %v8340 = vrot.slane %v8339, 4
      %v8341 = vmax.f32 %v8339, %v8340
      %v8342 = vrot.slane %v8341, 2
      %v8343 = vmax.f32 %v8341, %v8342
      %v8344 = vrot.slane %v8343, 1
      %v8345 = vmax.f32 %v8343, %v8344
      %v8346 = vsub.f32 %v8252, %v8345
      %v8347 = vsub.f32 %v8253, %v8345
      %v8348 = vsub.f32 %v8254, %v8345
      %v8349 = vsub.f32 %v8255, %v8345
      %v8350 = vsub.f32 %v8256, %v8345
      %v8351 = vsub.f32 %v8257, %v8345
      %v8352 = vsub.f32 %v8258, %v8345
      %v8353 = vsub.f32 %v8259, %v8345
      %v8354 = vsub.f32 %v8260, %v8345
      %v8355 = vsub.f32 %v8261, %v8345
      %v8356 = vsub.f32 %v8262, %v8345
      %v8357 = vsub.f32 %v8263, %v8345
      %v8358 = vsub.f32 %v8264, %v8345
      %v8359 = vsub.f32 %v8265, %v8345
      %v8360 = vsub.f32 %v8266, %v8345
      %v8361 = vsub.f32 %v8267, %v8345
      %v8362 = vsub.f32 %v8268, %v8345
      %v8363 = vsub.f32 %v8269, %v8345
      %v8364 = vsub.f32 %v8270, %v8345
      %v8365 = vsub.f32 %v8271, %v8345
      %v8366 = vsub.f32 %v8272, %v8345
      %v8367 = vsub.f32 %v8273, %v8345
      %v8368 = vsub.f32 %v8274, %v8345
      %v8369 = vsub.f32 %v8275, %v8345
      %v8370 = vsub.f32 %v8276, %v8345
      %v8371 = vsub.f32 %v8277, %v8345
      %v8372 = vsub.f32 %v8278, %v8345
      %v8373 = vsub.f32 %v8279, %v8345
      %v8374 = vsub.f32 %v8280, %v8345
      %v8375 = vmul.f32 %v8346, 1.442695
      %v8376 = vpow.pop %v8375
      %v8377 = vmul.f32 %v8347, 1.442695
      %v8378 = vpow.pop %v8377
      %v8379 = vmul.f32 %v8348, 1.442695
      %v8380 = vpow.pop %v8379
      %v8381 = vmul.f32 %v8349, 1.442695
      %v8382 = vpow.pop %v8381
      %v8383 = vmul.f32 %v8350, 1.442695
      %v8384 = vpow.pop %v8383
      %v8385 = vmul.f32 %v8351, 1.442695
      %v8386 = vpow.pop %v8385
      %v8387 = vmul.f32 %v8352, 1.442695
      %v8388 = vpow.pop %v8387
      %v8389 = vmul.f32 %v8353, 1.442695
      %v8390 = vpow.pop %v8389
      %v8391 = vmul.f32 %v8354, 1.442695
      %v8392 = vpow.pop %v8391
      %v8393 = vmul.f32 %v8355, 1.442695
      %v8394 = vpow.pop %v8393
      %v8395 = vmul.f32 %v8356, 1.442695
      %v8396 = vpow.pop %v8395
      %v8397 = vmul.f32 %v8357, 1.442695
      %v8398 = vpow.pop %v8397
      %v8399 = vmul.f32 %v8358, 1.442695
      %v8400 = vpow.pop %v8399
      %v8401 = vmul.f32 %v8359, 1.442695
      %v8402 = vpow.pop %v8401
      %v8403 = vmul.f32 %v8360, 1.442695
      %v8404 = vpow.pop %v8403
      %v8405 = vmul.f32 %v8361, 1.442695
      %v8406 = vpow.pop %v8405
      %v8407 = vmul.f32 %v8362, 1.442695
      %v8408 = vpow.pop %v8407
      %v8409 = vmul.f32 %v8363, 1.442695
      %v8410 = vpow.pop %v8409
      %v8411 = vmul.f32 %v8364, 1.442695
      %v8412 = vpow.pop %v8411
      %v8413 = vmul.f32 %v8365, 1.442695
      %v8414 = vpow.pop %v8413
      %v8415 = vmul.f32 %v8366, 1.442695
      %v8416 = vpow.pop %v8415
      %v8417 = vmul.f32 %v8367, 1.442695
      %v8418 = vpow.pop %v8417
      %v8419 = vmul.f32 %v8368, 1.442695
      %v8420 = vpow.pop %v8419
      %v8421 = vmul.f32 %v8369, 1.442695
      %v8422 = vpow.pop %v8421
      %v8423 = vmul.f32 %v8370, 1.442695
      %v8424 = vpow.pop %v8423
      %v8425 = vmul.f32 %v8371, 1.442695
      %v8426 = vpow.pop %v8425
      %v8427 = vmul.f32 %v8372, 1.442695
      %v8428 = vpow.pop %v8427
      %v8429 = vmul.f32 %v8373, 1.442695
      %v8430 = vpow.pop %v8429
      %v8431 = vmul.f32 %v8374, 1.442695
      %v8432 = vpow.pop %v8431
      %v8433 = vsel %vm8281, %v8376, 0.0
      %v8434 = vsel %vm8281, %v8378, 0.0
      %v8435 = vadd.f32 %v8433, %v8434
      %v8436 = vsel %vm8281, %v8380, 0.0
      %v8437 = vadd.f32 %v8435, %v8436
      %v8438 = vsel %vm8281, %v8382, 0.0
      %v8439 = vadd.f32 %v8437, %v8438
      %v8440 = vsel %vm8281, %v8384, 0.0
      %v8441 = vadd.f32 %v8439, %v8440
      %v8442 = vsel %vm8281, %v8386, 0.0
      %v8443 = vadd.f32 %v8441, %v8442
      %v8444 = vsel %vm8281, %v8388, 0.0
      %v8445 = vadd.f32 %v8443, %v8444
      %v8446 = vsel %vm8281, %v8390, 0.0
      %v8447 = vadd.f32 %v8445, %v8446
      %v8448 = vsel %vm8281, %v8392, 0.0
      %v8449 = vadd.f32 %v8447, %v8448
      %v8450 = vsel %vm8281, %v8394, 0.0
      %v8451 = vadd.f32 %v8449, %v8450
      %v8452 = vsel %vm8281, %v8396, 0.0
      %v8453 = vadd.f32 %v8451, %v8452
      %v8454 = vsel %vm8281, %v8398, 0.0
      %v8455 = vadd.f32 %v8453, %v8454
      %v8456 = vsel %vm8281, %v8400, 0.0
      %v8457 = vadd.f32 %v8455, %v8456
      %v8458 = vsel %vm8281, %v8402, 0.0
      %v8459 = vadd.f32 %v8457, %v8458
      %v8460 = vsel %vm8281, %v8404, 0.0
      %v8461 = vadd.f32 %v8459, %v8460
      %v8462 = vsel %vm8281, %v8406, 0.0
      %v8463 = vadd.f32 %v8461, %v8462
      %v8464 = vsel %vm8281, %v8408, 0.0
      %v8465 = vadd.f32 %v8463, %v8464
      %v8466 = vsel %vm8281, %v8410, 0.0
      %v8467 = vadd.f32 %v8465, %v8466
      %v8468 = vsel %vm8281, %v8412, 0.0
      %v8469 = vadd.f32 %v8467, %v8468
      %v8470 = vsel %vm8281, %v8414, 0.0
      %v8471 = vadd.f32 %v8469, %v8470
      %v8472 = vsel %vm8281, %v8416, 0.0
      %v8473 = vadd.f32 %v8471, %v8472
      %v8474 = vsel %vm8281, %v8418, 0.0
      %v8475 = vadd.f32 %v8473, %v8474
      %v8476 = vsel %vm8281, %v8420, 0.0
      %v8477 = vadd.f32 %v8475, %v8476
      %v8478 = vsel %vm8281, %v8422, 0.0
      %v8479 = vadd.f32 %v8477, %v8478
      %v8480 = vsel %vm8281, %v8424, 0.0
      %v8481 = vadd.f32 %v8479, %v8480
      %v8482 = vsel %vm8281, %v8426, 0.0
      %v8483 = vadd.f32 %v8481, %v8482
      %v8484 = vsel %vm8281, %v8428, 0.0
      %v8485 = vadd.f32 %v8483, %v8484
      %v8486 = vsel %vm8281, %v8430, 0.0
      %v8487 = vadd.f32 %v8485, %v8486
      %v8488 = vsel %vm8334, %v8432, 0.0
      %v8489 = vadd.f32 %v8487, %v8488
      %v8490 = vrot.slane %v8489, 4
      %v8491 = vadd.f32 %v8489, %v8490
      %v8492 = vrot.slane %v8491, 2
      %v8493 = vadd.f32 %v8491, %v8492
      %v8494 = vrot.slane %v8493, 1
      %v8495 = vadd.f32 %v8493, %v8494
      %v8496 = vrcp.pop %v8495
      %v8497 = vmul.f32 %v8376, %v8496
      %v8498 = vmul.f32 %v8378, %v8496
      %v8499 = vmul.f32 %v8380, %v8496
      %v8500 = vmul.f32 %v8382, %v8496
      %v8501 = vmul.f32 %v8384, %v8496
      %v8502 = vmul.f32 %v8386, %v8496
      %v8503 = vmul.f32 %v8388, %v8496
      %v8504 = vmul.f32 %v8390, %v8496
      %v8505 = vmul.f32 %v8392, %v8496
      %v8506 = vmul.f32 %v8394, %v8496
      %v8507 = vmul.f32 %v8396, %v8496
      %v8508 = vmul.f32 %v8398, %v8496
      %v8509 = vmul.f32 %v8400, %v8496
      %v8510 = vmul.f32 %v8402, %v8496
      %v8511 = vmul.f32 %v8404, %v8496
      %v8512 = vmul.f32 %v8406, %v8496
      %v8513 = vmul.f32 %v8408, %v8496
      %v8514 = vmul.f32 %v8410, %v8496
      %v8515 = vmul.f32 %v8412, %v8496
      %v8516 = vmul.f32 %v8414, %v8496
      %v8517 = vmul.f32 %v8416, %v8496
      %v8518 = vmul.f32 %v8418, %v8496
      %v8519 = vmul.f32 %v8420, %v8496
      %v8520 = vmul.f32 %v8422, %v8496
      %v8521 = vmul.f32 %v8424, %v8496
      %v8522 = vmul.f32 %v8426, %v8496
      %v8523 = vmul.f32 %v8428, %v8496
      %v8524 = vmul.f32 %v8430, %v8496
      %v8525 = vmul.f32 %v8432, %v8496
      %8526 = vst.msk [vmem:[%s556] sm:$0xff] %vm8281, %v8497
      %8527 = vst.msk [vmem:[%s556 + $0x8] sm:$0xff] %vm8281, %v8498
      %8528 = vst.msk [vmem:[%s556 + $0x10] sm:$0xff] %vm8281, %v8499
      %8529 = vst.msk [vmem:[%s556 + $0x18] sm:$0xff] %vm8281, %v8500
      %8530 = vst.msk [vmem:[%s556 + $0x20] sm:$0xff] %vm8281, %v8501
      %8531 = vst.msk [vmem:[%s556 + $0x28] sm:$0xff] %vm8281, %v8502
      %8532 = vst.msk [vmem:[%s556 + $0x30] sm:$0xff] %vm8281, %v8503
      %8533 = vst.msk [vmem:[%s556 + $0x38] sm:$0xff] %vm8281, %v8504
      %8534 = vst.msk [vmem:[%s556 + $0x40] sm:$0xff] %vm8281, %v8505
      %8535 = vst.msk [vmem:[%s556 + $0x48] sm:$0xff] %vm8281, %v8506
      %8536 = vst.msk [vmem:[%s556 + $0x50] sm:$0xff] %vm8281, %v8507
      %8537 = vst.msk [vmem:[%s556 + $0x58] sm:$0xff] %vm8281, %v8508
      %8538 = vst.msk [vmem:[%s556 + $0x60] sm:$0xff] %vm8281, %v8509
      %8539 = vst.msk [vmem:[%s556 + $0x68] sm:$0xff] %vm8281, %v8510
      %8540 = vst.msk [vmem:[%s556 + $0x70] sm:$0xff] %vm8281, %v8511
      %8541 = vst.msk [vmem:[%s556 + $0x78] sm:$0xff] %vm8281, %v8512
      %8542 = vst.msk [vmem:[%s556 + $0x80] sm:$0xff] %vm8281, %v8513
      %8543 = vst.msk [vmem:[%s556 + $0x88] sm:$0xff] %vm8281, %v8514
      %8544 = vst.msk [vmem:[%s556 + $0x90] sm:$0xff] %vm8281, %v8515
      %8545 = vst.msk [vmem:[%s556 + $0x98] sm:$0xff] %vm8281, %v8516
      %8546 = vst.msk [vmem:[%s556 + $0xa0] sm:$0xff] %vm8281, %v8517
      %8547 = vst.msk [vmem:[%s556 + $0xa8] sm:$0xff] %vm8281, %v8518
      %8548 = vst.msk [vmem:[%s556 + $0xb0] sm:$0xff] %vm8281, %v8519
      %8549 = vst.msk [vmem:[%s556 + $0xb8] sm:$0xff] %vm8281, %v8520
      %8550 = vst.msk [vmem:[%s556 + $0xc0] sm:$0xff] %vm8281, %v8521
      %8551 = vst.msk [vmem:[%s556 + $0xc8] sm:$0xff] %vm8281, %v8522
      %8552 = vst.msk [vmem:[%s556 + $0xd0] sm:$0xff] %vm8281, %v8523
      %8553 = vst.msk [vmem:[%s556 + $0xd8] sm:$0xff] %vm8281, %v8524
      %8554 = vst.msk [vmem:[%s556 + $0xe0] sm:$0x1] %vm8334, %v8525
      %v8555 = vld [vmem:[%s12] sm:$0xff]
      %v8556 = vld [vmem:[%s12 + $0x8] sm:$0xff]
      %v8557 = vld [vmem:[%s12 + $0x10] sm:$0xff]
      %v8558 = vld [vmem:[%s12 + $0x18] sm:$0xff]
      %v8559 = vld [vmem:[%s12 + $0x20] sm:$0xff]
      %v8560 = vld [vmem:[%s12 + $0x28] sm:$0xff]
      %v8561 = vld [vmem:[%s12 + $0x30] sm:$0xff]
      %v8562 = vld [vmem:[%s12 + $0x38] sm:$0xff]
      %v8563 = vld [vmem:[%s13] sm:$0xff]
      %v8564 = vld [vmem:[%s13 + $0x8] sm:$0xff]
      %v8565 = vld [vmem:[%s13 + $0x10] sm:$0xff]
      %v8566 = vld [vmem:[%s13 + $0x18] sm:$0xff]
      %v8567 = vld [vmem:[%s13 + $0x20] sm:$0xff]
      %v8568 = vld [vmem:[%s13 + $0x28] sm:$0xff]
      %v8569 = vld [vmem:[%s13 + $0x30] sm:$0xff]
      %v8570 = vld [vmem:[%s13 + $0x38] sm:$0xff]
      %v8579 = vunpack.c.l.b16 %v8555
      %v8580 = vunpack.c.h.b16 %v8555
      %v8581 = vunpack.c.l.b16 %v8556
      %v8582 = vunpack.c.h.b16 %v8556
      %v8583 = vunpack.c.l.b16 %v8557
      %v8584 = vunpack.c.h.b16 %v8557
      %v8585 = vunpack.c.l.b16 %v8558
      %v8586 = vunpack.c.h.b16 %v8558
      %v8587 = vunpack.c.l.b16 %v8559
      %v8588 = vunpack.c.h.b16 %v8559
      %v8589 = vunpack.c.l.b16 %v8560
      %v8590 = vunpack.c.h.b16 %v8560
      %v8591 = vunpack.c.l.b16 %v8561
      %v8592 = vunpack.c.h.b16 %v8561
      %v8593 = vunpack.c.l.b16 %v8562
      %v8594 = vunpack.c.h.b16 %v8562
      %v8595 = vpack.c.b16 %v8581, %v8579
      %v8596 = vpack.c.b16 %v8582, %v8580
      %v8597 = vpack.c.b16 %v8585, %v8583
      %v8598 = vpack.c.b16 %v8586, %v8584
      %v8599 = vpack.c.b16 %v8589, %v8587
      %v8600 = vpack.c.b16 %v8590, %v8588
      %v8601 = vpack.c.b16 %v8593, %v8591
      %v8602 = vpack.c.b16 %v8594, %v8592
      %8611 = vrot.lane.b32.xlu0 %v7692, 126
      %v8612 = vpop.permute.xlu0 %8611
      %8613 = vrot.lane.b32.xlu0 %v7693, 126
      %v8614 = vpop.permute.xlu0 %8613
      %8615 = vrot.lane.b32.xlu0 %v7694, 126
      %v8616 = vpop.permute.xlu0 %8615
      %8617 = vrot.lane.b32.xlu0 %v7695, 126
      %v8618 = vpop.permute.xlu0 %8617
      %8619 = vrot.lane.b32.xlu0 %v7696, 126
      %v8620 = vpop.permute.xlu0 %8619
      %8621 = vrot.lane.b32.xlu0 %v7697, 126
      %v8622 = vpop.permute.xlu0 %8621
      %8623 = vrot.lane.b32.xlu0 %v7698, 126
      %v8624 = vpop.permute.xlu0 %8623
      %8625 = vrot.lane.b32.xlu0 %v7699, 126
      %v8626 = vpop.permute.xlu0 %8625
      %8627 = vrot.lane.b32.xlu0 %v7700, 126
      %v8628 = vpop.permute.xlu0 %8627
      %8629 = vrot.lane.b32.xlu0 %v7701, 126
      %v8630 = vpop.permute.xlu0 %8629
      %8631 = vrot.lane.b32.xlu0 %v7702, 126
      %v8632 = vpop.permute.xlu0 %8631
      %8633 = vrot.lane.b32.xlu0 %v7703, 126
      %v8634 = vpop.permute.xlu0 %8633
      %8635 = vrot.lane.b32.xlu0 %v7704, 126
      %v8636 = vpop.permute.xlu0 %8635
      %8637 = vrot.lane.b32.xlu0 %v7705, 126
      %v8638 = vpop.permute.xlu0 %8637
      %8639 = vrot.lane.b32.xlu0 %v7706, 126
      %v8640 = vpop.permute.xlu0 %8639
      %8641 = vrot.lane.b32.xlu0 %v7707, 126
      %v8642 = vpop.permute.xlu0 %8641
      %8659 = vmatprep.subr.bf16.mxu0 0
      %8660 = vmatpush1.bf16.msra.mxu0 %v8626
      %8661 = vmatprep.subr.bf16.mxu0 0
      %8662 = vmatpush1.bf16.msra.mxu0 %v8624
      %8663 = vmatprep.subr.bf16.mxu0 0
      %8664 = vmatpush1.bf16.msra.mxu0 %v8622
      %8665 = vmatprep.subr.bf16.mxu0 0
      %8666 = vmatpush1.bf16.msra.mxu0 %v8620
      %8667 = vmatprep.subr.bf16.mxu0 0
      %8668 = vmatpush1.bf16.msra.mxu0 %v8618
      %8669 = vmatprep.subr.bf16.mxu0 0
      %8670 = vmatpush1.bf16.msra.mxu0 %v8616
      %8671 = vmatprep.subr.bf16.mxu0 0
      %8672 = vmatpush1.bf16.msra.mxu0 %v8614
      %8673 = vmatprep.subr.bf16.mxu0 0
      %8674 = vmatpush1.bf16.msra.mxu0 %v8612
      %8675 = vmatprep.subr.bf16.mxu0 0
      %8676 = vmatpush2.bf16.msra.mxu0 %v8642
      %8677 = vmatprep.subr.bf16.mxu0 0
      %8678 = vmatpush2.bf16.msra.mxu0 %v8640
      %8679 = vmatprep.subr.bf16.mxu0 0
      %8680 = vmatpush2.bf16.msra.mxu0 %v8638
      %8681 = vmatprep.subr.bf16.mxu0 0
      %8682 = vmatpush2.bf16.msra.mxu0 %v8636
      %8683 = vmatprep.subr.bf16.mxu0 0
      %8684 = vmatpush2.bf16.msra.mxu0 %v8634
      %8685 = vmatprep.subr.bf16.mxu0 0
      %8686 = vmatpush2.bf16.msra.mxu0 %v8632
      %8687 = vmatprep.subr.bf16.mxu0 0
      %8688 = vmatpush2.bf16.msra.mxu0 %v8630
      %8689 = vmatprep.subr.bf16.mxu0 0
      %8690 = vmatpush2.bf16.msra.mxu0 %v8628
      %8691 = vmatprep.mubr.bf16.mxu0 %v8596
      %8692 = vmatmul.mubr.bf16.gmra.mxu0 %v8595
      %v8693 = vpop.f32.mrf.mxu0
      %v8694 = vadd.f32 %v8563, %v8693
      %v8695 = vpop.f32.mrf.mxu0
      %v8696 = vpop.f32.mrf.mxu0
      %v8697 = vadd.f32 %v8564, %v8696
      %v8698 = vpop.f32.mrf.mxu0
      %8699 = vmatprep.mubr.bf16.mxu0 %v8598
      %8700 = vmatmul.mubr.bf16.gmra.mxu0 %v8597
      %v8701 = vpop.f32.mrf.mxu0
      %v8702 = vadd.f32 %v8565, %v8701
      %v8703 = vpop.f32.mrf.mxu0
      %v8704 = vpop.f32.mrf.mxu0
      %v8705 = vadd.f32 %v8566, %v8704
      %v8706 = vpop.f32.mrf.mxu0
      %8707 = vmatprep.mubr.bf16.mxu0 %v8600
      %8708 = vmatmul.mubr.bf16.gmra.mxu0 %v8599
      %v8709 = vpop.f32.mrf.mxu0
      %v8710 = vadd.f32 %v8567, %v8709
      %v8711 = vpop.f32.mrf.mxu0
      %v8712 = vpop.f32.mrf.mxu0
      %v8713 = vadd.f32 %v8568, %v8712
      %v8714 = vpop.f32.mrf.mxu0
      %8715 = vmatprep.mubr.bf16.mxu0 %v8602
      %8716 = vmatmul.mubr.bf16.gmra.mxu0 %v8601
      %v8717 = vpop.f32.mrf.mxu0
      %v8718 = vadd.f32 %v8569, %v8717
      %v8719 = vpop.f32.mrf.mxu0
      %v8720 = vpop.f32.mrf.mxu0
      %v8721 = vadd.f32 %v8570, %v8720
      %v8722 = vpop.f32.mrf.mxu0
      %8723 = vdwg.mxu0
      %v8724 = vmax.f32 %v8694, 0.0
      %v8725 = vmax.f32 %v8697, 0.0
      %v8726 = vmax.f32 %v8702, 0.0
      %v8727 = vmax.f32 %v8705, 0.0
      %v8728 = vmax.f32 %v8710, 0.0
      %v8729 = vmax.f32 %v8713, 0.0
      %v8730 = vmax.f32 %v8718, 0.0
      %v8731 = vmax.f32 %v8721, 0.0
      %v8732 = vld [vmem:[%s14] sm:$0xff]
      %v8733 = vld [vmem:[%s14 + $0x8] sm:$0xff]
      %v8734 = vld [vmem:[%s14 + $0x10] sm:$0xff]
      %v8735 = vld [vmem:[%s14 + $0x18] sm:$0xff]
      %v8736 = vld [vmem:[%s14 + $0x20] sm:$0xff]
      %v8737 = vld [vmem:[%s14 + $0x28] sm:$0xff]
      %v8738 = vld [vmem:[%s14 + $0x30] sm:$0xff]
      %v8739 = vld [vmem:[%s14 + $0x38] sm:$0xff]
      %v8740 = vmul.f32 %v8732, %v8724
      %v8741 = vmul.f32 %v8733, %v8725
      %v8742 = vmul.f32 %v8734, %v8726
      %v8743 = vmul.f32 %v8735, %v8727
      %v8744 = vmul.f32 %v8736, %v8728
      %v8745 = vmul.f32 %v8737, %v8729
      %v8746 = vmul.f32 %v8738, %v8730
      %v8747 = vmul.f32 %v8739, %v8731
      %v8748 = vsel %vm8281, %v8740, 0.0
      %v8749 = vsel %vm8281, %v8741, 0.0
      %v8750 = vadd.f32 %v8748, %v8749
      %v8751 = vsel %vm8281, %v8742, 0.0
      %v8752 = vadd.f32 %v8750, %v8751
      %v8753 = vsel %vm8281, %v8743, 0.0
      %v8754 = vadd.f32 %v8752, %v8753
      %v8755 = vsel %vm8281, %v8744, 0.0
      %v8756 = vadd.f32 %v8754, %v8755
      %v8757 = vsel %vm8281, %v8745, 0.0
      %v8758 = vadd.f32 %v8756, %v8757
      %v8759 = vsel %vm8281, %v8746, 0.0
      %v8760 = vadd.f32 %v8758, %v8759
      %v8761 = vsel %vm8281, %v8747, 0.0
      %v8762 = vadd.f32 %v8760, %v8761
      %v8763 = vrot.slane %v8762, 4
      %v8764 = vadd.f32 %v8762, %v8763
      %v8765 = vrot.slane %v8764, 2
      %v8766 = vadd.f32 %v8764, %v8765
      %v8767 = vrot.slane %v8766, 1
      %v8768 = vadd.f32 %v8766, %v8767
      %v8769 = vld [vmem:[#allocation5] sm:$0x1]
      %v8770 = vadd.f32 %v8768, %v8769
      %v8771 = vtanh.pop %v8770
      %8772 = vst.msk [vmem:[%s559] sm:$0x1] %vm8334, %v8771
      %p8773 = scmp.lt.s32.totalorder %s31, 1
      %s8774 = scalar_select %p8773, %s31, 1
      %s8775 = smul.addr %s8774, 29
      %s8776 = smul.addr %s8775, 8
      %s8777 = scalar_lea.vmem %s16, %s8776
      %p8778 = scmp.lt.s32.totalorder %s31, 1
      %s8779 = scalar_select %p8778, %s31, 1
      %s8780 = scalar_lea.vmem %s17, %s8779
      // Predicated region
      $region85: #{alphazero_forward.1} parent=83 // pred_check
        %p8781 = pneg %p390
      $region86: #{alphazero_forward.1} parent=83 // pred_check_branch
        %8783 = sbr.rel (%p8781) target = $region88
      $region87: #{alphazero_forward.1} parent=83 // pred_region
        _
      $region88: #{alphazero_forward.1} parent=83 // pred_fallthru
        _
      // Predicated region
      $region89: #{alphazero_forward.1} parent=83 // pred_check
        %p8784 = pneg %p416
      $region90: #{alphazero_forward.1} parent=83 // pred_check_branch
        %8786 = sbr.rel (%p8784) target = $region92
      $region91: #{alphazero_forward.1} parent=83 // pred_region
        _
      $region92: #{alphazero_forward.1} parent=83 // pred_fallthru
        _
    $region84: #{alphazero_forward.1} parent=5 // pred_fallthru
      _
    %p8787 = scmp.le.s32.totalorder 2, %s26
    // Predicated region
    $region93: #{alphazero_forward.1} parent=5 // pred_check
      %p8788 = pneg %p8787
    $region94: #{alphazero_forward.1} parent=5 // pred_check_branch
      %8790 = sbr.rel (%p8788) target = $region96
    $region95: #{alphazero_forward.1} parent=5 // pred_region
      %s8791 = ssub.s32 %s26, 2
      // Predicated region
      $region97: #{alphazero_forward.1} parent=95 // pred_check
        %p8792 = pneg %p396
      $region98: #{alphazero_forward.1} parent=95 // pred_check_branch
        %8794 = sbr.rel (%p8792) target = $region100
      $region99: #{alphazero_forward.1} parent=95 // pred_region
        %p8795 = scmp.lt.s32.totalorder %s32, 1
        %s8796 = scalar_select %p8795, %s32, 1
        %s8797 = smul.addr %s8796, 29
        %s8798 = smul.addr %s8797, 8
        %s8799 = scalar_lea.vmem %s16, %s8798
      $region100: #{alphazero_forward.1} parent=95 // pred_fallthru
        _
      // Predicated region
      $region101: #{alphazero_forward.1} parent=95 // pred_check
        %p8800 = pneg %p422
      $region102: #{alphazero_forward.1} parent=95 // pred_check_branch
        %8802 = sbr.rel (%p8800) target = $region104
      $region103: #{alphazero_forward.1} parent=95 // pred_region
        %p8803 = scmp.lt.s32.totalorder %s32, 1
        %s8804 = scalar_select %p8803, %s32, 1
        %s8805 = scalar_lea.vmem %s17, %s8804
      $region104: #{alphazero_forward.1} parent=95 // pred_fallthru
        _
    $region96: #{alphazero_forward.1} parent=5 // pred_fallthru
      _
  $region6: #{alphazero_forward.1} parent=0 // loop_footer
    %s30 = sadd.s32 1, %s26
  $region7: #{alphazero_forward.1} parent=0 // loop_footer_branch
    %25 = sbr.rel target = $region3
  $region8: #{alphazero_forward.1} parent=0 // loop_exit
    _

</llo_original>
